<compile_context>
chip_gen: v6e
topology: v6e:2x2x1
jax: 0.10.0
libtpu: 0.0.40
codegen_flags: <defaults>
</compile_context>

<pallas_src>
import functools

import jax
import jax.numpy as jnp
from jax.experimental import pallas as pl
from jax.experimental.pallas import tpu as pltpu

LN_EPS = 1e-5  # torch.nn.LayerNorm default


# --------------------------------------------------------------------------
# Fused kernel
# --------------------------------------------------------------------------
def _layernorm(x, gamma, beta):
    mu = jnp.mean(x, axis=-1, keepdims=True)
    var = jnp.mean(jnp.square(x - mu), axis=-1, keepdims=True)
    return (x - mu) * jax.lax.rsqrt(var + LN_EPS) * gamma + beta


def _channel_block_kernel(
        x_ref,
        dw1_w_ref, dw1_b_ref,
        ln1_g_ref, ln1_b_ref, wqkv_ref, bqkv_ref, wp_ref, bp_ref, mask_ref,
        dw2_w_ref, dw2_b_ref,
        ln2_g_ref, ln2_b_ref, w1_ref, b1_ref, w2_ref, b2_ref,
        o_ref,
        xp_ref,                      # VMEM scratch [(N + 2*pad), C] f32
        *, H, W, pad, with_conv1, with_conv2):
    N = H * W
    C = x_ref.shape[-1]
    x = x_ref[0].astype(jnp.float32)                     # [N, C]

    use_conv = with_conv1 or with_conv2
    if use_conv:
        # Zero once per invocation: halo rows stay zero, the interior is
        # overwritten by each conv stage.  (Unconditional => megacore-safe.)
        xp_ref[...] = jnp.zeros_like(xp_ref)
        # Column-validity masks for the horizontal taps (does w-1 / w+1 exist).
        w_idx = jax.lax.broadcasted_iota(jnp.int32, (N, 1), 0) % W
        has_left = jnp.where(w_idx > 0, 1.0, 0.0)
        has_right = jnp.where(w_idx < W - 1, 1.0, 0.0)
        col_masks = (has_left, None, has_right)          # dj = 0, 1, 2

    def dwconv(xin, w_ref, b_ref):
        """Depthwise 3x3 (pad=1, stride=1) on xin viewed as [H, W, C], done in
        the flat [N, C] layout via sublane shifts of a zero-haloed copy."""
        xp_ref[pad:pad + N, :] = xin                     # aligned interior write
        acc = jnp.zeros((N, C), jnp.float32) + b_ref[...]
        for dj in range(3):
            oj = dj - 1
            grp = jnp.zeros((N, C), jnp.float32)
            for di in range(3):
                shift = (di - 1) * W + oj                # row shift handled by halo zeros
                win = xp_ref[pad + shift:pad + shift + N, :]
                grp = grp + win * w_ref[di * 3 + dj:di * 3 + dj + 1, :]
            if col_masks[dj] is not None:                # mask row-wrap of w+-1
                grp = grp * col_masks[dj]
            acc = acc + grp
        return acc

    # ---- stage 1: x = x + dwconv1(x) -------------------------------------
    if with_conv1:
        x = x + dwconv(x, dw1_w_ref, dw1_b_ref)

    # ---- stage 2: x = x + proj(channel_attn(layernorm(x))) ---------------
    ln = _layernorm(x, ln1_g_ref[...], ln1_b_ref[...])
    qkv = jnp.dot(ln.astype(jnp.bfloat16), wqkv_ref[...],
                  preferred_element_type=jnp.float32) + bqkv_ref[...]
    q = qkv[:, 0:C].astype(jnp.bfloat16)
    k = qkv[:, C:2 * C].astype(jnp.bfloat16)
    v = qkv[:, 2 * C:3 * C].astype(jnp.bfloat16)

    # Per-group (Cg x Cg) attention as one [C, C] score matrix with a
    # precomputed block-diagonal additive mask: s[i, j] = sum_n q[n,i]*k[n,j].
    s = jax.lax.dot_general(q, k, (((0,), (0,)), ((), ())),
                            preferred_element_type=jnp.float32)       # [C, C]
    s = s * (float(N) ** -0.5) + mask_ref[...]
    s = s - jnp.max(s, axis=-1, keepdims=True)
    e = jnp.exp(s)
    a = (e / jnp.sum(e, axis=-1, keepdims=True)).astype(jnp.bfloat16)

    # out[n, i] = sum_j a[i, j] * v[n, j]
    attn = jax.lax.dot_general(v, a, (((1,), (1,)), ((), ())),
                               preferred_element_type=jnp.float32)    # [N, C]
    proj = jnp.dot(attn.astype(jnp.bfloat16), wp_ref[...],
                   preferred_element_type=jnp.float32) + bp_ref[...]
    x = x + proj

    # ---- stage 3: x = x + dwconv2(x) -------------------------------------
    if with_conv2:
        x = x + dwconv(x, dw2_w_ref, dw2_b_ref)

    # ---- stage 4: x = x + mlp(layernorm(x)) -------------------------------
    ln = _layernorm(x, ln2_g_ref[...], ln2_b_ref[...])
    h = jnp.dot(ln.astype(jnp.bfloat16), w1_ref[...],
                preferred_element_type=jnp.float32) + b1_ref[...]
    h = jax.nn.gelu(h, approximate=True)   # torch default is erf; ~1e-3 diff
    y = jnp.dot(h.astype(jnp.bfloat16), w2_ref[...],
                preferred_element_type=jnp.float32) + b2_ref[...]
    o_ref[0] = (x + y).astype(o_ref.dtype)


# --------------------------------------------------------------------------
# Wrapper
# --------------------------------------------------------------------------
def channel_block_forward(x, size, kp, *, conv_at_attn=True, conv_at_ffn=True):
    """x: [B, N, C]; size: (H, W) with N == H*W.  Returns [B, N, C]."""
    H, W = size
    B, N, C = x.shape
    assert N == H * W
    pad = ((W + 8) // 8) * 8          # sublane-aligned zero halo, >= W + 1

    kernel = functools.partial(
        _channel_block_kernel, H=H, W=W, pad=pad,
        with_conv1=conv_at_attn, with_conv2=conv_at_ffn)

    weights = (
        kp["dw1_w"], kp["dw1_b"],
        kp["ln1_g"], kp["ln1_b"], kp["wqkv"], kp["bqkv"], kp["wp"], kp["bp"],
        kp["attn_mask"],
        kp["dw2_w"], kp["dw2_b"],
        kp["ln2_g"], kp["ln2_b"], kp["w1"], kp["b1"], kp["w2"], kp["b2"],
    )

    def w_spec(arr):                  # whole (2-D) array, constant block index
        return pl.BlockSpec(arr.shape, lambda b: (0, 0))

    return pl.pallas_call(
        kernel,
        out_shape=jax.ShapeDtypeStruct((B, N, C), x.dtype),
        grid=(B,),
        in_specs=[pl.BlockSpec((1, N, C), lambda b: (b, 0, 0))]
                 + [w_spec(w) for w in weights],
        out_specs=pl.BlockSpec((1, N, C), lambda b: (b, 0, 0)),
        scratch_shapes=[pltpu.VMEM((N + 2 * pad, C), jnp.float32)],
        compiler_params=pltpu.CompilerParams(
            dimension_semantics=("parallel",)),
    )(x, *weights)


# --------------------------------------------------------------------------
# Module
# --------------------------------------------------------------------------
class ChannelBlock:
    """JAX/Pallas port of florence2's ChannelBlock (forward semantics kept).

    Linear weights stored as [in, out] (y = x @ W + b); depthwise conv weights
    stored as [3, 3, C]; drop_path_rate = 0 (identity).
    """

    def __init__(self, dim, groups, mlp_ratio=4.0, qkv_bias=True,
                 conv_at_attn=True, conv_at_ffn=True, *, key):
        assert dim % groups == 0
        self.dim = dim
        self.groups = groups
        self.conv_at_attn = conv_at_attn
        self.conv_at_ffn = conv_at_ffn
        hidden = int(dim * mlp_ratio)
        self.hidden = hidden
        ks = iter(jax.random.split(key, 24))
        s = 0.08

        def nrm(shape):
            return s * jax.random.normal(next(ks), shape, jnp.float32)

        self.p = dict(
            dw1_w=nrm((3, 3, dim)), dw1_b=nrm((dim,)),
            ln1_g=1.0 + nrm((dim,)), ln1_b=nrm((dim,)),
            wq=nrm((dim, dim)), bq=nrm((dim,)) if qkv_bias else jnp.zeros((dim,)),
            wk=nrm((dim, dim)), bk=nrm((dim,)) if qkv_bias else jnp.zeros((dim,)),
            wv=nrm((dim, dim)), bv=nrm((dim,)) if qkv_bias else jnp.zeros((dim,)),
            wp=nrm((dim, dim)), bp=nrm((dim,)),
            dw2_w=nrm((3, 3, dim)), dw2_b=nrm((dim,)),
            ln2_g=1.0 + nrm((dim,)), ln2_b=nrm((dim,)),
            w1=nrm((dim, hidden)), b1=nrm((hidden,)),
            w2=nrm((hidden, dim)), b2=nrm((dim,)),
        )

        # Kernel-ready parameters: fused QKV, bf16 matmul weights, 2-D biases,
        # flattened depthwise taps and the precomputed block-diagonal softmax
        # mask.  Built once, outside the hot path.
        p = self.p
        row = lambda v: v.reshape(1, -1)
        cg = dim // groups
        gid = jnp.arange(dim) // cg
        self.kp = dict(
            dw1_w=p["dw1_w"].reshape(9, dim), dw1_b=row(p["dw1_b"]),
            ln1_g=row(p["ln1_g"]), ln1_b=row(p["ln1_b"]),
            wqkv=jnp.concatenate([p["wq"], p["wk"], p["wv"]],
                                 axis=1).astype(jnp.bfloat16),
            bqkv=row(jnp.concatenate([p["bq"], p["bk"], p["bv"]])),
            wp=p["wp"].astype(jnp.bfloat16), bp=row(p["bp"]),
            attn_mask=jnp.where(gid[:, None] == gid[None, :],
                                0.0, -1e30).astype(jnp.float32),
            dw2_w=p["dw2_w"].reshape(9, dim), dw2_b=row(p["dw2_b"]),
            ln2_g=row(p["ln2_g"]), ln2_b=row(p["ln2_b"]),
            w1=p["w1"].astype(jnp.bfloat16), b1=row(p["b1"]),
            w2=p["w2"].astype(jnp.bfloat16), b2=row(p["b2"]),
        )

    def __call__(self, x, size):
        out = channel_block_forward(
            x, size, self.kp,
            conv_at_attn=self.conv_at_attn, conv_at_ffn=self.conv_at_ffn)
        return out, size  # 3x3 / pad 1 / stride 1 keeps (H, W) unchanged


# --------------------------------------------------------------------------
# Plain-JAX reference (for validation)
# --------------------------------------------------------------------------
def ref_channel_block(x, size, p, groups):
    HIGH = jax.lax.Precision.HIGHEST
    H, W = size
    B, N, C = x.shape
    cg = C // groups

    def mm(a, b):
        return jnp.matmul(a, b, precision=HIGH)

    def dwconv(t, w, b):
        ti = t.reshape(B, H, W, C)
        wk = w.reshape(3, 3, 1, C)
        y = jax.lax.conv_general_dilated(
            ti, wk, (1, 1), "SAME",
            dimension_numbers=("NHWC", "HWIO", "NHWC"),
            feature_group_count=C, precision=HIGH)
        return (y + b).reshape(B, N, C)

    def ln(t, g, b):
        mu = t.mean(-1, keepdims=True)
        var = ((t - mu) ** 2).mean(-1, keepdims=True)
        return (t - mu) / jnp.sqrt(var + LN_EPS) * g + b

    x = x + dwconv(x, p["dw1_w"], p["dw1_b"])

    h = ln(x, p["ln1_g"], p["ln1_b"])
    q = mm(h, p["wq"]) + p["bq"]
    k = mm(h, p["wk"]) + p["bk"]
    v = mm(h, p["wv"]) + p["bv"]

    def grp(t):
        return t.reshape(B, N, groups, cg).transpose(0, 2, 1, 3)

    qg = grp(q) * (float(N) ** -0.5)
    kg, vg = grp(k), grp(v)
    attn = jnp.einsum("bgni,bgnj->bgij", qg, kg, precision=HIGH)
    attn = jax.nn.softmax(attn, axis=-1)
    out = jnp.einsum("bgij,bgnj->bgni", attn, vg, precision=HIGH)
    out = out.transpose(0, 2, 1, 3).reshape(B, N, C)
    x = x + (mm(out, p["wp"]) + p["bp"])

    x = x + dwconv(x, p["dw2_w"], p["dw2_b"])

    h = ln(x, p["ln2_g"], p["ln2_b"])
    h = mm(h, p["w1"]) + p["b1"]
    h = jax.nn.gelu(h, approximate=True)
    x = x + (mm(h, p["w2"]) + p["b2"])
    return x, size


# --------------------------------------------------------------------------
if __name__ == "__main__":
    B, dim, H, W, groups = 2, 32, 16, 16, 8
    N = H * W

    key = jax.random.PRNGKey(0)
    kx, kp = jax.random.split(key)
    x = jax.random.normal(kx, (B, N, dim), dtype=jnp.float32)

    block = ChannelBlock(dim, groups, mlp_ratio=4.0, key=kp)

    out, out_size = block(x, (H, W))
    out = jax.block_until_ready(out)
    assert out.shape == (B, N, dim), out.shape
    assert out_size == (H, W), out_size

    ref, _ = ref_channel_block(x, (H, W), block.p, groups)
    max_err = float(jnp.max(jnp.abs(out - ref)))
    assert jnp.allclose(out, ref, atol=2e-2, rtol=2e-2), max_err

    print("KERNEL_OK")
</pallas_src>

<mosaic_0001>
module attributes {stable_mosaic.version = 11 : i64} {
  func.func @_channel_block_kernel(%arg0: i32, %arg1: memref<1x256x32xf32, #tpu.memory_space<vmem>>, %arg2: memref<9x32xf32, #tpu.memory_space<vmem>>, %arg3: memref<1x32xf32, #tpu.memory_space<vmem>>, %arg4: memref<1x32xf32, #tpu.memory_space<vmem>>, %arg5: memref<1x32xf32, #tpu.memory_space<vmem>>, %arg6: memref<32x96xbf16, #tpu.memory_space<vmem>>, %arg7: memref<1x96xf32, #tpu.memory_space<vmem>>, %arg8: memref<32x32xbf16, #tpu.memory_space<vmem>>, %arg9: memref<1x32xf32, #tpu.memory_space<vmem>>, %arg10: memref<32x32xf32, #tpu.memory_space<vmem>>, %arg11: memref<9x32xf32, #tpu.memory_space<vmem>>, %arg12: memref<1x32xf32, #tpu.memory_space<vmem>>, %arg13: memref<1x32xf32, #tpu.memory_space<vmem>>, %arg14: memref<1x32xf32, #tpu.memory_space<vmem>>, %arg15: memref<32x128xbf16, #tpu.memory_space<vmem>>, %arg16: memref<1x128xf32, #tpu.memory_space<vmem>>, %arg17: memref<128x32xbf16, #tpu.memory_space<vmem>>, %arg18: memref<1x32xf32, #tpu.memory_space<vmem>>, %arg19: memref<1x256x32xf32, #tpu.memory_space<vmem>>, %arg20: memref<304x32xf32, #tpu.memory_space<vmem>>) attributes {dimension_semantics = [#tpu.dimension_semantics<parallel>], iteration_bounds = array<i64: 2>, scalar_prefetch = 0 : i64, scratch_operands = 1 : i64, tpu.core_type = #tpu.core_type<tc>, window_params = [{transform_indices = @transform_0, window_bounds = array<i64: 1, 256, 32>}, {pipeline_mode = #tpu.pipeline_mode<synchronous>, transform_indices = @transform_1, window_bounds = array<i64: 9, 32>}, {pipeline_mode = #tpu.pipeline_mode<synchronous>, transform_indices = @transform_2, window_bounds = array<i64: 1, 32>}, {pipeline_mode = #tpu.pipeline_mode<synchronous>, transform_indices = @transform_3, window_bounds = array<i64: 1, 32>}, {pipeline_mode = #tpu.pipeline_mode<synchronous>, transform_indices = @transform_4, window_bounds = array<i64: 1, 32>}, {pipeline_mode = #tpu.pipeline_mode<synchronous>, transform_indices = @transform_5, window_bounds = array<i64: 32, 96>}, {pipeline_mode = #tpu.pipeline_mode<synchronous>, transform_indices = @transform_6, window_bounds = array<i64: 1, 96>}, {pipeline_mode = #tpu.pipeline_mode<synchronous>, transform_indices = @transform_7, window_bounds = array<i64: 32, 32>}, {pipeline_mode = #tpu.pipeline_mode<synchronous>, transform_indices = @transform_8, window_bounds = array<i64: 1, 32>}, {pipeline_mode = #tpu.pipeline_mode<synchronous>, transform_indices = @transform_9, window_bounds = array<i64: 32, 32>}, {pipeline_mode = #tpu.pipeline_mode<synchronous>, transform_indices = @transform_10, window_bounds = array<i64: 9, 32>}, {pipeline_mode = #tpu.pipeline_mode<synchronous>, transform_indices = @transform_11, window_bounds = array<i64: 1, 32>}, {pipeline_mode = #tpu.pipeline_mode<synchronous>, transform_indices = @transform_12, window_bounds = array<i64: 1, 32>}, {pipeline_mode = #tpu.pipeline_mode<synchronous>, transform_indices = @transform_13, window_bounds = array<i64: 1, 32>}, {pipeline_mode = #tpu.pipeline_mode<synchronous>, transform_indices = @transform_14, window_bounds = array<i64: 32, 128>}, {pipeline_mode = #tpu.pipeline_mode<synchronous>, transform_indices = @transform_15, window_bounds = array<i64: 1, 128>}, {pipeline_mode = #tpu.pipeline_mode<synchronous>, transform_indices = @transform_16, window_bounds = array<i64: 128, 32>}, {pipeline_mode = #tpu.pipeline_mode<synchronous>, transform_indices = @transform_17, window_bounds = array<i64: 1, 32>}, {transform_indices = @transform_18, window_bounds = array<i64: 1, 256, 32>}]} {
    %c0 = arith.constant 0 : index
    %c0_0 = arith.constant 0 : index
    %c0_1 = arith.constant 0 : index
    %0 = vector.load %arg1[%c0, %c0_0, %c0_1] : memref<1x256x32xf32, #tpu.memory_space<vmem>>, vector<1x256x32xf32>
    %1 = vector.shape_cast %0 : vector<1x256x32xf32> to vector<256x32xf32>
    %cst = arith.constant 0.000000e+00 : f32
    %2 = vector.broadcast %cst : f32 to vector<304x32xf32>
    %c0_2 = arith.constant 0 : index
    %c0_3 = arith.constant 0 : index
    %3 = vector.load %arg20[%c0_2, %c0_3] : memref<304x32xf32, #tpu.memory_space<vmem>>, vector<304x32xf32>
    tpu.vector_store %arg20[%c0_2, %c0_3], %2 {strides = array<i32>} : memref<304x32xf32, #tpu.memory_space<vmem>>, vector<304x32xf32>,
    %4 = tpu.iota {dimensions = array<i32: 0>} : vector<256x1xi32>
    %c16_i32 = arith.constant 16 : i32
    %c0_i32 = arith.constant 0 : i32
    %5 = arith.cmpi eq, %c16_i32, %c0_i32 : i32
    %c1_i32 = arith.constant 1 : i32
    %6 = arith.select %5, %c1_i32, %c16_i32 : i32
    %7 = vector.broadcast %6 : i32 to vector<256x1xi32>
    %8 = arith.remsi %4, %7 : vector<256x1xi32>
    %c0_i32_4 = arith.constant 0 : i32
    %9 = vector.broadcast %c0_i32_4 : i32 to vector<256x1xi32>
    %10 = arith.cmpi ne, %8, %9 : vector<256x1xi32>
    %c0_i32_5 = arith.constant 0 : i32
    %11 = vector.broadcast %c0_i32_5 : i32 to vector<256x1xi32>
    %12 = arith.cmpi slt, %8, %11 : vector<256x1xi32>
    %c0_i32_6 = arith.constant 0 : i32
    %13 = arith.cmpi slt, %6, %c0_i32_6 : i32
    %14 = vector.broadcast %13 : i1 to vector<256x1xi1>
    %15 = vector.broadcast %14 : vector<256x1xi1> to vector<256x1xi1>
    %16 = arith.xori %12, %15 : vector<256x1xi1>
    %17 = arith.andi %16, %10 : vector<256x1xi1>
    %18 = vector.broadcast %6 : i32 to vector<256x1xi32>
    %19 = arith.addi %8, %18 : vector<256x1xi32>
    %20 = arith.select %17, %19, %8 : vector<256x1xi1>, vector<256x1xi32>
    %c0_i32_7 = arith.constant 0 : i32
    %21 = vector.broadcast %c0_i32_7 : i32 to vector<256x1xi32>
    %22 = arith.cmpi sgt, %20, %21 : vector<256x1xi32>
    %cst_8 = arith.constant 1.000000e+00 : f32
    %cst_9 = arith.constant 0.000000e+00 : f32
    %23 = vector.broadcast %cst_8 : f32 to vector<256x1xf32>
    %24 = vector.broadcast %cst_9 : f32 to vector<256x1xf32>
    %25 = arith.select %22, %23, %24 : vector<256x1xi1>, vector<256x1xf32>
    %c15_i32 = arith.constant 15 : i32
    %26 = vector.broadcast %c15_i32 : i32 to vector<256x1xi32>
    %27 = arith.cmpi slt, %20, %26 : vector<256x1xi32>
    %cst_10 = arith.constant 1.000000e+00 : f32
    %cst_11 = arith.constant 0.000000e+00 : f32
    %28 = vector.broadcast %cst_10 : f32 to vector<256x1xf32>
    %29 = vector.broadcast %cst_11 : f32 to vector<256x1xf32>
    %30 = arith.select %27, %28, %29 : vector<256x1xi1>, vector<256x1xf32>
    %c24 = arith.constant 24 : index
    %c0_12 = arith.constant 0 : index
    %31 = vector.load %arg20[%c24, %c0_12] : memref<304x32xf32, #tpu.memory_space<vmem>>, vector<256x32xf32>
    tpu.vector_store %arg20[%c24, %c0_12], %1 {strides = array<i32>} : memref<304x32xf32, #tpu.memory_space<vmem>>, vector<256x32xf32>,
    %cst_13 = arith.constant 0.000000e+00 : f32
    %32 = vector.broadcast %cst_13 : f32 to vector<256x32xf32>
    %c0_14 = arith.constant 0 : index
    %c0_15 = arith.constant 0 : index
    %33 = vector.load %arg3[%c0_14, %c0_15] : memref<1x32xf32, #tpu.memory_space<vmem>>, vector<1x32xf32>
    %34 = vector.broadcast %33 : vector<1x32xf32> to vector<256x32xf32>
    %35 = arith.addf %32, %34 : vector<256x32xf32>
    %cst_16 = arith.constant 0.000000e+00 : f32
    %36 = vector.broadcast %cst_16 : f32 to vector<256x32xf32>
    %c7 = arith.constant 7 : index
    %c0_17 = arith.constant 0 : index
    %37 = vector.load %arg20[%c7, %c0_17] : memref<304x32xf32, #tpu.memory_space<vmem>>, vector<256x32xf32>
    %c0_18 = arith.constant 0 : index
    %c0_19 = arith.constant 0 : index
    %38 = vector.load %arg2[%c0_18, %c0_19] : memref<9x32xf32, #tpu.memory_space<vmem>>, vector<1x32xf32>
    %39 = vector.broadcast %38 : vector<1x32xf32> to vector<256x32xf32>
    %40 = arith.mulf %37, %39 : vector<256x32xf32>
    %41 = arith.addf %36, %40 : vector<256x32xf32>
    %c23 = arith.constant 23 : index
    %c0_20 = arith.constant 0 : index
    %42 = vector.load %arg20[%c23, %c0_20] : memref<304x32xf32, #tpu.memory_space<vmem>>, vector<256x32xf32>
    %c3 = arith.constant 3 : index
    %c0_21 = arith.constant 0 : index
    %43 = vector.load %arg2[%c3, %c0_21] : memref<9x32xf32, #tpu.memory_space<vmem>>, vector<1x32xf32>
    %44 = vector.broadcast %43 : vector<1x32xf32> to vector<256x32xf32>
    %45 = arith.mulf %42, %44 : vector<256x32xf32>
    %46 = arith.addf %41, %45 : vector<256x32xf32>
    %c39 = arith.constant 39 : index
    %c0_22 = arith.constant 0 : index
    %47 = vector.load %arg20[%c39, %c0_22] : memref<304x32xf32, #tpu.memory_space<vmem>>, vector<256x32xf32>
    %c6 = arith.constant 6 : index
    %c0_23 = arith.constant 0 : index
    %48 = vector.load %arg2[%c6, %c0_23] : memref<9x32xf32, #tpu.memory_space<vmem>>, vector<1x32xf32>
    %49 = vector.broadcast %48 : vector<1x32xf32> to vector<256x32xf32>
    %50 = arith.mulf %47, %49 : vector<256x32xf32>
    %51 = arith.addf %46, %50 : vector<256x32xf32>
    %52 = vector.broadcast %25 : vector<256x1xf32> to vector<256x32xf32>
    %53 = arith.mulf %51, %52 : vector<256x32xf32>
    %54 = arith.addf %35, %53 : vector<256x32xf32>
    %cst_24 = arith.constant 0.000000e+00 : f32
    %55 = vector.broadcast %cst_24 : f32 to vector<256x32xf32>
    %c8 = arith.constant 8 : index
    %c0_25 = arith.constant 0 : index
    %56 = vector.load %arg20[%c8, %c0_25] : memref<304x32xf32, #tpu.memory_space<vmem>>, vector<256x32xf32>
    %c1 = arith.constant 1 : index
    %c0_26 = arith.constant 0 : index
    %57 = vector.load %arg2[%c1, %c0_26] : memref<9x32xf32, #tpu.memory_space<vmem>>, vector<1x32xf32>
    %58 = vector.broadcast %57 : vector<1x32xf32> to vector<256x32xf32>
    %59 = arith.mulf %56, %58 : vector<256x32xf32>
    %60 = arith.addf %55, %59 : vector<256x32xf32>
    %c24_27 = arith.constant 24 : index
    %c0_28 = arith.constant 0 : index
    %61 = vector.load %arg20[%c24_27, %c0_28] : memref<304x32xf32, #tpu.memory_space<vmem>>, vector<256x32xf32>
    %c4 = arith.constant 4 : index
    %c0_29 = arith.constant 0 : index
    %62 = vector.load %arg2[%c4, %c0_29] : memref<9x32xf32, #tpu.memory_space<vmem>>, vector<1x32xf32>
    %63 = vector.broadcast %62 : vector<1x32xf32> to vector<256x32xf32>
    %64 = arith.mulf %61, %63 : vector<256x32xf32>
    %65 = arith.addf %60, %64 : vector<256x32xf32>
    %c40 = arith.constant 40 : index
    %c0_30 = arith.constant 0 : index
    %66 = vector.load %arg20[%c40, %c0_30] : memref<304x32xf32, #tpu.memory_space<vmem>>, vector<256x32xf32>
    %c7_31 = arith.constant 7 : index
    %c0_32 = arith.constant 0 : index
    %67 = vector.load %arg2[%c7_31, %c0_32] : memref<9x32xf32, #tpu.memory_space<vmem>>, vector<1x32xf32>
    %68 = vector.broadcast %67 : vector<1x32xf32> to vector<256x32xf32>
    %69 = arith.mulf %66, %68 : vector<256x32xf32>
    %70 = arith.addf %65, %69 : vector<256x32xf32>
    %71 = arith.addf %54, %70 : vector<256x32xf32>
    %cst_33 = arith.constant 0.000000e+00 : f32
    %72 = vector.broadcast %cst_33 : f32 to vector<256x32xf32>
    %c9 = arith.constant 9 : index
    %c0_34 = arith.constant 0 : index
    %73 = vector.load %arg20[%c9, %c0_34] : memref<304x32xf32, #tpu.memory_space<vmem>>, vector<256x32xf32>
    %c2 = arith.constant 2 : index
    %c0_35 = arith.constant 0 : index
    %74 = vector.load %arg2[%c2, %c0_35] : memref<9x32xf32, #tpu.memory_space<vmem>>, vector<1x32xf32>
    %75 = vector.broadcast %74 : vector<1x32xf32> to vector<256x32xf32>
    %76 = arith.mulf %73, %75 : vector<256x32xf32>
    %77 = arith.addf %72, %76 : vector<256x32xf32>
    %c25 = arith.constant 25 : index
    %c0_36 = arith.constant 0 : index
    %78 = vector.load %arg20[%c25, %c0_36] : memref<304x32xf32, #tpu.memory_space<vmem>>, vector<256x32xf32>
    %c5 = arith.constant 5 : index
    %c0_37 = arith.constant 0 : index
    %79 = vector.load %arg2[%c5, %c0_37] : memref<9x32xf32, #tpu.memory_space<vmem>>, vector<1x32xf32>
    %80 = vector.broadcast %79 : vector<1x32xf32> to vector<256x32xf32>
    %81 = arith.mulf %78, %80 : vector<256x32xf32>
    %82 = arith.addf %77, %81 : vector<256x32xf32>
    %c41 = arith.constant 41 : index
    %c0_38 = arith.constant 0 : index
    %83 = vector.load %arg20[%c41, %c0_38] : memref<304x32xf32, #tpu.memory_space<vmem>>, vector<256x32xf32>
    %c8_39 = arith.constant 8 : index
    %c0_40 = arith.constant 0 : index
    %84 = vector.load %arg2[%c8_39, %c0_40] : memref<9x32xf32, #tpu.memory_space<vmem>>, vector<1x32xf32>
    %85 = vector.broadcast %84 : vector<1x32xf32> to vector<256x32xf32>
    %86 = arith.mulf %83, %85 : vector<256x32xf32>
    %87 = arith.addf %82, %86 : vector<256x32xf32>
    %88 = vector.broadcast %30 : vector<256x1xf32> to vector<256x32xf32>
    %89 = arith.mulf %87, %88 : vector<256x32xf32>
    %90 = arith.addf %71, %89 : vector<256x32xf32>
    %91 = arith.addf %1, %90 : vector<256x32xf32>
    %c0_41 = arith.constant 0 : index
    %c0_42 = arith.constant 0 : index
    %92 = vector.load %arg4[%c0_41, %c0_42] : memref<1x32xf32, #tpu.memory_space<vmem>>, vector<1x32xf32>
    %c0_43 = arith.constant 0 : index
    %c0_44 = arith.constant 0 : index
    %93 = vector.load %arg5[%c0_43, %c0_44] : memref<1x32xf32, #tpu.memory_space<vmem>>, vector<1x32xf32>
    %cst_45 = arith.constant dense<0.000000e+00> : vector<256xf32>
    %94 = vector.multi_reduction <add>, %91, %cst_45 [1] : vector<256x32xf32> to vector<256xf32>
    %95 = vector.shape_cast %94 : vector<256xf32> to vector<256x1xf32>
    %cst_46 = arith.constant 3.200000e+01 : f32
    %96 = vector.broadcast %cst_46 : f32 to vector<256x1xf32>
    %97 = arith.divf %95, %96 : vector<256x1xf32>
    %98 = vector.broadcast %97 : vector<256x1xf32> to vector<256x32xf32>
    %99 = arith.subf %91, %98 : vector<256x32xf32>
    %100 = arith.mulf %99, %99 : vector<256x32xf32>
    %cst_47 = arith.constant dense<0.000000e+00> : vector<256xf32>
    %101 = vector.multi_reduction <add>, %100, %cst_47 [1] : vector<256x32xf32> to vector<256xf32>
    %102 = vector.shape_cast %101 : vector<256xf32> to vector<256x1xf32>
    %cst_48 = arith.constant 3.200000e+01 : f32
    %103 = vector.broadcast %cst_48 : f32 to vector<256x1xf32>
    %104 = arith.divf %102, %103 : vector<256x1xf32>
    %105 = vector.broadcast %97 : vector<256x1xf32> to vector<256x32xf32>
    %106 = arith.subf %91, %105 : vector<256x32xf32>
    %cst_49 = arith.constant 9.99999974E-6 : f32
    %107 = vector.broadcast %cst_49 : f32 to vector<256x1xf32>
    %108 = arith.addf %104, %107 : vector<256x1xf32>
    %109 = math.rsqrt %108 : vector<256x1xf32>
    %110 = vector.broadcast %109 : vector<256x1xf32> to vector<256x32xf32>
    %111 = arith.mulf %106, %110 : vector<256x32xf32>
    %112 = vector.broadcast %92 : vector<1x32xf32> to vector<256x32xf32>
    %113 = arith.mulf %111, %112 : vector<256x32xf32>
    %114 = vector.broadcast %93 : vector<1x32xf32> to vector<256x32xf32>
    %115 = arith.addf %113, %114 : vector<256x32xf32>
    %116 = arith.truncf %115 : vector<256x32xf32> to vector<256x32xbf16>
    %c0_50 = arith.constant 0 : index
    %c0_51 = arith.constant 0 : index
    %117 = vector.load %arg6[%c0_50, %c0_51] : memref<32x96xbf16, #tpu.memory_space<vmem>>, vector<32x96xbf16>
    %cst_52 = arith.constant dense<0.000000e+00> : vector<256x96xf32>
    %118 = tpu.matmul %116, %117, %cst_52 {dimension_numbers = #tpu.dot_dimension_numbers<[1], [0], [0], [1], [0, 0, 1, 1], [], []>} : vector<256x32xbf16>, vector<32x96xbf16>, vector<256x96xf32> -> vector<256x96xf32>
    %c0_53 = arith.constant 0 : index
    %c0_54 = arith.constant 0 : index
    %119 = vector.load %arg7[%c0_53, %c0_54] : memref<1x96xf32, #tpu.memory_space<vmem>>, vector<1x96xf32>
    %120 = vector.broadcast %119 : vector<1x96xf32> to vector<256x96xf32>
    %121 = arith.addf %118, %120 : vector<256x96xf32>
    %122 = vector.extract_strided_slice %121 {offsets = [0, 0], sizes = [256, 32], strides = [1, 1]} : vector<256x96xf32> to vector<256x32xf32>
    %123 = arith.truncf %122 : vector<256x32xf32> to vector<256x32xbf16>
    %124 = vector.extract_strided_slice %121 {offsets = [0, 32], sizes = [256, 32], strides = [1, 1]} : vector<256x96xf32> to vector<256x32xf32>
    %125 = arith.truncf %124 : vector<256x32xf32> to vector<256x32xbf16>
    %126 = vector.extract_strided_slice %121 {offsets = [0, 64], sizes = [256, 32], strides = [1, 1]} : vector<256x96xf32> to vector<256x32xf32>
    %127 = arith.truncf %126 : vector<256x32xf32> to vector<256x32xbf16>
    %cst_55 = arith.constant dense<0.000000e+00> : vector<32x32xf32>
    %128 = tpu.matmul %123, %125, %cst_55 {dimension_numbers = #tpu.dot_dimension_numbers<[0], [0], [1], [1], [0, 1, 1, 1], [], []>} : vector<256x32xbf16>, vector<256x32xbf16>, vector<32x32xf32> -> vector<32x32xf32>
    %cst_56 = arith.constant 6.250000e-02 : f32
    %129 = vector.broadcast %cst_56 : f32 to vector<32x32xf32>
    %130 = arith.mulf %128, %129 : vector<32x32xf32>
    %c0_57 = arith.constant 0 : index
    %c0_58 = arith.constant 0 : index
    %131 = vector.load %arg10[%c0_57, %c0_58] : memref<32x32xf32, #tpu.memory_space<vmem>>, vector<32x32xf32>
    %132 = arith.addf %130, %131 : vector<32x32xf32>
    %cst_59 = arith.constant dense<0xFF800000> : vector<32xf32>
    %133 = vector.multi_reduction <maximumf>, %132, %cst_59 [1] : vector<32x32xf32> to vector<32xf32>
    %134 = vector.shape_cast %133 : vector<32xf32> to vector<32x1xf32>
    %135 = vector.broadcast %134 : vector<32x1xf32> to vector<32x32xf32>
    %136 = arith.subf %132, %135 : vector<32x32xf32>
    %137 = math.exp %136 : vector<32x32xf32>
    %cst_60 = arith.constant dense<0.000000e+00> : vector<32xf32>
    %138 = vector.multi_reduction <add>, %137, %cst_60 [1] : vector<32x32xf32> to vector<32xf32>
    %139 = vector.shape_cast %138 : vector<32xf32> to vector<32x1xf32>
    %140 = vector.broadcast %139 : vector<32x1xf32> to vector<32x32xf32>
    %141 = arith.divf %137, %140 : vector<32x32xf32>
    %142 = arith.truncf %141 : vector<32x32xf32> to vector<32x32xbf16>
    %cst_61 = arith.constant dense<0.000000e+00> : vector<256x32xf32>
    %143 = tpu.matmul %127, %142, %cst_61 {dimension_numbers = #tpu.dot_dimension_numbers<[1], [1], [0], [0], [0, 0, 1, 0], [], []>} : vector<256x32xbf16>, vector<32x32xbf16>, vector<256x32xf32> -> vector<256x32xf32>
    %144 = arith.truncf %143 : vector<256x32xf32> to vector<256x32xbf16>
    %c0_62 = arith.constant 0 : index
    %c0_63 = arith.constant 0 : index
    %145 = vector.load %arg8[%c0_62, %c0_63] : memref<32x32xbf16, #tpu.memory_space<vmem>>, vector<32x32xbf16>
    %cst_64 = arith.constant dense<0.000000e+00> : vector<256x32xf32>
    %146 = tpu.matmul %144, %145, %cst_64 {dimension_numbers = #tpu.dot_dimension_numbers<[1], [0], [0], [1], [0, 0, 1, 1], [], []>} : vector<256x32xbf16>, vector<32x32xbf16>, vector<256x32xf32> -> vector<256x32xf32>
    %c0_65 = arith.constant 0 : index
    %c0_66 = arith.constant 0 : index
    %147 = vector.load %arg9[%c0_65, %c0_66] : memref<1x32xf32, #tpu.memory_space<vmem>>, vector<1x32xf32>
    %148 = vector.broadcast %147 : vector<1x32xf32> to vector<256x32xf32>
    %149 = arith.addf %146, %148 : vector<256x32xf32>
    %150 = arith.addf %91, %149 : vector<256x32xf32>
    %c24_67 = arith.constant 24 : index
    %c0_68 = arith.constant 0 : index
    %151 = vector.load %arg20[%c24_67, %c0_68] : memref<304x32xf32, #tpu.memory_space<vmem>>, vector<256x32xf32>
    tpu.vector_store %arg20[%c24_67, %c0_68], %150 {strides = array<i32>} : memref<304x32xf32, #tpu.memory_space<vmem>>, vector<256x32xf32>,
    %cst_69 = arith.constant 0.000000e+00 : f32
    %152 = vector.broadcast %cst_69 : f32 to vector<256x32xf32>
    %c0_70 = arith.constant 0 : index
    %c0_71 = arith.constant 0 : index
    %153 = vector.load %arg12[%c0_70, %c0_71] : memref<1x32xf32, #tpu.memory_space<vmem>>, vector<1x32xf32>
    %154 = vector.broadcast %153 : vector<1x32xf32> to vector<256x32xf32>
    %155 = arith.addf %152, %154 : vector<256x32xf32>
    %cst_72 = arith.constant 0.000000e+00 : f32
    %156 = vector.broadcast %cst_72 : f32 to vector<256x32xf32>
    %c7_73 = arith.constant 7 : index
    %c0_74 = arith.constant 0 : index
    %157 = vector.load %arg20[%c7_73, %c0_74] : memref<304x32xf32, #tpu.memory_space<vmem>>, vector<256x32xf32>
    %c0_75 = arith.constant 0 : index
    %c0_76 = arith.constant 0 : index
    %158 = vector.load %arg11[%c0_75, %c0_76] : memref<9x32xf32, #tpu.memory_space<vmem>>, vector<1x32xf32>
    %159 = vector.broadcast %158 : vector<1x32xf32> to vector<256x32xf32>
    %160 = arith.mulf %157, %159 : vector<256x32xf32>
    %161 = arith.addf %156, %160 : vector<256x32xf32>
    %c23_77 = arith.constant 23 : index
    %c0_78 = arith.constant 0 : index
    %162 = vector.load %arg20[%c23_77, %c0_78] : memref<304x32xf32, #tpu.memory_space<vmem>>, vector<256x32xf32>
    %c3_79 = arith.constant 3 : index
    %c0_80 = arith.constant 0 : index
    %163 = vector.load %arg11[%c3_79, %c0_80] : memref<9x32xf32, #tpu.memory_space<vmem>>, vector<1x32xf32>
    %164 = vector.broadcast %163 : vector<1x32xf32> to vector<256x32xf32>
    %165 = arith.mulf %162, %164 : vector<256x32xf32>
    %166 = arith.addf %161, %165 : vector<256x32xf32>
    %c39_81 = arith.constant 39 : index
    %c0_82 = arith.constant 0 : index
    %167 = vector.load %arg20[%c39_81, %c0_82] : memref<304x32xf32, #tpu.memory_space<vmem>>, vector<256x32xf32>
    %c6_83 = arith.constant 6 : index
    %c0_84 = arith.constant 0 : index
    %168 = vector.load %arg11[%c6_83, %c0_84] : memref<9x32xf32, #tpu.memory_space<vmem>>, vector<1x32xf32>
    %169 = vector.broadcast %168 : vector<1x32xf32> to vector<256x32xf32>
    %170 = arith.mulf %167, %169 : vector<256x32xf32>
    %171 = arith.addf %166, %170 : vector<256x32xf32>
    %172 = vector.broadcast %25 : vector<256x1xf32> to vector<256x32xf32>
    %173 = arith.mulf %171, %172 : vector<256x32xf32>
    %174 = arith.addf %155, %173 : vector<256x32xf32>
    %cst_85 = arith.constant 0.000000e+00 : f32
    %175 = vector.broadcast %cst_85 : f32 to vector<256x32xf32>
    %c8_86 = arith.constant 8 : index
    %c0_87 = arith.constant 0 : index
    %176 = vector.load %arg20[%c8_86, %c0_87] : memref<304x32xf32, #tpu.memory_space<vmem>>, vector<256x32xf32>
    %c1_88 = arith.constant 1 : index
    %c0_89 = arith.constant 0 : index
    %177 = vector.load %arg11[%c1_88, %c0_89] : memref<9x32xf32, #tpu.memory_space<vmem>>, vector<1x32xf32>
    %178 = vector.broadcast %177 : vector<1x32xf32> to vector<256x32xf32>
    %179 = arith.mulf %176, %178 : vector<256x32xf32>
    %180 = arith.addf %175, %179 : vector<256x32xf32>
    %c24_90 = arith.constant 24 : index
    %c0_91 = arith.constant 0 : index
    %181 = vector.load %arg20[%c24_90, %c0_91] : memref<304x32xf32, #tpu.memory_space<vmem>>, vector<256x32xf32>
    %c4_92 = arith.constant 4 : index
    %c0_93 = arith.constant 0 : index
    %182 = vector.load %arg11[%c4_92, %c0_93] : memref<9x32xf32, #tpu.memory_space<vmem>>, vector<1x32xf32>
    %183 = vector.broadcast %182 : vector<1x32xf32> to vector<256x32xf32>
    %184 = arith.mulf %181, %183 : vector<256x32xf32>
    %185 = arith.addf %180, %184 : vector<256x32xf32>
    %c40_94 = arith.constant 40 : index
    %c0_95 = arith.constant 0 : index
    %186 = vector.load %arg20[%c40_94, %c0_95] : memref<304x32xf32, #tpu.memory_space<vmem>>, vector<256x32xf32>
    %c7_96 = arith.constant 7 : index
    %c0_97 = arith.constant 0 : index
    %187 = vector.load %arg11[%c7_96, %c0_97] : memref<9x32xf32, #tpu.memory_space<vmem>>, vector<1x32xf32>
    %188 = vector.broadcast %187 : vector<1x32xf32> to vector<256x32xf32>
    %189 = arith.mulf %186, %188 : vector<256x32xf32>
    %190 = arith.addf %185, %189 : vector<256x32xf32>
    %191 = arith.addf %174, %190 : vector<256x32xf32>
    %cst_98 = arith.constant 0.000000e+00 : f32
    %192 = vector.broadcast %cst_98 : f32 to vector<256x32xf32>
    %c9_99 = arith.constant 9 : index
    %c0_100 = arith.constant 0 : index
    %193 = vector.load %arg20[%c9_99, %c0_100] : memref<304x32xf32, #tpu.memory_space<vmem>>, vector<256x32xf32>
    %c2_101 = arith.constant 2 : index
    %c0_102 = arith.constant 0 : index
    %194 = vector.load %arg11[%c2_101, %c0_102] : memref<9x32xf32, #tpu.memory_space<vmem>>, vector<1x32xf32>
    %195 = vector.broadcast %194 : vector<1x32xf32> to vector<256x32xf32>
    %196 = arith.mulf %193, %195 : vector<256x32xf32>
    %197 = arith.addf %192, %196 : vector<256x32xf32>
    %c25_103 = arith.constant 25 : index
    %c0_104 = arith.constant 0 : index
    %198 = vector.load %arg20[%c25_103, %c0_104] : memref<304x32xf32, #tpu.memory_space<vmem>>, vector<256x32xf32>
    %c5_105 = arith.constant 5 : index
    %c0_106 = arith.constant 0 : index
    %199 = vector.load %arg11[%c5_105, %c0_106] : memref<9x32xf32, #tpu.memory_space<vmem>>, vector<1x32xf32>
    %200 = vector.broadcast %199 : vector<1x32xf32> to vector<256x32xf32>
    %201 = arith.mulf %198, %200 : vector<256x32xf32>
    %202 = arith.addf %197, %201 : vector<256x32xf32>
    %c41_107 = arith.constant 41 : index
    %c0_108 = arith.constant 0 : index
    %203 = vector.load %arg20[%c41_107, %c0_108] : memref<304x32xf32, #tpu.memory_space<vmem>>, vector<256x32xf32>
    %c8_109 = arith.constant 8 : index
    %c0_110 = arith.constant 0 : index
    %204 = vector.load %arg11[%c8_109, %c0_110] : memref<9x32xf32, #tpu.memory_space<vmem>>, vector<1x32xf32>
    %205 = vector.broadcast %204 : vector<1x32xf32> to vector<256x32xf32>
    %206 = arith.mulf %203, %205 : vector<256x32xf32>
    %207 = arith.addf %202, %206 : vector<256x32xf32>
    %208 = vector.broadcast %30 : vector<256x1xf32> to vector<256x32xf32>
    %209 = arith.mulf %207, %208 : vector<256x32xf32>
    %210 = arith.addf %191, %209 : vector<256x32xf32>
    %211 = arith.addf %150, %210 : vector<256x32xf32>
    %c0_111 = arith.constant 0 : index
    %c0_112 = arith.constant 0 : index
    %212 = vector.load %arg13[%c0_111, %c0_112] : memref<1x32xf32, #tpu.memory_space<vmem>>, vector<1x32xf32>
    %c0_113 = arith.constant 0 : index
    %c0_114 = arith.constant 0 : index
    %213 = vector.load %arg14[%c0_113, %c0_114] : memref<1x32xf32, #tpu.memory_space<vmem>>, vector<1x32xf32>
    %cst_115 = arith.constant dense<0.000000e+00> : vector<256xf32>
    %214 = vector.multi_reduction <add>, %211, %cst_115 [1] : vector<256x32xf32> to vector<256xf32>
    %215 = vector.shape_cast %214 : vector<256xf32> to vector<256x1xf32>
    %cst_116 = arith.constant 3.200000e+01 : f32
    %216 = vector.broadcast %cst_116 : f32 to vector<256x1xf32>
    %217 = arith.divf %215, %216 : vector<256x1xf32>
    %218 = vector.broadcast %217 : vector<256x1xf32> to vector<256x32xf32>
    %219 = arith.subf %211, %218 : vector<256x32xf32>
    %220 = arith.mulf %219, %219 : vector<256x32xf32>
    %cst_117 = arith.constant dense<0.000000e+00> : vector<256xf32>
    %221 = vector.multi_reduction <add>, %220, %cst_117 [1] : vector<256x32xf32> to vector<256xf32>
    %222 = vector.shape_cast %221 : vector<256xf32> to vector<256x1xf32>
    %cst_118 = arith.constant 3.200000e+01 : f32
    %223 = vector.broadcast %cst_118 : f32 to vector<256x1xf32>
    %224 = arith.divf %222, %223 : vector<256x1xf32>
    %225 = vector.broadcast %217 : vector<256x1xf32> to vector<256x32xf32>
    %226 = arith.subf %211, %225 : vector<256x32xf32>
    %cst_119 = arith.constant 9.99999974E-6 : f32
    %227 = vector.broadcast %cst_119 : f32 to vector<256x1xf32>
    %228 = arith.addf %224, %227 : vector<256x1xf32>
    %229 = math.rsqrt %228 : vector<256x1xf32>
    %230 = vector.broadcast %229 : vector<256x1xf32> to vector<256x32xf32>
    %231 = arith.mulf %226, %230 : vector<256x32xf32>
    %232 = vector.broadcast %212 : vector<1x32xf32> to vector<256x32xf32>
    %233 = arith.mulf %231, %232 : vector<256x32xf32>
    %234 = vector.broadcast %213 : vector<1x32xf32> to vector<256x32xf32>
    %235 = arith.addf %233, %234 : vector<256x32xf32>
    %236 = arith.truncf %235 : vector<256x32xf32> to vector<256x32xbf16>
    %c0_120 = arith.constant 0 : index
    %c0_121 = arith.constant 0 : index
    %237 = vector.load %arg15[%c0_120, %c0_121] : memref<32x128xbf16, #tpu.memory_space<vmem>>, vector<32x128xbf16>
    %cst_122 = arith.constant dense<0.000000e+00> : vector<256x128xf32>
    %238 = tpu.matmul %236, %237, %cst_122 {dimension_numbers = #tpu.dot_dimension_numbers<[1], [0], [0], [1], [0, 0, 1, 1], [], []>} : vector<256x32xbf16>, vector<32x128xbf16>, vector<256x128xf32> -> vector<256x128xf32>
    %c0_123 = arith.constant 0 : index
    %c0_124 = arith.constant 0 : index
    %239 = vector.load %arg16[%c0_123, %c0_124] : memref<1x128xf32, #tpu.memory_space<vmem>>, vector<1x128xf32>
    %240 = vector.broadcast %239 : vector<1x128xf32> to vector<256x128xf32>
    %241 = arith.addf %238, %240 : vector<256x128xf32>
    %242 = arith.mulf %241, %241 : vector<256x128xf32>
    %243 = arith.mulf %241, %242 : vector<256x128xf32>
    %cst_125 = arith.constant 4.471500e-02 : f32
    %244 = vector.broadcast %cst_125 : f32 to vector<256x128xf32>
    %245 = arith.mulf %244, %243 : vector<256x128xf32>
    %246 = arith.addf %241, %245 : vector<256x128xf32>
    %cst_126 = arith.constant 0.797884583 : f32
    %247 = vector.broadcast %cst_126 : f32 to vector<256x128xf32>
    %248 = arith.mulf %247, %246 : vector<256x128xf32>
    %249 = math.tanh %248 : vector<256x128xf32>
    %cst_127 = arith.constant 1.000000e+00 : f32
    %250 = vector.broadcast %cst_127 : f32 to vector<256x128xf32>
    %251 = arith.addf %250, %249 : vector<256x128xf32>
    %cst_128 = arith.constant 5.000000e-01 : f32
    %252 = vector.broadcast %cst_128 : f32 to vector<256x128xf32>
    %253 = arith.mulf %252, %251 : vector<256x128xf32>
    %254 = arith.mulf %241, %253 : vector<256x128xf32>
    %255 = arith.truncf %254 : vector<256x128xf32> to vector<256x128xbf16>
    %c0_129 = arith.constant 0 : index
    %c0_130 = arith.constant 0 : index
    %256 = vector.load %arg17[%c0_129, %c0_130] : memref<128x32xbf16, #tpu.memory_space<vmem>>, vector<128x32xbf16>
    %cst_131 = arith.constant dense<0.000000e+00> : vector<256x32xf32>
    %257 = tpu.matmul %255, %256, %cst_131 {dimension_numbers = #tpu.dot_dimension_numbers<[1], [0], [0], [1], [0, 0, 1, 1], [], []>} : vector<256x128xbf16>, vector<128x32xbf16>, vector<256x32xf32> -> vector<256x32xf32>
    %c0_132 = arith.constant 0 : index
    %c0_133 = arith.constant 0 : index
    %258 = vector.load %arg18[%c0_132, %c0_133] : memref<1x32xf32, #tpu.memory_space<vmem>>, vector<1x32xf32>
    %259 = vector.broadcast %258 : vector<1x32xf32> to vector<256x32xf32>
    %260 = arith.addf %257, %259 : vector<256x32xf32>
    %261 = arith.addf %211, %260 : vector<256x32xf32>
    %c0_134 = arith.constant 0 : index
    %c0_135 = arith.constant 0 : index
    %c0_136 = arith.constant 0 : index
    %262 = vector.load %arg19[%c0_134, %c0_135, %c0_136] : memref<1x256x32xf32, #tpu.memory_space<vmem>>, vector<1x256x32xf32>
    %263 = vector.shape_cast %262 : vector<1x256x32xf32> to vector<256x32xf32>
    %264 = vector.shape_cast %261 : vector<256x32xf32> to vector<1x256x32xf32>
    tpu.vector_store %arg19[%c0_134, %c0_135, %c0_136], %264 {strides = array<i32>} : memref<1x256x32xf32, #tpu.memory_space<vmem>>, vector<1x256x32xf32>,
    return
  }
  func.func @transform_0(%arg0: i32) -> (i32, i32, i32) {
    %c0_i32 = arith.constant 0 : i32
    %c0_i32_0 = arith.constant 0 : i32
    %c0_i32_1 = arith.constant 0 : i32
    return %arg0, %c0_i32, %c0_i32_0 : i32, i32, i32
  }
  func.func @transform_1(%arg0: i32) -> (i32, i32) {
    %c0_i32 = arith.constant 0 : i32
    %c0_i32_0 = arith.constant 0 : i32
    %c0_i32_1 = arith.constant 0 : i32
    return %c0_i32, %c0_i32_0 : i32, i32
  }
  func.func @transform_2(%arg0: i32) -> (i32, i32) {
    %c0_i32 = arith.constant 0 : i32
    %c0_i32_0 = arith.constant 0 : i32
    %c0_i32_1 = arith.constant 0 : i32
    return %c0_i32, %c0_i32_0 : i32, i32
  }
  func.func @transform_3(%arg0: i32) -> (i32, i32) {
    %c0_i32 = arith.constant 0 : i32
    %c0_i32_0 = arith.constant 0 : i32
    %c0_i32_1 = arith.constant 0 : i32
    return %c0_i32, %c0_i32_0 : i32, i32
  }
  func.func @transform_4(%arg0: i32) -> (i32, i32) {
    %c0_i32 = arith.constant 0 : i32
    %c0_i32_0 = arith.constant 0 : i32
    %c0_i32_1 = arith.constant 0 : i32
    return %c0_i32, %c0_i32_0 : i32, i32
  }
  func.func @transform_5(%arg0: i32) -> (i32, i32) {
    %c0_i32 = arith.constant 0 : i32
    %c0_i32_0 = arith.constant 0 : i32
    %c0_i32_1 = arith.constant 0 : i32
    return %c0_i32, %c0_i32_0 : i32, i32
  }
  func.func @transform_6(%arg0: i32) -> (i32, i32) {
    %c0_i32 = arith.constant 0 : i32
    %c0_i32_0 = arith.constant 0 : i32
    %c0_i32_1 = arith.constant 0 : i32
    return %c0_i32, %c0_i32_0 : i32, i32
  }
  func.func @transform_7(%arg0: i32) -> (i32, i32) {
    %c0_i32 = arith.constant 0 : i32
    %c0_i32_0 = arith.constant 0 : i32
    %c0_i32_1 = arith.constant 0 : i32
    return %c0_i32, %c0_i32_0 : i32, i32
  }
  func.func @transform_8(%arg0: i32) -> (i32, i32) {
    %c0_i32 = arith.constant 0 : i32
    %c0_i32_0 = arith.constant 0 : i32
    %c0_i32_1 = arith.constant 0 : i32
    return %c0_i32, %c0_i32_0 : i32, i32
  }
  func.func @transform_9(%arg0: i32) -> (i32, i32) {
    %c0_i32 = arith.constant 0 : i32
    %c0_i32_0 = arith.constant 0 : i32
    %c0_i32_1 = arith.constant 0 : i32
    return %c0_i32, %c0_i32_0 : i32, i32
  }
  func.func @transform_10(%arg0: i32) -> (i32, i32) {
    %c0_i32 = arith.constant 0 : i32
    %c0_i32_0 = arith.constant 0 : i32
    %c0_i32_1 = arith.constant 0 : i32
    return %c0_i32, %c0_i32_0 : i32, i32
  }
  func.func @transform_11(%arg0: i32) -> (i32, i32) {
    %c0_i32 = arith.constant 0 : i32
    %c0_i32_0 = arith.constant 0 : i32
    %c0_i32_1 = arith.constant 0 : i32
    return %c0_i32, %c0_i32_0 : i32, i32
  }
  func.func @transform_12(%arg0: i32) -> (i32, i32) {
    %c0_i32 = arith.constant 0 : i32
    %c0_i32_0 = arith.constant 0 : i32
    %c0_i32_1 = arith.constant 0 : i32
    return %c0_i32, %c0_i32_0 : i32, i32
  }
  func.func @transform_13(%arg0: i32) -> (i32, i32) {
    %c0_i32 = arith.constant 0 : i32
    %c0_i32_0 = arith.constant 0 : i32
    %c0_i32_1 = arith.constant 0 : i32
    return %c0_i32, %c0_i32_0 : i32, i32
  }
  func.func @transform_14(%arg0: i32) -> (i32, i32) {
    %c0_i32 = arith.constant 0 : i32
    %c0_i32_0 = arith.constant 0 : i32
    %c0_i32_1 = arith.constant 0 : i32
    return %c0_i32, %c0_i32_0 : i32, i32
  }
  func.func @transform_15(%arg0: i32) -> (i32, i32) {
    %c0_i32 = arith.constant 0 : i32
    %c0_i32_0 = arith.constant 0 : i32
    %c0_i32_1 = arith.constant 0 : i32
    return %c0_i32, %c0_i32_0 : i32, i32
  }
  func.func @transform_16(%arg0: i32) -> (i32, i32) {
    %c0_i32 = arith.constant 0 : i32
    %c0_i32_0 = arith.constant 0 : i32
    %c0_i32_1 = arith.constant 0 : i32
    return %c0_i32, %c0_i32_0 : i32, i32
  }
  func.func @transform_17(%arg0: i32) -> (i32, i32) {
    %c0_i32 = arith.constant 0 : i32
    %c0_i32_0 = arith.constant 0 : i32
    %c0_i32_1 = arith.constant 0 : i32
    return %c0_i32, %c0_i32_0 : i32, i32
  }
  func.func @transform_18(%arg0: i32) -> (i32, i32, i32) {
    %c0_i32 = arith.constant 0 : i32
    %c0_i32_0 = arith.constant 0 : i32
    %c0_i32_1 = arith.constant 0 : i32
    return %arg0, %c0_i32, %c0_i32_0 : i32, i32, i32
  }
}

</mosaic_0001>

<llo_original>
// kernel: tpu_custom_call.1
$region0: #{tpu_custom_call.1}
  #allocation0 [shape = 'u32[]', space=smem, size = 0x4, offset = 0x4, fixed_abs, tag = 'smem constant byte address 0x4 - core index']
  #allocation1 [shape = 'u32[144,128]{1,0:T(1,128)}', space=vmem, size = 0x12000, scoped, tag = 'internal scratch']
  #allocation2 [shape = 'f32[304,32]{1,0:T(8,128)}', space=vmem, size = 0x26000, scoped, tag = 'scratch operand']
  %s0 = inlined_call_operand.vmem [shape: f32[2,256,32], index: 0, kind: input, shape index: {}]
  %s1 = inlined_call_operand.vmem [shape: f32[9,32], index: 1, kind: input, shape index: {}]
  %s2 = inlined_call_operand.vmem [shape: f32[1,32], index: 2, kind: input, shape index: {}]
  %s3 = inlined_call_operand.vmem [shape: f32[1,32], index: 3, kind: input, shape index: {}]
  %s4 = inlined_call_operand.vmem [shape: f32[1,32], index: 4, kind: input, shape index: {}]
  %s5 = inlined_call_operand.vmem [shape: bf16[32,96], index: 5, kind: input, shape index: {}]
  %s6 = inlined_call_operand.vmem [shape: f32[1,96], index: 6, kind: input, shape index: {}]
  %s7 = inlined_call_operand.vmem [shape: bf16[32,32], index: 7, kind: input, shape index: {}]
  %s8 = inlined_call_operand.vmem [shape: f32[1,32], index: 8, kind: input, shape index: {}]
  %s9 = inlined_call_operand.vmem [shape: f32[32,32], index: 9, kind: input, shape index: {}]
  %s10 = inlined_call_operand.vmem [shape: f32[9,32], index: 10, kind: input, shape index: {}]
  %s11 = inlined_call_operand.vmem [shape: f32[1,32], index: 11, kind: input, shape index: {}]
  %s12 = inlined_call_operand.vmem [shape: f32[1,32], index: 12, kind: input, shape index: {}]
  %s13 = inlined_call_operand.vmem [shape: f32[1,32], index: 13, kind: input, shape index: {}]
  %s14 = inlined_call_operand.vmem [shape: bf16[32,128], index: 14, kind: input, shape index: {}]
  %s15 = inlined_call_operand.vmem [shape: f32[1,128], index: 15, kind: input, shape index: {}]
  %s16 = inlined_call_operand.vmem [shape: bf16[128,32], index: 16, kind: input, shape index: {}]
  %s17 = inlined_call_operand.vmem [shape: f32[1,32], index: 17, kind: input, shape index: {}]
  %s18 = inlined_call_operand.vmem [shape: f32[2,256,32], index: 18, kind: output, shape index: {}]
  %s19 = sld [smem:[#allocation0]]
  $region105: #{tpu_custom_call.1} parent=0
    _
  %s21 = ssub.s32 1, %s19
  %s22 = scalar_select 0, %s21, %s19
  loop: start=0, step=1, limit=4
  $region2: #{tpu_custom_call.1} parent=0 // loop_pre_header
    _
  $region3: #{tpu_custom_call.1} parent=0 // loop_header
    %s24 = sphi 0, %s28
    %p25 = scmp.ge.s32.totalorder %s24, 4
    %s34 = sphi 0, %s36
    %s37 = sphi 0, %s34
    %s38 = sphi 0, %s37
    %s54 = sphi 0, %s38
    %s58 = sphi 0, %s58
    %s60 = sphi 0, %s58
    %s61 = sphi 0, %s60
    %s75 = sphi 0, %s61
    %s79 = sphi 0, %s79
    %s81 = sphi 0, %s79
    %s82 = sphi 0, %s81
    %s96 = sphi 0, %s82
    %s100 = sphi 0, %s100
    %s102 = sphi 0, %s100
    %s103 = sphi 0, %s102
    %s117 = sphi 0, %s103
    %s121 = sphi 0, %s121
    %s123 = sphi 0, %s121
    %s124 = sphi 0, %s123
    %s138 = sphi 0, %s124
    %s142 = sphi 0, %s142
    %s144 = sphi 0, %s142
    %s145 = sphi 0, %s144
    %s159 = sphi 0, %s145
    %s163 = sphi 0, %s163
    %s165 = sphi 0, %s163
    %s166 = sphi 0, %s165
    %s180 = sphi 0, %s166
    %s184 = sphi 0, %s184
    %s186 = sphi 0, %s184
    %s187 = sphi 0, %s186
    %s201 = sphi 0, %s187
    %s205 = sphi 0, %s205
    %s207 = sphi 0, %s205
    %s208 = sphi 0, %s207
    %s222 = sphi 0, %s208
    %s226 = sphi 0, %s226
    %s228 = sphi 0, %s226
    %s229 = sphi 0, %s228
    %s243 = sphi 0, %s229
    %s247 = sphi 0, %s247
    %s249 = sphi 0, %s247
    %s250 = sphi 0, %s249
    %s264 = sphi 0, %s250
    %s268 = sphi 0, %s268
    %s270 = sphi 0, %s268
    %s271 = sphi 0, %s270
    %s285 = sphi 0, %s271
    %s289 = sphi 0, %s289
    %s291 = sphi 0, %s289
    %s292 = sphi 0, %s291
    %s306 = sphi 0, %s292
    %s310 = sphi 0, %s310
    %s312 = sphi 0, %s310
    %s313 = sphi 0, %s312
    %s327 = sphi 0, %s313
    %s331 = sphi 0, %s331
    %s333 = sphi 0, %s331
    %s334 = sphi 0, %s333
    %s348 = sphi 0, %s334
    %s352 = sphi 0, %s352
    %s354 = sphi 0, %s352
    %s355 = sphi 0, %s354
    %s369 = sphi 0, %s355
    %s373 = sphi 0, %s373
    %s375 = sphi 0, %s373
    %s376 = sphi 0, %s375
    %s390 = sphi 0, %s376
    %s394 = sphi 0, %s394
    %s396 = sphi 0, %s394
    %s397 = sphi 0, %s396
    %s411 = sphi 0, %s397
    %s417 = sphi 0, %s419
    %s420 = sphi 0, %s417
    %s421 = sphi 0, %s420
    %s437 = sphi 0, %s421
  $region4: #{tpu_custom_call.1} parent=0 // loop_header_branch
    %27 = sbr.rel (%p25) target = $region8
  $region5: #{tpu_custom_call.1} parent=0 // loop_body
    %s29 = ssub.s32 %s24, 1
    %s30 = ssub.s32 %s24, 2
    %s31 = sadd.s32 %s24, 1
    %s32 = ssub.s32 %s24, %s31
    %p33 = scmp.eq.s32.totalorder %s32, 0
    %s35 = sadd.s32 %s34, 1
    %s36 = scalar_select %p33, %s34, %s35
    %p39 = pneg %p33
    %p40 = scmp.eq.s32.totalorder %s24, 1
    %p41 = por %p39, %p40
    %p42 = scmp.ne.s32.totalorder %s34, %s37
    %p43 = scmp.eq.s32.totalorder %s24, 0
    %p44 = por %p42, %p43
    %p45 = scmp.ne.s32.totalorder %s34, %s37
    %p46 = scmp.eq.s32.totalorder %s29, 1
    %p47 = por %p45, %p46
    %p48 = scmp.ne.s32.totalorder %s37, %s38
    %p49 = scmp.eq.s32.totalorder %s29, 0
    %p50 = por %p48, %p49
    %p51 = scmp.ne.s32.totalorder %s37, %s38
    %p52 = scmp.eq.s32.totalorder %s30, 1
    %p53 = por %p51, %p52
    %p55 = scmp.ne.s32.totalorder %s38, %s54
    %p56 = scmp.eq.s32.totalorder %s30, 0
    %p57 = por %p55, %p56
    %s59 = sadd.s32 %s58, 1
    %p62 = scmp.eq.s32.totalorder %s24, 1
    %p63 = scmp.ne.s32.totalorder %s58, %s60
    %p64 = scmp.eq.s32.totalorder %s24, 0
    %p65 = por %p63, %p64
    %p66 = scmp.ne.s32.totalorder %s58, %s60
    %p67 = scmp.eq.s32.totalorder %s29, 1
    %p68 = por %p66, %p67
    %p69 = scmp.ne.s32.totalorder %s60, %s61
    %p70 = scmp.eq.s32.totalorder %s29, 0
    %p71 = por %p69, %p70
    %p72 = scmp.ne.s32.totalorder %s60, %s61
    %p73 = scmp.eq.s32.totalorder %s30, 1
    %p74 = por %p72, %p73
    %p76 = scmp.ne.s32.totalorder %s61, %s75
    %p77 = scmp.eq.s32.totalorder %s30, 0
    %p78 = por %p76, %p77
    %s80 = sadd.s32 %s79, 1
    %p83 = scmp.eq.s32.totalorder %s24, 1
    %p84 = scmp.ne.s32.totalorder %s79, %s81
    %p85 = scmp.eq.s32.totalorder %s24, 0
    %p86 = por %p84, %p85
    %p87 = scmp.ne.s32.totalorder %s79, %s81
    %p88 = scmp.eq.s32.totalorder %s29, 1
    %p89 = por %p87, %p88
    %p90 = scmp.ne.s32.totalorder %s81, %s82
    %p91 = scmp.eq.s32.totalorder %s29, 0
    %p92 = por %p90, %p91
    %p93 = scmp.ne.s32.totalorder %s81, %s82
    %p94 = scmp.eq.s32.totalorder %s30, 1
    %p95 = por %p93, %p94
    %p97 = scmp.ne.s32.totalorder %s82, %s96
    %p98 = scmp.eq.s32.totalorder %s30, 0
    %p99 = por %p97, %p98
    %s101 = sadd.s32 %s100, 1
    %p104 = scmp.eq.s32.totalorder %s24, 1
    %p105 = scmp.ne.s32.totalorder %s100, %s102
    %p106 = scmp.eq.s32.totalorder %s24, 0
    %p107 = por %p105, %p106
    %p108 = scmp.ne.s32.totalorder %s100, %s102
    %p109 = scmp.eq.s32.totalorder %s29, 1
    %p110 = por %p108, %p109
    %p111 = scmp.ne.s32.totalorder %s102, %s103
    %p112 = scmp.eq.s32.totalorder %s29, 0
    %p113 = por %p111, %p112
    %p114 = scmp.ne.s32.totalorder %s102, %s103
    %p115 = scmp.eq.s32.totalorder %s30, 1
    %p116 = por %p114, %p115
    %p118 = scmp.ne.s32.totalorder %s103, %s117
    %p119 = scmp.eq.s32.totalorder %s30, 0
    %p120 = por %p118, %p119
    %s122 = sadd.s32 %s121, 1
    %p125 = scmp.eq.s32.totalorder %s24, 1
    %p126 = scmp.ne.s32.totalorder %s121, %s123
    %p127 = scmp.eq.s32.totalorder %s24, 0
    %p128 = por %p126, %p127
    %p129 = scmp.ne.s32.totalorder %s121, %s123
    %p130 = scmp.eq.s32.totalorder %s29, 1
    %p131 = por %p129, %p130
    %p132 = scmp.ne.s32.totalorder %s123, %s124
    %p133 = scmp.eq.s32.totalorder %s29, 0
    %p134 = por %p132, %p133
    %p135 = scmp.ne.s32.totalorder %s123, %s124
    %p136 = scmp.eq.s32.totalorder %s30, 1
    %p137 = por %p135, %p136
    %p139 = scmp.ne.s32.totalorder %s124, %s138
    %p140 = scmp.eq.s32.totalorder %s30, 0
    %p141 = por %p139, %p140
    %s143 = sadd.s32 %s142, 1
    %p146 = scmp.eq.s32.totalorder %s24, 1
    %p147 = scmp.ne.s32.totalorder %s142, %s144
    %p148 = scmp.eq.s32.totalorder %s24, 0
    %p149 = por %p147, %p148
    %p150 = scmp.ne.s32.totalorder %s142, %s144
    %p151 = scmp.eq.s32.totalorder %s29, 1
    %p152 = por %p150, %p151
    %p153 = scmp.ne.s32.totalorder %s144, %s145
    %p154 = scmp.eq.s32.totalorder %s29, 0
    %p155 = por %p153, %p154
    %p156 = scmp.ne.s32.totalorder %s144, %s145
    %p157 = scmp.eq.s32.totalorder %s30, 1
    %p158 = por %p156, %p157
    %p160 = scmp.ne.s32.totalorder %s145, %s159
    %p161 = scmp.eq.s32.totalorder %s30, 0
    %p162 = por %p160, %p161
    %s164 = sadd.s32 %s163, 1
    %p167 = scmp.eq.s32.totalorder %s24, 1
    %p168 = scmp.ne.s32.totalorder %s163, %s165
    %p169 = scmp.eq.s32.totalorder %s24, 0
    %p170 = por %p168, %p169
    %p171 = scmp.ne.s32.totalorder %s163, %s165
    %p172 = scmp.eq.s32.totalorder %s29, 1
    %p173 = por %p171, %p172
    %p174 = scmp.ne.s32.totalorder %s165, %s166
    %p175 = scmp.eq.s32.totalorder %s29, 0
    %p176 = por %p174, %p175
    %p177 = scmp.ne.s32.totalorder %s165, %s166
    %p178 = scmp.eq.s32.totalorder %s30, 1
    %p179 = por %p177, %p178
    %p181 = scmp.ne.s32.totalorder %s166, %s180
    %p182 = scmp.eq.s32.totalorder %s30, 0
    %p183 = por %p181, %p182
    %s185 = sadd.s32 %s184, 1
    %p188 = scmp.eq.s32.totalorder %s24, 1
    %p189 = scmp.ne.s32.totalorder %s184, %s186
    %p190 = scmp.eq.s32.totalorder %s24, 0
    %p191 = por %p189, %p190
    %p192 = scmp.ne.s32.totalorder %s184, %s186
    %p193 = scmp.eq.s32.totalorder %s29, 1
    %p194 = por %p192, %p193
    %p195 = scmp.ne.s32.totalorder %s186, %s187
    %p196 = scmp.eq.s32.totalorder %s29, 0
    %p197 = por %p195, %p196
    %p198 = scmp.ne.s32.totalorder %s186, %s187
    %p199 = scmp.eq.s32.totalorder %s30, 1
    %p200 = por %p198, %p199
    %p202 = scmp.ne.s32.totalorder %s187, %s201
    %p203 = scmp.eq.s32.totalorder %s30, 0
    %p204 = por %p202, %p203
    %s206 = sadd.s32 %s205, 1
    %p209 = scmp.eq.s32.totalorder %s24, 1
    %p210 = scmp.ne.s32.totalorder %s205, %s207
    %p211 = scmp.eq.s32.totalorder %s24, 0
    %p212 = por %p210, %p211
    %p213 = scmp.ne.s32.totalorder %s205, %s207
    %p214 = scmp.eq.s32.totalorder %s29, 1
    %p215 = por %p213, %p214
    %p216 = scmp.ne.s32.totalorder %s207, %s208
    %p217 = scmp.eq.s32.totalorder %s29, 0
    %p218 = por %p216, %p217
    %p219 = scmp.ne.s32.totalorder %s207, %s208
    %p220 = scmp.eq.s32.totalorder %s30, 1
    %p221 = por %p219, %p220
    %p223 = scmp.ne.s32.totalorder %s208, %s222
    %p224 = scmp.eq.s32.totalorder %s30, 0
    %p225 = por %p223, %p224
    %s227 = sadd.s32 %s226, 1
    %p230 = scmp.eq.s32.totalorder %s24, 1
    %p231 = scmp.ne.s32.totalorder %s226, %s228
    %p232 = scmp.eq.s32.totalorder %s24, 0
    %p233 = por %p231, %p232
    %p234 = scmp.ne.s32.totalorder %s226, %s228
    %p235 = scmp.eq.s32.totalorder %s29, 1
    %p236 = por %p234, %p235
    %p237 = scmp.ne.s32.totalorder %s228, %s229
    %p238 = scmp.eq.s32.totalorder %s29, 0
    %p239 = por %p237, %p238
    %p240 = scmp.ne.s32.totalorder %s228, %s229
    %p241 = scmp.eq.s32.totalorder %s30, 1
    %p242 = por %p240, %p241
    %p244 = scmp.ne.s32.totalorder %s229, %s243
    %p245 = scmp.eq.s32.totalorder %s30, 0
    %p246 = por %p244, %p245
    %s248 = sadd.s32 %s247, 1
    %p251 = scmp.eq.s32.totalorder %s24, 1
    %p252 = scmp.ne.s32.totalorder %s247, %s249
    %p253 = scmp.eq.s32.totalorder %s24, 0
    %p254 = por %p252, %p253
    %p255 = scmp.ne.s32.totalorder %s247, %s249
    %p256 = scmp.eq.s32.totalorder %s29, 1
    %p257 = por %p255, %p256
    %p258 = scmp.ne.s32.totalorder %s249, %s250
    %p259 = scmp.eq.s32.totalorder %s29, 0
    %p260 = por %p258, %p259
    %p261 = scmp.ne.s32.totalorder %s249, %s250
    %p262 = scmp.eq.s32.totalorder %s30, 1
    %p263 = por %p261, %p262
    %p265 = scmp.ne.s32.totalorder %s250, %s264
    %p266 = scmp.eq.s32.totalorder %s30, 0
    %p267 = por %p265, %p266
    %s269 = sadd.s32 %s268, 1
    %p272 = scmp.eq.s32.totalorder %s24, 1
    %p273 = scmp.ne.s32.totalorder %s268, %s270
    %p274 = scmp.eq.s32.totalorder %s24, 0
    %p275 = por %p273, %p274
    %p276 = scmp.ne.s32.totalorder %s268, %s270
    %p277 = scmp.eq.s32.totalorder %s29, 1
    %p278 = por %p276, %p277
    %p279 = scmp.ne.s32.totalorder %s270, %s271
    %p280 = scmp.eq.s32.totalorder %s29, 0
    %p281 = por %p279, %p280
    %p282 = scmp.ne.s32.totalorder %s270, %s271
    %p283 = scmp.eq.s32.totalorder %s30, 1
    %p284 = por %p282, %p283
    %p286 = scmp.ne.s32.totalorder %s271, %s285
    %p287 = scmp.eq.s32.totalorder %s30, 0
    %p288 = por %p286, %p287
    %s290 = sadd.s32 %s289, 1
    %p293 = scmp.eq.s32.totalorder %s24, 1
    %p294 = scmp.ne.s32.totalorder %s289, %s291
    %p295 = scmp.eq.s32.totalorder %s24, 0
    %p296 = por %p294, %p295
    %p297 = scmp.ne.s32.totalorder %s289, %s291
    %p298 = scmp.eq.s32.totalorder %s29, 1
    %p299 = por %p297, %p298
    %p300 = scmp.ne.s32.totalorder %s291, %s292
    %p301 = scmp.eq.s32.totalorder %s29, 0
    %p302 = por %p300, %p301
    %p303 = scmp.ne.s32.totalorder %s291, %s292
    %p304 = scmp.eq.s32.totalorder %s30, 1
    %p305 = por %p303, %p304
    %p307 = scmp.ne.s32.totalorder %s292, %s306
    %p308 = scmp.eq.s32.totalorder %s30, 0
    %p309 = por %p307, %p308
    %s311 = sadd.s32 %s310, 1
    %p314 = scmp.eq.s32.totalorder %s24, 1
    %p315 = scmp.ne.s32.totalorder %s310, %s312
    %p316 = scmp.eq.s32.totalorder %s24, 0
    %p317 = por %p315, %p316
    %p318 = scmp.ne.s32.totalorder %s310, %s312
    %p319 = scmp.eq.s32.totalorder %s29, 1
    %p320 = por %p318, %p319
    %p321 = scmp.ne.s32.totalorder %s312, %s313
    %p322 = scmp.eq.s32.totalorder %s29, 0
    %p323 = por %p321, %p322
    %p324 = scmp.ne.s32.totalorder %s312, %s313
    %p325 = scmp.eq.s32.totalorder %s30, 1
    %p326 = por %p324, %p325
    %p328 = scmp.ne.s32.totalorder %s313, %s327
    %p329 = scmp.eq.s32.totalorder %s30, 0
    %p330 = por %p328, %p329
    %s332 = sadd.s32 %s331, 1
    %p335 = scmp.eq.s32.totalorder %s24, 1
    %p336 = scmp.ne.s32.totalorder %s331, %s333
    %p337 = scmp.eq.s32.totalorder %s24, 0
    %p338 = por %p336, %p337
    %p339 = scmp.ne.s32.totalorder %s331, %s333
    %p340 = scmp.eq.s32.totalorder %s29, 1
    %p341 = por %p339, %p340
    %p342 = scmp.ne.s32.totalorder %s333, %s334
    %p343 = scmp.eq.s32.totalorder %s29, 0
    %p344 = por %p342, %p343
    %p345 = scmp.ne.s32.totalorder %s333, %s334
    %p346 = scmp.eq.s32.totalorder %s30, 1
    %p347 = por %p345, %p346
    %p349 = scmp.ne.s32.totalorder %s334, %s348
    %p350 = scmp.eq.s32.totalorder %s30, 0
    %p351 = por %p349, %p350
    %s353 = sadd.s32 %s352, 1
    %p356 = scmp.eq.s32.totalorder %s24, 1
    %p357 = scmp.ne.s32.totalorder %s352, %s354
    %p358 = scmp.eq.s32.totalorder %s24, 0
    %p359 = por %p357, %p358
    %p360 = scmp.ne.s32.totalorder %s352, %s354
    %p361 = scmp.eq.s32.totalorder %s29, 1
    %p362 = por %p360, %p361
    %p363 = scmp.ne.s32.totalorder %s354, %s355
    %p364 = scmp.eq.s32.totalorder %s29, 0
    %p365 = por %p363, %p364
    %p366 = scmp.ne.s32.totalorder %s354, %s355
    %p367 = scmp.eq.s32.totalorder %s30, 1
    %p368 = por %p366, %p367
    %p370 = scmp.ne.s32.totalorder %s355, %s369
    %p371 = scmp.eq.s32.totalorder %s30, 0
    %p372 = por %p370, %p371
    %s374 = sadd.s32 %s373, 1
    %p377 = scmp.eq.s32.totalorder %s24, 1
    %p378 = scmp.ne.s32.totalorder %s373, %s375
    %p379 = scmp.eq.s32.totalorder %s24, 0
    %p380 = por %p378, %p379
    %p381 = scmp.ne.s32.totalorder %s373, %s375
    %p382 = scmp.eq.s32.totalorder %s29, 1
    %p383 = por %p381, %p382
    %p384 = scmp.ne.s32.totalorder %s375, %s376
    %p385 = scmp.eq.s32.totalorder %s29, 0
    %p386 = por %p384, %p385
    %p387 = scmp.ne.s32.totalorder %s375, %s376
    %p388 = scmp.eq.s32.totalorder %s30, 1
    %p389 = por %p387, %p388
    %p391 = scmp.ne.s32.totalorder %s376, %s390
    %p392 = scmp.eq.s32.totalorder %s30, 0
    %p393 = por %p391, %p392
    %s395 = sadd.s32 %s394, 1
    %p398 = scmp.eq.s32.totalorder %s24, 1
    %p399 = scmp.ne.s32.totalorder %s394, %s396
    %p400 = scmp.eq.s32.totalorder %s24, 0
    %p401 = por %p399, %p400
    %p402 = scmp.ne.s32.totalorder %s394, %s396
    %p403 = scmp.eq.s32.totalorder %s29, 1
    %p404 = por %p402, %p403
    %p405 = scmp.ne.s32.totalorder %s396, %s397
    %p406 = scmp.eq.s32.totalorder %s29, 0
    %p407 = por %p405, %p406
    %p408 = scmp.ne.s32.totalorder %s396, %s397
    %p409 = scmp.eq.s32.totalorder %s30, 1
    %p410 = por %p408, %p409
    %p412 = scmp.ne.s32.totalorder %s397, %s411
    %p413 = scmp.eq.s32.totalorder %s30, 0
    %p414 = por %p412, %p413
    %s415 = ssub.s32 %s24, %s31
    %p416 = scmp.eq.s32.totalorder %s415, 0
    %s418 = sadd.s32 %s417, 1
    %s419 = scalar_select %p416, %s417, %s418
    %p422 = pneg %p416
    %p423 = scmp.eq.s32.totalorder %s24, 1
    %p424 = por %p422, %p423
    %p425 = scmp.ne.s32.totalorder %s417, %s420
    %p426 = scmp.eq.s32.totalorder %s24, 0
    %p427 = por %p425, %p426
    %p428 = scmp.ne.s32.totalorder %s417, %s420
    %p429 = scmp.eq.s32.totalorder %s29, 1
    %p430 = por %p428, %p429
    %p431 = scmp.ne.s32.totalorder %s420, %s421
    %p432 = scmp.eq.s32.totalorder %s29, 0
    %p433 = por %p431, %p432
    %p434 = scmp.ne.s32.totalorder %s420, %s421
    %p435 = scmp.eq.s32.totalorder %s30, 1
    %p436 = por %p434, %p435
    %p438 = scmp.ne.s32.totalorder %s421, %s437
    %p439 = scmp.eq.s32.totalorder %s30, 0
    %p440 = por %p438, %p439
    %p441 = scmp.le.s32.totalorder 1, %s24
    %p442 = scmp.lt.s32.totalorder %s24, 3
    %p443 = pnand %p441, %p442
    %p444 = pneg %p443
    // Predicated region
    $region9: #{tpu_custom_call.1} parent=5 // pred_check
      _
    $region10: #{tpu_custom_call.1} parent=5 // pred_check_branch
      %446 = sbr.rel (%p443) target = $region12
    $region11: #{tpu_custom_call.1} parent=5 // pred_region
      %s447 = ssub.s32 %s24, 1
      // Predicated region
      $region13: #{tpu_custom_call.1} parent=11 // pred_check
        %p448 = pneg %p71
      $region14: #{tpu_custom_call.1} parent=11 // pred_check_branch
        %450 = sbr.rel (%p448) target = $region16
      $region15: #{tpu_custom_call.1} parent=11 // pred_region
        _
      $region16: #{tpu_custom_call.1} parent=11 // pred_fallthru
        _
      // Predicated region
      $region17: #{tpu_custom_call.1} parent=11 // pred_check
        %p451 = pneg %p92
      $region18: #{tpu_custom_call.1} parent=11 // pred_check_branch
        %453 = sbr.rel (%p451) target = $region20
      $region19: #{tpu_custom_call.1} parent=11 // pred_region
        _
      $region20: #{tpu_custom_call.1} parent=11 // pred_fallthru
        _
      // Predicated region
      $region21: #{tpu_custom_call.1} parent=11 // pred_check
        %p454 = pneg %p113
      $region22: #{tpu_custom_call.1} parent=11 // pred_check_branch
        %456 = sbr.rel (%p454) target = $region24
      $region23: #{tpu_custom_call.1} parent=11 // pred_region
        _
      $region24: #{tpu_custom_call.1} parent=11 // pred_fallthru
        _
      // Predicated region
      $region25: #{tpu_custom_call.1} parent=11 // pred_check
        %p457 = pneg %p134
      $region26: #{tpu_custom_call.1} parent=11 // pred_check_branch
        %459 = sbr.rel (%p457) target = $region28
      $region27: #{tpu_custom_call.1} parent=11 // pred_region
        _
      $region28: #{tpu_custom_call.1} parent=11 // pred_fallthru
        _
      // Predicated region
      $region29: #{tpu_custom_call.1} parent=11 // pred_check
        %p460 = pneg %p155
      $region30: #{tpu_custom_call.1} parent=11 // pred_check_branch
        %462 = sbr.rel (%p460) target = $region32
      $region31: #{tpu_custom_call.1} parent=11 // pred_region
        _
      $region32: #{tpu_custom_call.1} parent=11 // pred_fallthru
        _
      // Predicated region
      $region33: #{tpu_custom_call.1} parent=11 // pred_check
        %p463 = pneg %p176
      $region34: #{tpu_custom_call.1} parent=11 // pred_check_branch
        %465 = sbr.rel (%p463) target = $region36
      $region35: #{tpu_custom_call.1} parent=11 // pred_region
        _
      $region36: #{tpu_custom_call.1} parent=11 // pred_fallthru
        _
      // Predicated region
      $region37: #{tpu_custom_call.1} parent=11 // pred_check
        %p466 = pneg %p197
      $region38: #{tpu_custom_call.1} parent=11 // pred_check_branch
        %468 = sbr.rel (%p466) target = $region40
      $region39: #{tpu_custom_call.1} parent=11 // pred_region
        _
      $region40: #{tpu_custom_call.1} parent=11 // pred_fallthru
        _
      // Predicated region
      $region41: #{tpu_custom_call.1} parent=11 // pred_check
        %p469 = pneg %p218
      $region42: #{tpu_custom_call.1} parent=11 // pred_check_branch
        %471 = sbr.rel (%p469) target = $region44
      $region43: #{tpu_custom_call.1} parent=11 // pred_region
        _
      $region44: #{tpu_custom_call.1} parent=11 // pred_fallthru
        _
      // Predicated region
      $region45: #{tpu_custom_call.1} parent=11 // pred_check
        %p472 = pneg %p239
      $region46: #{tpu_custom_call.1} parent=11 // pred_check_branch
        %474 = sbr.rel (%p472) target = $region48
      $region47: #{tpu_custom_call.1} parent=11 // pred_region
        _
      $region48: #{tpu_custom_call.1} parent=11 // pred_fallthru
        _
      // Predicated region
      $region49: #{tpu_custom_call.1} parent=11 // pred_check
        %p475 = pneg %p260
      $region50: #{tpu_custom_call.1} parent=11 // pred_check_branch
        %477 = sbr.rel (%p475) target = $region52
      $region51: #{tpu_custom_call.1} parent=11 // pred_region
        _
      $region52: #{tpu_custom_call.1} parent=11 // pred_fallthru
        _
      // Predicated region
      $region53: #{tpu_custom_call.1} parent=11 // pred_check
        %p478 = pneg %p281
      $region54: #{tpu_custom_call.1} parent=11 // pred_check_branch
        %480 = sbr.rel (%p478) target = $region56
      $region55: #{tpu_custom_call.1} parent=11 // pred_region
        _
      $region56: #{tpu_custom_call.1} parent=11 // pred_fallthru
        _
      // Predicated region
      $region57: #{tpu_custom_call.1} parent=11 // pred_check
        %p481 = pneg %p302
      $region58: #{tpu_custom_call.1} parent=11 // pred_check_branch
        %483 = sbr.rel (%p481) target = $region60
      $region59: #{tpu_custom_call.1} parent=11 // pred_region
        _
      $region60: #{tpu_custom_call.1} parent=11 // pred_fallthru
        _
      // Predicated region
      $region61: #{tpu_custom_call.1} parent=11 // pred_check
        %p484 = pneg %p323
      $region62: #{tpu_custom_call.1} parent=11 // pred_check_branch
        %486 = sbr.rel (%p484) target = $region64
      $region63: #{tpu_custom_call.1} parent=11 // pred_region
        _
      $region64: #{tpu_custom_call.1} parent=11 // pred_fallthru
        _
      // Predicated region
      $region65: #{tpu_custom_call.1} parent=11 // pred_check
        %p487 = pneg %p344
      $region66: #{tpu_custom_call.1} parent=11 // pred_check_branch
        %489 = sbr.rel (%p487) target = $region68
      $region67: #{tpu_custom_call.1} parent=11 // pred_region
        _
      $region68: #{tpu_custom_call.1} parent=11 // pred_fallthru
        _
      // Predicated region
      $region69: #{tpu_custom_call.1} parent=11 // pred_check
        %p490 = pneg %p365
      $region70: #{tpu_custom_call.1} parent=11 // pred_check_branch
        %492 = sbr.rel (%p490) target = $region72
      $region71: #{tpu_custom_call.1} parent=11 // pred_region
        _
      $region72: #{tpu_custom_call.1} parent=11 // pred_fallthru
        _
      // Predicated region
      $region73: #{tpu_custom_call.1} parent=11 // pred_check
        %p493 = pneg %p386
      $region74: #{tpu_custom_call.1} parent=11 // pred_check_branch
        %495 = sbr.rel (%p493) target = $region76
      $region75: #{tpu_custom_call.1} parent=11 // pred_region
        _
      $region76: #{tpu_custom_call.1} parent=11 // pred_fallthru
        _
      // Predicated region
      $region77: #{tpu_custom_call.1} parent=11 // pred_check
        %p496 = pneg %p407
      $region78: #{tpu_custom_call.1} parent=11 // pred_check_branch
        %498 = sbr.rel (%p496) target = $region80
      $region79: #{tpu_custom_call.1} parent=11 // pred_region
        _
      $region80: #{tpu_custom_call.1} parent=11 // pred_fallthru
        _
    $region12: #{tpu_custom_call.1} parent=5 // pred_fallthru
      _
    %p499 = scmp.lt.s32.totalorder %s24, 2
    // Predicated region
    $region81: #{tpu_custom_call.1} parent=5 // pred_check
      %p500 = pneg %p499
    $region82: #{tpu_custom_call.1} parent=5 // pred_check_branch
      %502 = sbr.rel (%p500) target = $region84
    $region83: #{tpu_custom_call.1} parent=5 // pred_region
      // Predicated region
      $region85: #{tpu_custom_call.1} parent=83 // pred_check
        %p503 = pneg %p44
      $region86: #{tpu_custom_call.1} parent=83 // pred_check_branch
        %505 = sbr.rel (%p503) target = $region88
      $region87: #{tpu_custom_call.1} parent=83 // pred_region
        %p506 = scmp.lt.s32.totalorder %s24, 1
        %s507 = scalar_select %p506, %s24, 1
        %s508 = smul.addr %s507, 32
        %s509 = smul.addr %s508, 8
        %s510 = scalar_lea.vmem %s0, %s509
      $region88: #{tpu_custom_call.1} parent=83 // pred_fallthru
        _
    $region84: #{tpu_custom_call.1} parent=5 // pred_fallthru
      _
    %p511 = scmp.le.s32.totalorder 1, %s24
    %p512 = scmp.lt.s32.totalorder %s24, 3
    %p513 = pnand %p511, %p512
    %p514 = pneg %p513
    // Predicated region
    $region89: #{tpu_custom_call.1} parent=5 // pred_check
      _
    $region90: #{tpu_custom_call.1} parent=5 // pred_check_branch
      %516 = sbr.rel (%p513) target = $region92
    $region91: #{tpu_custom_call.1} parent=5 // pred_region
      %s517 = ssub.s32 %s24, 1
      %p518 = scmp.lt.s32.totalorder %s29, 1
      %s519 = scalar_select %p518, %s29, 1
      %s520 = smul.addr %s519, 32
      %s521 = smul.addr %s520, 8
      %s522 = scalar_lea.vmem %s0, %s521
      %p523 = pneg %p50
      %p524 = pneg %p47
      %p525 = pneg %p71
      %p526 = pneg %p68
      %p527 = pneg %p92
      %p528 = pneg %p89
      %p529 = pneg %p113
      %p530 = pneg %p110
      %p531 = pneg %p134
      %p532 = pneg %p131
      %p533 = pneg %p155
      %p534 = pneg %p152
      %p535 = pneg %p176
      %p536 = pneg %p173
      %p537 = pneg %p197
      %p538 = pneg %p194
      %p539 = pneg %p218
      %p540 = pneg %p215
      %p541 = pneg %p239
      %p542 = pneg %p236
      %p543 = pneg %p260
      %p544 = pneg %p257
      %p545 = pneg %p281
      %p546 = pneg %p278
      %p547 = pneg %p302
      %p548 = pneg %p299
      %p549 = pneg %p323
      %p550 = pneg %p320
      %p551 = pneg %p344
      %p552 = pneg %p341
      %p553 = pneg %p365
      %p554 = pneg %p362
      %p555 = pneg %p386
      %p556 = pneg %p383
      %p557 = pneg %p407
      %p558 = pneg %p404
      %p559 = pneg %p433
      %p560 = pneg %p430
      %p561 = scmp.lt.s32.totalorder %s29, 1
      %s562 = scalar_select %p561, %s29, 1
      %s563 = smul.addr %s562, 32
      %s564 = smul.addr %s563, 8
      %s565 = scalar_lea.vmem %s18, %s564
      %p566 = scmp.lt.s32.totalorder %s29, 1
      %s567 = scalar_select %p566, %s29, 1
      %s568 = smul.addr %s567, 32
      %s569 = smul.addr %s568, 8
      %s570 = scalar_lea.vmem %s0, %s569
      %p571 = scmp.lt.s32.totalorder %s29, 1
      %s572 = scalar_select %p571, %s29, 1
      %s573 = smul.addr %s572, 32
      %s574 = smul.addr %s573, 8
      %s575 = scalar_lea.vmem %s18, %s574
      %v577 = vld [vmem:[%s570] sm:$0xff]
      %v578 = vld [vmem:[%s570 + $0x8] sm:$0xff]
      %v579 = vld [vmem:[%s570 + $0x10] sm:$0xff]
      %v580 = vld [vmem:[%s570 + $0x18] sm:$0xff]
      %v581 = vld [vmem:[%s570 + $0x20] sm:$0xff]
      %v582 = vld [vmem:[%s570 + $0x28] sm:$0xff]
      %v583 = vld [vmem:[%s570 + $0x30] sm:$0xff]
      %v584 = vld [vmem:[%s570 + $0x38] sm:$0xff]
      %v585 = vld [vmem:[%s570 + $0x40] sm:$0xff]
      %v586 = vld [vmem:[%s570 + $0x48] sm:$0xff]
      %v587 = vld [vmem:[%s570 + $0x50] sm:$0xff]
      %v588 = vld [vmem:[%s570 + $0x58] sm:$0xff]
      %v589 = vld [vmem:[%s570 + $0x60] sm:$0xff]
      %v590 = vld [vmem:[%s570 + $0x68] sm:$0xff]
      %v591 = vld [vmem:[%s570 + $0x70] sm:$0xff]
      %v592 = vld [vmem:[%s570 + $0x78] sm:$0xff]
      %v593 = vld [vmem:[%s570 + $0x80] sm:$0xff]
      %v594 = vld [vmem:[%s570 + $0x88] sm:$0xff]
      %v595 = vld [vmem:[%s570 + $0x90] sm:$0xff]
      %v596 = vld [vmem:[%s570 + $0x98] sm:$0xff]
      %v597 = vld [vmem:[%s570 + $0xa0] sm:$0xff]
      %v598 = vld [vmem:[%s570 + $0xa8] sm:$0xff]
      %v599 = vld [vmem:[%s570 + $0xb0] sm:$0xff]
      %v600 = vld [vmem:[%s570 + $0xb8] sm:$0xff]
      %v601 = vld [vmem:[%s570 + $0xc0] sm:$0xff]
      %v602 = vld [vmem:[%s570 + $0xc8] sm:$0xff]
      %v603 = vld [vmem:[%s570 + $0xd0] sm:$0xff]
      %v604 = vld [vmem:[%s570 + $0xd8] sm:$0xff]
      %v605 = vld [vmem:[%s570 + $0xe0] sm:$0xff]
      %v606 = vld [vmem:[%s570 + $0xe8] sm:$0xff]
      %v607 = vld [vmem:[%s570 + $0xf0] sm:$0xff]
      %v608 = vld [vmem:[%s570 + $0xf8] sm:$0xff]
      %vm609 = vcmask 261120
      %610 = vst.msk [vmem:[#allocation2] sm:$0xff] %vm609, 0.0
      %611 = vst.msk [vmem:[#allocation2 + $0x8] sm:$0xff] %vm609, 0.0
      %612 = vst.msk [vmem:[#allocation2 + $0x10] sm:$0xff] %vm609, 0.0
      %613 = vst.msk [vmem:[#allocation2 + $0x18] sm:$0xff] %vm609, 0.0
      %614 = vst.msk [vmem:[#allocation2 + $0x20] sm:$0xff] %vm609, 0.0
      %615 = vst.msk [vmem:[#allocation2 + $0x28] sm:$0xff] %vm609, 0.0
      %616 = vst.msk [vmem:[#allocation2 + $0x30] sm:$0xff] %vm609, 0.0
      %617 = vst.msk [vmem:[#allocation2 + $0x38] sm:$0xff] %vm609, 0.0
      %618 = vst.msk [vmem:[#allocation2 + $0x40] sm:$0xff] %vm609, 0.0
      %619 = vst.msk [vmem:[#allocation2 + $0x48] sm:$0xff] %vm609, 0.0
      %620 = vst.msk [vmem:[#allocation2 + $0x50] sm:$0xff] %vm609, 0.0
      %621 = vst.msk [vmem:[#allocation2 + $0x58] sm:$0xff] %vm609, 0.0
      %622 = vst.msk [vmem:[#allocation2 + $0x60] sm:$0xff] %vm609, 0.0
      %623 = vst.msk [vmem:[#allocation2 + $0x68] sm:$0xff] %vm609, 0.0
      %624 = vst.msk [vmem:[#allocation2 + $0x70] sm:$0xff] %vm609, 0.0
      %625 = vst.msk [vmem:[#allocation2 + $0x78] sm:$0xff] %vm609, 0.0
      %626 = vst.msk [vmem:[#allocation2 + $0x80] sm:$0xff] %vm609, 0.0
      %627 = vst.msk [vmem:[#allocation2 + $0x88] sm:$0xff] %vm609, 0.0
      %628 = vst.msk [vmem:[#allocation2 + $0x90] sm:$0xff] %vm609, 0.0
      %629 = vst.msk [vmem:[#allocation2 + $0x98] sm:$0xff] %vm609, 0.0
      %630 = vst.msk [vmem:[#allocation2 + $0xa0] sm:$0xff] %vm609, 0.0
      %631 = vst.msk [vmem:[#allocation2 + $0xa8] sm:$0xff] %vm609, 0.0
      %632 = vst.msk [vmem:[#allocation2 + $0xb0] sm:$0xff] %vm609, 0.0
      %633 = vst.msk [vmem:[#allocation2 + $0xb8] sm:$0xff] %vm609, 0.0
      %634 = vst.msk [vmem:[#allocation2 + $0xc0] sm:$0xff] %vm609, 0.0
      %635 = vst.msk [vmem:[#allocation2 + $0xc8] sm:$0xff] %vm609, 0.0
      %636 = vst.msk [vmem:[#allocation2 + $0xd0] sm:$0xff] %vm609, 0.0
      %637 = vst.msk [vmem:[#allocation2 + $0xd8] sm:$0xff] %vm609, 0.0
      %638 = vst.msk [vmem:[#allocation2 + $0xe0] sm:$0xff] %vm609, 0.0
      %639 = vst.msk [vmem:[#allocation2 + $0xe8] sm:$0xff] %vm609, 0.0
      %640 = vst.msk [vmem:[#allocation2 + $0xf0] sm:$0xff] %vm609, 0.0
      %641 = vst.msk [vmem:[#allocation2 + $0xf8] sm:$0xff] %vm609, 0.0
      %642 = vst.msk [vmem:[#allocation2 + $0x100] sm:$0xff] %vm609, 0.0
      %643 = vst.msk [vmem:[#allocation2 + $0x108] sm:$0xff] %vm609, 0.0
      %644 = vst.msk [vmem:[#allocation2 + $0x110] sm:$0xff] %vm609, 0.0
      %645 = vst.msk [vmem:[#allocation2 + $0x118] sm:$0xff] %vm609, 0.0
      %646 = vst.msk [vmem:[#allocation2 + $0x120] sm:$0xff] %vm609, 0.0
      %647 = vst.msk [vmem:[#allocation2 + $0x128] sm:$0xff] %vm609, 0.0
      %v648 = vlaneseq
      %v649 = vshrl.u32 %v648, 7
      %v650 = vadd.s32 %v649, 8
      %v651 = vadd.s32 %v649, 16
      %v652 = vadd.s32 %v649, 24
      %v653 = vadd.s32 %v649, 32
      %v654 = vadd.s32 %v649, 40
      %v655 = vadd.s32 %v649, 48
      %v656 = vadd.s32 %v649, 56
      %v657 = vadd.s32 %v649, 64
      %v658 = vadd.s32 %v649, 72
      %v659 = vadd.s32 %v649, 80
      %v660 = vadd.s32 %v649, 88
      %v661 = vadd.s32 %v649, 96
      %v662 = vadd.s32 %v649, 104
      %v663 = vadd.s32 %v649, 112
      %v664 = vadd.s32 %v649, 120
      %v665 = vadd.s32 %v649, 128
      %v666 = vadd.s32 %v649, 136
      %v667 = vadd.s32 %v649, 144
      %v668 = vadd.s32 %v649, 152
      %v669 = vadd.s32 %v649, 160
      %v670 = vadd.s32 %v649, 168
      %v671 = vadd.s32 %v649, 176
      %v672 = vadd.s32 %v649, 184
      %v673 = vadd.s32 %v649, 192
      %v674 = vadd.s32 %v649, 200
      %v675 = vadd.s32 %v649, 208
      %v676 = vadd.s32 %v649, 216
      %v677 = vadd.s32 %v649, 224
      %v678 = vadd.s32 %v649, 232
      %v679 = vadd.s32 %v649, 240
      %v680 = vadd.s32 %v649, 248
      %vm681 = vcmp.lt.s32.totalorder %v649, 0
      %v682 = vsub.s32 0, %v649
      %v683 = vsel %vm681, %v682, %v649
      %v684 = vshrl.u32 %v683, 4
      %v685 = vand.u32 %v683, 15
      %v686 = vsub.s32 0, %v685
      %v687 = vsel %vm681, %v686, %v685
      %vm688 = vcmp.lt.s32.totalorder %v650, 0
      %v689 = vsub.s32 0, %v650
      %v690 = vsel %vm688, %v689, %v650
      %v691 = vshrl.u32 %v690, 4
      %v692 = vand.u32 %v690, 15
      %v693 = vsub.s32 0, %v692
      %v694 = vsel %vm688, %v693, %v692
      %vm695 = vcmp.lt.s32.totalorder %v651, 0
      %v696 = vsub.s32 0, %v651
      %v697 = vsel %vm695, %v696, %v651
      %v698 = vshrl.u32 %v697, 4
      %v699 = vand.u32 %v697, 15
      %v700 = vsub.s32 0, %v699
      %v701 = vsel %vm695, %v700, %v699
      %vm702 = vcmp.lt.s32.totalorder %v652, 0
      %v703 = vsub.s32 0, %v652
      %v704 = vsel %vm702, %v703, %v652
      %v705 = vshrl.u32 %v704, 4
      %v706 = vand.u32 %v704, 15
      %v707 = vsub.s32 0, %v706
      %v708 = vsel %vm702, %v707, %v706
      %vm709 = vcmp.lt.s32.totalorder %v653, 0
      %v710 = vsub.s32 0, %v653
      %v711 = vsel %vm709, %v710, %v653
      %v712 = vshrl.u32 %v711, 4
      %v713 = vand.u32 %v711, 15
      %v714 = vsub.s32 0, %v713
      %v715 = vsel %vm709, %v714, %v713
      %vm716 = vcmp.lt.s32.totalorder %v654, 0
      %v717 = vsub.s32 0, %v654
      %v718 = vsel %vm716, %v717, %v654
      %v719 = vshrl.u32 %v718, 4
      %v720 = vand.u32 %v718, 15
      %v721 = vsub.s32 0, %v720
      %v722 = vsel %vm716, %v721, %v720
      %vm723 = vcmp.lt.s32.totalorder %v655, 0
      %v724 = vsub.s32 0, %v655
      %v725 = vsel %vm723, %v724, %v655
      %v726 = vshrl.u32 %v725, 4
      %v727 = vand.u32 %v725, 15
      %v728 = vsub.s32 0, %v727
      %v729 = vsel %vm723, %v728, %v727
      %vm730 = vcmp.lt.s32.totalorder %v656, 0
      %v731 = vsub.s32 0, %v656
      %v732 = vsel %vm730, %v731, %v656
      %v733 = vshrl.u32 %v732, 4
      %v734 = vand.u32 %v732, 15
      %v735 = vsub.s32 0, %v734
      %v736 = vsel %vm730, %v735, %v734
      %vm737 = vcmp.lt.s32.totalorder %v657, 0
      %v738 = vsub.s32 0, %v657
      %v739 = vsel %vm737, %v738, %v657
      %v740 = vshrl.u32 %v739, 4
      %v741 = vand.u32 %v739, 15
      %v742 = vsub.s32 0, %v741
      %v743 = vsel %vm737, %v742, %v741
      %vm744 = vcmp.lt.s32.totalorder %v658, 0
      %v745 = vsub.s32 0, %v658
      %v746 = vsel %vm744, %v745, %v658
      %v747 = vshrl.u32 %v746, 4
      %v748 = vand.u32 %v746, 15
      %v749 = vsub.s32 0, %v748
      %v750 = vsel %vm744, %v749, %v748
      %vm751 = vcmp.lt.s32.totalorder %v659, 0
      %v752 = vsub.s32 0, %v659
      %v753 = vsel %vm751, %v752, %v659
      %v754 = vshrl.u32 %v753, 4
      %v755 = vand.u32 %v753, 15
      %v756 = vsub.s32 0, %v755
      %v757 = vsel %vm751, %v756, %v755
      %vm758 = vcmp.lt.s32.totalorder %v660, 0
      %v759 = vsub.s32 0, %v660
      %v760 = vsel %vm758, %v759, %v660
      %v761 = vshrl.u32 %v760, 4
      %v762 = vand.u32 %v760, 15
      %v763 = vsub.s32 0, %v762
      %v764 = vsel %vm758, %v763, %v762
      %vm765 = vcmp.lt.s32.totalorder %v661, 0
      %v766 = vsub.s32 0, %v661
      %v767 = vsel %vm765, %v766, %v661
      %v768 = vshrl.u32 %v767, 4
      %v769 = vand.u32 %v767, 15
      %v770 = vsub.s32 0, %v769
      %v771 = vsel %vm765, %v770, %v769
      %vm772 = vcmp.lt.s32.totalorder %v662, 0
      %v773 = vsub.s32 0, %v662
      %v774 = vsel %vm772, %v773, %v662
      %v775 = vshrl.u32 %v774, 4
      %v776 = vand.u32 %v774, 15
      %v777 = vsub.s32 0, %v776
      %v778 = vsel %vm772, %v777, %v776
      %vm779 = vcmp.lt.s32.totalorder %v663, 0
      %v780 = vsub.s32 0, %v663
      %v781 = vsel %vm779, %v780, %v663
      %v782 = vshrl.u32 %v781, 4
      %v783 = vand.u32 %v781, 15
      %v784 = vsub.s32 0, %v783
      %v785 = vsel %vm779, %v784, %v783
      %vm786 = vcmp.lt.s32.totalorder %v664, 0
      %v787 = vsub.s32 0, %v664
      %v788 = vsel %vm786, %v787, %v664
      %v789 = vshrl.u32 %v788, 4
      %v790 = vand.u32 %v788, 15
      %v791 = vsub.s32 0, %v790
      %v792 = vsel %vm786, %v791, %v790
      %vm793 = vcmp.lt.s32.totalorder %v665, 0
      %v794 = vsub.s32 0, %v665
      %v795 = vsel %vm793, %v794, %v665
      %v796 = vshrl.u32 %v795, 4
      %v797 = vand.u32 %v795, 15
      %v798 = vsub.s32 0, %v797
      %v799 = vsel %vm793, %v798, %v797
      %vm800 = vcmp.lt.s32.totalorder %v666, 0
      %v801 = vsub.s32 0, %v666
      %v802 = vsel %vm800, %v801, %v666
      %v803 = vshrl.u32 %v802, 4
      %v804 = vand.u32 %v802, 15
      %v805 = vsub.s32 0, %v804
      %v806 = vsel %vm800, %v805, %v804
      %vm807 = vcmp.lt.s32.totalorder %v667, 0
      %v808 = vsub.s32 0, %v667
      %v809 = vsel %vm807, %v808, %v667
      %v810 = vshrl.u32 %v809, 4
      %v811 = vand.u32 %v809, 15
      %v812 = vsub.s32 0, %v811
      %v813 = vsel %vm807, %v812, %v811
      %vm814 = vcmp.lt.s32.totalorder %v668, 0
      %v815 = vsub.s32 0, %v668
      %v816 = vsel %vm814, %v815, %v668
      %v817 = vshrl.u32 %v816, 4
      %v818 = vand.u32 %v816, 15
      %v819 = vsub.s32 0, %v818
      %v820 = vsel %vm814, %v819, %v818
      %vm821 = vcmp.lt.s32.totalorder %v669, 0
      %v822 = vsub.s32 0, %v669
      %v823 = vsel %vm821, %v822, %v669
      %v824 = vshrl.u32 %v823, 4
      %v825 = vand.u32 %v823, 15
      %v826 = vsub.s32 0, %v825
      %v827 = vsel %vm821, %v826, %v825
      %vm828 = vcmp.lt.s32.totalorder %v670, 0
      %v829 = vsub.s32 0, %v670
      %v830 = vsel %vm828, %v829, %v670
      %v831 = vshrl.u32 %v830, 4
      %v832 = vand.u32 %v830, 15
      %v833 = vsub.s32 0, %v832
      %v834 = vsel %vm828, %v833, %v832
      %vm835 = vcmp.lt.s32.totalorder %v671, 0
      %v836 = vsub.s32 0, %v671
      %v837 = vsel %vm835, %v836, %v671
      %v838 = vshrl.u32 %v837, 4
      %v839 = vand.u32 %v837, 15
      %v840 = vsub.s32 0, %v839
      %v841 = vsel %vm835, %v840, %v839
      %vm842 = vcmp.lt.s32.totalorder %v672, 0
      %v843 = vsub.s32 0, %v672
      %v844 = vsel %vm842, %v843, %v672
      %v845 = vshrl.u32 %v844, 4
      %v846 = vand.u32 %v844, 15
      %v847 = vsub.s32 0, %v846
      %v848 = vsel %vm842, %v847, %v846
      %vm849 = vcmp.lt.s32.totalorder %v673, 0
      %v850 = vsub.s32 0, %v673
      %v851 = vsel %vm849, %v850, %v673
      %v852 = vshrl.u32 %v851, 4
      %v853 = vand.u32 %v851, 15
      %v854 = vsub.s32 0, %v853
      %v855 = vsel %vm849, %v854, %v853
      %vm856 = vcmp.lt.s32.totalorder %v674, 0
      %v857 = vsub.s32 0, %v674
      %v858 = vsel %vm856, %v857, %v674
      %v859 = vshrl.u32 %v858, 4
      %v860 = vand.u32 %v858, 15
      %v861 = vsub.s32 0, %v860
      %v862 = vsel %vm856, %v861, %v860
      %vm863 = vcmp.lt.s32.totalorder %v675, 0
      %v864 = vsub.s32 0, %v675
      %v865 = vsel %vm863, %v864, %v675
      %v866 = vshrl.u32 %v865, 4
      %v867 = vand.u32 %v865, 15
      %v868 = vsub.s32 0, %v867
      %v869 = vsel %vm863, %v868, %v867
      %vm870 = vcmp.lt.s32.totalorder %v676, 0
      %v871 = vsub.s32 0, %v676
      %v872 = vsel %vm870, %v871, %v676
      %v873 = vshrl.u32 %v872, 4
      %v874 = vand.u32 %v872, 15
      %v875 = vsub.s32 0, %v874
      %v876 = vsel %vm870, %v875, %v874
      %vm877 = vcmp.lt.s32.totalorder %v677, 0
      %v878 = vsub.s32 0, %v677
      %v879 = vsel %vm877, %v878, %v677
      %v880 = vshrl.u32 %v879, 4
      %v881 = vand.u32 %v879, 15
      %v882 = vsub.s32 0, %v881
      %v883 = vsel %vm877, %v882, %v881
      %vm884 = vcmp.lt.s32.totalorder %v678, 0
      %v885 = vsub.s32 0, %v678
      %v886 = vsel %vm884, %v885, %v678
      %v887 = vshrl.u32 %v886, 4
      %v888 = vand.u32 %v886, 15
      %v889 = vsub.s32 0, %v888
      %v890 = vsel %vm884, %v889, %v888
      %vm891 = vcmp.lt.s32.totalorder %v679, 0
      %v892 = vsub.s32 0, %v679
      %v893 = vsel %vm891, %v892, %v679
      %v894 = vshrl.u32 %v893, 4
      %v895 = vand.u32 %v893, 15
      %v896 = vsub.s32 0, %v895
      %v897 = vsel %vm891, %v896, %v895
      %vm898 = vcmp.lt.s32.totalorder %v680, 0
      %v899 = vsub.s32 0, %v680
      %v900 = vsel %vm898, %v899, %v680
      %v901 = vshrl.u32 %v900, 4
      %v902 = vand.u32 %v900, 15
      %v903 = vsub.s32 0, %v902
      %v904 = vsel %vm898, %v903, %v902
      %vm905 = vcmp.ne.s32.totalorder %v687, 0
      %vm906 = vcmp.ne.s32.totalorder %v694, 0
      %vm907 = vcmp.ne.s32.totalorder %v701, 0
      %vm908 = vcmp.ne.s32.totalorder %v708, 0
      %vm909 = vcmp.ne.s32.totalorder %v715, 0
      %vm910 = vcmp.ne.s32.totalorder %v722, 0
      %vm911 = vcmp.ne.s32.totalorder %v729, 0
      %vm912 = vcmp.ne.s32.totalorder %v736, 0
      %vm913 = vcmp.ne.s32.totalorder %v743, 0
      %vm914 = vcmp.ne.s32.totalorder %v750, 0
      %vm915 = vcmp.ne.s32.totalorder %v757, 0
      %vm916 = vcmp.ne.s32.totalorder %v764, 0
      %vm917 = vcmp.ne.s32.totalorder %v771, 0
      %vm918 = vcmp.ne.s32.totalorder %v778, 0
      %vm919 = vcmp.ne.s32.totalorder %v785, 0
      %vm920 = vcmp.ne.s32.totalorder %v792, 0
      %vm921 = vcmp.ne.s32.totalorder %v799, 0
      %vm922 = vcmp.ne.s32.totalorder %v806, 0
      %vm923 = vcmp.ne.s32.totalorder %v813, 0
      %vm924 = vcmp.ne.s32.totalorder %v820, 0
      %vm925 = vcmp.ne.s32.totalorder %v827, 0
      %vm926 = vcmp.ne.s32.totalorder %v834, 0
      %vm927 = vcmp.ne.s32.totalorder %v841, 0
      %vm928 = vcmp.ne.s32.totalorder %v848, 0
      %vm929 = vcmp.ne.s32.totalorder %v855, 0
      %vm930 = vcmp.ne.s32.totalorder %v862, 0
      %vm931 = vcmp.ne.s32.totalorder %v869, 0
      %vm932 = vcmp.ne.s32.totalorder %v876, 0
      %vm933 = vcmp.ne.s32.totalorder %v883, 0
      %vm934 = vcmp.ne.s32.totalorder %v890, 0
      %vm935 = vcmp.ne.s32.totalorder %v897, 0
      %vm936 = vcmp.ne.s32.totalorder %v904, 0
      %vm937 = vcmp.lt.s32.totalorder %v687, 0
      %vm938 = vcmp.lt.s32.totalorder %v694, 0
      %vm939 = vcmp.lt.s32.totalorder %v701, 0
      %vm940 = vcmp.lt.s32.totalorder %v708, 0
      %vm941 = vcmp.lt.s32.totalorder %v715, 0
      %vm942 = vcmp.lt.s32.totalorder %v722, 0
      %vm943 = vcmp.lt.s32.totalorder %v729, 0
      %vm944 = vcmp.lt.s32.totalorder %v736, 0
      %vm945 = vcmp.lt.s32.totalorder %v743, 0
      %vm946 = vcmp.lt.s32.totalorder %v750, 0
      %vm947 = vcmp.lt.s32.totalorder %v757, 0
      %vm948 = vcmp.lt.s32.totalorder %v764, 0
      %vm949 = vcmp.lt.s32.totalorder %v771, 0
      %vm950 = vcmp.lt.s32.totalorder %v778, 0
      %vm951 = vcmp.lt.s32.totalorder %v785, 0
      %vm952 = vcmp.lt.s32.totalorder %v792, 0
      %vm953 = vcmp.lt.s32.totalorder %v799, 0
      %vm954 = vcmp.lt.s32.totalorder %v806, 0
      %vm955 = vcmp.lt.s32.totalorder %v813, 0
      %vm956 = vcmp.lt.s32.totalorder %v820, 0
      %vm957 = vcmp.lt.s32.totalorder %v827, 0
      %vm958 = vcmp.lt.s32.totalorder %v834, 0
      %vm959 = vcmp.lt.s32.totalorder %v841, 0
      %vm960 = vcmp.lt.s32.totalorder %v848, 0
      %vm961 = vcmp.lt.s32.totalorder %v855, 0
      %vm962 = vcmp.lt.s32.totalorder %v862, 0
      %vm963 = vcmp.lt.s32.totalorder %v869, 0
      %vm964 = vcmp.lt.s32.totalorder %v876, 0
      %vm965 = vcmp.lt.s32.totalorder %v883, 0
      %vm966 = vcmp.lt.s32.totalorder %v890, 0
      %vm967 = vcmp.lt.s32.totalorder %v897, 0
      %vm968 = vcmp.lt.s32.totalorder %v904, 0
      %vm969 = vmand %vm937, %vm905
      %vm970 = vmand %vm938, %vm906
      %vm971 = vmand %vm939, %vm907
      %vm972 = vmand %vm940, %vm908
      %vm973 = vmand %vm941, %vm909
      %vm974 = vmand %vm942, %vm910
      %vm975 = vmand %vm943, %vm911
      %vm976 = vmand %vm944, %vm912
      %vm977 = vmand %vm945, %vm913
      %vm978 = vmand %vm946, %vm914
      %vm979 = vmand %vm947, %vm915
      %vm980 = vmand %vm948, %vm916
      %vm981 = vmand %vm949, %vm917
      %vm982 = vmand %vm950, %vm918
      %vm983 = vmand %vm951, %vm919
      %vm984 = vmand %vm952, %vm920
      %vm985 = vmand %vm953, %vm921
      %vm986 = vmand %vm954, %vm922
      %vm987 = vmand %vm955, %vm923
      %vm988 = vmand %vm956, %vm924
      %vm989 = vmand %vm957, %vm925
      %vm990 = vmand %vm958, %vm926
      %vm991 = vmand %vm959, %vm927
      %vm992 = vmand %vm960, %vm928
      %vm993 = vmand %vm961, %vm929
      %vm994 = vmand %vm962, %vm930
      %vm995 = vmand %vm963, %vm931
      %vm996 = vmand %vm964, %vm932
      %vm997 = vmand %vm965, %vm933
      %vm998 = vmand %vm966, %vm934
      %vm999 = vmand %vm967, %vm935
      %vm1000 = vmand %vm968, %vm936
      %v1001 = vadd.s32 %v687, 16
      %v1002 = vadd.s32 %v694, 16
      %v1003 = vadd.s32 %v701, 16
      %v1004 = vadd.s32 %v708, 16
      %v1005 = vadd.s32 %v715, 16
      %v1006 = vadd.s32 %v722, 16
      %v1007 = vadd.s32 %v729, 16
      %v1008 = vadd.s32 %v736, 16
      %v1009 = vadd.s32 %v743, 16
      %v1010 = vadd.s32 %v750, 16
      %v1011 = vadd.s32 %v757, 16
      %v1012 = vadd.s32 %v764, 16
      %v1013 = vadd.s32 %v771, 16
      %v1014 = vadd.s32 %v778, 16
      %v1015 = vadd.s32 %v785, 16
      %v1016 = vadd.s32 %v792, 16
      %v1017 = vadd.s32 %v799, 16
      %v1018 = vadd.s32 %v806, 16
      %v1019 = vadd.s32 %v813, 16
      %v1020 = vadd.s32 %v820, 16
      %v1021 = vadd.s32 %v827, 16
      %v1022 = vadd.s32 %v834, 16
      %v1023 = vadd.s32 %v841, 16
      %v1024 = vadd.s32 %v848, 16
      %v1025 = vadd.s32 %v855, 16
      %v1026 = vadd.s32 %v862, 16
      %v1027 = vadd.s32 %v869, 16
      %v1028 = vadd.s32 %v876, 16
      %v1029 = vadd.s32 %v883, 16
      %v1030 = vadd.s32 %v890, 16
      %v1031 = vadd.s32 %v897, 16
      %v1032 = vadd.s32 %v904, 16
      %v1033 = vsel %vm969, %v1001, %v687
      %v1034 = vsel %vm970, %v1002, %v694
      %v1035 = vsel %vm971, %v1003, %v701
      %v1036 = vsel %vm972, %v1004, %v708
      %v1037 = vsel %vm973, %v1005, %v715
      %v1038 = vsel %vm974, %v1006, %v722
      %v1039 = vsel %vm975, %v1007, %v729
      %v1040 = vsel %vm976, %v1008, %v736
      %v1041 = vsel %vm977, %v1009, %v743
      %v1042 = vsel %vm978, %v1010, %v750
      %v1043 = vsel %vm979, %v1011, %v757
      %v1044 = vsel %vm980, %v1012, %v764
      %v1045 = vsel %vm981, %v1013, %v771
      %v1046 = vsel %vm982, %v1014, %v778
      %v1047 = vsel %vm983, %v1015, %v785
      %v1048 = vsel %vm984, %v1016, %v792
      %v1049 = vsel %vm985, %v1017, %v799
      %v1050 = vsel %vm986, %v1018, %v806
      %v1051 = vsel %vm987, %v1019, %v813
      %v1052 = vsel %vm988, %v1020, %v820
      %v1053 = vsel %vm989, %v1021, %v827
      %v1054 = vsel %vm990, %v1022, %v834
      %v1055 = vsel %vm991, %v1023, %v841
      %v1056 = vsel %vm992, %v1024, %v848
      %v1057 = vsel %vm993, %v1025, %v855
      %v1058 = vsel %vm994, %v1026, %v862
      %v1059 = vsel %vm995, %v1027, %v869
      %v1060 = vsel %vm996, %v1028, %v876
      %v1061 = vsel %vm997, %v1029, %v883
      %v1062 = vsel %vm998, %v1030, %v890
      %v1063 = vsel %vm999, %v1031, %v897
      %v1064 = vsel %vm1000, %v1032, %v904
      %vm1065 = vcmp.gt.s32.totalorder %v1033, 0
      %vm1066 = vcmp.gt.s32.totalorder %v1034, 0
      %vm1067 = vcmp.gt.s32.totalorder %v1035, 0
      %vm1068 = vcmp.gt.s32.totalorder %v1036, 0
      %vm1069 = vcmp.gt.s32.totalorder %v1037, 0
      %vm1070 = vcmp.gt.s32.totalorder %v1038, 0
      %vm1071 = vcmp.gt.s32.totalorder %v1039, 0
      %vm1072 = vcmp.gt.s32.totalorder %v1040, 0
      %vm1073 = vcmp.gt.s32.totalorder %v1041, 0
      %vm1074 = vcmp.gt.s32.totalorder %v1042, 0
      %vm1075 = vcmp.gt.s32.totalorder %v1043, 0
      %vm1076 = vcmp.gt.s32.totalorder %v1044, 0
      %vm1077 = vcmp.gt.s32.totalorder %v1045, 0
      %vm1078 = vcmp.gt.s32.totalorder %v1046, 0
      %vm1079 = vcmp.gt.s32.totalorder %v1047, 0
      %vm1080 = vcmp.gt.s32.totalorder %v1048, 0
      %vm1081 = vcmp.gt.s32.totalorder %v1049, 0
      %vm1082 = vcmp.gt.s32.totalorder %v1050, 0
      %vm1083 = vcmp.gt.s32.totalorder %v1051, 0
      %vm1084 = vcmp.gt.s32.totalorder %v1052, 0
      %vm1085 = vcmp.gt.s32.totalorder %v1053, 0
      %vm1086 = vcmp.gt.s32.totalorder %v1054, 0
      %vm1087 = vcmp.gt.s32.totalorder %v1055, 0
      %vm1088 = vcmp.gt.s32.totalorder %v1056, 0
      %vm1089 = vcmp.gt.s32.totalorder %v1057, 0
      %vm1090 = vcmp.gt.s32.totalorder %v1058, 0
      %vm1091 = vcmp.gt.s32.totalorder %v1059, 0
      %vm1092 = vcmp.gt.s32.totalorder %v1060, 0
      %vm1093 = vcmp.gt.s32.totalorder %v1061, 0
      %vm1094 = vcmp.gt.s32.totalorder %v1062, 0
      %vm1095 = vcmp.gt.s32.totalorder %v1063, 0
      %vm1096 = vcmp.gt.s32.totalorder %v1064, 0
      %v1097 = vsel %vm1065, 1.0, 0.0
      %v1098 = vsel %vm1066, 1.0, 0.0
      %v1099 = vsel %vm1067, 1.0, 0.0
      %v1100 = vsel %vm1068, 1.0, 0.0
      %v1101 = vsel %vm1069, 1.0, 0.0
      %v1102 = vsel %vm1070, 1.0, 0.0
      %v1103 = vsel %vm1071, 1.0, 0.0
      %v1104 = vsel %vm1072, 1.0, 0.0
      %v1105 = vsel %vm1073, 1.0, 0.0
      %v1106 = vsel %vm1074, 1.0, 0.0
      %v1107 = vsel %vm1075, 1.0, 0.0
      %v1108 = vsel %vm1076, 1.0, 0.0
      %v1109 = vsel %vm1077, 1.0, 0.0
      %v1110 = vsel %vm1078, 1.0, 0.0
      %v1111 = vsel %vm1079, 1.0, 0.0
      %v1112 = vsel %vm1080, 1.0, 0.0
      %v1113 = vsel %vm1081, 1.0, 0.0
      %v1114 = vsel %vm1082, 1.0, 0.0
      %v1115 = vsel %vm1083, 1.0, 0.0
      %v1116 = vsel %vm1084, 1.0, 0.0
      %v1117 = vsel %vm1085, 1.0, 0.0
      %v1118 = vsel %vm1086, 1.0, 0.0
      %v1119 = vsel %vm1087, 1.0, 0.0
      %v1120 = vsel %vm1088, 1.0, 0.0
      %v1121 = vsel %vm1089, 1.0, 0.0
      %v1122 = vsel %vm1090, 1.0, 0.0
      %v1123 = vsel %vm1091, 1.0, 0.0
      %v1124 = vsel %vm1092, 1.0, 0.0
      %v1125 = vsel %vm1093, 1.0, 0.0
      %v1126 = vsel %vm1094, 1.0, 0.0
      %v1127 = vsel %vm1095, 1.0, 0.0
      %v1128 = vsel %vm1096, 1.0, 0.0
      %vm1129 = vcmp.lt.s32.totalorder %v1033, 15
      %vm1130 = vcmp.lt.s32.totalorder %v1034, 15
      %vm1131 = vcmp.lt.s32.totalorder %v1035, 15
      %vm1132 = vcmp.lt.s32.totalorder %v1036, 15
      %vm1133 = vcmp.lt.s32.totalorder %v1037, 15
      %vm1134 = vcmp.lt.s32.totalorder %v1038, 15
      %vm1135 = vcmp.lt.s32.totalorder %v1039, 15
      %vm1136 = vcmp.lt.s32.totalorder %v1040, 15
      %vm1137 = vcmp.lt.s32.totalorder %v1041, 15
      %vm1138 = vcmp.lt.s32.totalorder %v1042, 15
      %vm1139 = vcmp.lt.s32.totalorder %v1043, 15
      %vm1140 = vcmp.lt.s32.totalorder %v1044, 15
      %vm1141 = vcmp.lt.s32.totalorder %v1045, 15
      %vm1142 = vcmp.lt.s32.totalorder %v1046, 15
      %vm1143 = vcmp.lt.s32.totalorder %v1047, 15
      %vm1144 = vcmp.lt.s32.totalorder %v1048, 15
      %vm1145 = vcmp.lt.s32.totalorder %v1049, 15
      %vm1146 = vcmp.lt.s32.totalorder %v1050, 15
      %vm1147 = vcmp.lt.s32.totalorder %v1051, 15
      %vm1148 = vcmp.lt.s32.totalorder %v1052, 15
      %vm1149 = vcmp.lt.s32.totalorder %v1053, 15
      %vm1150 = vcmp.lt.s32.totalorder %v1054, 15
      %vm1151 = vcmp.lt.s32.totalorder %v1055, 15
      %vm1152 = vcmp.lt.s32.totalorder %v1056, 15
      %vm1153 = vcmp.lt.s32.totalorder %v1057, 15
      %vm1154 = vcmp.lt.s32.totalorder %v1058, 15
      %vm1155 = vcmp.lt.s32.totalorder %v1059, 15
      %vm1156 = vcmp.lt.s32.totalorder %v1060, 15
      %vm1157 = vcmp.lt.s32.totalorder %v1061, 15
      %vm1158 = vcmp.lt.s32.totalorder %v1062, 15
      %vm1159 = vcmp.lt.s32.totalorder %v1063, 15
      %vm1160 = vcmp.lt.s32.totalorder %v1064, 15
      %v1161 = vsel %vm1129, 1.0, 0.0
      %v1162 = vsel %vm1130, 1.0, 0.0
      %v1163 = vsel %vm1131, 1.0, 0.0
      %v1164 = vsel %vm1132, 1.0, 0.0
      %v1165 = vsel %vm1133, 1.0, 0.0
      %v1166 = vsel %vm1134, 1.0, 0.0
      %v1167 = vsel %vm1135, 1.0, 0.0
      %v1168 = vsel %vm1136, 1.0, 0.0
      %v1169 = vsel %vm1137, 1.0, 0.0
      %v1170 = vsel %vm1138, 1.0, 0.0
      %v1171 = vsel %vm1139, 1.0, 0.0
      %v1172 = vsel %vm1140, 1.0, 0.0
      %v1173 = vsel %vm1141, 1.0, 0.0
      %v1174 = vsel %vm1142, 1.0, 0.0
      %v1175 = vsel %vm1143, 1.0, 0.0
      %v1176 = vsel %vm1144, 1.0, 0.0
      %v1177 = vsel %vm1145, 1.0, 0.0
      %v1178 = vsel %vm1146, 1.0, 0.0
      %v1179 = vsel %vm1147, 1.0, 0.0
      %v1180 = vsel %vm1148, 1.0, 0.0
      %v1181 = vsel %vm1149, 1.0, 0.0
      %v1182 = vsel %vm1150, 1.0, 0.0
      %v1183 = vsel %vm1151, 1.0, 0.0
      %v1184 = vsel %vm1152, 1.0, 0.0
      %v1185 = vsel %vm1153, 1.0, 0.0
      %v1186 = vsel %vm1154, 1.0, 0.0
      %v1187 = vsel %vm1155, 1.0, 0.0
      %v1188 = vsel %vm1156, 1.0, 0.0
      %v1189 = vsel %vm1157, 1.0, 0.0
      %v1190 = vsel %vm1158, 1.0, 0.0
      %v1191 = vsel %vm1159, 1.0, 0.0
      %v1192 = vsel %vm1160, 1.0, 0.0
      %1193 = vst.msk [vmem:[#allocation2 + $0x18] sm:$0xff] %vm609, %v577
      %1194 = vst.msk [vmem:[#allocation2 + $0x20] sm:$0xff] %vm609, %v578
      %1195 = vst.msk [vmem:[#allocation2 + $0x28] sm:$0xff] %vm609, %v579
      %1196 = vst.msk [vmem:[#allocation2 + $0x30] sm:$0xff] %vm609, %v580
      %1197 = vst.msk [vmem:[#allocation2 + $0x38] sm:$0xff] %vm609, %v581
      %1198 = vst.msk [vmem:[#allocation2 + $0x40] sm:$0xff] %vm609, %v582
      %1199 = vst.msk [vmem:[#allocation2 + $0x48] sm:$0xff] %vm609, %v583
      %1200 = vst.msk [vmem:[#allocation2 + $0x50] sm:$0xff] %vm609, %v584
      %1201 = vst.msk [vmem:[#allocation2 + $0x58] sm:$0xff] %vm609, %v585
      %1202 = vst.msk [vmem:[#allocation2 + $0x60] sm:$0xff] %vm609, %v586
      %1203 = vst.msk [vmem:[#allocation2 + $0x68] sm:$0xff] %vm609, %v587
      %1204 = vst.msk [vmem:[#allocation2 + $0x70] sm:$0xff] %vm609, %v588
      %1205 = vst.msk [vmem:[#allocation2 + $0x78] sm:$0xff] %vm609, %v589
      %1206 = vst.msk [vmem:[#allocation2 + $0x80] sm:$0xff] %vm609, %v590
      %1207 = vst.msk [vmem:[#allocation2 + $0x88] sm:$0xff] %vm609, %v591
      %1208 = vst.msk [vmem:[#allocation2 + $0x90] sm:$0xff] %vm609, %v592
      %1209 = vst.msk [vmem:[#allocation2 + $0x98] sm:$0xff] %vm609, %v593
      %1210 = vst.msk [vmem:[#allocation2 + $0xa0] sm:$0xff] %vm609, %v594
      %1211 = vst.msk [vmem:[#allocation2 + $0xa8] sm:$0xff] %vm609, %v595
      %1212 = vst.msk [vmem:[#allocation2 + $0xb0] sm:$0xff] %vm609, %v596
      %1213 = vst.msk [vmem:[#allocation2 + $0xb8] sm:$0xff] %vm609, %v597
      %1214 = vst.msk [vmem:[#allocation2 + $0xc0] sm:$0xff] %vm609, %v598
      %1215 = vst.msk [vmem:[#allocation2 + $0xc8] sm:$0xff] %vm609, %v599
      %1216 = vst.msk [vmem:[#allocation2 + $0xd0] sm:$0xff] %vm609, %v600
      %1217 = vst.msk [vmem:[#allocation2 + $0xd8] sm:$0xff] %vm609, %v601
      %1218 = vst.msk [vmem:[#allocation2 + $0xe0] sm:$0xff] %vm609, %v602
      %1219 = vst.msk [vmem:[#allocation2 + $0xe8] sm:$0xff] %vm609, %v603
      %1220 = vst.msk [vmem:[#allocation2 + $0xf0] sm:$0xff] %vm609, %v604
      %1221 = vst.msk [vmem:[#allocation2 + $0xf8] sm:$0xff] %vm609, %v605
      %1222 = vst.msk [vmem:[#allocation2 + $0x100] sm:$0xff] %vm609, %v606
      %1223 = vst.msk [vmem:[#allocation2 + $0x108] sm:$0xff] %vm609, %v607
      %1224 = vst.msk [vmem:[#allocation2 + $0x110] sm:$0xff] %vm609, %v608
      %v1225 = vld [vmem:[%s2] sm:$0x1]
      %v1227 = vlaneseq
      %v1228 = vshrl.u32 %v1227, 7
      %v1229 = vsub.s32 0, %v1228
      %v1230 = vrot.slane %v1225, %v1229
      %v1232 = vadd.f32 %v1230, 0.0
      %v1233 = vld [vmem:[#allocation2 + $0x7] sm:$0xff]
      %v1234 = vld [vmem:[#allocation2 + $0xf] sm:$0xff]
      %v1235 = vld [vmem:[#allocation2 + $0x17] sm:$0xff]
      %v1236 = vld [vmem:[#allocation2 + $0x1f] sm:$0xff]
      %v1237 = vld [vmem:[#allocation2 + $0x27] sm:$0xff]
      %v1238 = vld [vmem:[#allocation2 + $0x2f] sm:$0xff]
      %v1239 = vld [vmem:[#allocation2 + $0x37] sm:$0xff]
      %v1240 = vld [vmem:[#allocation2 + $0x3f] sm:$0xff]
      %v1241 = vld [vmem:[#allocation2 + $0x47] sm:$0xff]
      %v1242 = vld [vmem:[#allocation2 + $0x4f] sm:$0xff]
      %v1243 = vld [vmem:[#allocation2 + $0x57] sm:$0xff]
      %v1244 = vld [vmem:[#allocation2 + $0x5f] sm:$0xff]
      %v1245 = vld [vmem:[#allocation2 + $0x67] sm:$0xff]
      %v1246 = vld [vmem:[#allocation2 + $0x6f] sm:$0xff]
      %v1247 = vld [vmem:[#allocation2 + $0x77] sm:$0xff]
      %v1248 = vld [vmem:[#allocation2 + $0x7f] sm:$0xff]
      %v1249 = vld [vmem:[#allocation2 + $0x87] sm:$0xff]
      %v1250 = vld [vmem:[#allocation2 + $0x8f] sm:$0xff]
      %v1251 = vld [vmem:[#allocation2 + $0x97] sm:$0xff]
      %v1252 = vld [vmem:[#allocation2 + $0x9f] sm:$0xff]
      %v1253 = vld [vmem:[#allocation2 + $0xa7] sm:$0xff]
      %v1254 = vld [vmem:[#allocation2 + $0xaf] sm:$0xff]
      %v1255 = vld [vmem:[#allocation2 + $0xb7] sm:$0xff]
      %v1256 = vld [vmem:[#allocation2 + $0xbf] sm:$0xff]
      %v1257 = vld [vmem:[#allocation2 + $0xc7] sm:$0xff]
      %v1258 = vld [vmem:[#allocation2 + $0xcf] sm:$0xff]
      %v1259 = vld [vmem:[#allocation2 + $0xd7] sm:$0xff]
      %v1260 = vld [vmem:[#allocation2 + $0xdf] sm:$0xff]
      %v1261 = vld [vmem:[#allocation2 + $0xe7] sm:$0xff]
      %v1262 = vld [vmem:[#allocation2 + $0xef] sm:$0xff]
      %v1263 = vld [vmem:[#allocation2 + $0xf7] sm:$0xff]
      %v1264 = vld [vmem:[#allocation2 + $0xff] sm:$0xff]
      %v1265 = vld [vmem:[%s1] sm:$0x1]
      %v1266 = vlaneseq
      %v1267 = vshrl.u32 %v1266, 7
      %v1268 = vsub.s32 0, %v1267
      %v1269 = vrot.slane %v1265, %v1268
      %v1270 = vmul.f32 %v1233, %v1269
      %v1271 = vmul.f32 %v1234, %v1269
      %v1272 = vmul.f32 %v1235, %v1269
      %v1273 = vmul.f32 %v1236, %v1269
      %v1274 = vmul.f32 %v1237, %v1269
      %v1275 = vmul.f32 %v1238, %v1269
      %v1276 = vmul.f32 %v1239, %v1269
      %v1277 = vmul.f32 %v1240, %v1269
      %v1278 = vmul.f32 %v1241, %v1269
      %v1279 = vmul.f32 %v1242, %v1269
      %v1280 = vmul.f32 %v1243, %v1269
      %v1281 = vmul.f32 %v1244, %v1269
      %v1282 = vmul.f32 %v1245, %v1269
      %v1283 = vmul.f32 %v1246, %v1269
      %v1284 = vmul.f32 %v1247, %v1269
      %v1285 = vmul.f32 %v1248, %v1269
      %v1286 = vmul.f32 %v1249, %v1269
      %v1287 = vmul.f32 %v1250, %v1269
      %v1288 = vmul.f32 %v1251, %v1269
      %v1289 = vmul.f32 %v1252, %v1269
      %v1290 = vmul.f32 %v1253, %v1269
      %v1291 = vmul.f32 %v1254, %v1269
      %v1292 = vmul.f32 %v1255, %v1269
      %v1293 = vmul.f32 %v1256, %v1269
      %v1294 = vmul.f32 %v1257, %v1269
      %v1295 = vmul.f32 %v1258, %v1269
      %v1296 = vmul.f32 %v1259, %v1269
      %v1297 = vmul.f32 %v1260, %v1269
      %v1298 = vmul.f32 %v1261, %v1269
      %v1299 = vmul.f32 %v1262, %v1269
      %v1300 = vmul.f32 %v1263, %v1269
      %v1301 = vmul.f32 %v1264, %v1269
      %v1302 = vadd.f32 %v1270, 0.0
      %v1303 = vadd.f32 %v1271, 0.0
      %v1304 = vadd.f32 %v1272, 0.0
      %v1305 = vadd.f32 %v1273, 0.0
      %v1306 = vadd.f32 %v1274, 0.0
      %v1307 = vadd.f32 %v1275, 0.0
      %v1308 = vadd.f32 %v1276, 0.0
      %v1309 = vadd.f32 %v1277, 0.0
      %v1310 = vadd.f32 %v1278, 0.0
      %v1311 = vadd.f32 %v1279, 0.0
      %v1312 = vadd.f32 %v1280, 0.0
      %v1313 = vadd.f32 %v1281, 0.0
      %v1314 = vadd.f32 %v1282, 0.0
      %v1315 = vadd.f32 %v1283, 0.0
      %v1316 = vadd.f32 %v1284, 0.0
      %v1317 = vadd.f32 %v1285, 0.0
      %v1318 = vadd.f32 %v1286, 0.0
      %v1319 = vadd.f32 %v1287, 0.0
      %v1320 = vadd.f32 %v1288, 0.0
      %v1321 = vadd.f32 %v1289, 0.0
      %v1322 = vadd.f32 %v1290, 0.0
      %v1323 = vadd.f32 %v1291, 0.0
      %v1324 = vadd.f32 %v1292, 0.0
      %v1325 = vadd.f32 %v1293, 0.0
      %v1326 = vadd.f32 %v1294, 0.0
      %v1327 = vadd.f32 %v1295, 0.0
      %v1328 = vadd.f32 %v1296, 0.0
      %v1329 = vadd.f32 %v1297, 0.0
      %v1330 = vadd.f32 %v1298, 0.0
      %v1331 = vadd.f32 %v1299, 0.0
      %v1332 = vadd.f32 %v1300, 0.0
      %v1333 = vadd.f32 %v1301, 0.0
      %v1334 = vld [vmem:[#allocation2 + $0x107] sm:$0xff]
      %v1335 = vld [vmem:[#allocation2 + $0x10f] sm:$0xff]
      %v1336 = vld [vmem:[%s1 + $0x3] sm:$0x1]
      %v1337 = vlaneseq
      %v1338 = vshrl.u32 %v1337, 7
      %v1339 = vsub.s32 0, %v1338
      %v1340 = vrot.slane %v1336, %v1339
      %v1341 = vmul.f32 %v1235, %v1340
      %v1342 = vmul.f32 %v1236, %v1340
      %v1343 = vmul.f32 %v1237, %v1340
      %v1344 = vmul.f32 %v1238, %v1340
      %v1345 = vmul.f32 %v1239, %v1340
      %v1346 = vmul.f32 %v1240, %v1340
      %v1347 = vmul.f32 %v1241, %v1340
      %v1348 = vmul.f32 %v1242, %v1340
      %v1349 = vmul.f32 %v1243, %v1340
      %v1350 = vmul.f32 %v1244, %v1340
      %v1351 = vmul.f32 %v1245, %v1340
      %v1352 = vmul.f32 %v1246, %v1340
      %v1353 = vmul.f32 %v1247, %v1340
      %v1354 = vmul.f32 %v1248, %v1340
      %v1355 = vmul.f32 %v1249, %v1340
      %v1356 = vmul.f32 %v1250, %v1340
      %v1357 = vmul.f32 %v1251, %v1340
      %v1358 = vmul.f32 %v1252, %v1340
      %v1359 = vmul.f32 %v1253, %v1340
      %v1360 = vmul.f32 %v1254, %v1340
      %v1361 = vmul.f32 %v1255, %v1340
      %v1362 = vmul.f32 %v1256, %v1340
      %v1363 = vmul.f32 %v1257, %v1340
      %v1364 = vmul.f32 %v1258, %v1340
      %v1365 = vmul.f32 %v1259, %v1340
      %v1366 = vmul.f32 %v1260, %v1340
      %v1367 = vmul.f32 %v1261, %v1340
      %v1368 = vmul.f32 %v1262, %v1340
      %v1369 = vmul.f32 %v1263, %v1340
      %v1370 = vmul.f32 %v1264, %v1340
      %v1371 = vmul.f32 %v1334, %v1340
      %v1372 = vmul.f32 %v1335, %v1340
      %v1373 = vadd.f32 %v1302, %v1341
      %v1374 = vadd.f32 %v1303, %v1342
      %v1375 = vadd.f32 %v1304, %v1343
      %v1376 = vadd.f32 %v1305, %v1344
      %v1377 = vadd.f32 %v1306, %v1345
      %v1378 = vadd.f32 %v1307, %v1346
      %v1379 = vadd.f32 %v1308, %v1347
      %v1380 = vadd.f32 %v1309, %v1348
      %v1381 = vadd.f32 %v1310, %v1349
      %v1382 = vadd.f32 %v1311, %v1350
      %v1383 = vadd.f32 %v1312, %v1351
      %v1384 = vadd.f32 %v1313, %v1352
      %v1385 = vadd.f32 %v1314, %v1353
      %v1386 = vadd.f32 %v1315, %v1354
      %v1387 = vadd.f32 %v1316, %v1355
      %v1388 = vadd.f32 %v1317, %v1356
      %v1389 = vadd.f32 %v1318, %v1357
      %v1390 = vadd.f32 %v1319, %v1358
      %v1391 = vadd.f32 %v1320, %v1359
      %v1392 = vadd.f32 %v1321, %v1360
      %v1393 = vadd.f32 %v1322, %v1361
      %v1394 = vadd.f32 %v1323, %v1362
      %v1395 = vadd.f32 %v1324, %v1363
      %v1396 = vadd.f32 %v1325, %v1364
      %v1397 = vadd.f32 %v1326, %v1365
      %v1398 = vadd.f32 %v1327, %v1366
      %v1399 = vadd.f32 %v1328, %v1367
      %v1400 = vadd.f32 %v1329, %v1368
      %v1401 = vadd.f32 %v1330, %v1369
      %v1402 = vadd.f32 %v1331, %v1370
      %v1403 = vadd.f32 %v1332, %v1371
      %v1404 = vadd.f32 %v1333, %v1372
      %v1405 = vld [vmem:[#allocation2 + $0x117] sm:$0xff]
      %v1406 = vld [vmem:[#allocation2 + $0x11f] sm:$0xff]
      %v1407 = vld [vmem:[%s1 + $0x6] sm:$0x1]
      %v1408 = vlaneseq
      %v1409 = vshrl.u32 %v1408, 7
      %v1410 = vsub.s32 0, %v1409
      %v1411 = vrot.slane %v1407, %v1410
      %v1412 = vmul.f32 %v1237, %v1411
      %v1413 = vmul.f32 %v1238, %v1411
      %v1414 = vmul.f32 %v1239, %v1411
      %v1415 = vmul.f32 %v1240, %v1411
      %v1416 = vmul.f32 %v1241, %v1411
      %v1417 = vmul.f32 %v1242, %v1411
      %v1418 = vmul.f32 %v1243, %v1411
      %v1419 = vmul.f32 %v1244, %v1411
      %v1420 = vmul.f32 %v1245, %v1411
      %v1421 = vmul.f32 %v1246, %v1411
      %v1422 = vmul.f32 %v1247, %v1411
      %v1423 = vmul.f32 %v1248, %v1411
      %v1424 = vmul.f32 %v1249, %v1411
      %v1425 = vmul.f32 %v1250, %v1411
      %v1426 = vmul.f32 %v1251, %v1411
      %v1427 = vmul.f32 %v1252, %v1411
      %v1428 = vmul.f32 %v1253, %v1411
      %v1429 = vmul.f32 %v1254, %v1411
      %v1430 = vmul.f32 %v1255, %v1411
      %v1431 = vmul.f32 %v1256, %v1411
      %v1432 = vmul.f32 %v1257, %v1411
      %v1433 = vmul.f32 %v1258, %v1411
      %v1434 = vmul.f32 %v1259, %v1411
      %v1435 = vmul.f32 %v1260, %v1411
      %v1436 = vmul.f32 %v1261, %v1411
      %v1437 = vmul.f32 %v1262, %v1411
      %v1438 = vmul.f32 %v1263, %v1411
      %v1439 = vmul.f32 %v1264, %v1411
      %v1440 = vmul.f32 %v1334, %v1411
      %v1441 = vmul.f32 %v1335, %v1411
      %v1442 = vmul.f32 %v1405, %v1411
      %v1443 = vmul.f32 %v1406, %v1411
      %v1444 = vadd.f32 %v1373, %v1412
      %v1445 = vadd.f32 %v1374, %v1413
      %v1446 = vadd.f32 %v1375, %v1414
      %v1447 = vadd.f32 %v1376, %v1415
      %v1448 = vadd.f32 %v1377, %v1416
      %v1449 = vadd.f32 %v1378, %v1417
      %v1450 = vadd.f32 %v1379, %v1418
      %v1451 = vadd.f32 %v1380, %v1419
      %v1452 = vadd.f32 %v1381, %v1420
      %v1453 = vadd.f32 %v1382, %v1421
      %v1454 = vadd.f32 %v1383, %v1422
      %v1455 = vadd.f32 %v1384, %v1423
      %v1456 = vadd.f32 %v1385, %v1424
      %v1457 = vadd.f32 %v1386, %v1425
      %v1458 = vadd.f32 %v1387, %v1426
      %v1459 = vadd.f32 %v1388, %v1427
      %v1460 = vadd.f32 %v1389, %v1428
      %v1461 = vadd.f32 %v1390, %v1429
      %v1462 = vadd.f32 %v1391, %v1430
      %v1463 = vadd.f32 %v1392, %v1431
      %v1464 = vadd.f32 %v1393, %v1432
      %v1465 = vadd.f32 %v1394, %v1433
      %v1466 = vadd.f32 %v1395, %v1434
      %v1467 = vadd.f32 %v1396, %v1435
      %v1468 = vadd.f32 %v1397, %v1436
      %v1469 = vadd.f32 %v1398, %v1437
      %v1470 = vadd.f32 %v1399, %v1438
      %v1471 = vadd.f32 %v1400, %v1439
      %v1472 = vadd.f32 %v1401, %v1440
      %v1473 = vadd.f32 %v1402, %v1441
      %v1474 = vadd.f32 %v1403, %v1442
      %v1475 = vadd.f32 %v1404, %v1443
      %v1476 = vmul.f32 %v1444, %v1097
      %v1477 = vmul.f32 %v1445, %v1098
      %v1478 = vmul.f32 %v1446, %v1099
      %v1479 = vmul.f32 %v1447, %v1100
      %v1480 = vmul.f32 %v1448, %v1101
      %v1481 = vmul.f32 %v1449, %v1102
      %v1482 = vmul.f32 %v1450, %v1103
      %v1483 = vmul.f32 %v1451, %v1104
      %v1484 = vmul.f32 %v1452, %v1105
      %v1485 = vmul.f32 %v1453, %v1106
      %v1486 = vmul.f32 %v1454, %v1107
      %v1487 = vmul.f32 %v1455, %v1108
      %v1488 = vmul.f32 %v1456, %v1109
      %v1489 = vmul.f32 %v1457, %v1110
      %v1490 = vmul.f32 %v1458, %v1111
      %v1491 = vmul.f32 %v1459, %v1112
      %v1492 = vmul.f32 %v1460, %v1113
      %v1493 = vmul.f32 %v1461, %v1114
      %v1494 = vmul.f32 %v1462, %v1115
      %v1495 = vmul.f32 %v1463, %v1116
      %v1496 = vmul.f32 %v1464, %v1117
      %v1497 = vmul.f32 %v1465, %v1118
      %v1498 = vmul.f32 %v1466, %v1119
      %v1499 = vmul.f32 %v1467, %v1120
      %v1500 = vmul.f32 %v1468, %v1121
      %v1501 = vmul.f32 %v1469, %v1122
      %v1502 = vmul.f32 %v1470, %v1123
      %v1503 = vmul.f32 %v1471, %v1124
      %v1504 = vmul.f32 %v1472, %v1125
      %v1505 = vmul.f32 %v1473, %v1126
      %v1506 = vmul.f32 %v1474, %v1127
      %v1507 = vmul.f32 %v1475, %v1128
      %v1508 = vadd.f32 %v1232, %v1476
      %v1509 = vadd.f32 %v1232, %v1477
      %v1510 = vadd.f32 %v1232, %v1478
      %v1511 = vadd.f32 %v1232, %v1479
      %v1512 = vadd.f32 %v1232, %v1480
      %v1513 = vadd.f32 %v1232, %v1481
      %v1514 = vadd.f32 %v1232, %v1482
      %v1515 = vadd.f32 %v1232, %v1483
      %v1516 = vadd.f32 %v1232, %v1484
      %v1517 = vadd.f32 %v1232, %v1485
      %v1518 = vadd.f32 %v1232, %v1486
      %v1519 = vadd.f32 %v1232, %v1487
      %v1520 = vadd.f32 %v1232, %v1488
      %v1521 = vadd.f32 %v1232, %v1489
      %v1522 = vadd.f32 %v1232, %v1490
      %v1523 = vadd.f32 %v1232, %v1491
      %v1524 = vadd.f32 %v1232, %v1492
      %v1525 = vadd.f32 %v1232, %v1493
      %v1526 = vadd.f32 %v1232, %v1494
      %v1527 = vadd.f32 %v1232, %v1495
      %v1528 = vadd.f32 %v1232, %v1496
      %v1529 = vadd.f32 %v1232, %v1497
      %v1530 = vadd.f32 %v1232, %v1498
      %v1531 = vadd.f32 %v1232, %v1499
      %v1532 = vadd.f32 %v1232, %v1500
      %v1533 = vadd.f32 %v1232, %v1501
      %v1534 = vadd.f32 %v1232, %v1502
      %v1535 = vadd.f32 %v1232, %v1503
      %v1536 = vadd.f32 %v1232, %v1504
      %v1537 = vadd.f32 %v1232, %v1505
      %v1538 = vadd.f32 %v1232, %v1506
      %v1539 = vadd.f32 %v1232, %v1507
      %v1540 = vld [vmem:[#allocation2 + $0x8] sm:$0xff]
      %v1541 = vld [vmem:[#allocation2 + $0x10] sm:$0xff]
      %v1542 = vld [vmem:[#allocation2 + $0x18] sm:$0xff]
      %v1543 = vld [vmem:[#allocation2 + $0x20] sm:$0xff]
      %v1544 = vld [vmem:[#allocation2 + $0x28] sm:$0xff]
      %v1545 = vld [vmem:[#allocation2 + $0x30] sm:$0xff]
      %v1546 = vld [vmem:[#allocation2 + $0x38] sm:$0xff]
      %v1547 = vld [vmem:[#allocation2 + $0x40] sm:$0xff]
      %v1548 = vld [vmem:[#allocation2 + $0x48] sm:$0xff]
      %v1549 = vld [vmem:[#allocation2 + $0x50] sm:$0xff]
      %v1550 = vld [vmem:[#allocation2 + $0x58] sm:$0xff]
      %v1551 = vld [vmem:[#allocation2 + $0x60] sm:$0xff]
      %v1552 = vld [vmem:[#allocation2 + $0x68] sm:$0xff]
      %v1553 = vld [vmem:[#allocation2 + $0x70] sm:$0xff]
      %v1554 = vld [vmem:[#allocation2 + $0x78] sm:$0xff]
      %v1555 = vld [vmem:[#allocation2 + $0x80] sm:$0xff]
      %v1556 = vld [vmem:[#allocation2 + $0x88] sm:$0xff]
      %v1557 = vld [vmem:[#allocation2 + $0x90] sm:$0xff]
      %v1558 = vld [vmem:[#allocation2 + $0x98] sm:$0xff]
      %v1559 = vld [vmem:[#allocation2 + $0xa0] sm:$0xff]
      %v1560 = vld [vmem:[#allocation2 + $0xa8] sm:$0xff]
      %v1561 = vld [vmem:[#allocation2 + $0xb0] sm:$0xff]
      %v1562 = vld [vmem:[#allocation2 + $0xb8] sm:$0xff]
      %v1563 = vld [vmem:[#allocation2 + $0xc0] sm:$0xff]
      %v1564 = vld [vmem:[#allocation2 + $0xc8] sm:$0xff]
      %v1565 = vld [vmem:[#allocation2 + $0xd0] sm:$0xff]
      %v1566 = vld [vmem:[#allocation2 + $0xd8] sm:$0xff]
      %v1567 = vld [vmem:[#allocation2 + $0xe0] sm:$0xff]
      %v1568 = vld [vmem:[#allocation2 + $0xe8] sm:$0xff]
      %v1569 = vld [vmem:[#allocation2 + $0xf0] sm:$0xff]
      %v1570 = vld [vmem:[#allocation2 + $0xf8] sm:$0xff]
      %v1571 = vld [vmem:[#allocation2 + $0x100] sm:$0xff]
      %v1572 = vld [vmem:[%s1 + $0x1] sm:$0x1]
      %v1573 = vlaneseq
      %v1574 = vshrl.u32 %v1573, 7
      %v1575 = vsub.s32 0, %v1574
      %v1576 = vrot.slane %v1572, %v1575
      %v1577 = vmul.f32 %v1540, %v1576
      %v1578 = vmul.f32 %v1541, %v1576
      %v1579 = vmul.f32 %v1542, %v1576
      %v1580 = vmul.f32 %v1543, %v1576
      %v1581 = vmul.f32 %v1544, %v1576
      %v1582 = vmul.f32 %v1545, %v1576
      %v1583 = vmul.f32 %v1546, %v1576
      %v1584 = vmul.f32 %v1547, %v1576
      %v1585 = vmul.f32 %v1548, %v1576
      %v1586 = vmul.f32 %v1549, %v1576
      %v1587 = vmul.f32 %v1550, %v1576
      %v1588 = vmul.f32 %v1551, %v1576
      %v1589 = vmul.f32 %v1552, %v1576
      %v1590 = vmul.f32 %v1553, %v1576
      %v1591 = vmul.f32 %v1554, %v1576
      %v1592 = vmul.f32 %v1555, %v1576
      %v1593 = vmul.f32 %v1556, %v1576
      %v1594 = vmul.f32 %v1557, %v1576
      %v1595 = vmul.f32 %v1558, %v1576
      %v1596 = vmul.f32 %v1559, %v1576
      %v1597 = vmul.f32 %v1560, %v1576
      %v1598 = vmul.f32 %v1561, %v1576
      %v1599 = vmul.f32 %v1562, %v1576
      %v1600 = vmul.f32 %v1563, %v1576
      %v1601 = vmul.f32 %v1564, %v1576
      %v1602 = vmul.f32 %v1565, %v1576
      %v1603 = vmul.f32 %v1566, %v1576
      %v1604 = vmul.f32 %v1567, %v1576
      %v1605 = vmul.f32 %v1568, %v1576
      %v1606 = vmul.f32 %v1569, %v1576
      %v1607 = vmul.f32 %v1570, %v1576
      %v1608 = vmul.f32 %v1571, %v1576
      %v1609 = vadd.f32 %v1577, 0.0
      %v1610 = vadd.f32 %v1578, 0.0
      %v1611 = vadd.f32 %v1579, 0.0
      %v1612 = vadd.f32 %v1580, 0.0
      %v1613 = vadd.f32 %v1581, 0.0
      %v1614 = vadd.f32 %v1582, 0.0
      %v1615 = vadd.f32 %v1583, 0.0
      %v1616 = vadd.f32 %v1584, 0.0
      %v1617 = vadd.f32 %v1585, 0.0
      %v1618 = vadd.f32 %v1586, 0.0
      %v1619 = vadd.f32 %v1587, 0.0
      %v1620 = vadd.f32 %v1588, 0.0
      %v1621 = vadd.f32 %v1589, 0.0
      %v1622 = vadd.f32 %v1590, 0.0
      %v1623 = vadd.f32 %v1591, 0.0
      %v1624 = vadd.f32 %v1592, 0.0
      %v1625 = vadd.f32 %v1593, 0.0
      %v1626 = vadd.f32 %v1594, 0.0
      %v1627 = vadd.f32 %v1595, 0.0
      %v1628 = vadd.f32 %v1596, 0.0
      %v1629 = vadd.f32 %v1597, 0.0
      %v1630 = vadd.f32 %v1598, 0.0
      %v1631 = vadd.f32 %v1599, 0.0
      %v1632 = vadd.f32 %v1600, 0.0
      %v1633 = vadd.f32 %v1601, 0.0
      %v1634 = vadd.f32 %v1602, 0.0
      %v1635 = vadd.f32 %v1603, 0.0
      %v1636 = vadd.f32 %v1604, 0.0
      %v1637 = vadd.f32 %v1605, 0.0
      %v1638 = vadd.f32 %v1606, 0.0
      %v1639 = vadd.f32 %v1607, 0.0
      %v1640 = vadd.f32 %v1608, 0.0
      %v1641 = vld [vmem:[#allocation2 + $0x108] sm:$0xff]
      %v1642 = vld [vmem:[#allocation2 + $0x110] sm:$0xff]
      %v1643 = vld [vmem:[%s1 + $0x4] sm:$0x1]
      %v1644 = vlaneseq
      %v1645 = vshrl.u32 %v1644, 7
      %v1646 = vsub.s32 0, %v1645
      %v1647 = vrot.slane %v1643, %v1646
      %v1648 = vmul.f32 %v1542, %v1647
      %v1649 = vmul.f32 %v1543, %v1647
      %v1650 = vmul.f32 %v1544, %v1647
      %v1651 = vmul.f32 %v1545, %v1647
      %v1652 = vmul.f32 %v1546, %v1647
      %v1653 = vmul.f32 %v1547, %v1647
      %v1654 = vmul.f32 %v1548, %v1647
      %v1655 = vmul.f32 %v1549, %v1647
      %v1656 = vmul.f32 %v1550, %v1647
      %v1657 = vmul.f32 %v1551, %v1647
      %v1658 = vmul.f32 %v1552, %v1647
      %v1659 = vmul.f32 %v1553, %v1647
      %v1660 = vmul.f32 %v1554, %v1647
      %v1661 = vmul.f32 %v1555, %v1647
      %v1662 = vmul.f32 %v1556, %v1647
      %v1663 = vmul.f32 %v1557, %v1647
      %v1664 = vmul.f32 %v1558, %v1647
      %v1665 = vmul.f32 %v1559, %v1647
      %v1666 = vmul.f32 %v1560, %v1647
      %v1667 = vmul.f32 %v1561, %v1647
      %v1668 = vmul.f32 %v1562, %v1647
      %v1669 = vmul.f32 %v1563, %v1647
      %v1670 = vmul.f32 %v1564, %v1647
      %v1671 = vmul.f32 %v1565, %v1647
      %v1672 = vmul.f32 %v1566, %v1647
      %v1673 = vmul.f32 %v1567, %v1647
      %v1674 = vmul.f32 %v1568, %v1647
      %v1675 = vmul.f32 %v1569, %v1647
      %v1676 = vmul.f32 %v1570, %v1647
      %v1677 = vmul.f32 %v1571, %v1647
      %v1678 = vmul.f32 %v1641, %v1647
      %v1679 = vmul.f32 %v1642, %v1647
      %v1680 = vadd.f32 %v1609, %v1648
      %v1681 = vadd.f32 %v1610, %v1649
      %v1682 = vadd.f32 %v1611, %v1650
      %v1683 = vadd.f32 %v1612, %v1651
      %v1684 = vadd.f32 %v1613, %v1652
      %v1685 = vadd.f32 %v1614, %v1653
      %v1686 = vadd.f32 %v1615, %v1654
      %v1687 = vadd.f32 %v1616, %v1655
      %v1688 = vadd.f32 %v1617, %v1656
      %v1689 = vadd.f32 %v1618, %v1657
      %v1690 = vadd.f32 %v1619, %v1658
      %v1691 = vadd.f32 %v1620, %v1659
      %v1692 = vadd.f32 %v1621, %v1660
      %v1693 = vadd.f32 %v1622, %v1661
      %v1694 = vadd.f32 %v1623, %v1662
      %v1695 = vadd.f32 %v1624, %v1663
      %v1696 = vadd.f32 %v1625, %v1664
      %v1697 = vadd.f32 %v1626, %v1665
      %v1698 = vadd.f32 %v1627, %v1666
      %v1699 = vadd.f32 %v1628, %v1667
      %v1700 = vadd.f32 %v1629, %v1668
      %v1701 = vadd.f32 %v1630, %v1669
      %v1702 = vadd.f32 %v1631, %v1670
      %v1703 = vadd.f32 %v1632, %v1671
      %v1704 = vadd.f32 %v1633, %v1672
      %v1705 = vadd.f32 %v1634, %v1673
      %v1706 = vadd.f32 %v1635, %v1674
      %v1707 = vadd.f32 %v1636, %v1675
      %v1708 = vadd.f32 %v1637, %v1676
      %v1709 = vadd.f32 %v1638, %v1677
      %v1710 = vadd.f32 %v1639, %v1678
      %v1711 = vadd.f32 %v1640, %v1679
      %v1712 = vld [vmem:[#allocation2 + $0x118] sm:$0xff]
      %v1713 = vld [vmem:[#allocation2 + $0x120] sm:$0xff]
      %v1714 = vld [vmem:[%s1 + $0x7] sm:$0x1]
      %v1715 = vlaneseq
      %v1716 = vshrl.u32 %v1715, 7
      %v1717 = vsub.s32 0, %v1716
      %v1718 = vrot.slane %v1714, %v1717
      %v1719 = vmul.f32 %v1544, %v1718
      %v1720 = vmul.f32 %v1545, %v1718
      %v1721 = vmul.f32 %v1546, %v1718
      %v1722 = vmul.f32 %v1547, %v1718
      %v1723 = vmul.f32 %v1548, %v1718
      %v1724 = vmul.f32 %v1549, %v1718
      %v1725 = vmul.f32 %v1550, %v1718
      %v1726 = vmul.f32 %v1551, %v1718
      %v1727 = vmul.f32 %v1552, %v1718
      %v1728 = vmul.f32 %v1553, %v1718
      %v1729 = vmul.f32 %v1554, %v1718
      %v1730 = vmul.f32 %v1555, %v1718
      %v1731 = vmul.f32 %v1556, %v1718
      %v1732 = vmul.f32 %v1557, %v1718
      %v1733 = vmul.f32 %v1558, %v1718
      %v1734 = vmul.f32 %v1559, %v1718
      %v1735 = vmul.f32 %v1560, %v1718
      %v1736 = vmul.f32 %v1561, %v1718
      %v1737 = vmul.f32 %v1562, %v1718
      %v1738 = vmul.f32 %v1563, %v1718
      %v1739 = vmul.f32 %v1564, %v1718
      %v1740 = vmul.f32 %v1565, %v1718
      %v1741 = vmul.f32 %v1566, %v1718
      %v1742 = vmul.f32 %v1567, %v1718
      %v1743 = vmul.f32 %v1568, %v1718
      %v1744 = vmul.f32 %v1569, %v1718
      %v1745 = vmul.f32 %v1570, %v1718
      %v1746 = vmul.f32 %v1571, %v1718
      %v1747 = vmul.f32 %v1641, %v1718
      %v1748 = vmul.f32 %v1642, %v1718
      %v1749 = vmul.f32 %v1712, %v1718
      %v1750 = vmul.f32 %v1713, %v1718
      %v1751 = vadd.f32 %v1680, %v1719
      %v1752 = vadd.f32 %v1681, %v1720
      %v1753 = vadd.f32 %v1682, %v1721
      %v1754 = vadd.f32 %v1683, %v1722
      %v1755 = vadd.f32 %v1684, %v1723
      %v1756 = vadd.f32 %v1685, %v1724
      %v1757 = vadd.f32 %v1686, %v1725
      %v1758 = vadd.f32 %v1687, %v1726
      %v1759 = vadd.f32 %v1688, %v1727
      %v1760 = vadd.f32 %v1689, %v1728
      %v1761 = vadd.f32 %v1690, %v1729
      %v1762 = vadd.f32 %v1691, %v1730
      %v1763 = vadd.f32 %v1692, %v1731
      %v1764 = vadd.f32 %v1693, %v1732
      %v1765 = vadd.f32 %v1694, %v1733
      %v1766 = vadd.f32 %v1695, %v1734
      %v1767 = vadd.f32 %v1696, %v1735
      %v1768 = vadd.f32 %v1697, %v1736
      %v1769 = vadd.f32 %v1698, %v1737
      %v1770 = vadd.f32 %v1699, %v1738
      %v1771 = vadd.f32 %v1700, %v1739
      %v1772 = vadd.f32 %v1701, %v1740
      %v1773 = vadd.f32 %v1702, %v1741
      %v1774 = vadd.f32 %v1703, %v1742
      %v1775 = vadd.f32 %v1704, %v1743
      %v1776 = vadd.f32 %v1705, %v1744
      %v1777 = vadd.f32 %v1706, %v1745
      %v1778 = vadd.f32 %v1707, %v1746
      %v1779 = vadd.f32 %v1708, %v1747
      %v1780 = vadd.f32 %v1709, %v1748
      %v1781 = vadd.f32 %v1710, %v1749
      %v1782 = vadd.f32 %v1711, %v1750
      %v1783 = vadd.f32 %v1508, %v1751
      %v1784 = vadd.f32 %v1509, %v1752
      %v1785 = vadd.f32 %v1510, %v1753
      %v1786 = vadd.f32 %v1511, %v1754
      %v1787 = vadd.f32 %v1512, %v1755
      %v1788 = vadd.f32 %v1513, %v1756
      %v1789 = vadd.f32 %v1514, %v1757
      %v1790 = vadd.f32 %v1515, %v1758
      %v1791 = vadd.f32 %v1516, %v1759
      %v1792 = vadd.f32 %v1517, %v1760
      %v1793 = vadd.f32 %v1518, %v1761
      %v1794 = vadd.f32 %v1519, %v1762
      %v1795 = vadd.f32 %v1520, %v1763
      %v1796 = vadd.f32 %v1521, %v1764
      %v1797 = vadd.f32 %v1522, %v1765
      %v1798 = vadd.f32 %v1523, %v1766
      %v1799 = vadd.f32 %v1524, %v1767
      %v1800 = vadd.f32 %v1525, %v1768
      %v1801 = vadd.f32 %v1526, %v1769
      %v1802 = vadd.f32 %v1527, %v1770
      %v1803 = vadd.f32 %v1528, %v1771
      %v1804 = vadd.f32 %v1529, %v1772
      %v1805 = vadd.f32 %v1530, %v1773
      %v1806 = vadd.f32 %v1531, %v1774
      %v1807 = vadd.f32 %v1532, %v1775
      %v1808 = vadd.f32 %v1533, %v1776
      %v1809 = vadd.f32 %v1534, %v1777
      %v1810 = vadd.f32 %v1535, %v1778
      %v1811 = vadd.f32 %v1536, %v1779
      %v1812 = vadd.f32 %v1537, %v1780
      %v1813 = vadd.f32 %v1538, %v1781
      %v1814 = vadd.f32 %v1539, %v1782
      %v1815 = vld [vmem:[#allocation2 + $0x9] sm:$0xff]
      %v1816 = vld [vmem:[#allocation2 + $0x11] sm:$0xff]
      %v1817 = vld [vmem:[#allocation2 + $0x19] sm:$0xff]
      %v1818 = vld [vmem:[#allocation2 + $0x21] sm:$0xff]
      %v1819 = vld [vmem:[#allocation2 + $0x29] sm:$0xff]
      %v1820 = vld [vmem:[#allocation2 + $0x31] sm:$0xff]
      %v1821 = vld [vmem:[#allocation2 + $0x39] sm:$0xff]
      %v1822 = vld [vmem:[#allocation2 + $0x41] sm:$0xff]
      %v1823 = vld [vmem:[#allocation2 + $0x49] sm:$0xff]
      %v1824 = vld [vmem:[#allocation2 + $0x51] sm:$0xff]
      %v1825 = vld [vmem:[#allocation2 + $0x59] sm:$0xff]
      %v1826 = vld [vmem:[#allocation2 + $0x61] sm:$0xff]
      %v1827 = vld [vmem:[#allocation2 + $0x69] sm:$0xff]
      %v1828 = vld [vmem:[#allocation2 + $0x71] sm:$0xff]
      %v1829 = vld [vmem:[#allocation2 + $0x79] sm:$0xff]
      %v1830 = vld [vmem:[#allocation2 + $0x81] sm:$0xff]
      %v1831 = vld [vmem:[#allocation2 + $0x89] sm:$0xff]
      %v1832 = vld [vmem:[#allocation2 + $0x91] sm:$0xff]
      %v1833 = vld [vmem:[#allocation2 + $0x99] sm:$0xff]
      %v1834 = vld [vmem:[#allocation2 + $0xa1] sm:$0xff]
      %v1835 = vld [vmem:[#allocation2 + $0xa9] sm:$0xff]
      %v1836 = vld [vmem:[#allocation2 + $0xb1] sm:$0xff]
      %v1837 = vld [vmem:[#allocation2 + $0xb9] sm:$0xff]
      %v1838 = vld [vmem:[#allocation2 + $0xc1] sm:$0xff]
      %v1839 = vld [vmem:[#allocation2 + $0xc9] sm:$0xff]
      %v1840 = vld [vmem:[#allocation2 + $0xd1] sm:$0xff]
      %v1841 = vld [vmem:[#allocation2 + $0xd9] sm:$0xff]
      %v1842 = vld [vmem:[#allocation2 + $0xe1] sm:$0xff]
      %v1843 = vld [vmem:[#allocation2 + $0xe9] sm:$0xff]
      %v1844 = vld [vmem:[#allocation2 + $0xf1] sm:$0xff]
      %v1845 = vld [vmem:[#allocation2 + $0xf9] sm:$0xff]
      %v1846 = vld [vmem:[#allocation2 + $0x101] sm:$0xff]
      %v1847 = vld [vmem:[%s1 + $0x2] sm:$0x1]
      %v1848 = vlaneseq
      %v1849 = vshrl.u32 %v1848, 7
      %v1850 = vsub.s32 0, %v1849
      %v1851 = vrot.slane %v1847, %v1850
      %v1852 = vmul.f32 %v1815, %v1851
      %v1853 = vmul.f32 %v1816, %v1851
      %v1854 = vmul.f32 %v1817, %v1851
      %v1855 = vmul.f32 %v1818, %v1851
      %v1856 = vmul.f32 %v1819, %v1851
      %v1857 = vmul.f32 %v1820, %v1851
      %v1858 = vmul.f32 %v1821, %v1851
      %v1859 = vmul.f32 %v1822, %v1851
      %v1860 = vmul.f32 %v1823, %v1851
      %v1861 = vmul.f32 %v1824, %v1851
      %v1862 = vmul.f32 %v1825, %v1851
      %v1863 = vmul.f32 %v1826, %v1851
      %v1864 = vmul.f32 %v1827, %v1851
      %v1865 = vmul.f32 %v1828, %v1851
      %v1866 = vmul.f32 %v1829, %v1851
      %v1867 = vmul.f32 %v1830, %v1851
      %v1868 = vmul.f32 %v1831, %v1851
      %v1869 = vmul.f32 %v1832, %v1851
      %v1870 = vmul.f32 %v1833, %v1851
      %v1871 = vmul.f32 %v1834, %v1851
      %v1872 = vmul.f32 %v1835, %v1851
      %v1873 = vmul.f32 %v1836, %v1851
      %v1874 = vmul.f32 %v1837, %v1851
      %v1875 = vmul.f32 %v1838, %v1851
      %v1876 = vmul.f32 %v1839, %v1851
      %v1877 = vmul.f32 %v1840, %v1851
      %v1878 = vmul.f32 %v1841, %v1851
      %v1879 = vmul.f32 %v1842, %v1851
      %v1880 = vmul.f32 %v1843, %v1851
      %v1881 = vmul.f32 %v1844, %v1851
      %v1882 = vmul.f32 %v1845, %v1851
      %v1883 = vmul.f32 %v1846, %v1851
      %v1884 = vadd.f32 %v1852, 0.0
      %v1885 = vadd.f32 %v1853, 0.0
      %v1886 = vadd.f32 %v1854, 0.0
      %v1887 = vadd.f32 %v1855, 0.0
      %v1888 = vadd.f32 %v1856, 0.0
      %v1889 = vadd.f32 %v1857, 0.0
      %v1890 = vadd.f32 %v1858, 0.0
      %v1891 = vadd.f32 %v1859, 0.0
      %v1892 = vadd.f32 %v1860, 0.0
      %v1893 = vadd.f32 %v1861, 0.0
      %v1894 = vadd.f32 %v1862, 0.0
      %v1895 = vadd.f32 %v1863, 0.0
      %v1896 = vadd.f32 %v1864, 0.0
      %v1897 = vadd.f32 %v1865, 0.0
      %v1898 = vadd.f32 %v1866, 0.0
      %v1899 = vadd.f32 %v1867, 0.0
      %v1900 = vadd.f32 %v1868, 0.0
      %v1901 = vadd.f32 %v1869, 0.0
      %v1902 = vadd.f32 %v1870, 0.0
      %v1903 = vadd.f32 %v1871, 0.0
      %v1904 = vadd.f32 %v1872, 0.0
      %v1905 = vadd.f32 %v1873, 0.0
      %v1906 = vadd.f32 %v1874, 0.0
      %v1907 = vadd.f32 %v1875, 0.0
      %v1908 = vadd.f32 %v1876, 0.0
      %v1909 = vadd.f32 %v1877, 0.0
      %v1910 = vadd.f32 %v1878, 0.0
      %v1911 = vadd.f32 %v1879, 0.0
      %v1912 = vadd.f32 %v1880, 0.0
      %v1913 = vadd.f32 %v1881, 0.0
      %v1914 = vadd.f32 %v1882, 0.0
      %v1915 = vadd.f32 %v1883, 0.0
      %v1916 = vld [vmem:[#allocation2 + $0x109] sm:$0xff]
      %v1917 = vld [vmem:[#allocation2 + $0x111] sm:$0xff]
      %v1918 = vld [vmem:[%s1 + $0x5] sm:$0x1]
      %v1919 = vlaneseq
      %v1920 = vshrl.u32 %v1919, 7
      %v1921 = vsub.s32 0, %v1920
      %v1922 = vrot.slane %v1918, %v1921
      %v1923 = vmul.f32 %v1817, %v1922
      %v1924 = vmul.f32 %v1818, %v1922
      %v1925 = vmul.f32 %v1819, %v1922
      %v1926 = vmul.f32 %v1820, %v1922
      %v1927 = vmul.f32 %v1821, %v1922
      %v1928 = vmul.f32 %v1822, %v1922
      %v1929 = vmul.f32 %v1823, %v1922
      %v1930 = vmul.f32 %v1824, %v1922
      %v1931 = vmul.f32 %v1825, %v1922
      %v1932 = vmul.f32 %v1826, %v1922
      %v1933 = vmul.f32 %v1827, %v1922
      %v1934 = vmul.f32 %v1828, %v1922
      %v1935 = vmul.f32 %v1829, %v1922
      %v1936 = vmul.f32 %v1830, %v1922
      %v1937 = vmul.f32 %v1831, %v1922
      %v1938 = vmul.f32 %v1832, %v1922
      %v1939 = vmul.f32 %v1833, %v1922
      %v1940 = vmul.f32 %v1834, %v1922
      %v1941 = vmul.f32 %v1835, %v1922
      %v1942 = vmul.f32 %v1836, %v1922
      %v1943 = vmul.f32 %v1837, %v1922
      %v1944 = vmul.f32 %v1838, %v1922
      %v1945 = vmul.f32 %v1839, %v1922
      %v1946 = vmul.f32 %v1840, %v1922
      %v1947 = vmul.f32 %v1841, %v1922
      %v1948 = vmul.f32 %v1842, %v1922
      %v1949 = vmul.f32 %v1843, %v1922
      %v1950 = vmul.f32 %v1844, %v1922
      %v1951 = vmul.f32 %v1845, %v1922
      %v1952 = vmul.f32 %v1846, %v1922
      %v1953 = vmul.f32 %v1916, %v1922
      %v1954 = vmul.f32 %v1917, %v1922
      %v1955 = vadd.f32 %v1884, %v1923
      %v1956 = vadd.f32 %v1885, %v1924
      %v1957 = vadd.f32 %v1886, %v1925
      %v1958 = vadd.f32 %v1887, %v1926
      %v1959 = vadd.f32 %v1888, %v1927
      %v1960 = vadd.f32 %v1889, %v1928
      %v1961 = vadd.f32 %v1890, %v1929
      %v1962 = vadd.f32 %v1891, %v1930
      %v1963 = vadd.f32 %v1892, %v1931
      %v1964 = vadd.f32 %v1893, %v1932
      %v1965 = vadd.f32 %v1894, %v1933
      %v1966 = vadd.f32 %v1895, %v1934
      %v1967 = vadd.f32 %v1896, %v1935
      %v1968 = vadd.f32 %v1897, %v1936
      %v1969 = vadd.f32 %v1898, %v1937
      %v1970 = vadd.f32 %v1899, %v1938
      %v1971 = vadd.f32 %v1900, %v1939
      %v1972 = vadd.f32 %v1901, %v1940
      %v1973 = vadd.f32 %v1902, %v1941
      %v1974 = vadd.f32 %v1903, %v1942
      %v1975 = vadd.f32 %v1904, %v1943
      %v1976 = vadd.f32 %v1905, %v1944
      %v1977 = vadd.f32 %v1906, %v1945
      %v1978 = vadd.f32 %v1907, %v1946
      %v1979 = vadd.f32 %v1908, %v1947
      %v1980 = vadd.f32 %v1909, %v1948
      %v1981 = vadd.f32 %v1910, %v1949
      %v1982 = vadd.f32 %v1911, %v1950
      %v1983 = vadd.f32 %v1912, %v1951
      %v1984 = vadd.f32 %v1913, %v1952
      %v1985 = vadd.f32 %v1914, %v1953
      %v1986 = vadd.f32 %v1915, %v1954
      %v1987 = vld [vmem:[#allocation2 + $0x119] sm:$0xff]
      %v1988 = vld [vmem:[#allocation2 + $0x121] sm:$0xff]
      %v1989 = vld [vmem:[%s1 + $0x8] sm:$0x1]
      %v1990 = vlaneseq
      %v1991 = vshrl.u32 %v1990, 7
      %v1992 = vsub.s32 0, %v1991
      %v1993 = vrot.slane %v1989, %v1992
      %v1994 = vmul.f32 %v1819, %v1993
      %v1995 = vmul.f32 %v1820, %v1993
      %v1996 = vmul.f32 %v1821, %v1993
      %v1997 = vmul.f32 %v1822, %v1993
      %v1998 = vmul.f32 %v1823, %v1993
      %v1999 = vmul.f32 %v1824, %v1993
      %v2000 = vmul.f32 %v1825, %v1993
      %v2001 = vmul.f32 %v1826, %v1993
      %v2002 = vmul.f32 %v1827, %v1993
      %v2003 = vmul.f32 %v1828, %v1993
      %v2004 = vmul.f32 %v1829, %v1993
      %v2005 = vmul.f32 %v1830, %v1993
      %v2006 = vmul.f32 %v1831, %v1993
      %v2007 = vmul.f32 %v1832, %v1993
      %v2008 = vmul.f32 %v1833, %v1993
      %v2009 = vmul.f32 %v1834, %v1993
      %v2010 = vmul.f32 %v1835, %v1993
      %v2011 = vmul.f32 %v1836, %v1993
      %v2012 = vmul.f32 %v1837, %v1993
      %v2013 = vmul.f32 %v1838, %v1993
      %v2014 = vmul.f32 %v1839, %v1993
      %v2015 = vmul.f32 %v1840, %v1993
      %v2016 = vmul.f32 %v1841, %v1993
      %v2017 = vmul.f32 %v1842, %v1993
      %v2018 = vmul.f32 %v1843, %v1993
      %v2019 = vmul.f32 %v1844, %v1993
      %v2020 = vmul.f32 %v1845, %v1993
      %v2021 = vmul.f32 %v1846, %v1993
      %v2022 = vmul.f32 %v1916, %v1993
      %v2023 = vmul.f32 %v1917, %v1993
      %v2024 = vmul.f32 %v1987, %v1993
      %v2025 = vmul.f32 %v1988, %v1993
      %v2026 = vadd.f32 %v1955, %v1994
      %v2027 = vadd.f32 %v1956, %v1995
      %v2028 = vadd.f32 %v1957, %v1996
      %v2029 = vadd.f32 %v1958, %v1997
      %v2030 = vadd.f32 %v1959, %v1998
      %v2031 = vadd.f32 %v1960, %v1999
      %v2032 = vadd.f32 %v1961, %v2000
      %v2033 = vadd.f32 %v1962, %v2001
      %v2034 = vadd.f32 %v1963, %v2002
      %v2035 = vadd.f32 %v1964, %v2003
      %v2036 = vadd.f32 %v1965, %v2004
      %v2037 = vadd.f32 %v1966, %v2005
      %v2038 = vadd.f32 %v1967, %v2006
      %v2039 = vadd.f32 %v1968, %v2007
      %v2040 = vadd.f32 %v1969, %v2008
      %v2041 = vadd.f32 %v1970, %v2009
      %v2042 = vadd.f32 %v1971, %v2010
      %v2043 = vadd.f32 %v1972, %v2011
      %v2044 = vadd.f32 %v1973, %v2012
      %v2045 = vadd.f32 %v1974, %v2013
      %v2046 = vadd.f32 %v1975, %v2014
      %v2047 = vadd.f32 %v1976, %v2015
      %v2048 = vadd.f32 %v1977, %v2016
      %v2049 = vadd.f32 %v1978, %v2017
      %v2050 = vadd.f32 %v1979, %v2018
      %v2051 = vadd.f32 %v1980, %v2019
      %v2052 = vadd.f32 %v1981, %v2020
      %v2053 = vadd.f32 %v1982, %v2021
      %v2054 = vadd.f32 %v1983, %v2022
      %v2055 = vadd.f32 %v1984, %v2023
      %v2056 = vadd.f32 %v1985, %v2024
      %v2057 = vadd.f32 %v1986, %v2025
      %v2058 = vmul.f32 %v2026, %v1161
      %v2059 = vmul.f32 %v2027, %v1162
      %v2060 = vmul.f32 %v2028, %v1163
      %v2061 = vmul.f32 %v2029, %v1164
      %v2062 = vmul.f32 %v2030, %v1165
      %v2063 = vmul.f32 %v2031, %v1166
      %v2064 = vmul.f32 %v2032, %v1167
      %v2065 = vmul.f32 %v2033, %v1168
      %v2066 = vmul.f32 %v2034, %v1169
      %v2067 = vmul.f32 %v2035, %v1170
      %v2068 = vmul.f32 %v2036, %v1171
      %v2069 = vmul.f32 %v2037, %v1172
      %v2070 = vmul.f32 %v2038, %v1173
      %v2071 = vmul.f32 %v2039, %v1174
      %v2072 = vmul.f32 %v2040, %v1175
      %v2073 = vmul.f32 %v2041, %v1176
      %v2074 = vmul.f32 %v2042, %v1177
      %v2075 = vmul.f32 %v2043, %v1178
      %v2076 = vmul.f32 %v2044, %v1179
      %v2077 = vmul.f32 %v2045, %v1180
      %v2078 = vmul.f32 %v2046, %v1181
      %v2079 = vmul.f32 %v2047, %v1182
      %v2080 = vmul.f32 %v2048, %v1183
      %v2081 = vmul.f32 %v2049, %v1184
      %v2082 = vmul.f32 %v2050, %v1185
      %v2083 = vmul.f32 %v2051, %v1186
      %v2084 = vmul.f32 %v2052, %v1187
      %v2085 = vmul.f32 %v2053, %v1188
      %v2086 = vmul.f32 %v2054, %v1189
      %v2087 = vmul.f32 %v2055, %v1190
      %v2088 = vmul.f32 %v2056, %v1191
      %v2089 = vmul.f32 %v2057, %v1192
      %v2090 = vadd.f32 %v1783, %v2058
      %v2091 = vadd.f32 %v1784, %v2059
      %v2092 = vadd.f32 %v1785, %v2060
      %v2093 = vadd.f32 %v1786, %v2061
      %v2094 = vadd.f32 %v1787, %v2062
      %v2095 = vadd.f32 %v1788, %v2063
      %v2096 = vadd.f32 %v1789, %v2064
      %v2097 = vadd.f32 %v1790, %v2065
      %v2098 = vadd.f32 %v1791, %v2066
      %v2099 = vadd.f32 %v1792, %v2067
      %v2100 = vadd.f32 %v1793, %v2068
      %v2101 = vadd.f32 %v1794, %v2069
      %v2102 = vadd.f32 %v1795, %v2070
      %v2103 = vadd.f32 %v1796, %v2071
      %v2104 = vadd.f32 %v1797, %v2072
      %v2105 = vadd.f32 %v1798, %v2073
      %v2106 = vadd.f32 %v1799, %v2074
      %v2107 = vadd.f32 %v1800, %v2075
      %v2108 = vadd.f32 %v1801, %v2076
      %v2109 = vadd.f32 %v1802, %v2077
      %v2110 = vadd.f32 %v1803, %v2078
      %v2111 = vadd.f32 %v1804, %v2079
      %v2112 = vadd.f32 %v1805, %v2080
      %v2113 = vadd.f32 %v1806, %v2081
      %v2114 = vadd.f32 %v1807, %v2082
      %v2115 = vadd.f32 %v1808, %v2083
      %v2116 = vadd.f32 %v1809, %v2084
      %v2117 = vadd.f32 %v1810, %v2085
      %v2118 = vadd.f32 %v1811, %v2086
      %v2119 = vadd.f32 %v1812, %v2087
      %v2120 = vadd.f32 %v1813, %v2088
      %v2121 = vadd.f32 %v1814, %v2089
      %v2122 = vadd.f32 %v577, %v2090
      %v2123 = vadd.f32 %v578, %v2091
      %v2124 = vadd.f32 %v579, %v2092
      %v2125 = vadd.f32 %v580, %v2093
      %v2126 = vadd.f32 %v581, %v2094
      %v2127 = vadd.f32 %v582, %v2095
      %v2128 = vadd.f32 %v583, %v2096
      %v2129 = vadd.f32 %v584, %v2097
      %v2130 = vadd.f32 %v585, %v2098
      %v2131 = vadd.f32 %v586, %v2099
      %v2132 = vadd.f32 %v587, %v2100
      %v2133 = vadd.f32 %v588, %v2101
      %v2134 = vadd.f32 %v589, %v2102
      %v2135 = vadd.f32 %v590, %v2103
      %v2136 = vadd.f32 %v591, %v2104
      %v2137 = vadd.f32 %v592, %v2105
      %v2138 = vadd.f32 %v593, %v2106
      %v2139 = vadd.f32 %v594, %v2107
      %v2140 = vadd.f32 %v595, %v2108
      %v2141 = vadd.f32 %v596, %v2109
      %v2142 = vadd.f32 %v597, %v2110
      %v2143 = vadd.f32 %v598, %v2111
      %v2144 = vadd.f32 %v599, %v2112
      %v2145 = vadd.f32 %v600, %v2113
      %v2146 = vadd.f32 %v601, %v2114
      %v2147 = vadd.f32 %v602, %v2115
      %v2148 = vadd.f32 %v603, %v2116
      %v2149 = vadd.f32 %v604, %v2117
      %v2150 = vadd.f32 %v605, %v2118
      %v2151 = vadd.f32 %v606, %v2119
      %v2152 = vadd.f32 %v607, %v2120
      %v2153 = vadd.f32 %v608, %v2121
      %v2154 = vld [vmem:[%s3] sm:$0x1]
      %v2155 = vld [vmem:[%s4] sm:$0x1]
      %v2156 = vsel %vm609, %v2122, 0.0
      %2157 = vadd.xlane.f32.xlu0 %v2156
      %v2158 = vpop.xlane.xlu0 %2157
      %v2159 = vsel %vm609, %v2123, 0.0
      %2160 = vadd.xlane.f32.xlu0 %v2159
      %v2161 = vpop.xlane.xlu0 %2160
      %v2162 = vsel %vm609, %v2124, 0.0
      %2163 = vadd.xlane.f32.xlu0 %v2162
      %v2164 = vpop.xlane.xlu0 %2163
      %v2165 = vsel %vm609, %v2125, 0.0
      %2166 = vadd.xlane.f32.xlu0 %v2165
      %v2167 = vpop.xlane.xlu0 %2166
      %v2168 = vsel %vm609, %v2126, 0.0
      %2169 = vadd.xlane.f32.xlu0 %v2168
      %v2170 = vpop.xlane.xlu0 %2169
      %v2171 = vsel %vm609, %v2127, 0.0
      %2172 = vadd.xlane.f32.xlu0 %v2171
      %v2173 = vpop.xlane.xlu0 %2172
      %v2174 = vsel %vm609, %v2128, 0.0
      %2175 = vadd.xlane.f32.xlu0 %v2174
      %v2176 = vpop.xlane.xlu0 %2175
      %v2177 = vsel %vm609, %v2129, 0.0
      %2178 = vadd.xlane.f32.xlu0 %v2177
      %v2179 = vpop.xlane.xlu0 %2178
      %v2180 = vsel %vm609, %v2130, 0.0
      %2181 = vadd.xlane.f32.xlu0 %v2180
      %v2182 = vpop.xlane.xlu0 %2181
      %v2183 = vsel %vm609, %v2131, 0.0
      %2184 = vadd.xlane.f32.xlu0 %v2183
      %v2185 = vpop.xlane.xlu0 %2184
      %v2186 = vsel %vm609, %v2132, 0.0
      %2187 = vadd.xlane.f32.xlu0 %v2186
      %v2188 = vpop.xlane.xlu0 %2187
      %v2189 = vsel %vm609, %v2133, 0.0
      %2190 = vadd.xlane.f32.xlu0 %v2189
      %v2191 = vpop.xlane.xlu0 %2190
      %v2192 = vsel %vm609, %v2134, 0.0
      %2193 = vadd.xlane.f32.xlu0 %v2192
      %v2194 = vpop.xlane.xlu0 %2193
      %v2195 = vsel %vm609, %v2135, 0.0
      %2196 = vadd.xlane.f32.xlu0 %v2195
      %v2197 = vpop.xlane.xlu0 %2196
      %v2198 = vsel %vm609, %v2136, 0.0
      %2199 = vadd.xlane.f32.xlu0 %v2198
      %v2200 = vpop.xlane.xlu0 %2199
      %v2201 = vsel %vm609, %v2137, 0.0
      %2202 = vadd.xlane.f32.xlu0 %v2201
      %v2203 = vpop.xlane.xlu0 %2202
      %v2204 = vsel %vm609, %v2138, 0.0
      %2205 = vadd.xlane.f32.xlu0 %v2204
      %v2206 = vpop.xlane.xlu0 %2205
      %v2207 = vsel %vm609, %v2139, 0.0
      %2208 = vadd.xlane.f32.xlu0 %v2207
      %v2209 = vpop.xlane.xlu0 %2208
      %v2210 = vsel %vm609, %v2140, 0.0
      %2211 = vadd.xlane.f32.xlu0 %v2210
      %v2212 = vpop.xlane.xlu0 %2211
      %v2213 = vsel %vm609, %v2141, 0.0
      %2214 = vadd.xlane.f32.xlu0 %v2213
      %v2215 = vpop.xlane.xlu0 %2214
      %v2216 = vsel %vm609, %v2142, 0.0
      %2217 = vadd.xlane.f32.xlu0 %v2216
      %v2218 = vpop.xlane.xlu0 %2217
      %v2219 = vsel %vm609, %v2143, 0.0
      %2220 = vadd.xlane.f32.xlu0 %v2219
      %v2221 = vpop.xlane.xlu0 %2220
      %v2222 = vsel %vm609, %v2144, 0.0
      %2223 = vadd.xlane.f32.xlu0 %v2222
      %v2224 = vpop.xlane.xlu0 %2223
      %v2225 = vsel %vm609, %v2145, 0.0
      %2226 = vadd.xlane.f32.xlu0 %v2225
      %v2227 = vpop.xlane.xlu0 %2226
      %v2228 = vsel %vm609, %v2146, 0.0
      %2229 = vadd.xlane.f32.xlu0 %v2228
      %v2230 = vpop.xlane.xlu0 %2229
      %v2231 = vsel %vm609, %v2147, 0.0
      %2232 = vadd.xlane.f32.xlu0 %v2231
      %v2233 = vpop.xlane.xlu0 %2232
      %v2234 = vsel %vm609, %v2148, 0.0
      %2235 = vadd.xlane.f32.xlu0 %v2234
      %v2236 = vpop.xlane.xlu0 %2235
      %v2237 = vsel %vm609, %v2149, 0.0
      %2238 = vadd.xlane.f32.xlu0 %v2237
      %v2239 = vpop.xlane.xlu0 %2238
      %v2240 = vsel %vm609, %v2150, 0.0
      %2241 = vadd.xlane.f32.xlu0 %v2240
      %v2242 = vpop.xlane.xlu0 %2241
      %v2243 = vsel %vm609, %v2151, 0.0
      %2244 = vadd.xlane.f32.xlu0 %v2243
      %v2245 = vpop.xlane.xlu0 %2244
      %v2246 = vsel %vm609, %v2152, 0.0
      %2247 = vadd.xlane.f32.xlu0 %v2246
      %v2248 = vpop.xlane.xlu0 %2247
      %v2249 = vsel %vm609, %v2153, 0.0
      %2250 = vadd.xlane.f32.xlu0 %v2249
      %v2251 = vpop.xlane.xlu0 %2250
      %v2252 = vrcp.pop 32.0
      %v2253 = vmul.f32 %v2158, %v2252
      %v2254 = vmul.f32 %v2161, %v2252
      %v2255 = vmul.f32 %v2164, %v2252
      %v2256 = vmul.f32 %v2167, %v2252
      %v2257 = vmul.f32 %v2170, %v2252
      %v2258 = vmul.f32 %v2173, %v2252
      %v2259 = vmul.f32 %v2176, %v2252
      %v2260 = vmul.f32 %v2179, %v2252
      %v2261 = vmul.f32 %v2182, %v2252
      %v2262 = vmul.f32 %v2185, %v2252
      %v2263 = vmul.f32 %v2188, %v2252
      %v2264 = vmul.f32 %v2191, %v2252
      %v2265 = vmul.f32 %v2194, %v2252
      %v2266 = vmul.f32 %v2197, %v2252
      %v2267 = vmul.f32 %v2200, %v2252
      %v2268 = vmul.f32 %v2203, %v2252
      %v2269 = vmul.f32 %v2206, %v2252
      %v2270 = vmul.f32 %v2209, %v2252
      %v2271 = vmul.f32 %v2212, %v2252
      %v2272 = vmul.f32 %v2215, %v2252
      %v2273 = vmul.f32 %v2218, %v2252
      %v2274 = vmul.f32 %v2221, %v2252
      %v2275 = vmul.f32 %v2224, %v2252
      %v2276 = vmul.f32 %v2227, %v2252
      %v2277 = vmul.f32 %v2230, %v2252
      %v2278 = vmul.f32 %v2233, %v2252
      %v2279 = vmul.f32 %v2236, %v2252
      %v2280 = vmul.f32 %v2239, %v2252
      %v2281 = vmul.f32 %v2242, %v2252
      %v2282 = vmul.f32 %v2245, %v2252
      %v2283 = vmul.f32 %v2248, %v2252
      %v2284 = vmul.f32 %v2251, %v2252
      %v2285 = vsub.f32 %v2122, %v2253
      %v2286 = vsub.f32 %v2123, %v2254
      %v2287 = vsub.f32 %v2124, %v2255
      %v2288 = vsub.f32 %v2125, %v2256
      %v2289 = vsub.f32 %v2126, %v2257
      %v2290 = vsub.f32 %v2127, %v2258
      %v2291 = vsub.f32 %v2128, %v2259
      %v2292 = vsub.f32 %v2129, %v2260
      %v2293 = vsub.f32 %v2130, %v2261
      %v2294 = vsub.f32 %v2131, %v2262
      %v2295 = vsub.f32 %v2132, %v2263
      %v2296 = vsub.f32 %v2133, %v2264
      %v2297 = vsub.f32 %v2134, %v2265
      %v2298 = vsub.f32 %v2135, %v2266
      %v2299 = vsub.f32 %v2136, %v2267
      %v2300 = vsub.f32 %v2137, %v2268
      %v2301 = vsub.f32 %v2138, %v2269
      %v2302 = vsub.f32 %v2139, %v2270
      %v2303 = vsub.f32 %v2140, %v2271
      %v2304 = vsub.f32 %v2141, %v2272
      %v2305 = vsub.f32 %v2142, %v2273
      %v2306 = vsub.f32 %v2143, %v2274
      %v2307 = vsub.f32 %v2144, %v2275
      %v2308 = vsub.f32 %v2145, %v2276
      %v2309 = vsub.f32 %v2146, %v2277
      %v2310 = vsub.f32 %v2147, %v2278
      %v2311 = vsub.f32 %v2148, %v2279
      %v2312 = vsub.f32 %v2149, %v2280
      %v2313 = vsub.f32 %v2150, %v2281
      %v2314 = vsub.f32 %v2151, %v2282
      %v2315 = vsub.f32 %v2152, %v2283
      %v2316 = vsub.f32 %v2153, %v2284
      %v2317 = vmul.f32 %v2285, %v2285
      %v2318 = vmul.f32 %v2286, %v2286
      %v2319 = vmul.f32 %v2287, %v2287
      %v2320 = vmul.f32 %v2288, %v2288
      %v2321 = vmul.f32 %v2289, %v2289
      %v2322 = vmul.f32 %v2290, %v2290
      %v2323 = vmul.f32 %v2291, %v2291
      %v2324 = vmul.f32 %v2292, %v2292
      %v2325 = vmul.f32 %v2293, %v2293
      %v2326 = vmul.f32 %v2294, %v2294
      %v2327 = vmul.f32 %v2295, %v2295
      %v2328 = vmul.f32 %v2296, %v2296
      %v2329 = vmul.f32 %v2297, %v2297
      %v2330 = vmul.f32 %v2298, %v2298
      %v2331 = vmul.f32 %v2299, %v2299
      %v2332 = vmul.f32 %v2300, %v2300
      %v2333 = vmul.f32 %v2301, %v2301
      %v2334 = vmul.f32 %v2302, %v2302
      %v2335 = vmul.f32 %v2303, %v2303
      %v2336 = vmul.f32 %v2304, %v2304
      %v2337 = vmul.f32 %v2305, %v2305
      %v2338 = vmul.f32 %v2306, %v2306
      %v2339 = vmul.f32 %v2307, %v2307
      %v2340 = vmul.f32 %v2308, %v2308
      %v2341 = vmul.f32 %v2309, %v2309
      %v2342 = vmul.f32 %v2310, %v2310
      %v2343 = vmul.f32 %v2311, %v2311
      %v2344 = vmul.f32 %v2312, %v2312
      %v2345 = vmul.f32 %v2313, %v2313
      %v2346 = vmul.f32 %v2314, %v2314
      %v2347 = vmul.f32 %v2315, %v2315
      %v2348 = vmul.f32 %v2316, %v2316
      %v2349 = vsel %vm609, %v2317, 0.0
      %2350 = vadd.xlane.f32.xlu0 %v2349
      %v2351 = vpop.xlane.xlu0 %2350
      %v2352 = vsel %vm609, %v2318, 0.0
      %2353 = vadd.xlane.f32.xlu0 %v2352
      %v2354 = vpop.xlane.xlu0 %2353
      %v2355 = vsel %vm609, %v2319, 0.0
      %2356 = vadd.xlane.f32.xlu0 %v2355
      %v2357 = vpop.xlane.xlu0 %2356
      %v2358 = vsel %vm609, %v2320, 0.0
      %2359 = vadd.xlane.f32.xlu0 %v2358
      %v2360 = vpop.xlane.xlu0 %2359
      %v2361 = vsel %vm609, %v2321, 0.0
      %2362 = vadd.xlane.f32.xlu0 %v2361
      %v2363 = vpop.xlane.xlu0 %2362
      %v2364 = vsel %vm609, %v2322, 0.0
      %2365 = vadd.xlane.f32.xlu0 %v2364
      %v2366 = vpop.xlane.xlu0 %2365
      %v2367 = vsel %vm609, %v2323, 0.0
      %2368 = vadd.xlane.f32.xlu0 %v2367
      %v2369 = vpop.xlane.xlu0 %2368
      %v2370 = vsel %vm609, %v2324, 0.0
      %2371 = vadd.xlane.f32.xlu0 %v2370
      %v2372 = vpop.xlane.xlu0 %2371
      %v2373 = vsel %vm609, %v2325, 0.0
      %2374 = vadd.xlane.f32.xlu0 %v2373
      %v2375 = vpop.xlane.xlu0 %2374
      %v2376 = vsel %vm609, %v2326, 0.0
      %2377 = vadd.xlane.f32.xlu0 %v2376
      %v2378 = vpop.xlane.xlu0 %2377
      %v2379 = vsel %vm609, %v2327, 0.0
      %2380 = vadd.xlane.f32.xlu0 %v2379
      %v2381 = vpop.xlane.xlu0 %2380
      %v2382 = vsel %vm609, %v2328, 0.0
      %2383 = vadd.xlane.f32.xlu0 %v2382
      %v2384 = vpop.xlane.xlu0 %2383
      %v2385 = vsel %vm609, %v2329, 0.0
      %2386 = vadd.xlane.f32.xlu0 %v2385
      %v2387 = vpop.xlane.xlu0 %2386
      %v2388 = vsel %vm609, %v2330, 0.0
      %2389 = vadd.xlane.f32.xlu0 %v2388
      %v2390 = vpop.xlane.xlu0 %2389
      %v2391 = vsel %vm609, %v2331, 0.0
      %2392 = vadd.xlane.f32.xlu0 %v2391
      %v2393 = vpop.xlane.xlu0 %2392
      %v2394 = vsel %vm609, %v2332, 0.0
      %2395 = vadd.xlane.f32.xlu0 %v2394
      %v2396 = vpop.xlane.xlu0 %2395
      %v2397 = vsel %vm609, %v2333, 0.0
      %2398 = vadd.xlane.f32.xlu0 %v2397
      %v2399 = vpop.xlane.xlu0 %2398
      %v2400 = vsel %vm609, %v2334, 0.0
      %2401 = vadd.xlane.f32.xlu0 %v2400
      %v2402 = vpop.xlane.xlu0 %2401
      %v2403 = vsel %vm609, %v2335, 0.0
      %2404 = vadd.xlane.f32.xlu0 %v2403
      %v2405 = vpop.xlane.xlu0 %2404
      %v2406 = vsel %vm609, %v2336, 0.0
      %2407 = vadd.xlane.f32.xlu0 %v2406
      %v2408 = vpop.xlane.xlu0 %2407
      %v2409 = vsel %vm609, %v2337, 0.0
      %2410 = vadd.xlane.f32.xlu0 %v2409
      %v2411 = vpop.xlane.xlu0 %2410
      %v2412 = vsel %vm609, %v2338, 0.0
      %2413 = vadd.xlane.f32.xlu0 %v2412
      %v2414 = vpop.xlane.xlu0 %2413
      %v2415 = vsel %vm609, %v2339, 0.0
      %2416 = vadd.xlane.f32.xlu0 %v2415
      %v2417 = vpop.xlane.xlu0 %2416
      %v2418 = vsel %vm609, %v2340, 0.0
      %2419 = vadd.xlane.f32.xlu0 %v2418
      %v2420 = vpop.xlane.xlu0 %2419
      %v2421 = vsel %vm609, %v2341, 0.0
      %2422 = vadd.xlane.f32.xlu0 %v2421
      %v2423 = vpop.xlane.xlu0 %2422
      %v2424 = vsel %vm609, %v2342, 0.0
      %2425 = vadd.xlane.f32.xlu0 %v2424
      %v2426 = vpop.xlane.xlu0 %2425
      %v2427 = vsel %vm609, %v2343, 0.0
      %2428 = vadd.xlane.f32.xlu0 %v2427
      %v2429 = vpop.xlane.xlu0 %2428
      %v2430 = vsel %vm609, %v2344, 0.0
      %2431 = vadd.xlane.f32.xlu0 %v2430
      %v2432 = vpop.xlane.xlu0 %2431
      %v2433 = vsel %vm609, %v2345, 0.0
      %2434 = vadd.xlane.f32.xlu0 %v2433
      %v2435 = vpop.xlane.xlu0 %2434
      %v2436 = vsel %vm609, %v2346, 0.0
      %2437 = vadd.xlane.f32.xlu0 %v2436
      %v2438 = vpop.xlane.xlu0 %2437
      %v2439 = vsel %vm609, %v2347, 0.0
      %2440 = vadd.xlane.f32.xlu0 %v2439
      %v2441 = vpop.xlane.xlu0 %2440
      %v2442 = vsel %vm609, %v2348, 0.0
      %2443 = vadd.xlane.f32.xlu0 %v2442
      %v2444 = vpop.xlane.xlu0 %2443
      %v2445 = vmul.f32 %v2351, %v2252
      %v2446 = vmul.f32 %v2354, %v2252
      %v2447 = vmul.f32 %v2357, %v2252
      %v2448 = vmul.f32 %v2360, %v2252
      %v2449 = vmul.f32 %v2363, %v2252
      %v2450 = vmul.f32 %v2366, %v2252
      %v2451 = vmul.f32 %v2369, %v2252
      %v2452 = vmul.f32 %v2372, %v2252
      %v2453 = vmul.f32 %v2375, %v2252
      %v2454 = vmul.f32 %v2378, %v2252
      %v2455 = vmul.f32 %v2381, %v2252
      %v2456 = vmul.f32 %v2384, %v2252
      %v2457 = vmul.f32 %v2387, %v2252
      %v2458 = vmul.f32 %v2390, %v2252
      %v2459 = vmul.f32 %v2393, %v2252
      %v2460 = vmul.f32 %v2396, %v2252
      %v2461 = vmul.f32 %v2399, %v2252
      %v2462 = vmul.f32 %v2402, %v2252
      %v2463 = vmul.f32 %v2405, %v2252
      %v2464 = vmul.f32 %v2408, %v2252
      %v2465 = vmul.f32 %v2411, %v2252
      %v2466 = vmul.f32 %v2414, %v2252
      %v2467 = vmul.f32 %v2417, %v2252
      %v2468 = vmul.f32 %v2420, %v2252
      %v2469 = vmul.f32 %v2423, %v2252
      %v2470 = vmul.f32 %v2426, %v2252
      %v2471 = vmul.f32 %v2429, %v2252
      %v2472 = vmul.f32 %v2432, %v2252
      %v2473 = vmul.f32 %v2435, %v2252
      %v2474 = vmul.f32 %v2438, %v2252
      %v2475 = vmul.f32 %v2441, %v2252
      %v2476 = vmul.f32 %v2444, %v2252
      %v2477 = vadd.f32 %v2445, 1e-05
      %v2478 = vadd.f32 %v2446, 1e-05
      %v2479 = vadd.f32 %v2447, 1e-05
      %v2480 = vadd.f32 %v2448, 1e-05
      %v2481 = vadd.f32 %v2449, 1e-05
      %v2482 = vadd.f32 %v2450, 1e-05
      %v2483 = vadd.f32 %v2451, 1e-05
      %v2484 = vadd.f32 %v2452, 1e-05
      %v2485 = vadd.f32 %v2453, 1e-05
      %v2486 = vadd.f32 %v2454, 1e-05
      %v2487 = vadd.f32 %v2455, 1e-05
      %v2488 = vadd.f32 %v2456, 1e-05
      %v2489 = vadd.f32 %v2457, 1e-05
      %v2490 = vadd.f32 %v2458, 1e-05
      %v2491 = vadd.f32 %v2459, 1e-05
      %v2492 = vadd.f32 %v2460, 1e-05
      %v2493 = vadd.f32 %v2461, 1e-05
      %v2494 = vadd.f32 %v2462, 1e-05
      %v2495 = vadd.f32 %v2463, 1e-05
      %v2496 = vadd.f32 %v2464, 1e-05
      %v2497 = vadd.f32 %v2465, 1e-05
      %v2498 = vadd.f32 %v2466, 1e-05
      %v2499 = vadd.f32 %v2467, 1e-05
      %v2500 = vadd.f32 %v2468, 1e-05
      %v2501 = vadd.f32 %v2469, 1e-05
      %v2502 = vadd.f32 %v2470, 1e-05
      %v2503 = vadd.f32 %v2471, 1e-05
      %v2504 = vadd.f32 %v2472, 1e-05
      %v2505 = vadd.f32 %v2473, 1e-05
      %v2506 = vadd.f32 %v2474, 1e-05
      %v2507 = vadd.f32 %v2475, 1e-05
      %v2508 = vadd.f32 %v2476, 1e-05
      %v2509 = vrsqrt.pop %v2477
      %v2510 = vrsqrt.pop %v2478
      %v2511 = vrsqrt.pop %v2479
      %v2512 = vrsqrt.pop %v2480
      %v2513 = vrsqrt.pop %v2481
      %v2514 = vrsqrt.pop %v2482
      %v2515 = vrsqrt.pop %v2483
      %v2516 = vrsqrt.pop %v2484
      %v2517 = vrsqrt.pop %v2485
      %v2518 = vrsqrt.pop %v2486
      %v2519 = vrsqrt.pop %v2487
      %v2520 = vrsqrt.pop %v2488
      %v2521 = vrsqrt.pop %v2489
      %v2522 = vrsqrt.pop %v2490
      %v2523 = vrsqrt.pop %v2491
      %v2524 = vrsqrt.pop %v2492
      %v2525 = vrsqrt.pop %v2493
      %v2526 = vrsqrt.pop %v2494
      %v2527 = vrsqrt.pop %v2495
      %v2528 = vrsqrt.pop %v2496
      %v2529 = vrsqrt.pop %v2497
      %v2530 = vrsqrt.pop %v2498
      %v2531 = vrsqrt.pop %v2499
      %v2532 = vrsqrt.pop %v2500
      %v2533 = vrsqrt.pop %v2501
      %v2534 = vrsqrt.pop %v2502
      %v2535 = vrsqrt.pop %v2503
      %v2536 = vrsqrt.pop %v2504
      %v2537 = vrsqrt.pop %v2505
      %v2538 = vrsqrt.pop %v2506
      %v2539 = vrsqrt.pop %v2507
      %v2540 = vrsqrt.pop %v2508
      %v2541 = vmul.f32 %v2285, %v2509
      %v2542 = vmul.f32 %v2286, %v2510
      %v2543 = vmul.f32 %v2287, %v2511
      %v2544 = vmul.f32 %v2288, %v2512
      %v2545 = vmul.f32 %v2289, %v2513
      %v2546 = vmul.f32 %v2290, %v2514
      %v2547 = vmul.f32 %v2291, %v2515
      %v2548 = vmul.f32 %v2292, %v2516
      %v2549 = vmul.f32 %v2293, %v2517
      %v2550 = vmul.f32 %v2294, %v2518
      %v2551 = vmul.f32 %v2295, %v2519
      %v2552 = vmul.f32 %v2296, %v2520
      %v2553 = vmul.f32 %v2297, %v2521
      %v2554 = vmul.f32 %v2298, %v2522
      %v2555 = vmul.f32 %v2299, %v2523
      %v2556 = vmul.f32 %v2300, %v2524
      %v2557 = vmul.f32 %v2301, %v2525
      %v2558 = vmul.f32 %v2302, %v2526
      %v2559 = vmul.f32 %v2303, %v2527
      %v2560 = vmul.f32 %v2304, %v2528
      %v2561 = vmul.f32 %v2305, %v2529
      %v2562 = vmul.f32 %v2306, %v2530
      %v2563 = vmul.f32 %v2307, %v2531
      %v2564 = vmul.f32 %v2308, %v2532
      %v2565 = vmul.f32 %v2309, %v2533
      %v2566 = vmul.f32 %v2310, %v2534
      %v2567 = vmul.f32 %v2311, %v2535
      %v2568 = vmul.f32 %v2312, %v2536
      %v2569 = vmul.f32 %v2313, %v2537
      %v2570 = vmul.f32 %v2314, %v2538
      %v2571 = vmul.f32 %v2315, %v2539
      %v2572 = vmul.f32 %v2316, %v2540
      %v2574 = vlaneseq
      %v2575 = vshrl.u32 %v2574, 7
      %v2576 = vsub.s32 0, %v2575
      %v2577 = vrot.slane %v2154, %v2576
      %v2579 = vmul.f32 %v2541, %v2577
      %v2580 = vmul.f32 %v2542, %v2577
      %v2581 = vmul.f32 %v2543, %v2577
      %v2582 = vmul.f32 %v2544, %v2577
      %v2583 = vmul.f32 %v2545, %v2577
      %v2584 = vmul.f32 %v2546, %v2577
      %v2585 = vmul.f32 %v2547, %v2577
      %v2586 = vmul.f32 %v2548, %v2577
      %v2587 = vmul.f32 %v2549, %v2577
      %v2588 = vmul.f32 %v2550, %v2577
      %v2589 = vmul.f32 %v2551, %v2577
      %v2590 = vmul.f32 %v2552, %v2577
      %v2591 = vmul.f32 %v2553, %v2577
      %v2592 = vmul.f32 %v2554, %v2577
      %v2593 = vmul.f32 %v2555, %v2577
      %v2594 = vmul.f32 %v2556, %v2577
      %v2595 = vmul.f32 %v2557, %v2577
      %v2596 = vmul.f32 %v2558, %v2577
      %v2597 = vmul.f32 %v2559, %v2577
      %v2598 = vmul.f32 %v2560, %v2577
      %v2599 = vmul.f32 %v2561, %v2577
      %v2600 = vmul.f32 %v2562, %v2577
      %v2601 = vmul.f32 %v2563, %v2577
      %v2602 = vmul.f32 %v2564, %v2577
      %v2603 = vmul.f32 %v2565, %v2577
      %v2604 = vmul.f32 %v2566, %v2577
      %v2605 = vmul.f32 %v2567, %v2577
      %v2606 = vmul.f32 %v2568, %v2577
      %v2607 = vmul.f32 %v2569, %v2577
      %v2608 = vmul.f32 %v2570, %v2577
      %v2609 = vmul.f32 %v2571, %v2577
      %v2610 = vmul.f32 %v2572, %v2577
      %v2612 = vlaneseq
      %v2613 = vshrl.u32 %v2612, 7
      %v2614 = vsub.s32 0, %v2613
      %v2615 = vrot.slane %v2155, %v2614
      %v2617 = vadd.f32 %v2579, %v2615
      %v2618 = vadd.f32 %v2580, %v2615
      %v2619 = vadd.f32 %v2581, %v2615
      %v2620 = vadd.f32 %v2582, %v2615
      %v2621 = vadd.f32 %v2583, %v2615
      %v2622 = vadd.f32 %v2584, %v2615
      %v2623 = vadd.f32 %v2585, %v2615
      %v2624 = vadd.f32 %v2586, %v2615
      %v2625 = vadd.f32 %v2587, %v2615
      %v2626 = vadd.f32 %v2588, %v2615
      %v2627 = vadd.f32 %v2589, %v2615
      %v2628 = vadd.f32 %v2590, %v2615
      %v2629 = vadd.f32 %v2591, %v2615
      %v2630 = vadd.f32 %v2592, %v2615
      %v2631 = vadd.f32 %v2593, %v2615
      %v2632 = vadd.f32 %v2594, %v2615
      %v2633 = vadd.f32 %v2595, %v2615
      %v2634 = vadd.f32 %v2596, %v2615
      %v2635 = vadd.f32 %v2597, %v2615
      %v2636 = vadd.f32 %v2598, %v2615
      %v2637 = vadd.f32 %v2599, %v2615
      %v2638 = vadd.f32 %v2600, %v2615
      %v2639 = vadd.f32 %v2601, %v2615
      %v2640 = vadd.f32 %v2602, %v2615
      %v2641 = vadd.f32 %v2603, %v2615
      %v2642 = vadd.f32 %v2604, %v2615
      %v2643 = vadd.f32 %v2605, %v2615
      %v2644 = vadd.f32 %v2606, %v2615
      %v2645 = vadd.f32 %v2607, %v2615
      %v2646 = vadd.f32 %v2608, %v2615
      %v2647 = vadd.f32 %v2609, %v2615
      %v2648 = vadd.f32 %v2610, %v2615
      %v2649 = vpack.c.bf16 %v2618, %v2617
      %v2650 = vpack.c.bf16 %v2620, %v2619
      %v2651 = vpack.c.bf16 %v2622, %v2621
      %v2652 = vpack.c.bf16 %v2624, %v2623
      %v2653 = vpack.c.bf16 %v2626, %v2625
      %v2654 = vpack.c.bf16 %v2628, %v2627
      %v2655 = vpack.c.bf16 %v2630, %v2629
      %v2656 = vpack.c.bf16 %v2632, %v2631
      %v2657 = vpack.c.bf16 %v2634, %v2633
      %v2658 = vpack.c.bf16 %v2636, %v2635
      %v2659 = vpack.c.bf16 %v2638, %v2637
      %v2660 = vpack.c.bf16 %v2640, %v2639
      %v2661 = vpack.c.bf16 %v2642, %v2641
      %v2662 = vpack.c.bf16 %v2644, %v2643
      %v2663 = vpack.c.bf16 %v2646, %v2645
      %v2664 = vpack.c.bf16 %v2648, %v2647
      %v2665 = vld [vmem:[%s5] sm:$0xf]
      %v2666 = vld [vmem:[%s5 + $0x4] sm:$0xf]
      %v2667 = vld [vmem:[%s5 + $0x8] sm:$0xf]
      %v2668 = vld [vmem:[%s5 + $0xc] sm:$0xf]
      %v2669 = vld [vmem:[%s6] sm:$0x1]
      %v2671 = vlaneseq
      %v2672 = vshrl.u32 %v2671, 7
      %v2673 = vsub.s32 0, %v2672
      %v2674 = vrot.slane %v2669, %v2673
      %v2680 = vunpack.c.l.b16 %v2665
      %v2681 = vunpack.c.l.b16 %v2666
      %v2682 = vunpack.c.l.b16 %v2667
      %v2683 = vunpack.c.l.b16 %v2668
      %v2684 = vpack.c.b16 %v2681, %v2680
      %v2685 = vpack.c.b16 %v2683, %v2682
      %v2689 = vsel %vm609, %v2649, 0
      %v2692 = vsel %vm609, %v2650, 0
      %v2695 = vsel %vm609, %v2651, 0
      %v2698 = vsel %vm609, %v2652, 0
      %v2701 = vsel %vm609, %v2653, 0
      %v2704 = vsel %vm609, %v2654, 0
      %v2707 = vsel %vm609, %v2655, 0
      %v2710 = vsel %vm609, %v2656, 0
      %v2713 = vsel %vm609, %v2657, 0
      %v2716 = vsel %vm609, %v2658, 0
      %v2719 = vsel %vm609, %v2659, 0
      %v2722 = vsel %vm609, %v2660, 0
      %v2725 = vsel %vm609, %v2661, 0
      %v2728 = vsel %vm609, %v2662, 0
      %v2731 = vsel %vm609, %v2663, 0
      %v2734 = vsel %vm609, %v2664, 0
      %2736 = vmatprep.subr.bf16.mxu0 0
      %2737 = vmatpush1.bf16.msra.mxu0 0
      %2738 = vmatprep.subr.bf16.mxu0 0
      %2739 = vmatpush1.bf16.msra.mxu0 0
      %2740 = vmatprep.subr.bf16.mxu0 0
      %2741 = vmatpush1.bf16.msra.mxu0 0
      %2742 = vmatprep.subr.bf16.mxu0 0
      %2743 = vmatpush1.bf16.msra.mxu0 0
      %2744 = vmatprep.subr.bf16.mxu0 0
      %2745 = vmatpush1.bf16.msra.mxu0 0
      %2746 = vmatprep.subr.bf16.mxu0 0
      %2747 = vmatpush1.bf16.msra.mxu0 0
      %2748 = vmatprep.subr.bf16.mxu0 0
      %2749 = vmatpush1.bf16.msra.mxu0 %v2685
      %2750 = vmatprep.subr.bf16.mxu0 0
      %2751 = vmatpush1.bf16.msra.mxu0 %v2684
      %2752 = vmatprep.subr.bf16.mxu0 0
      %2753 = vmatpush2.bf16.msra.mxu0 0
      %2754 = vmatprep.subr.bf16.mxu0 0
      %2755 = vmatpush2.bf16.msra.mxu0 0
      %2756 = vmatprep.subr.bf16.mxu0 0
      %2757 = vmatpush2.bf16.msra.mxu0 0
      %2758 = vmatprep.subr.bf16.mxu0 0
      %2759 = vmatpush2.bf16.msra.mxu0 0
      %2760 = vmatprep.subr.bf16.mxu0 0
      %2761 = vmatpush2.bf16.msra.mxu0 0
      %2762 = vmatprep.subr.bf16.mxu0 0
      %2763 = vmatpush2.bf16.msra.mxu0 0
      %2764 = vmatprep.subr.bf16.mxu0 0
      %2765 = vmatpush2.bf16.msra.mxu0 0
      %2766 = vmatprep.subr.bf16.mxu0 0
      %2767 = vmatpush2.bf16.msra.mxu0 0
      %2768 = vmatprep.mubr.bf16.mxu0 0
      %2769 = vmatmul.mubr.bf16.gmra.mxu0 %v2689
      %v2770 = vpop.f32.mrf.mxu0
      %v2771 = vadd.f32 %v2674, %v2770
      %v2772 = vpop.f32.mrf.mxu0
      %v2773 = vpop.f32.mrf.mxu0
      %v2774 = vadd.f32 %v2674, %v2773
      %v2775 = vpop.f32.mrf.mxu0
      %2776 = vmatprep.mubr.bf16.mxu0 0
      %2777 = vmatmul.mubr.bf16.gmra.mxu0 %v2692
      %v2778 = vpop.f32.mrf.mxu0
      %v2779 = vadd.f32 %v2674, %v2778
      %v2780 = vpop.f32.mrf.mxu0
      %v2781 = vpop.f32.mrf.mxu0
      %v2782 = vadd.f32 %v2674, %v2781
      %v2783 = vpop.f32.mrf.mxu0
      %2784 = vmatprep.mubr.bf16.mxu0 0
      %2785 = vmatmul.mubr.bf16.gmra.mxu0 %v2695
      %v2786 = vpop.f32.mrf.mxu0
      %v2787 = vadd.f32 %v2674, %v2786
      %v2788 = vpop.f32.mrf.mxu0
      %v2789 = vpop.f32.mrf.mxu0
      %v2790 = vadd.f32 %v2674, %v2789
      %v2791 = vpop.f32.mrf.mxu0
      %2792 = vmatprep.mubr.bf16.mxu0 0
      %2793 = vmatmul.mubr.bf16.gmra.mxu0 %v2698
      %v2794 = vpop.f32.mrf.mxu0
      %v2795 = vadd.f32 %v2674, %v2794
      %v2796 = vpop.f32.mrf.mxu0
      %v2797 = vpop.f32.mrf.mxu0
      %v2798 = vadd.f32 %v2674, %v2797
      %v2799 = vpop.f32.mrf.mxu0
      %2800 = vmatprep.mubr.bf16.mxu0 0
      %2801 = vmatmul.mubr.bf16.gmra.mxu0 %v2701
      %v2802 = vpop.f32.mrf.mxu0
      %v2803 = vadd.f32 %v2674, %v2802
      %v2804 = vpop.f32.mrf.mxu0
      %v2805 = vpop.f32.mrf.mxu0
      %v2806 = vadd.f32 %v2674, %v2805
      %v2807 = vpop.f32.mrf.mxu0
      %2808 = vmatprep.mubr.bf16.mxu0 0
      %2809 = vmatmul.mubr.bf16.gmra.mxu0 %v2704
      %v2810 = vpop.f32.mrf.mxu0
      %v2811 = vadd.f32 %v2674, %v2810
      %v2812 = vpop.f32.mrf.mxu0
      %v2813 = vpop.f32.mrf.mxu0
      %v2814 = vadd.f32 %v2674, %v2813
      %v2815 = vpop.f32.mrf.mxu0
      %2816 = vmatprep.mubr.bf16.mxu0 0
      %2817 = vmatmul.mubr.bf16.gmra.mxu0 %v2707
      %v2818 = vpop.f32.mrf.mxu0
      %v2819 = vadd.f32 %v2674, %v2818
      %v2820 = vpop.f32.mrf.mxu0
      %v2821 = vpop.f32.mrf.mxu0
      %v2822 = vadd.f32 %v2674, %v2821
      %v2823 = vpop.f32.mrf.mxu0
      %2824 = vmatprep.mubr.bf16.mxu0 0
      %2825 = vmatmul.mubr.bf16.gmra.mxu0 %v2710
      %v2826 = vpop.f32.mrf.mxu0
      %v2827 = vadd.f32 %v2674, %v2826
      %v2828 = vpop.f32.mrf.mxu0
      %v2829 = vpop.f32.mrf.mxu0
      %v2830 = vadd.f32 %v2674, %v2829
      %v2831 = vpop.f32.mrf.mxu0
      %2832 = vmatprep.mubr.bf16.mxu0 0
      %2833 = vmatmul.mubr.bf16.gmra.mxu0 %v2713
      %v2834 = vpop.f32.mrf.mxu0
      %v2835 = vadd.f32 %v2674, %v2834
      %v2836 = vpop.f32.mrf.mxu0
      %v2837 = vpop.f32.mrf.mxu0
      %v2838 = vadd.f32 %v2674, %v2837
      %v2839 = vpop.f32.mrf.mxu0
      %2840 = vmatprep.mubr.bf16.mxu0 0
      %2841 = vmatmul.mubr.bf16.gmra.mxu0 %v2716
      %v2842 = vpop.f32.mrf.mxu0
      %v2843 = vadd.f32 %v2674, %v2842
      %v2844 = vpop.f32.mrf.mxu0
      %v2845 = vpop.f32.mrf.mxu0
      %v2846 = vadd.f32 %v2674, %v2845
      %v2847 = vpop.f32.mrf.mxu0
      %2848 = vmatprep.mubr.bf16.mxu0 0
      %2849 = vmatmul.mubr.bf16.gmra.mxu0 %v2719
      %v2850 = vpop.f32.mrf.mxu0
      %v2851 = vadd.f32 %v2674, %v2850
      %v2852 = vpop.f32.mrf.mxu0
      %v2853 = vpop.f32.mrf.mxu0
      %v2854 = vadd.f32 %v2674, %v2853
      %v2855 = vpop.f32.mrf.mxu0
      %2856 = vmatprep.mubr.bf16.mxu0 0
      %2857 = vmatmul.mubr.bf16.gmra.mxu0 %v2722
      %v2858 = vpop.f32.mrf.mxu0
      %v2859 = vadd.f32 %v2674, %v2858
      %v2860 = vpop.f32.mrf.mxu0
      %v2861 = vpop.f32.mrf.mxu0
      %v2862 = vadd.f32 %v2674, %v2861
      %v2863 = vpop.f32.mrf.mxu0
      %2864 = vmatprep.mubr.bf16.mxu0 0
      %2865 = vmatmul.mubr.bf16.gmra.mxu0 %v2725
      %v2866 = vpop.f32.mrf.mxu0
      %v2867 = vadd.f32 %v2674, %v2866
      %v2868 = vpop.f32.mrf.mxu0
      %v2869 = vpop.f32.mrf.mxu0
      %v2870 = vadd.f32 %v2674, %v2869
      %v2871 = vpop.f32.mrf.mxu0
      %2872 = vmatprep.mubr.bf16.mxu0 0
      %2873 = vmatmul.mubr.bf16.gmra.mxu0 %v2728
      %v2874 = vpop.f32.mrf.mxu0
      %v2875 = vadd.f32 %v2674, %v2874
      %v2876 = vpop.f32.mrf.mxu0
      %v2877 = vpop.f32.mrf.mxu0
      %v2878 = vadd.f32 %v2674, %v2877
      %v2879 = vpop.f32.mrf.mxu0
      %2880 = vmatprep.mubr.bf16.mxu0 0
      %2881 = vmatmul.mubr.bf16.gmra.mxu0 %v2731
      %v2882 = vpop.f32.mrf.mxu0
      %v2883 = vadd.f32 %v2674, %v2882
      %v2884 = vpop.f32.mrf.mxu0
      %v2885 = vpop.f32.mrf.mxu0
      %v2886 = vadd.f32 %v2674, %v2885
      %v2887 = vpop.f32.mrf.mxu0
      %2888 = vmatprep.mubr.bf16.mxu0 0
      %2889 = vmatmul.mubr.bf16.gmra.mxu0 %v2734
      %v2890 = vpop.f32.mrf.mxu0
      %v2891 = vadd.f32 %v2674, %v2890
      %v2892 = vpop.f32.mrf.mxu0
      %v2893 = vpop.f32.mrf.mxu0
      %v2894 = vadd.f32 %v2674, %v2893
      %v2895 = vpop.f32.mrf.mxu0
      %2896 = vdwg.mxu0
      %v2897 = vpack.c.bf16 %v2774, %v2771
      %v2898 = vpack.c.bf16 %v2782, %v2779
      %v2899 = vpack.c.bf16 %v2790, %v2787
      %v2900 = vpack.c.bf16 %v2798, %v2795
      %v2901 = vpack.c.bf16 %v2806, %v2803
      %v2902 = vpack.c.bf16 %v2814, %v2811
      %v2903 = vpack.c.bf16 %v2822, %v2819
      %v2904 = vpack.c.bf16 %v2830, %v2827
      %v2905 = vpack.c.bf16 %v2838, %v2835
      %v2906 = vpack.c.bf16 %v2846, %v2843
      %v2907 = vpack.c.bf16 %v2854, %v2851
      %v2908 = vpack.c.bf16 %v2862, %v2859
      %v2909 = vpack.c.bf16 %v2870, %v2867
      %v2910 = vpack.c.bf16 %v2878, %v2875
      %v2911 = vpack.c.bf16 %v2886, %v2883
      %v2912 = vpack.c.bf16 %v2894, %v2891
      %2913 = vxpose.xlu0.c.b16.start [1/8] %v2897, 128
      %2914 = vxpose.xlu0.c.b16.cont [2/8] %v2898, 128
      %2915 = vxpose.xlu0.c.b16.cont [3/8] %v2899, 128
      %2916 = vxpose.xlu0.c.b16.cont [4/8] %v2900, 128
      %2917 = vxpose.xlu0.c.b16.cont [5/8] %v2901, 128
      %2918 = vxpose.xlu0.c.b16.cont [6/8] %v2902, 128
      %2919 = vxpose.xlu0.c.b16.cont [7/8] %v2903, 128
      %2920 = vxpose.xlu0.c.b16.end [8/8] %v2904, 128
      %v2921 = vpop.trf.xlu0
      %v2922 = vpop.trf.xlu0
      %v2923 = vpop.trf.xlu0
      %v2924 = vpop.trf.xlu0
      %v2925 = vpop.trf.xlu0
      %v2926 = vpop.trf.xlu0
      %v2927 = vpop.trf.xlu0
      %v2928 = vpop.trf.xlu0
      %2929 = vxpose.xlu0.c.b16.start [1/8] %v2905, 128
      %2930 = vxpose.xlu0.c.b16.cont [2/8] %v2906, 128
      %2931 = vxpose.xlu0.c.b16.cont [3/8] %v2907, 128
      %2932 = vxpose.xlu0.c.b16.cont [4/8] %v2908, 128
      %2933 = vxpose.xlu0.c.b16.cont [5/8] %v2909, 128
      %2934 = vxpose.xlu0.c.b16.cont [6/8] %v2910, 128
      %2935 = vxpose.xlu0.c.b16.cont [7/8] %v2911, 128
      %2936 = vxpose.xlu0.c.b16.end [8/8] %v2912, 128
      %v2937 = vpop.trf.xlu0
      %v2938 = vpop.trf.xlu0
      %v2939 = vpop.trf.xlu0
      %v2940 = vpop.trf.xlu0
      %v2941 = vpop.trf.xlu0
      %v2942 = vpop.trf.xlu0
      %v2943 = vpop.trf.xlu0
      %v2944 = vpop.trf.xlu0
      %2961 = vrot.lane.b32.xlu0 %v2897, 96
      %v2962 = vpop.permute.xlu0 %2961
      %2963 = vrot.lane.b32.xlu0 %v2898, 96
      %v2964 = vpop.permute.xlu0 %2963
      %2965 = vrot.lane.b32.xlu0 %v2899, 96
      %v2966 = vpop.permute.xlu0 %2965
      %2967 = vrot.lane.b32.xlu0 %v2900, 96
      %v2968 = vpop.permute.xlu0 %2967
      %2969 = vrot.lane.b32.xlu0 %v2901, 96
      %v2970 = vpop.permute.xlu0 %2969
      %2971 = vrot.lane.b32.xlu0 %v2902, 96
      %v2972 = vpop.permute.xlu0 %2971
      %2973 = vrot.lane.b32.xlu0 %v2903, 96
      %v2974 = vpop.permute.xlu0 %2973
      %2975 = vrot.lane.b32.xlu0 %v2904, 96
      %v2976 = vpop.permute.xlu0 %2975
      %2977 = vrot.lane.b32.xlu0 %v2905, 96
      %v2978 = vpop.permute.xlu0 %2977
      %2979 = vrot.lane.b32.xlu0 %v2906, 96
      %v2980 = vpop.permute.xlu0 %2979
      %2981 = vrot.lane.b32.xlu0 %v2907, 96
      %v2982 = vpop.permute.xlu0 %2981
      %2983 = vrot.lane.b32.xlu0 %v2908, 96
      %v2984 = vpop.permute.xlu0 %2983
      %2985 = vrot.lane.b32.xlu0 %v2909, 96
      %v2986 = vpop.permute.xlu0 %2985
      %2987 = vrot.lane.b32.xlu0 %v2910, 96
      %v2988 = vpop.permute.xlu0 %2987
      %2989 = vrot.lane.b32.xlu0 %v2911, 96
      %v2990 = vpop.permute.xlu0 %2989
      %2991 = vrot.lane.b32.xlu0 %v2912, 96
      %v2992 = vpop.permute.xlu0 %2991
      %3009 = vmatprep.subr.bf16.mxu0 0
      %3010 = vmatpush1.bf16.msra.mxu0 %v2976
      %3011 = vmatprep.subr.bf16.mxu0 0
      %3012 = vmatpush1.bf16.msra.mxu0 %v2974
      %3013 = vmatprep.subr.bf16.mxu0 0
      %3014 = vmatpush1.bf16.msra.mxu0 %v2972
      %3015 = vmatprep.subr.bf16.mxu0 0
      %3016 = vmatpush1.bf16.msra.mxu0 %v2970
      %3017 = vmatprep.subr.bf16.mxu0 0
      %3018 = vmatpush1.bf16.msra.mxu0 %v2968
      %3019 = vmatprep.subr.bf16.mxu0 0
      %3020 = vmatpush1.bf16.msra.mxu0 %v2966
      %3021 = vmatprep.subr.bf16.mxu0 0
      %3022 = vmatpush1.bf16.msra.mxu0 %v2964
      %3023 = vmatprep.subr.bf16.mxu0 0
      %3024 = vmatpush1.bf16.msra.mxu0 %v2962
      %3025 = vmatprep.subr.bf16.mxu0 0
      %3026 = vmatpush2.bf16.msra.mxu0 %v2992
      %3027 = vmatprep.subr.bf16.mxu0 0
      %3028 = vmatpush2.bf16.msra.mxu0 %v2990
      %3029 = vmatprep.subr.bf16.mxu0 0
      %3030 = vmatpush2.bf16.msra.mxu0 %v2988
      %3031 = vmatprep.subr.bf16.mxu0 0
      %3032 = vmatpush2.bf16.msra.mxu0 %v2986
      %3033 = vmatprep.subr.bf16.mxu0 0
      %3034 = vmatpush2.bf16.msra.mxu0 %v2984
      %3035 = vmatprep.subr.bf16.mxu0 0
      %3036 = vmatpush2.bf16.msra.mxu0 %v2982
      %3037 = vmatprep.subr.bf16.mxu0 0
      %3038 = vmatpush2.bf16.msra.mxu0 %v2980
      %3039 = vmatprep.subr.bf16.mxu0 0
      %3040 = vmatpush2.bf16.msra.mxu0 %v2978
      %3041 = vmatprep.mubr.bf16.mxu0 %v2937
      %3042 = vmatmul.mubr.bf16.gmra.mxu0 %v2921
      %v3043 = vpop.f32.mrf.mxu0
      %v3044 = vadd.f32 0.0, %v3043
      %v3045 = vpop.f32.mrf.mxu0
      %v3046 = vpop.f32.mrf.mxu0
      %v3047 = vadd.f32 0.0, %v3046
      %v3048 = vpop.f32.mrf.mxu0
      %3049 = vmatprep.mubr.bf16.mxu0 %v2938
      %3050 = vmatmul.mubr.bf16.gmra.mxu0 %v2922
      %v3051 = vpop.f32.mrf.mxu0
      %v3052 = vadd.f32 0.0, %v3051
      %v3053 = vpop.f32.mrf.mxu0
      %v3054 = vpop.f32.mrf.mxu0
      %v3055 = vadd.f32 0.0, %v3054
      %v3056 = vpop.f32.mrf.mxu0
      %3057 = vdwg.mxu0
      %v3058 = vmul.f32 %v3044, 0.0625
      %v3059 = vmul.f32 %v3047, 0.0625
      %v3060 = vmul.f32 %v3052, 0.0625
      %v3061 = vmul.f32 %v3055, 0.0625
      %v3062 = vld [vmem:[%s9] sm:$0xff]
      %v3063 = vld [vmem:[%s9 + $0x8] sm:$0xff]
      %v3064 = vld [vmem:[%s9 + $0x10] sm:$0xff]
      %v3065 = vld [vmem:[%s9 + $0x18] sm:$0xff]
      %v3066 = vadd.f32 %v3058, %v3062
      %v3067 = vadd.f32 %v3059, %v3063
      %v3068 = vadd.f32 %v3060, %v3064
      %v3069 = vadd.f32 %v3061, %v3065
      %v3070 = vsel %vm609, %v3066, -inf
      %3071 = vmax.xlane.f32.xlu0 %v3070
      %v3072 = vpop.xlane.xlu0 %3071
      %v3073 = vsel %vm609, %v3067, -inf
      %3074 = vmax.xlane.f32.xlu0 %v3073
      %v3075 = vpop.xlane.xlu0 %3074
      %v3076 = vsel %vm609, %v3068, -inf
      %3077 = vmax.xlane.f32.xlu0 %v3076
      %v3078 = vpop.xlane.xlu0 %3077
      %v3079 = vsel %vm609, %v3069, -inf
      %3080 = vmax.xlane.f32.xlu0 %v3079
      %v3081 = vpop.xlane.xlu0 %3080
      %v3082 = vsub.f32 %v3066, %v3072
      %v3083 = vsub.f32 %v3067, %v3075
      %v3084 = vsub.f32 %v3068, %v3078
      %v3085 = vsub.f32 %v3069, %v3081
      %v3086 = vmul.f32 %v3082, 1.442695
      %v3087 = vpow.pop %v3086
      %v3088 = vmul.f32 %v3083, 1.442695
      %v3089 = vpow.pop %v3088
      %v3090 = vmul.f32 %v3084, 1.442695
      %v3091 = vpow.pop %v3090
      %v3092 = vmul.f32 %v3085, 1.442695
      %v3093 = vpow.pop %v3092
      %v3094 = vsel %vm609, %v3087, 0.0
      %3095 = vadd.xlane.f32.xlu0 %v3094
      %v3096 = vpop.xlane.xlu0 %3095
      %v3097 = vsel %vm609, %v3089, 0.0
      %3098 = vadd.xlane.f32.xlu0 %v3097
      %v3099 = vpop.xlane.xlu0 %3098
      %v3100 = vsel %vm609, %v3091, 0.0
      %3101 = vadd.xlane.f32.xlu0 %v3100
      %v3102 = vpop.xlane.xlu0 %3101
      %v3103 = vsel %vm609, %v3093, 0.0
      %3104 = vadd.xlane.f32.xlu0 %v3103
      %v3105 = vpop.xlane.xlu0 %3104
      %v3106 = vrcp.pop %v3096
      %v3107 = vmul.f32 %v3087, %v3106
      %v3108 = vrcp.pop %v3099
      %v3109 = vmul.f32 %v3089, %v3108
      %v3110 = vrcp.pop %v3102
      %v3111 = vmul.f32 %v3091, %v3110
      %v3112 = vrcp.pop %v3105
      %v3113 = vmul.f32 %v3093, %v3112
      %v3114 = vpack.c.bf16 %v3109, %v3107
      %v3115 = vpack.c.bf16 %v3113, %v3111
      %3116 = vrot.lane.b32.xlu0 %v2897, 64
      %v3117 = vpop.permute.xlu0 %3116
      %3118 = vrot.lane.b32.xlu0 %v2898, 64
      %v3119 = vpop.permute.xlu0 %3118
      %3120 = vrot.lane.b32.xlu0 %v2899, 64
      %v3121 = vpop.permute.xlu0 %3120
      %3122 = vrot.lane.b32.xlu0 %v2900, 64
      %v3123 = vpop.permute.xlu0 %3122
      %3124 = vrot.lane.b32.xlu0 %v2901, 64
      %v3125 = vpop.permute.xlu0 %3124
      %3126 = vrot.lane.b32.xlu0 %v2902, 64
      %v3127 = vpop.permute.xlu0 %3126
      %3128 = vrot.lane.b32.xlu0 %v2903, 64
      %v3129 = vpop.permute.xlu0 %3128
      %3130 = vrot.lane.b32.xlu0 %v2904, 64
      %v3131 = vpop.permute.xlu0 %3130
      %3132 = vrot.lane.b32.xlu0 %v2905, 64
      %v3133 = vpop.permute.xlu0 %3132
      %3134 = vrot.lane.b32.xlu0 %v2906, 64
      %v3135 = vpop.permute.xlu0 %3134
      %3136 = vrot.lane.b32.xlu0 %v2907, 64
      %v3137 = vpop.permute.xlu0 %3136
      %3138 = vrot.lane.b32.xlu0 %v2908, 64
      %v3139 = vpop.permute.xlu0 %3138
      %3140 = vrot.lane.b32.xlu0 %v2909, 64
      %v3141 = vpop.permute.xlu0 %3140
      %3142 = vrot.lane.b32.xlu0 %v2910, 64
      %v3143 = vpop.permute.xlu0 %3142
      %3144 = vrot.lane.b32.xlu0 %v2911, 64
      %v3145 = vpop.permute.xlu0 %3144
      %3146 = vrot.lane.b32.xlu0 %v2912, 64
      %v3147 = vpop.permute.xlu0 %3146
      %v3149 = vsel %vm609, %v3117, 0
      %v3152 = vsel %vm609, %v3119, 0
      %v3155 = vsel %vm609, %v3121, 0
      %v3158 = vsel %vm609, %v3123, 0
      %v3161 = vsel %vm609, %v3125, 0
      %v3164 = vsel %vm609, %v3127, 0
      %v3167 = vsel %vm609, %v3129, 0
      %v3170 = vsel %vm609, %v3131, 0
      %v3173 = vsel %vm609, %v3133, 0
      %v3176 = vsel %vm609, %v3135, 0
      %v3179 = vsel %vm609, %v3137, 0
      %v3182 = vsel %vm609, %v3139, 0
      %v3185 = vsel %vm609, %v3141, 0
      %v3188 = vsel %vm609, %v3143, 0
      %v3191 = vsel %vm609, %v3145, 0
      %v3194 = vsel %vm609, %v3147, 0
      %v3197 = vsel %vm609, %v3114, 0
      %v3200 = vsel %vm609, %v3115, 0
      %3202 = vmatprep.subr.bf16.mxu0 0
      %3203 = vmatpush1.bf16.xpose.msra.mxu0 0
      %3204 = vmatprep.subr.bf16.mxu0 0
      %3205 = vmatpush1.bf16.xpose.msra.mxu0 0
      %3206 = vmatprep.subr.bf16.mxu0 0
      %3207 = vmatpush1.bf16.xpose.msra.mxu0 0
      %3208 = vmatprep.subr.bf16.mxu0 0
      %3209 = vmatpush1.bf16.xpose.msra.mxu0 0
      %3210 = vmatprep.subr.bf16.mxu0 0
      %3211 = vmatpush1.bf16.xpose.msra.mxu0 0
      %3212 = vmatprep.subr.bf16.mxu0 0
      %3213 = vmatpush1.bf16.xpose.msra.mxu0 0
      %3214 = vmatprep.subr.bf16.mxu0 0
      %3215 = vmatpush1.bf16.xpose.msra.mxu0 %v3200
      %3216 = vmatprep.subr.bf16.mxu0 0
      %3217 = vmatpush1.bf16.xpose.msra.mxu0 %v3197
      %3218 = vmatprep.subr.bf16.mxu0 0
      %3219 = vmatpush2.bf16.xpose.msra.mxu0 0
      %3220 = vmatprep.subr.bf16.mxu0 0
      %3221 = vmatpush2.bf16.xpose.msra.mxu0 0
      %3222 = vmatprep.subr.bf16.mxu0 0
      %3223 = vmatpush2.bf16.xpose.msra.mxu0 0
      %3224 = vmatprep.subr.bf16.mxu0 0
      %3225 = vmatpush2.bf16.xpose.msra.mxu0 0
      %3226 = vmatprep.subr.bf16.mxu0 0
      %3227 = vmatpush2.bf16.xpose.msra.mxu0 0
      %3228 = vmatprep.subr.bf16.mxu0 0
      %3229 = vmatpush2.bf16.xpose.msra.mxu0 0
      %3230 = vmatprep.subr.bf16.mxu0 0
      %3231 = vmatpush2.bf16.xpose.msra.mxu0 0
      %3232 = vmatprep.subr.bf16.mxu0 0
      %3233 = vmatpush2.bf16.xpose.msra.mxu0 0
      %3234 = vmatprep.mubr.bf16.mxu0 0
      %3235 = vmatmul.mubr.bf16.gmra.mxu0 %v3149
      %v3236 = vpop.f32.mrf.mxu0
      %v3237 = vadd.f32 0.0, %v3236
      %v3238 = vpop.f32.mrf.mxu0
      %v3239 = vpop.f32.mrf.mxu0
      %v3240 = vadd.f32 0.0, %v3239
      %v3241 = vpop.f32.mrf.mxu0
      %3242 = vmatprep.mubr.bf16.mxu0 0
      %3243 = vmatmul.mubr.bf16.gmra.mxu0 %v3152
      %v3244 = vpop.f32.mrf.mxu0
      %v3245 = vadd.f32 0.0, %v3244
      %v3246 = vpop.f32.mrf.mxu0
      %v3247 = vpop.f32.mrf.mxu0
      %v3248 = vadd.f32 0.0, %v3247
      %v3249 = vpop.f32.mrf.mxu0
      %3250 = vmatprep.mubr.bf16.mxu0 0
      %3251 = vmatmul.mubr.bf16.gmra.mxu0 %v3155
      %v3252 = vpop.f32.mrf.mxu0
      %v3253 = vadd.f32 0.0, %v3252
      %v3254 = vpop.f32.mrf.mxu0
      %v3255 = vpop.f32.mrf.mxu0
      %v3256 = vadd.f32 0.0, %v3255
      %v3257 = vpop.f32.mrf.mxu0
      %3258 = vmatprep.mubr.bf16.mxu0 0
      %3259 = vmatmul.mubr.bf16.gmra.mxu0 %v3158
      %v3260 = vpop.f32.mrf.mxu0
      %v3261 = vadd.f32 0.0, %v3260
      %v3262 = vpop.f32.mrf.mxu0
      %v3263 = vpop.f32.mrf.mxu0
      %v3264 = vadd.f32 0.0, %v3263
      %v3265 = vpop.f32.mrf.mxu0
      %3266 = vmatprep.mubr.bf16.mxu0 0
      %3267 = vmatmul.mubr.bf16.gmra.mxu0 %v3161
      %v3268 = vpop.f32.mrf.mxu0
      %v3269 = vadd.f32 0.0, %v3268
      %v3270 = vpop.f32.mrf.mxu0
      %v3271 = vpop.f32.mrf.mxu0
      %v3272 = vadd.f32 0.0, %v3271
      %v3273 = vpop.f32.mrf.mxu0
      %3274 = vmatprep.mubr.bf16.mxu0 0
      %3275 = vmatmul.mubr.bf16.gmra.mxu0 %v3164
      %v3276 = vpop.f32.mrf.mxu0
      %v3277 = vadd.f32 0.0, %v3276
      %v3278 = vpop.f32.mrf.mxu0
      %v3279 = vpop.f32.mrf.mxu0
      %v3280 = vadd.f32 0.0, %v3279
      %v3281 = vpop.f32.mrf.mxu0
      %3282 = vmatprep.mubr.bf16.mxu0 0
      %3283 = vmatmul.mubr.bf16.gmra.mxu0 %v3167
      %v3284 = vpop.f32.mrf.mxu0
      %v3285 = vadd.f32 0.0, %v3284
      %v3286 = vpop.f32.mrf.mxu0
      %v3287 = vpop.f32.mrf.mxu0
      %v3288 = vadd.f32 0.0, %v3287
      %v3289 = vpop.f32.mrf.mxu0
      %3290 = vmatprep.mubr.bf16.mxu0 0
      %3291 = vmatmul.mubr.bf16.gmra.mxu0 %v3170
      %v3292 = vpop.f32.mrf.mxu0
      %v3293 = vadd.f32 0.0, %v3292
      %v3294 = vpop.f32.mrf.mxu0
      %v3295 = vpop.f32.mrf.mxu0
      %v3296 = vadd.f32 0.0, %v3295
      %v3297 = vpop.f32.mrf.mxu0
      %3298 = vmatprep.mubr.bf16.mxu0 0
      %3299 = vmatmul.mubr.bf16.gmra.mxu0 %v3173
      %v3300 = vpop.f32.mrf.mxu0
      %v3301 = vadd.f32 0.0, %v3300
      %v3302 = vpop.f32.mrf.mxu0
      %v3303 = vpop.f32.mrf.mxu0
      %v3304 = vadd.f32 0.0, %v3303
      %v3305 = vpop.f32.mrf.mxu0
      %3306 = vmatprep.mubr.bf16.mxu0 0
      %3307 = vmatmul.mubr.bf16.gmra.mxu0 %v3176
      %v3308 = vpop.f32.mrf.mxu0
      %v3309 = vadd.f32 0.0, %v3308
      %v3310 = vpop.f32.mrf.mxu0
      %v3311 = vpop.f32.mrf.mxu0
      %v3312 = vadd.f32 0.0, %v3311
      %v3313 = vpop.f32.mrf.mxu0
      %3314 = vmatprep.mubr.bf16.mxu0 0
      %3315 = vmatmul.mubr.bf16.gmra.mxu0 %v3179
      %v3316 = vpop.f32.mrf.mxu0
      %v3317 = vadd.f32 0.0, %v3316
      %v3318 = vpop.f32.mrf.mxu0
      %v3319 = vpop.f32.mrf.mxu0
      %v3320 = vadd.f32 0.0, %v3319
      %v3321 = vpop.f32.mrf.mxu0
      %3322 = vmatprep.mubr.bf16.mxu0 0
      %3323 = vmatmul.mubr.bf16.gmra.mxu0 %v3182
      %v3324 = vpop.f32.mrf.mxu0
      %v3325 = vadd.f32 0.0, %v3324
      %v3326 = vpop.f32.mrf.mxu0
      %v3327 = vpop.f32.mrf.mxu0
      %v3328 = vadd.f32 0.0, %v3327
      %v3329 = vpop.f32.mrf.mxu0
      %3330 = vmatprep.mubr.bf16.mxu0 0
      %3331 = vmatmul.mubr.bf16.gmra.mxu0 %v3185
      %v3332 = vpop.f32.mrf.mxu0
      %v3333 = vadd.f32 0.0, %v3332
      %v3334 = vpop.f32.mrf.mxu0
      %v3335 = vpop.f32.mrf.mxu0
      %v3336 = vadd.f32 0.0, %v3335
      %v3337 = vpop.f32.mrf.mxu0
      %3338 = vmatprep.mubr.bf16.mxu0 0
      %3339 = vmatmul.mubr.bf16.gmra.mxu0 %v3188
      %v3340 = vpop.f32.mrf.mxu0
      %v3341 = vadd.f32 0.0, %v3340
      %v3342 = vpop.f32.mrf.mxu0
      %v3343 = vpop.f32.mrf.mxu0
      %v3344 = vadd.f32 0.0, %v3343
      %v3345 = vpop.f32.mrf.mxu0
      %3346 = vmatprep.mubr.bf16.mxu0 0
      %3347 = vmatmul.mubr.bf16.gmra.mxu0 %v3191
      %v3348 = vpop.f32.mrf.mxu0
      %v3349 = vadd.f32 0.0, %v3348
      %v3350 = vpop.f32.mrf.mxu0
      %v3351 = vpop.f32.mrf.mxu0
      %v3352 = vadd.f32 0.0, %v3351
      %v3353 = vpop.f32.mrf.mxu0
      %3354 = vmatprep.mubr.bf16.mxu0 0
      %3355 = vmatmul.mubr.bf16.gmra.mxu0 %v3194
      %v3356 = vpop.f32.mrf.mxu0
      %v3357 = vadd.f32 0.0, %v3356
      %v3358 = vpop.f32.mrf.mxu0
      %v3359 = vpop.f32.mrf.mxu0
      %v3360 = vadd.f32 0.0, %v3359
      %v3361 = vpop.f32.mrf.mxu0
      %3362 = vdwg.mxu0
      %v3363 = vpack.c.bf16 %v3240, %v3237
      %v3364 = vpack.c.bf16 %v3248, %v3245
      %v3365 = vpack.c.bf16 %v3256, %v3253
      %v3366 = vpack.c.bf16 %v3264, %v3261
      %v3367 = vpack.c.bf16 %v3272, %v3269
      %v3368 = vpack.c.bf16 %v3280, %v3277
      %v3369 = vpack.c.bf16 %v3288, %v3285
      %v3370 = vpack.c.bf16 %v3296, %v3293
      %v3371 = vpack.c.bf16 %v3304, %v3301
      %v3372 = vpack.c.bf16 %v3312, %v3309
      %v3373 = vpack.c.bf16 %v3320, %v3317
      %v3374 = vpack.c.bf16 %v3328, %v3325
      %v3375 = vpack.c.bf16 %v3336, %v3333
      %v3376 = vpack.c.bf16 %v3344, %v3341
      %v3377 = vpack.c.bf16 %v3352, %v3349
      %v3378 = vpack.c.bf16 %v3360, %v3357
      %v3379 = vld [vmem:[%s7] sm:$0xf]
      %v3380 = vld [vmem:[%s7 + $0x4] sm:$0xf]
      %v3381 = vld [vmem:[%s7 + $0x8] sm:$0xf]
      %v3382 = vld [vmem:[%s7 + $0xc] sm:$0xf]
      %v3383 = vld [vmem:[%s8] sm:$0x1]
      %v3385 = vlaneseq
      %v3386 = vshrl.u32 %v3385, 7
      %v3387 = vsub.s32 0, %v3386
      %v3388 = vrot.slane %v3383, %v3387
      %v3394 = vunpack.c.l.b16 %v3379
      %v3395 = vunpack.c.l.b16 %v3380
      %v3396 = vunpack.c.l.b16 %v3381
      %v3397 = vunpack.c.l.b16 %v3382
      %v3398 = vpack.c.b16 %v3395, %v3394
      %v3399 = vpack.c.b16 %v3397, %v3396
      %v3403 = vsel %vm609, %v3363, 0
      %v3406 = vsel %vm609, %v3364, 0
      %v3409 = vsel %vm609, %v3365, 0
      %v3412 = vsel %vm609, %v3366, 0
      %v3415 = vsel %vm609, %v3367, 0
      %v3418 = vsel %vm609, %v3368, 0
      %v3421 = vsel %vm609, %v3369, 0
      %v3424 = vsel %vm609, %v3370, 0
      %v3427 = vsel %vm609, %v3371, 0
      %v3430 = vsel %vm609, %v3372, 0
      %v3433 = vsel %vm609, %v3373, 0
      %v3436 = vsel %vm609, %v3374, 0
      %v3439 = vsel %vm609, %v3375, 0
      %v3442 = vsel %vm609, %v3376, 0
      %v3445 = vsel %vm609, %v3377, 0
      %v3448 = vsel %vm609, %v3378, 0
      %3450 = vmatprep.subr.bf16.mxu0 0
      %3451 = vmatpush1.bf16.msra.mxu0 0
      %3452 = vmatprep.subr.bf16.mxu0 0
      %3453 = vmatpush1.bf16.msra.mxu0 0
      %3454 = vmatprep.subr.bf16.mxu0 0
      %3455 = vmatpush1.bf16.msra.mxu0 0
      %3456 = vmatprep.subr.bf16.mxu0 0
      %3457 = vmatpush1.bf16.msra.mxu0 0
      %3458 = vmatprep.subr.bf16.mxu0 0
      %3459 = vmatpush1.bf16.msra.mxu0 0
      %3460 = vmatprep.subr.bf16.mxu0 0
      %3461 = vmatpush1.bf16.msra.mxu0 0
      %3462 = vmatprep.subr.bf16.mxu0 0
      %3463 = vmatpush1.bf16.msra.mxu0 %v3399
      %3464 = vmatprep.subr.bf16.mxu0 0
      %3465 = vmatpush1.bf16.msra.mxu0 %v3398
      %3466 = vmatprep.subr.bf16.mxu0 0
      %3467 = vmatpush2.bf16.msra.mxu0 0
      %3468 = vmatprep.subr.bf16.mxu0 0
      %3469 = vmatpush2.bf16.msra.mxu0 0
      %3470 = vmatprep.subr.bf16.mxu0 0
      %3471 = vmatpush2.bf16.msra.mxu0 0
      %3472 = vmatprep.subr.bf16.mxu0 0
      %3473 = vmatpush2.bf16.msra.mxu0 0
      %3474 = vmatprep.subr.bf16.mxu0 0
      %3475 = vmatpush2.bf16.msra.mxu0 0
      %3476 = vmatprep.subr.bf16.mxu0 0
      %3477 = vmatpush2.bf16.msra.mxu0 0
      %3478 = vmatprep.subr.bf16.mxu0 0
      %3479 = vmatpush2.bf16.msra.mxu0 0
      %3480 = vmatprep.subr.bf16.mxu0 0
      %3481 = vmatpush2.bf16.msra.mxu0 0
      %3482 = vmatprep.mubr.bf16.mxu0 0
      %3483 = vmatmul.mubr.bf16.gmra.mxu0 %v3403
      %v3484 = vpop.f32.mrf.mxu0
      %v3485 = vadd.f32 %v3388, %v3484
      %v3486 = vpop.f32.mrf.mxu0
      %v3487 = vpop.f32.mrf.mxu0
      %v3488 = vadd.f32 %v3388, %v3487
      %v3489 = vpop.f32.mrf.mxu0
      %3490 = vmatprep.mubr.bf16.mxu0 0
      %3491 = vmatmul.mubr.bf16.gmra.mxu0 %v3406
      %v3492 = vpop.f32.mrf.mxu0
      %v3493 = vadd.f32 %v3388, %v3492
      %v3494 = vpop.f32.mrf.mxu0
      %v3495 = vpop.f32.mrf.mxu0
      %v3496 = vadd.f32 %v3388, %v3495
      %v3497 = vpop.f32.mrf.mxu0
      %3498 = vmatprep.mubr.bf16.mxu0 0
      %3499 = vmatmul.mubr.bf16.gmra.mxu0 %v3409
      %v3500 = vpop.f32.mrf.mxu0
      %v3501 = vadd.f32 %v3388, %v3500
      %v3502 = vpop.f32.mrf.mxu0
      %v3503 = vpop.f32.mrf.mxu0
      %v3504 = vadd.f32 %v3388, %v3503
      %v3505 = vpop.f32.mrf.mxu0
      %3506 = vmatprep.mubr.bf16.mxu0 0
      %3507 = vmatmul.mubr.bf16.gmra.mxu0 %v3412
      %v3508 = vpop.f32.mrf.mxu0
      %v3509 = vadd.f32 %v3388, %v3508
      %v3510 = vpop.f32.mrf.mxu0
      %v3511 = vpop.f32.mrf.mxu0
      %v3512 = vadd.f32 %v3388, %v3511
      %v3513 = vpop.f32.mrf.mxu0
      %3514 = vmatprep.mubr.bf16.mxu0 0
      %3515 = vmatmul.mubr.bf16.gmra.mxu0 %v3415
      %v3516 = vpop.f32.mrf.mxu0
      %v3517 = vadd.f32 %v3388, %v3516
      %v3518 = vpop.f32.mrf.mxu0
      %v3519 = vpop.f32.mrf.mxu0
      %v3520 = vadd.f32 %v3388, %v3519
      %v3521 = vpop.f32.mrf.mxu0
      %3522 = vmatprep.mubr.bf16.mxu0 0
      %3523 = vmatmul.mubr.bf16.gmra.mxu0 %v3418
      %v3524 = vpop.f32.mrf.mxu0
      %v3525 = vadd.f32 %v3388, %v3524
      %v3526 = vpop.f32.mrf.mxu0
      %v3527 = vpop.f32.mrf.mxu0
      %v3528 = vadd.f32 %v3388, %v3527
      %v3529 = vpop.f32.mrf.mxu0
      %3530 = vmatprep.mubr.bf16.mxu0 0
      %3531 = vmatmul.mubr.bf16.gmra.mxu0 %v3421
      %v3532 = vpop.f32.mrf.mxu0
      %v3533 = vadd.f32 %v3388, %v3532
      %v3534 = vpop.f32.mrf.mxu0
      %v3535 = vpop.f32.mrf.mxu0
      %v3536 = vadd.f32 %v3388, %v3535
      %v3537 = vpop.f32.mrf.mxu0
      %3538 = vmatprep.mubr.bf16.mxu0 0
      %3539 = vmatmul.mubr.bf16.gmra.mxu0 %v3424
      %v3540 = vpop.f32.mrf.mxu0
      %v3541 = vadd.f32 %v3388, %v3540
      %v3542 = vpop.f32.mrf.mxu0
      %v3543 = vpop.f32.mrf.mxu0
      %v3544 = vadd.f32 %v3388, %v3543
      %v3545 = vpop.f32.mrf.mxu0
      %3546 = vmatprep.mubr.bf16.mxu0 0
      %3547 = vmatmul.mubr.bf16.gmra.mxu0 %v3427
      %v3548 = vpop.f32.mrf.mxu0
      %v3549 = vadd.f32 %v3388, %v3548
      %v3550 = vpop.f32.mrf.mxu0
      %v3551 = vpop.f32.mrf.mxu0
      %v3552 = vadd.f32 %v3388, %v3551
      %v3553 = vpop.f32.mrf.mxu0
      %3554 = vmatprep.mubr.bf16.mxu0 0
      %3555 = vmatmul.mubr.bf16.gmra.mxu0 %v3430
      %v3556 = vpop.f32.mrf.mxu0
      %v3557 = vadd.f32 %v3388, %v3556
      %v3558 = vpop.f32.mrf.mxu0
      %v3559 = vpop.f32.mrf.mxu0
      %v3560 = vadd.f32 %v3388, %v3559
      %v3561 = vpop.f32.mrf.mxu0
      %3562 = vmatprep.mubr.bf16.mxu0 0
      %3563 = vmatmul.mubr.bf16.gmra.mxu0 %v3433
      %v3564 = vpop.f32.mrf.mxu0
      %v3565 = vadd.f32 %v3388, %v3564
      %v3566 = vpop.f32.mrf.mxu0
      %v3567 = vpop.f32.mrf.mxu0
      %v3568 = vadd.f32 %v3388, %v3567
      %v3569 = vpop.f32.mrf.mxu0
      %3570 = vmatprep.mubr.bf16.mxu0 0
      %3571 = vmatmul.mubr.bf16.gmra.mxu0 %v3436
      %v3572 = vpop.f32.mrf.mxu0
      %v3573 = vadd.f32 %v3388, %v3572
      %v3574 = vpop.f32.mrf.mxu0
      %v3575 = vpop.f32.mrf.mxu0
      %v3576 = vadd.f32 %v3388, %v3575
      %v3577 = vpop.f32.mrf.mxu0
      %3578 = vmatprep.mubr.bf16.mxu0 0
      %3579 = vmatmul.mubr.bf16.gmra.mxu0 %v3439
      %v3580 = vpop.f32.mrf.mxu0
      %v3581 = vadd.f32 %v3388, %v3580
      %v3582 = vpop.f32.mrf.mxu0
      %v3583 = vpop.f32.mrf.mxu0
      %v3584 = vadd.f32 %v3388, %v3583
      %v3585 = vpop.f32.mrf.mxu0
      %3586 = vmatprep.mubr.bf16.mxu0 0
      %3587 = vmatmul.mubr.bf16.gmra.mxu0 %v3442
      %v3588 = vpop.f32.mrf.mxu0
      %v3589 = vadd.f32 %v3388, %v3588
      %v3590 = vpop.f32.mrf.mxu0
      %v3591 = vpop.f32.mrf.mxu0
      %v3592 = vadd.f32 %v3388, %v3591
      %v3593 = vpop.f32.mrf.mxu0
      %3594 = vmatprep.mubr.bf16.mxu0 0
      %3595 = vmatmul.mubr.bf16.gmra.mxu0 %v3445
      %v3596 = vpop.f32.mrf.mxu0
      %v3597 = vadd.f32 %v3388, %v3596
      %v3598 = vpop.f32.mrf.mxu0
      %v3599 = vpop.f32.mrf.mxu0
      %v3600 = vadd.f32 %v3388, %v3599
      %v3601 = vpop.f32.mrf.mxu0
      %3602 = vmatprep.mubr.bf16.mxu0 0
      %3603 = vmatmul.mubr.bf16.gmra.mxu0 %v3448
      %v3604 = vpop.f32.mrf.mxu0
      %v3605 = vadd.f32 %v3388, %v3604
      %v3606 = vpop.f32.mrf.mxu0
      %v3607 = vpop.f32.mrf.mxu0
      %v3608 = vadd.f32 %v3388, %v3607
      %v3609 = vpop.f32.mrf.mxu0
      %3610 = vdwg.mxu0
      %v3611 = vadd.f32 %v2122, %v3485
      %v3612 = vadd.f32 %v2123, %v3488
      %v3613 = vadd.f32 %v2124, %v3493
      %v3614 = vadd.f32 %v2125, %v3496
      %v3615 = vadd.f32 %v2126, %v3501
      %v3616 = vadd.f32 %v2127, %v3504
      %v3617 = vadd.f32 %v2128, %v3509
      %v3618 = vadd.f32 %v2129, %v3512
      %v3619 = vadd.f32 %v2130, %v3517
      %v3620 = vadd.f32 %v2131, %v3520
      %v3621 = vadd.f32 %v2132, %v3525
      %v3622 = vadd.f32 %v2133, %v3528
      %v3623 = vadd.f32 %v2134, %v3533
      %v3624 = vadd.f32 %v2135, %v3536
      %v3625 = vadd.f32 %v2136, %v3541
      %v3626 = vadd.f32 %v2137, %v3544
      %v3627 = vadd.f32 %v2138, %v3549
      %v3628 = vadd.f32 %v2139, %v3552
      %v3629 = vadd.f32 %v2140, %v3557
      %v3630 = vadd.f32 %v2141, %v3560
      %v3631 = vadd.f32 %v2142, %v3565
      %v3632 = vadd.f32 %v2143, %v3568
      %v3633 = vadd.f32 %v2144, %v3573
      %v3634 = vadd.f32 %v2145, %v3576
      %v3635 = vadd.f32 %v2146, %v3581
      %v3636 = vadd.f32 %v2147, %v3584
      %v3637 = vadd.f32 %v2148, %v3589
      %v3638 = vadd.f32 %v2149, %v3592
      %v3639 = vadd.f32 %v2150, %v3597
      %v3640 = vadd.f32 %v2151, %v3600
      %v3641 = vadd.f32 %v2152, %v3605
      %v3642 = vadd.f32 %v2153, %v3608
      %3643 = vst.msk [vmem:[#allocation2 + $0x18] sm:$0xff] %vm609, %v3611
      %3644 = vst.msk [vmem:[#allocation2 + $0x20] sm:$0xff] %vm609, %v3612
      %3645 = vst.msk [vmem:[#allocation2 + $0x28] sm:$0xff] %vm609, %v3613
      %3646 = vst.msk [vmem:[#allocation2 + $0x30] sm:$0xff] %vm609, %v3614
      %3647 = vst.msk [vmem:[#allocation2 + $0x38] sm:$0xff] %vm609, %v3615
      %3648 = vst.msk [vmem:[#allocation2 + $0x40] sm:$0xff] %vm609, %v3616
      %3649 = vst.msk [vmem:[#allocation2 + $0x48] sm:$0xff] %vm609, %v3617
      %3650 = vst.msk [vmem:[#allocation2 + $0x50] sm:$0xff] %vm609, %v3618
      %3651 = vst.msk [vmem:[#allocation2 + $0x58] sm:$0xff] %vm609, %v3619
      %3652 = vst.msk [vmem:[#allocation2 + $0x60] sm:$0xff] %vm609, %v3620
      %3653 = vst.msk [vmem:[#allocation2 + $0x68] sm:$0xff] %vm609, %v3621
      %3654 = vst.msk [vmem:[#allocation2 + $0x70] sm:$0xff] %vm609, %v3622
      %3655 = vst.msk [vmem:[#allocation2 + $0x78] sm:$0xff] %vm609, %v3623
      %3656 = vst.msk [vmem:[#allocation2 + $0x80] sm:$0xff] %vm609, %v3624
      %3657 = vst.msk [vmem:[#allocation2 + $0x88] sm:$0xff] %vm609, %v3625
      %3658 = vst.msk [vmem:[#allocation2 + $0x90] sm:$0xff] %vm609, %v3626
      %3659 = vst.msk [vmem:[#allocation2 + $0x98] sm:$0xff] %vm609, %v3627
      %3660 = vst.msk [vmem:[#allocation2 + $0xa0] sm:$0xff] %vm609, %v3628
      %3661 = vst.msk [vmem:[#allocation2 + $0xa8] sm:$0xff] %vm609, %v3629
      %3662 = vst.msk [vmem:[#allocation2 + $0xb0] sm:$0xff] %vm609, %v3630
      %3663 = vst.msk [vmem:[#allocation2 + $0xb8] sm:$0xff] %vm609, %v3631
      %3664 = vst.msk [vmem:[#allocation2 + $0xc0] sm:$0xff] %vm609, %v3632
      %3665 = vst.msk [vmem:[#allocation2 + $0xc8] sm:$0xff] %vm609, %v3633
      %3666 = vst.msk [vmem:[#allocation2 + $0xd0] sm:$0xff] %vm609, %v3634
      %3667 = vst.msk [vmem:[#allocation2 + $0xd8] sm:$0xff] %vm609, %v3635
      %3668 = vst.msk [vmem:[#allocation2 + $0xe0] sm:$0xff] %vm609, %v3636
      %3669 = vst.msk [vmem:[#allocation2 + $0xe8] sm:$0xff] %vm609, %v3637
      %3670 = vst.msk [vmem:[#allocation2 + $0xf0] sm:$0xff] %vm609, %v3638
      %3671 = vst.msk [vmem:[#allocation2 + $0xf8] sm:$0xff] %vm609, %v3639
      %3672 = vst.msk [vmem:[#allocation2 + $0x100] sm:$0xff] %vm609, %v3640
      %3673 = vst.msk [vmem:[#allocation2 + $0x108] sm:$0xff] %vm609, %v3641
      %3674 = vst.msk [vmem:[#allocation2 + $0x110] sm:$0xff] %vm609, %v3642
      %v3675 = vld [vmem:[%s11] sm:$0x1]
      %v3677 = vlaneseq
      %v3678 = vshrl.u32 %v3677, 7
      %v3679 = vsub.s32 0, %v3678
      %v3680 = vrot.slane %v3675, %v3679
      %v3682 = vadd.f32 %v3680, 0.0
      %v3683 = vld [vmem:[#allocation2 + $0x7] sm:$0xff]
      %v3684 = vld [vmem:[#allocation2 + $0xf] sm:$0xff]
      %v3685 = vld [vmem:[#allocation2 + $0x17] sm:$0xff]
      %v3686 = vld [vmem:[#allocation2 + $0x1f] sm:$0xff]
      %v3687 = vld [vmem:[#allocation2 + $0x27] sm:$0xff]
      %v3688 = vld [vmem:[#allocation2 + $0x2f] sm:$0xff]
      %v3689 = vld [vmem:[#allocation2 + $0x37] sm:$0xff]
      %v3690 = vld [vmem:[#allocation2 + $0x3f] sm:$0xff]
      %v3691 = vld [vmem:[#allocation2 + $0x47] sm:$0xff]
      %v3692 = vld [vmem:[#allocation2 + $0x4f] sm:$0xff]
      %v3693 = vld [vmem:[#allocation2 + $0x57] sm:$0xff]
      %v3694 = vld [vmem:[#allocation2 + $0x5f] sm:$0xff]
      %v3695 = vld [vmem:[#allocation2 + $0x67] sm:$0xff]
      %v3696 = vld [vmem:[#allocation2 + $0x6f] sm:$0xff]
      %v3697 = vld [vmem:[#allocation2 + $0x77] sm:$0xff]
      %v3698 = vld [vmem:[#allocation2 + $0x7f] sm:$0xff]
      %v3699 = vld [vmem:[#allocation2 + $0x87] sm:$0xff]
      %v3700 = vld [vmem:[#allocation2 + $0x8f] sm:$0xff]
      %v3701 = vld [vmem:[#allocation2 + $0x97] sm:$0xff]
      %v3702 = vld [vmem:[#allocation2 + $0x9f] sm:$0xff]
      %v3703 = vld [vmem:[#allocation2 + $0xa7] sm:$0xff]
      %v3704 = vld [vmem:[#allocation2 + $0xaf] sm:$0xff]
      %v3705 = vld [vmem:[#allocation2 + $0xb7] sm:$0xff]
      %v3706 = vld [vmem:[#allocation2 + $0xbf] sm:$0xff]
      %v3707 = vld [vmem:[#allocation2 + $0xc7] sm:$0xff]
      %v3708 = vld [vmem:[#allocation2 + $0xcf] sm:$0xff]
      %v3709 = vld [vmem:[#allocation2 + $0xd7] sm:$0xff]
      %v3710 = vld [vmem:[#allocation2 + $0xdf] sm:$0xff]
      %v3711 = vld [vmem:[#allocation2 + $0xe7] sm:$0xff]
      %v3712 = vld [vmem:[#allocation2 + $0xef] sm:$0xff]
      %v3713 = vld [vmem:[#allocation2 + $0xf7] sm:$0xff]
      %v3714 = vld [vmem:[#allocation2 + $0xff] sm:$0xff]
      %v3715 = vld [vmem:[%s10] sm:$0x1]
      %v3716 = vlaneseq
      %v3717 = vshrl.u32 %v3716, 7
      %v3718 = vsub.s32 0, %v3717
      %v3719 = vrot.slane %v3715, %v3718
      %v3720 = vmul.f32 %v3683, %v3719
      %v3721 = vmul.f32 %v3684, %v3719
      %v3722 = vmul.f32 %v3685, %v3719
      %v3723 = vmul.f32 %v3686, %v3719
      %v3724 = vmul.f32 %v3687, %v3719
      %v3725 = vmul.f32 %v3688, %v3719
      %v3726 = vmul.f32 %v3689, %v3719
      %v3727 = vmul.f32 %v3690, %v3719
      %v3728 = vmul.f32 %v3691, %v3719
      %v3729 = vmul.f32 %v3692, %v3719
      %v3730 = vmul.f32 %v3693, %v3719
      %v3731 = vmul.f32 %v3694, %v3719
      %v3732 = vmul.f32 %v3695, %v3719
      %v3733 = vmul.f32 %v3696, %v3719
      %v3734 = vmul.f32 %v3697, %v3719
      %v3735 = vmul.f32 %v3698, %v3719
      %v3736 = vmul.f32 %v3699, %v3719
      %v3737 = vmul.f32 %v3700, %v3719
      %v3738 = vmul.f32 %v3701, %v3719
      %v3739 = vmul.f32 %v3702, %v3719
      %v3740 = vmul.f32 %v3703, %v3719
      %v3741 = vmul.f32 %v3704, %v3719
      %v3742 = vmul.f32 %v3705, %v3719
      %v3743 = vmul.f32 %v3706, %v3719
      %v3744 = vmul.f32 %v3707, %v3719
      %v3745 = vmul.f32 %v3708, %v3719
      %v3746 = vmul.f32 %v3709, %v3719
      %v3747 = vmul.f32 %v3710, %v3719
      %v3748 = vmul.f32 %v3711, %v3719
      %v3749 = vmul.f32 %v3712, %v3719
      %v3750 = vmul.f32 %v3713, %v3719
      %v3751 = vmul.f32 %v3714, %v3719
      %v3752 = vadd.f32 %v3720, 0.0
      %v3753 = vadd.f32 %v3721, 0.0
      %v3754 = vadd.f32 %v3722, 0.0
      %v3755 = vadd.f32 %v3723, 0.0
      %v3756 = vadd.f32 %v3724, 0.0
      %v3757 = vadd.f32 %v3725, 0.0
      %v3758 = vadd.f32 %v3726, 0.0
      %v3759 = vadd.f32 %v3727, 0.0
      %v3760 = vadd.f32 %v3728, 0.0
      %v3761 = vadd.f32 %v3729, 0.0
      %v3762 = vadd.f32 %v3730, 0.0
      %v3763 = vadd.f32 %v3731, 0.0
      %v3764 = vadd.f32 %v3732, 0.0
      %v3765 = vadd.f32 %v3733, 0.0
      %v3766 = vadd.f32 %v3734, 0.0
      %v3767 = vadd.f32 %v3735, 0.0
      %v3768 = vadd.f32 %v3736, 0.0
      %v3769 = vadd.f32 %v3737, 0.0
      %v3770 = vadd.f32 %v3738, 0.0
      %v3771 = vadd.f32 %v3739, 0.0
      %v3772 = vadd.f32 %v3740, 0.0
      %v3773 = vadd.f32 %v3741, 0.0
      %v3774 = vadd.f32 %v3742, 0.0
      %v3775 = vadd.f32 %v3743, 0.0
      %v3776 = vadd.f32 %v3744, 0.0
      %v3777 = vadd.f32 %v3745, 0.0
      %v3778 = vadd.f32 %v3746, 0.0
      %v3779 = vadd.f32 %v3747, 0.0
      %v3780 = vadd.f32 %v3748, 0.0
      %v3781 = vadd.f32 %v3749, 0.0
      %v3782 = vadd.f32 %v3750, 0.0
      %v3783 = vadd.f32 %v3751, 0.0
      %v3784 = vld [vmem:[#allocation2 + $0x107] sm:$0xff]
      %v3785 = vld [vmem:[#allocation2 + $0x10f] sm:$0xff]
      %v3786 = vld [vmem:[%s10 + $0x3] sm:$0x1]
      %v3787 = vlaneseq
      %v3788 = vshrl.u32 %v3787, 7
      %v3789 = vsub.s32 0, %v3788
      %v3790 = vrot.slane %v3786, %v3789
      %v3791 = vmul.f32 %v3685, %v3790
      %v3792 = vmul.f32 %v3686, %v3790
      %v3793 = vmul.f32 %v3687, %v3790
      %v3794 = vmul.f32 %v3688, %v3790
      %v3795 = vmul.f32 %v3689, %v3790
      %v3796 = vmul.f32 %v3690, %v3790
      %v3797 = vmul.f32 %v3691, %v3790
      %v3798 = vmul.f32 %v3692, %v3790
      %v3799 = vmul.f32 %v3693, %v3790
      %v3800 = vmul.f32 %v3694, %v3790
      %v3801 = vmul.f32 %v3695, %v3790
      %v3802 = vmul.f32 %v3696, %v3790
      %v3803 = vmul.f32 %v3697, %v3790
      %v3804 = vmul.f32 %v3698, %v3790
      %v3805 = vmul.f32 %v3699, %v3790
      %v3806 = vmul.f32 %v3700, %v3790
      %v3807 = vmul.f32 %v3701, %v3790
      %v3808 = vmul.f32 %v3702, %v3790
      %v3809 = vmul.f32 %v3703, %v3790
      %v3810 = vmul.f32 %v3704, %v3790
      %v3811 = vmul.f32 %v3705, %v3790
      %v3812 = vmul.f32 %v3706, %v3790
      %v3813 = vmul.f32 %v3707, %v3790
      %v3814 = vmul.f32 %v3708, %v3790
      %v3815 = vmul.f32 %v3709, %v3790
      %v3816 = vmul.f32 %v3710, %v3790
      %v3817 = vmul.f32 %v3711, %v3790
      %v3818 = vmul.f32 %v3712, %v3790
      %v3819 = vmul.f32 %v3713, %v3790
      %v3820 = vmul.f32 %v3714, %v3790
      %v3821 = vmul.f32 %v3784, %v3790
      %v3822 = vmul.f32 %v3785, %v3790
      %v3823 = vadd.f32 %v3752, %v3791
      %v3824 = vadd.f32 %v3753, %v3792
      %v3825 = vadd.f32 %v3754, %v3793
      %v3826 = vadd.f32 %v3755, %v3794
      %v3827 = vadd.f32 %v3756, %v3795
      %v3828 = vadd.f32 %v3757, %v3796
      %v3829 = vadd.f32 %v3758, %v3797
      %v3830 = vadd.f32 %v3759, %v3798
      %v3831 = vadd.f32 %v3760, %v3799
      %v3832 = vadd.f32 %v3761, %v3800
      %v3833 = vadd.f32 %v3762, %v3801
      %v3834 = vadd.f32 %v3763, %v3802
      %v3835 = vadd.f32 %v3764, %v3803
      %v3836 = vadd.f32 %v3765, %v3804
      %v3837 = vadd.f32 %v3766, %v3805
      %v3838 = vadd.f32 %v3767, %v3806
      %v3839 = vadd.f32 %v3768, %v3807
      %v3840 = vadd.f32 %v3769, %v3808
      %v3841 = vadd.f32 %v3770, %v3809
      %v3842 = vadd.f32 %v3771, %v3810
      %v3843 = vadd.f32 %v3772, %v3811
      %v3844 = vadd.f32 %v3773, %v3812
      %v3845 = vadd.f32 %v3774, %v3813
      %v3846 = vadd.f32 %v3775, %v3814
      %v3847 = vadd.f32 %v3776, %v3815
      %v3848 = vadd.f32 %v3777, %v3816
      %v3849 = vadd.f32 %v3778, %v3817
      %v3850 = vadd.f32 %v3779, %v3818
      %v3851 = vadd.f32 %v3780, %v3819
      %v3852 = vadd.f32 %v3781, %v3820
      %v3853 = vadd.f32 %v3782, %v3821
      %v3854 = vadd.f32 %v3783, %v3822
      %v3855 = vld [vmem:[#allocation2 + $0x117] sm:$0xff]
      %v3856 = vld [vmem:[#allocation2 + $0x11f] sm:$0xff]
      %v3857 = vld [vmem:[%s10 + $0x6] sm:$0x1]
      %v3858 = vlaneseq
      %v3859 = vshrl.u32 %v3858, 7
      %v3860 = vsub.s32 0, %v3859
      %v3861 = vrot.slane %v3857, %v3860
      %v3862 = vmul.f32 %v3687, %v3861
      %v3863 = vmul.f32 %v3688, %v3861
      %v3864 = vmul.f32 %v3689, %v3861
      %v3865 = vmul.f32 %v3690, %v3861
      %v3866 = vmul.f32 %v3691, %v3861
      %v3867 = vmul.f32 %v3692, %v3861
      %v3868 = vmul.f32 %v3693, %v3861
      %v3869 = vmul.f32 %v3694, %v3861
      %v3870 = vmul.f32 %v3695, %v3861
      %v3871 = vmul.f32 %v3696, %v3861
      %v3872 = vmul.f32 %v3697, %v3861
      %v3873 = vmul.f32 %v3698, %v3861
      %v3874 = vmul.f32 %v3699, %v3861
      %v3875 = vmul.f32 %v3700, %v3861
      %v3876 = vmul.f32 %v3701, %v3861
      %v3877 = vmul.f32 %v3702, %v3861
      %v3878 = vmul.f32 %v3703, %v3861
      %v3879 = vmul.f32 %v3704, %v3861
      %v3880 = vmul.f32 %v3705, %v3861
      %v3881 = vmul.f32 %v3706, %v3861
      %v3882 = vmul.f32 %v3707, %v3861
      %v3883 = vmul.f32 %v3708, %v3861
      %v3884 = vmul.f32 %v3709, %v3861
      %v3885 = vmul.f32 %v3710, %v3861
      %v3886 = vmul.f32 %v3711, %v3861
      %v3887 = vmul.f32 %v3712, %v3861
      %v3888 = vmul.f32 %v3713, %v3861
      %v3889 = vmul.f32 %v3714, %v3861
      %v3890 = vmul.f32 %v3784, %v3861
      %v3891 = vmul.f32 %v3785, %v3861
      %v3892 = vmul.f32 %v3855, %v3861
      %v3893 = vmul.f32 %v3856, %v3861
      %v3894 = vadd.f32 %v3823, %v3862
      %v3895 = vadd.f32 %v3824, %v3863
      %v3896 = vadd.f32 %v3825, %v3864
      %v3897 = vadd.f32 %v3826, %v3865
      %v3898 = vadd.f32 %v3827, %v3866
      %v3899 = vadd.f32 %v3828, %v3867
      %v3900 = vadd.f32 %v3829, %v3868
      %v3901 = vadd.f32 %v3830, %v3869
      %v3902 = vadd.f32 %v3831, %v3870
      %v3903 = vadd.f32 %v3832, %v3871
      %v3904 = vadd.f32 %v3833, %v3872
      %v3905 = vadd.f32 %v3834, %v3873
      %v3906 = vadd.f32 %v3835, %v3874
      %v3907 = vadd.f32 %v3836, %v3875
      %v3908 = vadd.f32 %v3837, %v3876
      %v3909 = vadd.f32 %v3838, %v3877
      %v3910 = vadd.f32 %v3839, %v3878
      %v3911 = vadd.f32 %v3840, %v3879
      %v3912 = vadd.f32 %v3841, %v3880
      %v3913 = vadd.f32 %v3842, %v3881
      %v3914 = vadd.f32 %v3843, %v3882
      %v3915 = vadd.f32 %v3844, %v3883
      %v3916 = vadd.f32 %v3845, %v3884
      %v3917 = vadd.f32 %v3846, %v3885
      %v3918 = vadd.f32 %v3847, %v3886
      %v3919 = vadd.f32 %v3848, %v3887
      %v3920 = vadd.f32 %v3849, %v3888
      %v3921 = vadd.f32 %v3850, %v3889
      %v3922 = vadd.f32 %v3851, %v3890
      %v3923 = vadd.f32 %v3852, %v3891
      %v3924 = vadd.f32 %v3853, %v3892
      %v3925 = vadd.f32 %v3854, %v3893
      %v3926 = vmul.f32 %v3894, %v1097
      %v3927 = vmul.f32 %v3895, %v1098
      %v3928 = vmul.f32 %v3896, %v1099
      %v3929 = vmul.f32 %v3897, %v1100
      %v3930 = vmul.f32 %v3898, %v1101
      %v3931 = vmul.f32 %v3899, %v1102
      %v3932 = vmul.f32 %v3900, %v1103
      %v3933 = vmul.f32 %v3901, %v1104
      %v3934 = vmul.f32 %v3902, %v1105
      %v3935 = vmul.f32 %v3903, %v1106
      %v3936 = vmul.f32 %v3904, %v1107
      %v3937 = vmul.f32 %v3905, %v1108
      %v3938 = vmul.f32 %v3906, %v1109
      %v3939 = vmul.f32 %v3907, %v1110
      %v3940 = vmul.f32 %v3908, %v1111
      %v3941 = vmul.f32 %v3909, %v1112
      %v3942 = vmul.f32 %v3910, %v1113
      %v3943 = vmul.f32 %v3911, %v1114
      %v3944 = vmul.f32 %v3912, %v1115
      %v3945 = vmul.f32 %v3913, %v1116
      %v3946 = vmul.f32 %v3914, %v1117
      %v3947 = vmul.f32 %v3915, %v1118
      %v3948 = vmul.f32 %v3916, %v1119
      %v3949 = vmul.f32 %v3917, %v1120
      %v3950 = vmul.f32 %v3918, %v1121
      %v3951 = vmul.f32 %v3919, %v1122
      %v3952 = vmul.f32 %v3920, %v1123
      %v3953 = vmul.f32 %v3921, %v1124
      %v3954 = vmul.f32 %v3922, %v1125
      %v3955 = vmul.f32 %v3923, %v1126
      %v3956 = vmul.f32 %v3924, %v1127
      %v3957 = vmul.f32 %v3925, %v1128
      %v3958 = vadd.f32 %v3682, %v3926
      %v3959 = vadd.f32 %v3682, %v3927
      %v3960 = vadd.f32 %v3682, %v3928
      %v3961 = vadd.f32 %v3682, %v3929
      %v3962 = vadd.f32 %v3682, %v3930
      %v3963 = vadd.f32 %v3682, %v3931
      %v3964 = vadd.f32 %v3682, %v3932
      %v3965 = vadd.f32 %v3682, %v3933
      %v3966 = vadd.f32 %v3682, %v3934
      %v3967 = vadd.f32 %v3682, %v3935
      %v3968 = vadd.f32 %v3682, %v3936
      %v3969 = vadd.f32 %v3682, %v3937
      %v3970 = vadd.f32 %v3682, %v3938
      %v3971 = vadd.f32 %v3682, %v3939
      %v3972 = vadd.f32 %v3682, %v3940
      %v3973 = vadd.f32 %v3682, %v3941
      %v3974 = vadd.f32 %v3682, %v3942
      %v3975 = vadd.f32 %v3682, %v3943
      %v3976 = vadd.f32 %v3682, %v3944
      %v3977 = vadd.f32 %v3682, %v3945
      %v3978 = vadd.f32 %v3682, %v3946
      %v3979 = vadd.f32 %v3682, %v3947
      %v3980 = vadd.f32 %v3682, %v3948
      %v3981 = vadd.f32 %v3682, %v3949
      %v3982 = vadd.f32 %v3682, %v3950
      %v3983 = vadd.f32 %v3682, %v3951
      %v3984 = vadd.f32 %v3682, %v3952
      %v3985 = vadd.f32 %v3682, %v3953
      %v3986 = vadd.f32 %v3682, %v3954
      %v3987 = vadd.f32 %v3682, %v3955
      %v3988 = vadd.f32 %v3682, %v3956
      %v3989 = vadd.f32 %v3682, %v3957
      %v3990 = vld [vmem:[#allocation2 + $0x8] sm:$0xff]
      %v3991 = vld [vmem:[#allocation2 + $0x10] sm:$0xff]
      %v3992 = vld [vmem:[#allocation2 + $0x18] sm:$0xff]
      %v3993 = vld [vmem:[#allocation2 + $0x20] sm:$0xff]
      %v3994 = vld [vmem:[#allocation2 + $0x28] sm:$0xff]
      %v3995 = vld [vmem:[#allocation2 + $0x30] sm:$0xff]
      %v3996 = vld [vmem:[#allocation2 + $0x38] sm:$0xff]
      %v3997 = vld [vmem:[#allocation2 + $0x40] sm:$0xff]
      %v3998 = vld [vmem:[#allocation2 + $0x48] sm:$0xff]
      %v3999 = vld [vmem:[#allocation2 + $0x50] sm:$0xff]
      %v4000 = vld [vmem:[#allocation2 + $0x58] sm:$0xff]
      %v4001 = vld [vmem:[#allocation2 + $0x60] sm:$0xff]
      %v4002 = vld [vmem:[#allocation2 + $0x68] sm:$0xff]
      %v4003 = vld [vmem:[#allocation2 + $0x70] sm:$0xff]
      %v4004 = vld [vmem:[#allocation2 + $0x78] sm:$0xff]
      %v4005 = vld [vmem:[#allocation2 + $0x80] sm:$0xff]
      %v4006 = vld [vmem:[#allocation2 + $0x88] sm:$0xff]
      %v4007 = vld [vmem:[#allocation2 + $0x90] sm:$0xff]
      %v4008 = vld [vmem:[#allocation2 + $0x98] sm:$0xff]
      %v4009 = vld [vmem:[#allocation2 + $0xa0] sm:$0xff]
      %v4010 = vld [vmem:[#allocation2 + $0xa8] sm:$0xff]
      %v4011 = vld [vmem:[#allocation2 + $0xb0] sm:$0xff]
      %v4012 = vld [vmem:[#allocation2 + $0xb8] sm:$0xff]
      %v4013 = vld [vmem:[#allocation2 + $0xc0] sm:$0xff]
      %v4014 = vld [vmem:[#allocation2 + $0xc8] sm:$0xff]
      %v4015 = vld [vmem:[#allocation2 + $0xd0] sm:$0xff]
      %v4016 = vld [vmem:[#allocation2 + $0xd8] sm:$0xff]
      %v4017 = vld [vmem:[#allocation2 + $0xe0] sm:$0xff]
      %v4018 = vld [vmem:[#allocation2 + $0xe8] sm:$0xff]
      %v4019 = vld [vmem:[#allocation2 + $0xf0] sm:$0xff]
      %v4020 = vld [vmem:[#allocation2 + $0xf8] sm:$0xff]
      %v4021 = vld [vmem:[#allocation2 + $0x100] sm:$0xff]
      %v4022 = vld [vmem:[%s10 + $0x1] sm:$0x1]
      %v4023 = vlaneseq
      %v4024 = vshrl.u32 %v4023, 7
      %v4025 = vsub.s32 0, %v4024
      %v4026 = vrot.slane %v4022, %v4025
      %v4027 = vmul.f32 %v3990, %v4026
      %v4028 = vmul.f32 %v3991, %v4026
      %v4029 = vmul.f32 %v3992, %v4026
      %v4030 = vmul.f32 %v3993, %v4026
      %v4031 = vmul.f32 %v3994, %v4026
      %v4032 = vmul.f32 %v3995, %v4026
      %v4033 = vmul.f32 %v3996, %v4026
      %v4034 = vmul.f32 %v3997, %v4026
      %v4035 = vmul.f32 %v3998, %v4026
      %v4036 = vmul.f32 %v3999, %v4026
      %v4037 = vmul.f32 %v4000, %v4026
      %v4038 = vmul.f32 %v4001, %v4026
      %v4039 = vmul.f32 %v4002, %v4026
      %v4040 = vmul.f32 %v4003, %v4026
      %v4041 = vmul.f32 %v4004, %v4026
      %v4042 = vmul.f32 %v4005, %v4026
      %v4043 = vmul.f32 %v4006, %v4026
      %v4044 = vmul.f32 %v4007, %v4026
      %v4045 = vmul.f32 %v4008, %v4026
      %v4046 = vmul.f32 %v4009, %v4026
      %v4047 = vmul.f32 %v4010, %v4026
      %v4048 = vmul.f32 %v4011, %v4026
      %v4049 = vmul.f32 %v4012, %v4026
      %v4050 = vmul.f32 %v4013, %v4026
      %v4051 = vmul.f32 %v4014, %v4026
      %v4052 = vmul.f32 %v4015, %v4026
      %v4053 = vmul.f32 %v4016, %v4026
      %v4054 = vmul.f32 %v4017, %v4026
      %v4055 = vmul.f32 %v4018, %v4026
      %v4056 = vmul.f32 %v4019, %v4026
      %v4057 = vmul.f32 %v4020, %v4026
      %v4058 = vmul.f32 %v4021, %v4026
      %v4059 = vadd.f32 %v4027, 0.0
      %v4060 = vadd.f32 %v4028, 0.0
      %v4061 = vadd.f32 %v4029, 0.0
      %v4062 = vadd.f32 %v4030, 0.0
      %v4063 = vadd.f32 %v4031, 0.0
      %v4064 = vadd.f32 %v4032, 0.0
      %v4065 = vadd.f32 %v4033, 0.0
      %v4066 = vadd.f32 %v4034, 0.0
      %v4067 = vadd.f32 %v4035, 0.0
      %v4068 = vadd.f32 %v4036, 0.0
      %v4069 = vadd.f32 %v4037, 0.0
      %v4070 = vadd.f32 %v4038, 0.0
      %v4071 = vadd.f32 %v4039, 0.0
      %v4072 = vadd.f32 %v4040, 0.0
      %v4073 = vadd.f32 %v4041, 0.0
      %v4074 = vadd.f32 %v4042, 0.0
      %v4075 = vadd.f32 %v4043, 0.0
      %v4076 = vadd.f32 %v4044, 0.0
      %v4077 = vadd.f32 %v4045, 0.0
      %v4078 = vadd.f32 %v4046, 0.0
      %v4079 = vadd.f32 %v4047, 0.0
      %v4080 = vadd.f32 %v4048, 0.0
      %v4081 = vadd.f32 %v4049, 0.0
      %v4082 = vadd.f32 %v4050, 0.0
      %v4083 = vadd.f32 %v4051, 0.0
      %v4084 = vadd.f32 %v4052, 0.0
      %v4085 = vadd.f32 %v4053, 0.0
      %v4086 = vadd.f32 %v4054, 0.0
      %v4087 = vadd.f32 %v4055, 0.0
      %v4088 = vadd.f32 %v4056, 0.0
      %v4089 = vadd.f32 %v4057, 0.0
      %v4090 = vadd.f32 %v4058, 0.0
      %v4091 = vld [vmem:[#allocation2 + $0x108] sm:$0xff]
      %v4092 = vld [vmem:[#allocation2 + $0x110] sm:$0xff]
      %v4093 = vld [vmem:[%s10 + $0x4] sm:$0x1]
      %v4094 = vlaneseq
      %v4095 = vshrl.u32 %v4094, 7
      %v4096 = vsub.s32 0, %v4095
      %v4097 = vrot.slane %v4093, %v4096
      %v4098 = vmul.f32 %v3992, %v4097
      %v4099 = vmul.f32 %v3993, %v4097
      %v4100 = vmul.f32 %v3994, %v4097
      %v4101 = vmul.f32 %v3995, %v4097
      %v4102 = vmul.f32 %v3996, %v4097
      %v4103 = vmul.f32 %v3997, %v4097
      %v4104 = vmul.f32 %v3998, %v4097
      %v4105 = vmul.f32 %v3999, %v4097
      %v4106 = vmul.f32 %v4000, %v4097
      %v4107 = vmul.f32 %v4001, %v4097
      %v4108 = vmul.f32 %v4002, %v4097
      %v4109 = vmul.f32 %v4003, %v4097
      %v4110 = vmul.f32 %v4004, %v4097
      %v4111 = vmul.f32 %v4005, %v4097
      %v4112 = vmul.f32 %v4006, %v4097
      %v4113 = vmul.f32 %v4007, %v4097
      %v4114 = vmul.f32 %v4008, %v4097
      %v4115 = vmul.f32 %v4009, %v4097
      %v4116 = vmul.f32 %v4010, %v4097
      %v4117 = vmul.f32 %v4011, %v4097
      %v4118 = vmul.f32 %v4012, %v4097
      %v4119 = vmul.f32 %v4013, %v4097
      %v4120 = vmul.f32 %v4014, %v4097
      %v4121 = vmul.f32 %v4015, %v4097
      %v4122 = vmul.f32 %v4016, %v4097
      %v4123 = vmul.f32 %v4017, %v4097
      %v4124 = vmul.f32 %v4018, %v4097
      %v4125 = vmul.f32 %v4019, %v4097
      %v4126 = vmul.f32 %v4020, %v4097
      %v4127 = vmul.f32 %v4021, %v4097
      %v4128 = vmul.f32 %v4091, %v4097
      %v4129 = vmul.f32 %v4092, %v4097
      %v4130 = vadd.f32 %v4059, %v4098
      %v4131 = vadd.f32 %v4060, %v4099
      %v4132 = vadd.f32 %v4061, %v4100
      %v4133 = vadd.f32 %v4062, %v4101
      %v4134 = vadd.f32 %v4063, %v4102
      %v4135 = vadd.f32 %v4064, %v4103
      %v4136 = vadd.f32 %v4065, %v4104
      %v4137 = vadd.f32 %v4066, %v4105
      %v4138 = vadd.f32 %v4067, %v4106
      %v4139 = vadd.f32 %v4068, %v4107
      %v4140 = vadd.f32 %v4069, %v4108
      %v4141 = vadd.f32 %v4070, %v4109
      %v4142 = vadd.f32 %v4071, %v4110
      %v4143 = vadd.f32 %v4072, %v4111
      %v4144 = vadd.f32 %v4073, %v4112
      %v4145 = vadd.f32 %v4074, %v4113
      %v4146 = vadd.f32 %v4075, %v4114
      %v4147 = vadd.f32 %v4076, %v4115
      %v4148 = vadd.f32 %v4077, %v4116
      %v4149 = vadd.f32 %v4078, %v4117
      %v4150 = vadd.f32 %v4079, %v4118
      %v4151 = vadd.f32 %v4080, %v4119
      %v4152 = vadd.f32 %v4081, %v4120
      %v4153 = vadd.f32 %v4082, %v4121
      %v4154 = vadd.f32 %v4083, %v4122
      %v4155 = vadd.f32 %v4084, %v4123
      %v4156 = vadd.f32 %v4085, %v4124
      %v4157 = vadd.f32 %v4086, %v4125
      %v4158 = vadd.f32 %v4087, %v4126
      %v4159 = vadd.f32 %v4088, %v4127
      %v4160 = vadd.f32 %v4089, %v4128
      %v4161 = vadd.f32 %v4090, %v4129
      %v4162 = vld [vmem:[#allocation2 + $0x118] sm:$0xff]
      %v4163 = vld [vmem:[#allocation2 + $0x120] sm:$0xff]
      %v4164 = vld [vmem:[%s10 + $0x7] sm:$0x1]
      %v4165 = vlaneseq
      %v4166 = vshrl.u32 %v4165, 7
      %v4167 = vsub.s32 0, %v4166
      %v4168 = vrot.slane %v4164, %v4167
      %v4169 = vmul.f32 %v3994, %v4168
      %v4170 = vmul.f32 %v3995, %v4168
      %v4171 = vmul.f32 %v3996, %v4168
      %v4172 = vmul.f32 %v3997, %v4168
      %v4173 = vmul.f32 %v3998, %v4168
      %v4174 = vmul.f32 %v3999, %v4168
      %v4175 = vmul.f32 %v4000, %v4168
      %v4176 = vmul.f32 %v4001, %v4168
      %v4177 = vmul.f32 %v4002, %v4168
      %v4178 = vmul.f32 %v4003, %v4168
      %v4179 = vmul.f32 %v4004, %v4168
      %v4180 = vmul.f32 %v4005, %v4168
      %v4181 = vmul.f32 %v4006, %v4168
      %v4182 = vmul.f32 %v4007, %v4168
      %v4183 = vmul.f32 %v4008, %v4168
      %v4184 = vmul.f32 %v4009, %v4168
      %v4185 = vmul.f32 %v4010, %v4168
      %v4186 = vmul.f32 %v4011, %v4168
      %v4187 = vmul.f32 %v4012, %v4168
      %v4188 = vmul.f32 %v4013, %v4168
      %v4189 = vmul.f32 %v4014, %v4168
      %v4190 = vmul.f32 %v4015, %v4168
      %v4191 = vmul.f32 %v4016, %v4168
      %v4192 = vmul.f32 %v4017, %v4168
      %v4193 = vmul.f32 %v4018, %v4168
      %v4194 = vmul.f32 %v4019, %v4168
      %v4195 = vmul.f32 %v4020, %v4168
      %v4196 = vmul.f32 %v4021, %v4168
      %v4197 = vmul.f32 %v4091, %v4168
      %v4198 = vmul.f32 %v4092, %v4168
      %v4199 = vmul.f32 %v4162, %v4168
      %v4200 = vmul.f32 %v4163, %v4168
      %v4201 = vadd.f32 %v4130, %v4169
      %v4202 = vadd.f32 %v4131, %v4170
      %v4203 = vadd.f32 %v4132, %v4171
      %v4204 = vadd.f32 %v4133, %v4172
      %v4205 = vadd.f32 %v4134, %v4173
      %v4206 = vadd.f32 %v4135, %v4174
      %v4207 = vadd.f32 %v4136, %v4175
      %v4208 = vadd.f32 %v4137, %v4176
      %v4209 = vadd.f32 %v4138, %v4177
      %v4210 = vadd.f32 %v4139, %v4178
      %v4211 = vadd.f32 %v4140, %v4179
      %v4212 = vadd.f32 %v4141, %v4180
      %v4213 = vadd.f32 %v4142, %v4181
      %v4214 = vadd.f32 %v4143, %v4182
      %v4215 = vadd.f32 %v4144, %v4183
      %v4216 = vadd.f32 %v4145, %v4184
      %v4217 = vadd.f32 %v4146, %v4185
      %v4218 = vadd.f32 %v4147, %v4186
      %v4219 = vadd.f32 %v4148, %v4187
      %v4220 = vadd.f32 %v4149, %v4188
      %v4221 = vadd.f32 %v4150, %v4189
      %v4222 = vadd.f32 %v4151, %v4190
      %v4223 = vadd.f32 %v4152, %v4191
      %v4224 = vadd.f32 %v4153, %v4192
      %v4225 = vadd.f32 %v4154, %v4193
      %v4226 = vadd.f32 %v4155, %v4194
      %v4227 = vadd.f32 %v4156, %v4195
      %v4228 = vadd.f32 %v4157, %v4196
      %v4229 = vadd.f32 %v4158, %v4197
      %v4230 = vadd.f32 %v4159, %v4198
      %v4231 = vadd.f32 %v4160, %v4199
      %v4232 = vadd.f32 %v4161, %v4200
      %v4233 = vadd.f32 %v3958, %v4201
      %v4234 = vadd.f32 %v3959, %v4202
      %v4235 = vadd.f32 %v3960, %v4203
      %v4236 = vadd.f32 %v3961, %v4204
      %v4237 = vadd.f32 %v3962, %v4205
      %v4238 = vadd.f32 %v3963, %v4206
      %v4239 = vadd.f32 %v3964, %v4207
      %v4240 = vadd.f32 %v3965, %v4208
      %v4241 = vadd.f32 %v3966, %v4209
      %v4242 = vadd.f32 %v3967, %v4210
      %v4243 = vadd.f32 %v3968, %v4211
      %v4244 = vadd.f32 %v3969, %v4212
      %v4245 = vadd.f32 %v3970, %v4213
      %v4246 = vadd.f32 %v3971, %v4214
      %v4247 = vadd.f32 %v3972, %v4215
      %v4248 = vadd.f32 %v3973, %v4216
      %v4249 = vadd.f32 %v3974, %v4217
      %v4250 = vadd.f32 %v3975, %v4218
      %v4251 = vadd.f32 %v3976, %v4219
      %v4252 = vadd.f32 %v3977, %v4220
      %v4253 = vadd.f32 %v3978, %v4221
      %v4254 = vadd.f32 %v3979, %v4222
      %v4255 = vadd.f32 %v3980, %v4223
      %v4256 = vadd.f32 %v3981, %v4224
      %v4257 = vadd.f32 %v3982, %v4225
      %v4258 = vadd.f32 %v3983, %v4226
      %v4259 = vadd.f32 %v3984, %v4227
      %v4260 = vadd.f32 %v3985, %v4228
      %v4261 = vadd.f32 %v3986, %v4229
      %v4262 = vadd.f32 %v3987, %v4230
      %v4263 = vadd.f32 %v3988, %v4231
      %v4264 = vadd.f32 %v3989, %v4232
      %v4265 = vld [vmem:[#allocation2 + $0x9] sm:$0xff]
      %v4266 = vld [vmem:[#allocation2 + $0x11] sm:$0xff]
      %v4267 = vld [vmem:[#allocation2 + $0x19] sm:$0xff]
      %v4268 = vld [vmem:[#allocation2 + $0x21] sm:$0xff]
      %v4269 = vld [vmem:[#allocation2 + $0x29] sm:$0xff]
      %v4270 = vld [vmem:[#allocation2 + $0x31] sm:$0xff]
      %v4271 = vld [vmem:[#allocation2 + $0x39] sm:$0xff]
      %v4272 = vld [vmem:[#allocation2 + $0x41] sm:$0xff]
      %v4273 = vld [vmem:[#allocation2 + $0x49] sm:$0xff]
      %v4274 = vld [vmem:[#allocation2 + $0x51] sm:$0xff]
      %v4275 = vld [vmem:[#allocation2 + $0x59] sm:$0xff]
      %v4276 = vld [vmem:[#allocation2 + $0x61] sm:$0xff]
      %v4277 = vld [vmem:[#allocation2 + $0x69] sm:$0xff]
      %v4278 = vld [vmem:[#allocation2 + $0x71] sm:$0xff]
      %v4279 = vld [vmem:[#allocation2 + $0x79] sm:$0xff]
      %v4280 = vld [vmem:[#allocation2 + $0x81] sm:$0xff]
      %v4281 = vld [vmem:[#allocation2 + $0x89] sm:$0xff]
      %v4282 = vld [vmem:[#allocation2 + $0x91] sm:$0xff]
      %v4283 = vld [vmem:[#allocation2 + $0x99] sm:$0xff]
      %v4284 = vld [vmem:[#allocation2 + $0xa1] sm:$0xff]
      %v4285 = vld [vmem:[#allocation2 + $0xa9] sm:$0xff]
      %v4286 = vld [vmem:[#allocation2 + $0xb1] sm:$0xff]
      %v4287 = vld [vmem:[#allocation2 + $0xb9] sm:$0xff]
      %v4288 = vld [vmem:[#allocation2 + $0xc1] sm:$0xff]
      %v4289 = vld [vmem:[#allocation2 + $0xc9] sm:$0xff]
      %v4290 = vld [vmem:[#allocation2 + $0xd1] sm:$0xff]
      %v4291 = vld [vmem:[#allocation2 + $0xd9] sm:$0xff]
      %v4292 = vld [vmem:[#allocation2 + $0xe1] sm:$0xff]
      %v4293 = vld [vmem:[#allocation2 + $0xe9] sm:$0xff]
      %v4294 = vld [vmem:[#allocation2 + $0xf1] sm:$0xff]
      %v4295 = vld [vmem:[#allocation2 + $0xf9] sm:$0xff]
      %v4296 = vld [vmem:[#allocation2 + $0x101] sm:$0xff]
      %v4297 = vld [vmem:[%s10 + $0x2] sm:$0x1]
      %v4298 = vlaneseq
      %v4299 = vshrl.u32 %v4298, 7
      %v4300 = vsub.s32 0, %v4299
      %v4301 = vrot.slane %v4297, %v4300
      %v4302 = vmul.f32 %v4265, %v4301
      %v4303 = vmul.f32 %v4266, %v4301
      %v4304 = vmul.f32 %v4267, %v4301
      %v4305 = vmul.f32 %v4268, %v4301
      %v4306 = vmul.f32 %v4269, %v4301
      %v4307 = vmul.f32 %v4270, %v4301
      %v4308 = vmul.f32 %v4271, %v4301
      %v4309 = vmul.f32 %v4272, %v4301
      %v4310 = vmul.f32 %v4273, %v4301
      %v4311 = vmul.f32 %v4274, %v4301
      %v4312 = vmul.f32 %v4275, %v4301
      %v4313 = vmul.f32 %v4276, %v4301
      %v4314 = vmul.f32 %v4277, %v4301
      %v4315 = vmul.f32 %v4278, %v4301
      %v4316 = vmul.f32 %v4279, %v4301
      %v4317 = vmul.f32 %v4280, %v4301
      %v4318 = vmul.f32 %v4281, %v4301
      %v4319 = vmul.f32 %v4282, %v4301
      %v4320 = vmul.f32 %v4283, %v4301
      %v4321 = vmul.f32 %v4284, %v4301
      %v4322 = vmul.f32 %v4285, %v4301
      %v4323 = vmul.f32 %v4286, %v4301
      %v4324 = vmul.f32 %v4287, %v4301
      %v4325 = vmul.f32 %v4288, %v4301
      %v4326 = vmul.f32 %v4289, %v4301
      %v4327 = vmul.f32 %v4290, %v4301
      %v4328 = vmul.f32 %v4291, %v4301
      %v4329 = vmul.f32 %v4292, %v4301
      %v4330 = vmul.f32 %v4293, %v4301
      %v4331 = vmul.f32 %v4294, %v4301
      %v4332 = vmul.f32 %v4295, %v4301
      %v4333 = vmul.f32 %v4296, %v4301
      %v4334 = vadd.f32 %v4302, 0.0
      %v4335 = vadd.f32 %v4303, 0.0
      %v4336 = vadd.f32 %v4304, 0.0
      %v4337 = vadd.f32 %v4305, 0.0
      %v4338 = vadd.f32 %v4306, 0.0
      %v4339 = vadd.f32 %v4307, 0.0
      %v4340 = vadd.f32 %v4308, 0.0
      %v4341 = vadd.f32 %v4309, 0.0
      %v4342 = vadd.f32 %v4310, 0.0
      %v4343 = vadd.f32 %v4311, 0.0
      %v4344 = vadd.f32 %v4312, 0.0
      %v4345 = vadd.f32 %v4313, 0.0
      %v4346 = vadd.f32 %v4314, 0.0
      %v4347 = vadd.f32 %v4315, 0.0
      %v4348 = vadd.f32 %v4316, 0.0
      %v4349 = vadd.f32 %v4317, 0.0
      %v4350 = vadd.f32 %v4318, 0.0
      %v4351 = vadd.f32 %v4319, 0.0
      %v4352 = vadd.f32 %v4320, 0.0
      %v4353 = vadd.f32 %v4321, 0.0
      %v4354 = vadd.f32 %v4322, 0.0
      %v4355 = vadd.f32 %v4323, 0.0
      %v4356 = vadd.f32 %v4324, 0.0
      %v4357 = vadd.f32 %v4325, 0.0
      %v4358 = vadd.f32 %v4326, 0.0
      %v4359 = vadd.f32 %v4327, 0.0
      %v4360 = vadd.f32 %v4328, 0.0
      %v4361 = vadd.f32 %v4329, 0.0
      %v4362 = vadd.f32 %v4330, 0.0
      %v4363 = vadd.f32 %v4331, 0.0
      %v4364 = vadd.f32 %v4332, 0.0
      %v4365 = vadd.f32 %v4333, 0.0
      %v4366 = vld [vmem:[#allocation2 + $0x109] sm:$0xff]
      %v4367 = vld [vmem:[#allocation2 + $0x111] sm:$0xff]
      %v4368 = vld [vmem:[%s10 + $0x5] sm:$0x1]
      %v4369 = vlaneseq
      %v4370 = vshrl.u32 %v4369, 7
      %v4371 = vsub.s32 0, %v4370
      %v4372 = vrot.slane %v4368, %v4371
      %v4373 = vmul.f32 %v4267, %v4372
      %v4374 = vmul.f32 %v4268, %v4372
      %v4375 = vmul.f32 %v4269, %v4372
      %v4376 = vmul.f32 %v4270, %v4372
      %v4377 = vmul.f32 %v4271, %v4372
      %v4378 = vmul.f32 %v4272, %v4372
      %v4379 = vmul.f32 %v4273, %v4372
      %v4380 = vmul.f32 %v4274, %v4372
      %v4381 = vmul.f32 %v4275, %v4372
      %v4382 = vmul.f32 %v4276, %v4372
      %v4383 = vmul.f32 %v4277, %v4372
      %v4384 = vmul.f32 %v4278, %v4372
      %v4385 = vmul.f32 %v4279, %v4372
      %v4386 = vmul.f32 %v4280, %v4372
      %v4387 = vmul.f32 %v4281, %v4372
      %v4388 = vmul.f32 %v4282, %v4372
      %v4389 = vmul.f32 %v4283, %v4372
      %v4390 = vmul.f32 %v4284, %v4372
      %v4391 = vmul.f32 %v4285, %v4372
      %v4392 = vmul.f32 %v4286, %v4372
      %v4393 = vmul.f32 %v4287, %v4372
      %v4394 = vmul.f32 %v4288, %v4372
      %v4395 = vmul.f32 %v4289, %v4372
      %v4396 = vmul.f32 %v4290, %v4372
      %v4397 = vmul.f32 %v4291, %v4372
      %v4398 = vmul.f32 %v4292, %v4372
      %v4399 = vmul.f32 %v4293, %v4372
      %v4400 = vmul.f32 %v4294, %v4372
      %v4401 = vmul.f32 %v4295, %v4372
      %v4402 = vmul.f32 %v4296, %v4372
      %v4403 = vmul.f32 %v4366, %v4372
      %v4404 = vmul.f32 %v4367, %v4372
      %v4405 = vadd.f32 %v4334, %v4373
      %v4406 = vadd.f32 %v4335, %v4374
      %v4407 = vadd.f32 %v4336, %v4375
      %v4408 = vadd.f32 %v4337, %v4376
      %v4409 = vadd.f32 %v4338, %v4377
      %v4410 = vadd.f32 %v4339, %v4378
      %v4411 = vadd.f32 %v4340, %v4379
      %v4412 = vadd.f32 %v4341, %v4380
      %v4413 = vadd.f32 %v4342, %v4381
      %v4414 = vadd.f32 %v4343, %v4382
      %v4415 = vadd.f32 %v4344, %v4383
      %v4416 = vadd.f32 %v4345, %v4384
      %v4417 = vadd.f32 %v4346, %v4385
      %v4418 = vadd.f32 %v4347, %v4386
      %v4419 = vadd.f32 %v4348, %v4387
      %v4420 = vadd.f32 %v4349, %v4388
      %v4421 = vadd.f32 %v4350, %v4389
      %v4422 = vadd.f32 %v4351, %v4390
      %v4423 = vadd.f32 %v4352, %v4391
      %v4424 = vadd.f32 %v4353, %v4392
      %v4425 = vadd.f32 %v4354, %v4393
      %v4426 = vadd.f32 %v4355, %v4394
      %v4427 = vadd.f32 %v4356, %v4395
      %v4428 = vadd.f32 %v4357, %v4396
      %v4429 = vadd.f32 %v4358, %v4397
      %v4430 = vadd.f32 %v4359, %v4398
      %v4431 = vadd.f32 %v4360, %v4399
      %v4432 = vadd.f32 %v4361, %v4400
      %v4433 = vadd.f32 %v4362, %v4401
      %v4434 = vadd.f32 %v4363, %v4402
      %v4435 = vadd.f32 %v4364, %v4403
      %v4436 = vadd.f32 %v4365, %v4404
      %v4437 = vld [vmem:[#allocation2 + $0x119] sm:$0xff]
      %v4438 = vld [vmem:[#allocation2 + $0x121] sm:$0xff]
      %v4439 = vld [vmem:[%s10 + $0x8] sm:$0x1]
      %v4440 = vlaneseq
      %v4441 = vshrl.u32 %v4440, 7
      %v4442 = vsub.s32 0, %v4441
      %v4443 = vrot.slane %v4439, %v4442
      %v4444 = vmul.f32 %v4269, %v4443
      %v4445 = vmul.f32 %v4270, %v4443
      %v4446 = vmul.f32 %v4271, %v4443
      %v4447 = vmul.f32 %v4272, %v4443
      %v4448 = vmul.f32 %v4273, %v4443
      %v4449 = vmul.f32 %v4274, %v4443
      %v4450 = vmul.f32 %v4275, %v4443
      %v4451 = vmul.f32 %v4276, %v4443
      %v4452 = vmul.f32 %v4277, %v4443
      %v4453 = vmul.f32 %v4278, %v4443
      %v4454 = vmul.f32 %v4279, %v4443
      %v4455 = vmul.f32 %v4280, %v4443
      %v4456 = vmul.f32 %v4281, %v4443
      %v4457 = vmul.f32 %v4282, %v4443
      %v4458 = vmul.f32 %v4283, %v4443
      %v4459 = vmul.f32 %v4284, %v4443
      %v4460 = vmul.f32 %v4285, %v4443
      %v4461 = vmul.f32 %v4286, %v4443
      %v4462 = vmul.f32 %v4287, %v4443
      %v4463 = vmul.f32 %v4288, %v4443
      %v4464 = vmul.f32 %v4289, %v4443
      %v4465 = vmul.f32 %v4290, %v4443
      %v4466 = vmul.f32 %v4291, %v4443
      %v4467 = vmul.f32 %v4292, %v4443
      %v4468 = vmul.f32 %v4293, %v4443
      %v4469 = vmul.f32 %v4294, %v4443
      %v4470 = vmul.f32 %v4295, %v4443
      %v4471 = vmul.f32 %v4296, %v4443
      %v4472 = vmul.f32 %v4366, %v4443
      %v4473 = vmul.f32 %v4367, %v4443
      %v4474 = vmul.f32 %v4437, %v4443
      %v4475 = vmul.f32 %v4438, %v4443
      %v4476 = vadd.f32 %v4405, %v4444
      %v4477 = vadd.f32 %v4406, %v4445
      %v4478 = vadd.f32 %v4407, %v4446
      %v4479 = vadd.f32 %v4408, %v4447
      %v4480 = vadd.f32 %v4409, %v4448
      %v4481 = vadd.f32 %v4410, %v4449
      %v4482 = vadd.f32 %v4411, %v4450
      %v4483 = vadd.f32 %v4412, %v4451
      %v4484 = vadd.f32 %v4413, %v4452
      %v4485 = vadd.f32 %v4414, %v4453
      %v4486 = vadd.f32 %v4415, %v4454
      %v4487 = vadd.f32 %v4416, %v4455
      %v4488 = vadd.f32 %v4417, %v4456
      %v4489 = vadd.f32 %v4418, %v4457
      %v4490 = vadd.f32 %v4419, %v4458
      %v4491 = vadd.f32 %v4420, %v4459
      %v4492 = vadd.f32 %v4421, %v4460
      %v4493 = vadd.f32 %v4422, %v4461
      %v4494 = vadd.f32 %v4423, %v4462
      %v4495 = vadd.f32 %v4424, %v4463
      %v4496 = vadd.f32 %v4425, %v4464
      %v4497 = vadd.f32 %v4426, %v4465
      %v4498 = vadd.f32 %v4427, %v4466
      %v4499 = vadd.f32 %v4428, %v4467
      %v4500 = vadd.f32 %v4429, %v4468
      %v4501 = vadd.f32 %v4430, %v4469
      %v4502 = vadd.f32 %v4431, %v4470
      %v4503 = vadd.f32 %v4432, %v4471
      %v4504 = vadd.f32 %v4433, %v4472
      %v4505 = vadd.f32 %v4434, %v4473
      %v4506 = vadd.f32 %v4435, %v4474
      %v4507 = vadd.f32 %v4436, %v4475
      %v4508 = vmul.f32 %v4476, %v1161
      %v4509 = vmul.f32 %v4477, %v1162
      %v4510 = vmul.f32 %v4478, %v1163
      %v4511 = vmul.f32 %v4479, %v1164
      %v4512 = vmul.f32 %v4480, %v1165
      %v4513 = vmul.f32 %v4481, %v1166
      %v4514 = vmul.f32 %v4482, %v1167
      %v4515 = vmul.f32 %v4483, %v1168
      %v4516 = vmul.f32 %v4484, %v1169
      %v4517 = vmul.f32 %v4485, %v1170
      %v4518 = vmul.f32 %v4486, %v1171
      %v4519 = vmul.f32 %v4487, %v1172
      %v4520 = vmul.f32 %v4488, %v1173
      %v4521 = vmul.f32 %v4489, %v1174
      %v4522 = vmul.f32 %v4490, %v1175
      %v4523 = vmul.f32 %v4491, %v1176
      %v4524 = vmul.f32 %v4492, %v1177
      %v4525 = vmul.f32 %v4493, %v1178
      %v4526 = vmul.f32 %v4494, %v1179
      %v4527 = vmul.f32 %v4495, %v1180
      %v4528 = vmul.f32 %v4496, %v1181
      %v4529 = vmul.f32 %v4497, %v1182
      %v4530 = vmul.f32 %v4498, %v1183
      %v4531 = vmul.f32 %v4499, %v1184
      %v4532 = vmul.f32 %v4500, %v1185
      %v4533 = vmul.f32 %v4501, %v1186
      %v4534 = vmul.f32 %v4502, %v1187
      %v4535 = vmul.f32 %v4503, %v1188
      %v4536 = vmul.f32 %v4504, %v1189
      %v4537 = vmul.f32 %v4505, %v1190
      %v4538 = vmul.f32 %v4506, %v1191
      %v4539 = vmul.f32 %v4507, %v1192
      %v4540 = vadd.f32 %v4233, %v4508
      %v4541 = vadd.f32 %v4234, %v4509
      %v4542 = vadd.f32 %v4235, %v4510
      %v4543 = vadd.f32 %v4236, %v4511
      %v4544 = vadd.f32 %v4237, %v4512
      %v4545 = vadd.f32 %v4238, %v4513
      %v4546 = vadd.f32 %v4239, %v4514
      %v4547 = vadd.f32 %v4240, %v4515
      %v4548 = vadd.f32 %v4241, %v4516
      %v4549 = vadd.f32 %v4242, %v4517
      %v4550 = vadd.f32 %v4243, %v4518
      %v4551 = vadd.f32 %v4244, %v4519
      %v4552 = vadd.f32 %v4245, %v4520
      %v4553 = vadd.f32 %v4246, %v4521
      %v4554 = vadd.f32 %v4247, %v4522
      %v4555 = vadd.f32 %v4248, %v4523
      %v4556 = vadd.f32 %v4249, %v4524
      %v4557 = vadd.f32 %v4250, %v4525
      %v4558 = vadd.f32 %v4251, %v4526
      %v4559 = vadd.f32 %v4252, %v4527
      %v4560 = vadd.f32 %v4253, %v4528
      %v4561 = vadd.f32 %v4254, %v4529
      %v4562 = vadd.f32 %v4255, %v4530
      %v4563 = vadd.f32 %v4256, %v4531
      %v4564 = vadd.f32 %v4257, %v4532
      %v4565 = vadd.f32 %v4258, %v4533
      %v4566 = vadd.f32 %v4259, %v4534
      %v4567 = vadd.f32 %v4260, %v4535
      %v4568 = vadd.f32 %v4261, %v4536
      %v4569 = vadd.f32 %v4262, %v4537
      %v4570 = vadd.f32 %v4263, %v4538
      %v4571 = vadd.f32 %v4264, %v4539
      %v4572 = vadd.f32 %v3611, %v4540
      %v4573 = vadd.f32 %v3612, %v4541
      %v4574 = vadd.f32 %v3613, %v4542
      %v4575 = vadd.f32 %v3614, %v4543
      %v4576 = vadd.f32 %v3615, %v4544
      %v4577 = vadd.f32 %v3616, %v4545
      %v4578 = vadd.f32 %v3617, %v4546
      %v4579 = vadd.f32 %v3618, %v4547
      %v4580 = vadd.f32 %v3619, %v4548
      %v4581 = vadd.f32 %v3620, %v4549
      %v4582 = vadd.f32 %v3621, %v4550
      %v4583 = vadd.f32 %v3622, %v4551
      %v4584 = vadd.f32 %v3623, %v4552
      %v4585 = vadd.f32 %v3624, %v4553
      %v4586 = vadd.f32 %v3625, %v4554
      %v4587 = vadd.f32 %v3626, %v4555
      %v4588 = vadd.f32 %v3627, %v4556
      %v4589 = vadd.f32 %v3628, %v4557
      %v4590 = vadd.f32 %v3629, %v4558
      %v4591 = vadd.f32 %v3630, %v4559
      %v4592 = vadd.f32 %v3631, %v4560
      %v4593 = vadd.f32 %v3632, %v4561
      %v4594 = vadd.f32 %v3633, %v4562
      %v4595 = vadd.f32 %v3634, %v4563
      %v4596 = vadd.f32 %v3635, %v4564
      %v4597 = vadd.f32 %v3636, %v4565
      %v4598 = vadd.f32 %v3637, %v4566
      %v4599 = vadd.f32 %v3638, %v4567
      %v4600 = vadd.f32 %v3639, %v4568
      %v4601 = vadd.f32 %v3640, %v4569
      %v4602 = vadd.f32 %v3641, %v4570
      %v4603 = vadd.f32 %v3642, %v4571
      %v4604 = vld [vmem:[%s12] sm:$0x1]
      %v4605 = vld [vmem:[%s13] sm:$0x1]
      %v4606 = vsel %vm609, %v4572, 0.0
      %4607 = vadd.xlane.f32.xlu0 %v4606
      %v4608 = vpop.xlane.xlu0 %4607
      %v4609 = vsel %vm609, %v4573, 0.0
      %4610 = vadd.xlane.f32.xlu0 %v4609
      %v4611 = vpop.xlane.xlu0 %4610
      %v4612 = vsel %vm609, %v4574, 0.0
      %4613 = vadd.xlane.f32.xlu0 %v4612
      %v4614 = vpop.xlane.xlu0 %4613
      %v4615 = vsel %vm609, %v4575, 0.0
      %4616 = vadd.xlane.f32.xlu0 %v4615
      %v4617 = vpop.xlane.xlu0 %4616
      %v4618 = vsel %vm609, %v4576, 0.0
      %4619 = vadd.xlane.f32.xlu0 %v4618
      %v4620 = vpop.xlane.xlu0 %4619
      %v4621 = vsel %vm609, %v4577, 0.0
      %4622 = vadd.xlane.f32.xlu0 %v4621
      %v4623 = vpop.xlane.xlu0 %4622
      %v4624 = vsel %vm609, %v4578, 0.0
      %4625 = vadd.xlane.f32.xlu0 %v4624
      %v4626 = vpop.xlane.xlu0 %4625
      %v4627 = vsel %vm609, %v4579, 0.0
      %4628 = vadd.xlane.f32.xlu0 %v4627
      %v4629 = vpop.xlane.xlu0 %4628
      %v4630 = vsel %vm609, %v4580, 0.0
      %4631 = vadd.xlane.f32.xlu0 %v4630
      %v4632 = vpop.xlane.xlu0 %4631
      %v4633 = vsel %vm609, %v4581, 0.0
      %4634 = vadd.xlane.f32.xlu0 %v4633
      %v4635 = vpop.xlane.xlu0 %4634
      %v4636 = vsel %vm609, %v4582, 0.0
      %4637 = vadd.xlane.f32.xlu0 %v4636
      %v4638 = vpop.xlane.xlu0 %4637
      %v4639 = vsel %vm609, %v4583, 0.0
      %4640 = vadd.xlane.f32.xlu0 %v4639
      %v4641 = vpop.xlane.xlu0 %4640
      %v4642 = vsel %vm609, %v4584, 0.0
      %4643 = vadd.xlane.f32.xlu0 %v4642
      %v4644 = vpop.xlane.xlu0 %4643
      %v4645 = vsel %vm609, %v4585, 0.0
      %4646 = vadd.xlane.f32.xlu0 %v4645
      %v4647 = vpop.xlane.xlu0 %4646
      %v4648 = vsel %vm609, %v4586, 0.0
      %4649 = vadd.xlane.f32.xlu0 %v4648
      %v4650 = vpop.xlane.xlu0 %4649
      %v4651 = vsel %vm609, %v4587, 0.0
      %4652 = vadd.xlane.f32.xlu0 %v4651
      %v4653 = vpop.xlane.xlu0 %4652
      %v4654 = vsel %vm609, %v4588, 0.0
      %4655 = vadd.xlane.f32.xlu0 %v4654
      %v4656 = vpop.xlane.xlu0 %4655
      %v4657 = vsel %vm609, %v4589, 0.0
      %4658 = vadd.xlane.f32.xlu0 %v4657
      %v4659 = vpop.xlane.xlu0 %4658
      %v4660 = vsel %vm609, %v4590, 0.0
      %4661 = vadd.xlane.f32.xlu0 %v4660
      %v4662 = vpop.xlane.xlu0 %4661
      %v4663 = vsel %vm609, %v4591, 0.0
      %4664 = vadd.xlane.f32.xlu0 %v4663
      %v4665 = vpop.xlane.xlu0 %4664
      %v4666 = vsel %vm609, %v4592, 0.0
      %4667 = vadd.xlane.f32.xlu0 %v4666
      %v4668 = vpop.xlane.xlu0 %4667
      %v4669 = vsel %vm609, %v4593, 0.0
      %4670 = vadd.xlane.f32.xlu0 %v4669
      %v4671 = vpop.xlane.xlu0 %4670
      %v4672 = vsel %vm609, %v4594, 0.0
      %4673 = vadd.xlane.f32.xlu0 %v4672
      %v4674 = vpop.xlane.xlu0 %4673
      %v4675 = vsel %vm609, %v4595, 0.0
      %4676 = vadd.xlane.f32.xlu0 %v4675
      %v4677 = vpop.xlane.xlu0 %4676
      %v4678 = vsel %vm609, %v4596, 0.0
      %4679 = vadd.xlane.f32.xlu0 %v4678
      %v4680 = vpop.xlane.xlu0 %4679
      %v4681 = vsel %vm609, %v4597, 0.0
      %4682 = vadd.xlane.f32.xlu0 %v4681
      %v4683 = vpop.xlane.xlu0 %4682
      %v4684 = vsel %vm609, %v4598, 0.0
      %4685 = vadd.xlane.f32.xlu0 %v4684
      %v4686 = vpop.xlane.xlu0 %4685
      %v4687 = vsel %vm609, %v4599, 0.0
      %4688 = vadd.xlane.f32.xlu0 %v4687
      %v4689 = vpop.xlane.xlu0 %4688
      %v4690 = vsel %vm609, %v4600, 0.0
      %4691 = vadd.xlane.f32.xlu0 %v4690
      %v4692 = vpop.xlane.xlu0 %4691
      %v4693 = vsel %vm609, %v4601, 0.0
      %4694 = vadd.xlane.f32.xlu0 %v4693
      %v4695 = vpop.xlane.xlu0 %4694
      %v4696 = vsel %vm609, %v4602, 0.0
      %4697 = vadd.xlane.f32.xlu0 %v4696
      %v4698 = vpop.xlane.xlu0 %4697
      %v4699 = vsel %vm609, %v4603, 0.0
      %4700 = vadd.xlane.f32.xlu0 %v4699
      %v4701 = vpop.xlane.xlu0 %4700
      %v4702 = vmul.f32 %v4608, %v2252
      %v4703 = vmul.f32 %v4611, %v2252
      %v4704 = vmul.f32 %v4614, %v2252
      %v4705 = vmul.f32 %v4617, %v2252
      %v4706 = vmul.f32 %v4620, %v2252
      %v4707 = vmul.f32 %v4623, %v2252
      %v4708 = vmul.f32 %v4626, %v2252
      %v4709 = vmul.f32 %v4629, %v2252
      %v4710 = vmul.f32 %v4632, %v2252
      %v4711 = vmul.f32 %v4635, %v2252
      %v4712 = vmul.f32 %v4638, %v2252
      %v4713 = vmul.f32 %v4641, %v2252
      %v4714 = vmul.f32 %v4644, %v2252
      %v4715 = vmul.f32 %v4647, %v2252
      %v4716 = vmul.f32 %v4650, %v2252
      %v4717 = vmul.f32 %v4653, %v2252
      %v4718 = vmul.f32 %v4656, %v2252
      %v4719 = vmul.f32 %v4659, %v2252
      %v4720 = vmul.f32 %v4662, %v2252
      %v4721 = vmul.f32 %v4665, %v2252
      %v4722 = vmul.f32 %v4668, %v2252
      %v4723 = vmul.f32 %v4671, %v2252
      %v4724 = vmul.f32 %v4674, %v2252
      %v4725 = vmul.f32 %v4677, %v2252
      %v4726 = vmul.f32 %v4680, %v2252
      %v4727 = vmul.f32 %v4683, %v2252
      %v4728 = vmul.f32 %v4686, %v2252
      %v4729 = vmul.f32 %v4689, %v2252
      %v4730 = vmul.f32 %v4692, %v2252
      %v4731 = vmul.f32 %v4695, %v2252
      %v4732 = vmul.f32 %v4698, %v2252
      %v4733 = vmul.f32 %v4701, %v2252
      %v4734 = vsub.f32 %v4572, %v4702
      %v4735 = vsub.f32 %v4573, %v4703
      %v4736 = vsub.f32 %v4574, %v4704
      %v4737 = vsub.f32 %v4575, %v4705
      %v4738 = vsub.f32 %v4576, %v4706
      %v4739 = vsub.f32 %v4577, %v4707
      %v4740 = vsub.f32 %v4578, %v4708
      %v4741 = vsub.f32 %v4579, %v4709
      %v4742 = vsub.f32 %v4580, %v4710
      %v4743 = vsub.f32 %v4581, %v4711
      %v4744 = vsub.f32 %v4582, %v4712
      %v4745 = vsub.f32 %v4583, %v4713
      %v4746 = vsub.f32 %v4584, %v4714
      %v4747 = vsub.f32 %v4585, %v4715
      %v4748 = vsub.f32 %v4586, %v4716
      %v4749 = vsub.f32 %v4587, %v4717
      %v4750 = vsub.f32 %v4588, %v4718
      %v4751 = vsub.f32 %v4589, %v4719
      %v4752 = vsub.f32 %v4590, %v4720
      %v4753 = vsub.f32 %v4591, %v4721
      %v4754 = vsub.f32 %v4592, %v4722
      %v4755 = vsub.f32 %v4593, %v4723
      %v4756 = vsub.f32 %v4594, %v4724
      %v4757 = vsub.f32 %v4595, %v4725
      %v4758 = vsub.f32 %v4596, %v4726
      %v4759 = vsub.f32 %v4597, %v4727
      %v4760 = vsub.f32 %v4598, %v4728
      %v4761 = vsub.f32 %v4599, %v4729
      %v4762 = vsub.f32 %v4600, %v4730
      %v4763 = vsub.f32 %v4601, %v4731
      %v4764 = vsub.f32 %v4602, %v4732
      %v4765 = vsub.f32 %v4603, %v4733
      %v4766 = vmul.f32 %v4734, %v4734
      %v4767 = vmul.f32 %v4735, %v4735
      %v4768 = vmul.f32 %v4736, %v4736
      %v4769 = vmul.f32 %v4737, %v4737
      %v4770 = vmul.f32 %v4738, %v4738
      %v4771 = vmul.f32 %v4739, %v4739
      %v4772 = vmul.f32 %v4740, %v4740
      %v4773 = vmul.f32 %v4741, %v4741
      %v4774 = vmul.f32 %v4742, %v4742
      %v4775 = vmul.f32 %v4743, %v4743
      %v4776 = vmul.f32 %v4744, %v4744
      %v4777 = vmul.f32 %v4745, %v4745
      %v4778 = vmul.f32 %v4746, %v4746
      %v4779 = vmul.f32 %v4747, %v4747
      %v4780 = vmul.f32 %v4748, %v4748
      %v4781 = vmul.f32 %v4749, %v4749
      %v4782 = vmul.f32 %v4750, %v4750
      %v4783 = vmul.f32 %v4751, %v4751
      %v4784 = vmul.f32 %v4752, %v4752
      %v4785 = vmul.f32 %v4753, %v4753
      %v4786 = vmul.f32 %v4754, %v4754
      %v4787 = vmul.f32 %v4755, %v4755
      %v4788 = vmul.f32 %v4756, %v4756
      %v4789 = vmul.f32 %v4757, %v4757
      %v4790 = vmul.f32 %v4758, %v4758
      %v4791 = vmul.f32 %v4759, %v4759
      %v4792 = vmul.f32 %v4760, %v4760
      %v4793 = vmul.f32 %v4761, %v4761
      %v4794 = vmul.f32 %v4762, %v4762
      %v4795 = vmul.f32 %v4763, %v4763
      %v4796 = vmul.f32 %v4764, %v4764
      %v4797 = vmul.f32 %v4765, %v4765
      %v4798 = vsel %vm609, %v4766, 0.0
      %4799 = vadd.xlane.f32.xlu0 %v4798
      %v4800 = vpop.xlane.xlu0 %4799
      %v4801 = vsel %vm609, %v4767, 0.0
      %4802 = vadd.xlane.f32.xlu0 %v4801
      %v4803 = vpop.xlane.xlu0 %4802
      %v4804 = vsel %vm609, %v4768, 0.0
      %4805 = vadd.xlane.f32.xlu0 %v4804
      %v4806 = vpop.xlane.xlu0 %4805
      %v4807 = vsel %vm609, %v4769, 0.0
      %4808 = vadd.xlane.f32.xlu0 %v4807
      %v4809 = vpop.xlane.xlu0 %4808
      %v4810 = vsel %vm609, %v4770, 0.0
      %4811 = vadd.xlane.f32.xlu0 %v4810
      %v4812 = vpop.xlane.xlu0 %4811
      %v4813 = vsel %vm609, %v4771, 0.0
      %4814 = vadd.xlane.f32.xlu0 %v4813
      %v4815 = vpop.xlane.xlu0 %4814
      %v4816 = vsel %vm609, %v4772, 0.0
      %4817 = vadd.xlane.f32.xlu0 %v4816
      %v4818 = vpop.xlane.xlu0 %4817
      %v4819 = vsel %vm609, %v4773, 0.0
      %4820 = vadd.xlane.f32.xlu0 %v4819
      %v4821 = vpop.xlane.xlu0 %4820
      %v4822 = vsel %vm609, %v4774, 0.0
      %4823 = vadd.xlane.f32.xlu0 %v4822
      %v4824 = vpop.xlane.xlu0 %4823
      %v4825 = vsel %vm609, %v4775, 0.0
      %4826 = vadd.xlane.f32.xlu0 %v4825
      %v4827 = vpop.xlane.xlu0 %4826
      %v4828 = vsel %vm609, %v4776, 0.0
      %4829 = vadd.xlane.f32.xlu0 %v4828
      %v4830 = vpop.xlane.xlu0 %4829
      %v4831 = vsel %vm609, %v4777, 0.0
      %4832 = vadd.xlane.f32.xlu0 %v4831
      %v4833 = vpop.xlane.xlu0 %4832
      %v4834 = vsel %vm609, %v4778, 0.0
      %4835 = vadd.xlane.f32.xlu0 %v4834
      %v4836 = vpop.xlane.xlu0 %4835
      %v4837 = vsel %vm609, %v4779, 0.0
      %4838 = vadd.xlane.f32.xlu0 %v4837
      %v4839 = vpop.xlane.xlu0 %4838
      %v4840 = vsel %vm609, %v4780, 0.0
      %4841 = vadd.xlane.f32.xlu0 %v4840
      %v4842 = vpop.xlane.xlu0 %4841
      %v4843 = vsel %vm609, %v4781, 0.0
      %4844 = vadd.xlane.f32.xlu0 %v4843
      %v4845 = vpop.xlane.xlu0 %4844
      %v4846 = vsel %vm609, %v4782, 0.0
      %4847 = vadd.xlane.f32.xlu0 %v4846
      %v4848 = vpop.xlane.xlu0 %4847
      %v4849 = vsel %vm609, %v4783, 0.0
      %4850 = vadd.xlane.f32.xlu0 %v4849
      %v4851 = vpop.xlane.xlu0 %4850
      %v4852 = vsel %vm609, %v4784, 0.0
      %4853 = vadd.xlane.f32.xlu0 %v4852
      %v4854 = vpop.xlane.xlu0 %4853
      %v4855 = vsel %vm609, %v4785, 0.0
      %4856 = vadd.xlane.f32.xlu0 %v4855
      %v4857 = vpop.xlane.xlu0 %4856
      %v4858 = vsel %vm609, %v4786, 0.0
      %4859 = vadd.xlane.f32.xlu0 %v4858
      %v4860 = vpop.xlane.xlu0 %4859
      %v4861 = vsel %vm609, %v4787, 0.0
      %4862 = vadd.xlane.f32.xlu0 %v4861
      %v4863 = vpop.xlane.xlu0 %4862
      %v4864 = vsel %vm609, %v4788, 0.0
      %4865 = vadd.xlane.f32.xlu0 %v4864
      %v4866 = vpop.xlane.xlu0 %4865
      %v4867 = vsel %vm609, %v4789, 0.0
      %4868 = vadd.xlane.f32.xlu0 %v4867
      %v4869 = vpop.xlane.xlu0 %4868
      %v4870 = vsel %vm609, %v4790, 0.0
      %4871 = vadd.xlane.f32.xlu0 %v4870
      %v4872 = vpop.xlane.xlu0 %4871
      %v4873 = vsel %vm609, %v4791, 0.0
      %4874 = vadd.xlane.f32.xlu0 %v4873
      %v4875 = vpop.xlane.xlu0 %4874
      %v4876 = vsel %vm609, %v4792, 0.0
      %4877 = vadd.xlane.f32.xlu0 %v4876
      %v4878 = vpop.xlane.xlu0 %4877
      %v4879 = vsel %vm609, %v4793, 0.0
      %4880 = vadd.xlane.f32.xlu0 %v4879
      %v4881 = vpop.xlane.xlu0 %4880
      %v4882 = vsel %vm609, %v4794, 0.0
      %4883 = vadd.xlane.f32.xlu0 %v4882
      %v4884 = vpop.xlane.xlu0 %4883
      %v4885 = vsel %vm609, %v4795, 0.0
      %4886 = vadd.xlane.f32.xlu0 %v4885
      %v4887 = vpop.xlane.xlu0 %4886
      %v4888 = vsel %vm609, %v4796, 0.0
      %4889 = vadd.xlane.f32.xlu0 %v4888
      %v4890 = vpop.xlane.xlu0 %4889
      %v4891 = vsel %vm609, %v4797, 0.0
      %4892 = vadd.xlane.f32.xlu0 %v4891
      %v4893 = vpop.xlane.xlu0 %4892
      %v4894 = vmul.f32 %v4800, %v2252
      %v4895 = vmul.f32 %v4803, %v2252
      %v4896 = vmul.f32 %v4806, %v2252
      %v4897 = vmul.f32 %v4809, %v2252
      %v4898 = vmul.f32 %v4812, %v2252
      %v4899 = vmul.f32 %v4815, %v2252
      %v4900 = vmul.f32 %v4818, %v2252
      %v4901 = vmul.f32 %v4821, %v2252
      %v4902 = vmul.f32 %v4824, %v2252
      %v4903 = vmul.f32 %v4827, %v2252
      %v4904 = vmul.f32 %v4830, %v2252
      %v4905 = vmul.f32 %v4833, %v2252
      %v4906 = vmul.f32 %v4836, %v2252
      %v4907 = vmul.f32 %v4839, %v2252
      %v4908 = vmul.f32 %v4842, %v2252
      %v4909 = vmul.f32 %v4845, %v2252
      %v4910 = vmul.f32 %v4848, %v2252
      %v4911 = vmul.f32 %v4851, %v2252
      %v4912 = vmul.f32 %v4854, %v2252
      %v4913 = vmul.f32 %v4857, %v2252
      %v4914 = vmul.f32 %v4860, %v2252
      %v4915 = vmul.f32 %v4863, %v2252
      %v4916 = vmul.f32 %v4866, %v2252
      %v4917 = vmul.f32 %v4869, %v2252
      %v4918 = vmul.f32 %v4872, %v2252
      %v4919 = vmul.f32 %v4875, %v2252
      %v4920 = vmul.f32 %v4878, %v2252
      %v4921 = vmul.f32 %v4881, %v2252
      %v4922 = vmul.f32 %v4884, %v2252
      %v4923 = vmul.f32 %v4887, %v2252
      %v4924 = vmul.f32 %v4890, %v2252
      %v4925 = vmul.f32 %v4893, %v2252
      %v4926 = vadd.f32 %v4894, 1e-05
      %v4927 = vadd.f32 %v4895, 1e-05
      %v4928 = vadd.f32 %v4896, 1e-05
      %v4929 = vadd.f32 %v4897, 1e-05
      %v4930 = vadd.f32 %v4898, 1e-05
      %v4931 = vadd.f32 %v4899, 1e-05
      %v4932 = vadd.f32 %v4900, 1e-05
      %v4933 = vadd.f32 %v4901, 1e-05
      %v4934 = vadd.f32 %v4902, 1e-05
      %v4935 = vadd.f32 %v4903, 1e-05
      %v4936 = vadd.f32 %v4904, 1e-05
      %v4937 = vadd.f32 %v4905, 1e-05
      %v4938 = vadd.f32 %v4906, 1e-05
      %v4939 = vadd.f32 %v4907, 1e-05
      %v4940 = vadd.f32 %v4908, 1e-05
      %v4941 = vadd.f32 %v4909, 1e-05
      %v4942 = vadd.f32 %v4910, 1e-05
      %v4943 = vadd.f32 %v4911, 1e-05
      %v4944 = vadd.f32 %v4912, 1e-05
      %v4945 = vadd.f32 %v4913, 1e-05
      %v4946 = vadd.f32 %v4914, 1e-05
      %v4947 = vadd.f32 %v4915, 1e-05
      %v4948 = vadd.f32 %v4916, 1e-05
      %v4949 = vadd.f32 %v4917, 1e-05
      %v4950 = vadd.f32 %v4918, 1e-05
      %v4951 = vadd.f32 %v4919, 1e-05
      %v4952 = vadd.f32 %v4920, 1e-05
      %v4953 = vadd.f32 %v4921, 1e-05
      %v4954 = vadd.f32 %v4922, 1e-05
      %v4955 = vadd.f32 %v4923, 1e-05
      %v4956 = vadd.f32 %v4924, 1e-05
      %v4957 = vadd.f32 %v4925, 1e-05
      %v4958 = vrsqrt.pop %v4926
      %v4959 = vrsqrt.pop %v4927
      %v4960 = vrsqrt.pop %v4928
      %v4961 = vrsqrt.pop %v4929
      %v4962 = vrsqrt.pop %v4930
      %v4963 = vrsqrt.pop %v4931
      %v4964 = vrsqrt.pop %v4932
      %v4965 = vrsqrt.pop %v4933
      %v4966 = vrsqrt.pop %v4934
      %v4967 = vrsqrt.pop %v4935
      %v4968 = vrsqrt.pop %v4936
      %v4969 = vrsqrt.pop %v4937
      %v4970 = vrsqrt.pop %v4938
      %v4971 = vrsqrt.pop %v4939
      %v4972 = vrsqrt.pop %v4940
      %v4973 = vrsqrt.pop %v4941
      %v4974 = vrsqrt.pop %v4942
      %v4975 = vrsqrt.pop %v4943
      %v4976 = vrsqrt.pop %v4944
      %v4977 = vrsqrt.pop %v4945
      %v4978 = vrsqrt.pop %v4946
      %v4979 = vrsqrt.pop %v4947
      %v4980 = vrsqrt.pop %v4948
      %v4981 = vrsqrt.pop %v4949
      %v4982 = vrsqrt.pop %v4950
      %v4983 = vrsqrt.pop %v4951
      %v4984 = vrsqrt.pop %v4952
      %v4985 = vrsqrt.pop %v4953
      %v4986 = vrsqrt.pop %v4954
      %v4987 = vrsqrt.pop %v4955
      %v4988 = vrsqrt.pop %v4956
      %v4989 = vrsqrt.pop %v4957
      %v4990 = vmul.f32 %v4734, %v4958
      %v4991 = vmul.f32 %v4735, %v4959
      %v4992 = vmul.f32 %v4736, %v4960
      %v4993 = vmul.f32 %v4737, %v4961
      %v4994 = vmul.f32 %v4738, %v4962
      %v4995 = vmul.f32 %v4739, %v4963
      %v4996 = vmul.f32 %v4740, %v4964
      %v4997 = vmul.f32 %v4741, %v4965
      %v4998 = vmul.f32 %v4742, %v4966
      %v4999 = vmul.f32 %v4743, %v4967
      %v5000 = vmul.f32 %v4744, %v4968
      %v5001 = vmul.f32 %v4745, %v4969
      %v5002 = vmul.f32 %v4746, %v4970
      %v5003 = vmul.f32 %v4747, %v4971
      %v5004 = vmul.f32 %v4748, %v4972
      %v5005 = vmul.f32 %v4749, %v4973
      %v5006 = vmul.f32 %v4750, %v4974
      %v5007 = vmul.f32 %v4751, %v4975
      %v5008 = vmul.f32 %v4752, %v4976
      %v5009 = vmul.f32 %v4753, %v4977
      %v5010 = vmul.f32 %v4754, %v4978
      %v5011 = vmul.f32 %v4755, %v4979
      %v5012 = vmul.f32 %v4756, %v4980
      %v5013 = vmul.f32 %v4757, %v4981
      %v5014 = vmul.f32 %v4758, %v4982
      %v5015 = vmul.f32 %v4759, %v4983
      %v5016 = vmul.f32 %v4760, %v4984
      %v5017 = vmul.f32 %v4761, %v4985
      %v5018 = vmul.f32 %v4762, %v4986
      %v5019 = vmul.f32 %v4763, %v4987
      %v5020 = vmul.f32 %v4764, %v4988
      %v5021 = vmul.f32 %v4765, %v4989
      %v5023 = vlaneseq
      %v5024 = vshrl.u32 %v5023, 7
      %v5025 = vsub.s32 0, %v5024
      %v5026 = vrot.slane %v4604, %v5025
      %v5028 = vmul.f32 %v4990, %v5026
      %v5029 = vmul.f32 %v4991, %v5026
      %v5030 = vmul.f32 %v4992, %v5026
      %v5031 = vmul.f32 %v4993, %v5026
      %v5032 = vmul.f32 %v4994, %v5026
      %v5033 = vmul.f32 %v4995, %v5026
      %v5034 = vmul.f32 %v4996, %v5026
      %v5035 = vmul.f32 %v4997, %v5026
      %v5036 = vmul.f32 %v4998, %v5026
      %v5037 = vmul.f32 %v4999, %v5026
      %v5038 = vmul.f32 %v5000, %v5026
      %v5039 = vmul.f32 %v5001, %v5026
      %v5040 = vmul.f32 %v5002, %v5026
      %v5041 = vmul.f32 %v5003, %v5026
      %v5042 = vmul.f32 %v5004, %v5026
      %v5043 = vmul.f32 %v5005, %v5026
      %v5044 = vmul.f32 %v5006, %v5026
      %v5045 = vmul.f32 %v5007, %v5026
      %v5046 = vmul.f32 %v5008, %v5026
      %v5047 = vmul.f32 %v5009, %v5026
      %v5048 = vmul.f32 %v5010, %v5026
      %v5049 = vmul.f32 %v5011, %v5026
      %v5050 = vmul.f32 %v5012, %v5026
      %v5051 = vmul.f32 %v5013, %v5026
      %v5052 = vmul.f32 %v5014, %v5026
      %v5053 = vmul.f32 %v5015, %v5026
      %v5054 = vmul.f32 %v5016, %v5026
      %v5055 = vmul.f32 %v5017, %v5026
      %v5056 = vmul.f32 %v5018, %v5026
      %v5057 = vmul.f32 %v5019, %v5026
      %v5058 = vmul.f32 %v5020, %v5026
      %v5059 = vmul.f32 %v5021, %v5026
      %v5061 = vlaneseq
      %v5062 = vshrl.u32 %v5061, 7
      %v5063 = vsub.s32 0, %v5062
      %v5064 = vrot.slane %v4605, %v5063
      %v5066 = vadd.f32 %v5028, %v5064
      %v5067 = vadd.f32 %v5029, %v5064
      %v5068 = vadd.f32 %v5030, %v5064
      %v5069 = vadd.f32 %v5031, %v5064
      %v5070 = vadd.f32 %v5032, %v5064
      %v5071 = vadd.f32 %v5033, %v5064
      %v5072 = vadd.f32 %v5034, %v5064
      %v5073 = vadd.f32 %v5035, %v5064
      %v5074 = vadd.f32 %v5036, %v5064
      %v5075 = vadd.f32 %v5037, %v5064
      %v5076 = vadd.f32 %v5038, %v5064
      %v5077 = vadd.f32 %v5039, %v5064
      %v5078 = vadd.f32 %v5040, %v5064
      %v5079 = vadd.f32 %v5041, %v5064
      %v5080 = vadd.f32 %v5042, %v5064
      %v5081 = vadd.f32 %v5043, %v5064
      %v5082 = vadd.f32 %v5044, %v5064
      %v5083 = vadd.f32 %v5045, %v5064
      %v5084 = vadd.f32 %v5046, %v5064
      %v5085 = vadd.f32 %v5047, %v5064
      %v5086 = vadd.f32 %v5048, %v5064
      %v5087 = vadd.f32 %v5049, %v5064
      %v5088 = vadd.f32 %v5050, %v5064
      %v5089 = vadd.f32 %v5051, %v5064
      %v5090 = vadd.f32 %v5052, %v5064
      %v5091 = vadd.f32 %v5053, %v5064
      %v5092 = vadd.f32 %v5054, %v5064
      %v5093 = vadd.f32 %v5055, %v5064
      %v5094 = vadd.f32 %v5056, %v5064
      %v5095 = vadd.f32 %v5057, %v5064
      %v5096 = vadd.f32 %v5058, %v5064
      %v5097 = vadd.f32 %v5059, %v5064
      %v5098 = vpack.c.bf16 %v5067, %v5066
      %v5099 = vpack.c.bf16 %v5069, %v5068
      %v5100 = vpack.c.bf16 %v5071, %v5070
      %v5101 = vpack.c.bf16 %v5073, %v5072
      %v5102 = vpack.c.bf16 %v5075, %v5074
      %v5103 = vpack.c.bf16 %v5077, %v5076
      %v5104 = vpack.c.bf16 %v5079, %v5078
      %v5105 = vpack.c.bf16 %v5081, %v5080
      %v5106 = vpack.c.bf16 %v5083, %v5082
      %v5107 = vpack.c.bf16 %v5085, %v5084
      %v5108 = vpack.c.bf16 %v5087, %v5086
      %v5109 = vpack.c.bf16 %v5089, %v5088
      %v5110 = vpack.c.bf16 %v5091, %v5090
      %v5111 = vpack.c.bf16 %v5093, %v5092
      %v5112 = vpack.c.bf16 %v5095, %v5094
      %v5113 = vpack.c.bf16 %v5097, %v5096
      %v5114 = vld [vmem:[%s14] sm:$0xf]
      %v5115 = vld [vmem:[%s14 + $0x4] sm:$0xf]
      %v5116 = vld [vmem:[%s14 + $0x8] sm:$0xf]
      %v5117 = vld [vmem:[%s14 + $0xc] sm:$0xf]
      %v5118 = vld [vmem:[%s15] sm:$0x1]
      %v5120 = vlaneseq
      %v5121 = vshrl.u32 %v5120, 7
      %v5122 = vsub.s32 0, %v5121
      %v5123 = vrot.slane %v5118, %v5122
      %v5129 = vunpack.c.l.b16 %v5114
      %v5130 = vunpack.c.l.b16 %v5115
      %v5131 = vunpack.c.l.b16 %v5116
      %v5132 = vunpack.c.l.b16 %v5117
      %v5133 = vpack.c.b16 %v5130, %v5129
      %v5134 = vpack.c.b16 %v5132, %v5131
      %v5138 = vsel %vm609, %v5098, 0
      %v5141 = vsel %vm609, %v5099, 0
      %v5144 = vsel %vm609, %v5100, 0
      %v5147 = vsel %vm609, %v5101, 0
      %v5150 = vsel %vm609, %v5102, 0
      %v5153 = vsel %vm609, %v5103, 0
      %v5156 = vsel %vm609, %v5104, 0
      %v5159 = vsel %vm609, %v5105, 0
      %v5162 = vsel %vm609, %v5106, 0
      %v5165 = vsel %vm609, %v5107, 0
      %v5168 = vsel %vm609, %v5108, 0
      %v5171 = vsel %vm609, %v5109, 0
      %v5174 = vsel %vm609, %v5110, 0
      %v5177 = vsel %vm609, %v5111, 0
      %v5180 = vsel %vm609, %v5112, 0
      %v5183 = vsel %vm609, %v5113, 0
      %5185 = vmatprep.subr.bf16.mxu0 0
      %5186 = vmatpush1.bf16.msra.mxu0 0
      %5187 = vmatprep.subr.bf16.mxu0 0
      %5188 = vmatpush1.bf16.msra.mxu0 0
      %5189 = vmatprep.subr.bf16.mxu0 0
      %5190 = vmatpush1.bf16.msra.mxu0 0
      %5191 = vmatprep.subr.bf16.mxu0 0
      %5192 = vmatpush1.bf16.msra.mxu0 0
      %5193 = vmatprep.subr.bf16.mxu0 0
      %5194 = vmatpush1.bf16.msra.mxu0 0
      %5195 = vmatprep.subr.bf16.mxu0 0
      %5196 = vmatpush1.bf16.msra.mxu0 0
      %5197 = vmatprep.subr.bf16.mxu0 0
      %5198 = vmatpush1.bf16.msra.mxu0 %v5134
      %5199 = vmatprep.subr.bf16.mxu0 0
      %5200 = vmatpush1.bf16.msra.mxu0 %v5133
      %5201 = vmatprep.subr.bf16.mxu0 0
      %5202 = vmatpush2.bf16.msra.mxu0 0
      %5203 = vmatprep.subr.bf16.mxu0 0
      %5204 = vmatpush2.bf16.msra.mxu0 0
      %5205 = vmatprep.subr.bf16.mxu0 0
      %5206 = vmatpush2.bf16.msra.mxu0 0
      %5207 = vmatprep.subr.bf16.mxu0 0
      %5208 = vmatpush2.bf16.msra.mxu0 0
      %5209 = vmatprep.subr.bf16.mxu0 0
      %5210 = vmatpush2.bf16.msra.mxu0 0
      %5211 = vmatprep.subr.bf16.mxu0 0
      %5212 = vmatpush2.bf16.msra.mxu0 0
      %5213 = vmatprep.subr.bf16.mxu0 0
      %5214 = vmatpush2.bf16.msra.mxu0 0
      %5215 = vmatprep.subr.bf16.mxu0 0
      %5216 = vmatpush2.bf16.msra.mxu0 0
      %5217 = vmatprep.mubr.bf16.mxu0 0
      %5218 = vmatmul.mubr.bf16.gmra.mxu0 %v5138
      %v5219 = vpop.f32.mrf.mxu0
      %v5220 = vadd.f32 %v5123, %v5219
      %v5221 = vpop.f32.mrf.mxu0
      %v5222 = vpop.f32.mrf.mxu0
      %v5223 = vadd.f32 %v5123, %v5222
      %v5224 = vpop.f32.mrf.mxu0
      %5225 = vmatprep.mubr.bf16.mxu0 0
      %5226 = vmatmul.mubr.bf16.gmra.mxu0 %v5141
      %v5227 = vpop.f32.mrf.mxu0
      %v5228 = vadd.f32 %v5123, %v5227
      %v5229 = vpop.f32.mrf.mxu0
      %v5230 = vpop.f32.mrf.mxu0
      %v5231 = vadd.f32 %v5123, %v5230
      %v5232 = vpop.f32.mrf.mxu0
      %5233 = vmatprep.mubr.bf16.mxu0 0
      %5234 = vmatmul.mubr.bf16.gmra.mxu0 %v5144
      %v5235 = vpop.f32.mrf.mxu0
      %v5236 = vadd.f32 %v5123, %v5235
      %v5237 = vpop.f32.mrf.mxu0
      %v5238 = vpop.f32.mrf.mxu0
      %v5239 = vadd.f32 %v5123, %v5238
      %v5240 = vpop.f32.mrf.mxu0
      %5241 = vmatprep.mubr.bf16.mxu0 0
      %5242 = vmatmul.mubr.bf16.gmra.mxu0 %v5147
      %v5243 = vpop.f32.mrf.mxu0
      %v5244 = vadd.f32 %v5123, %v5243
      %v5245 = vpop.f32.mrf.mxu0
      %v5246 = vpop.f32.mrf.mxu0
      %v5247 = vadd.f32 %v5123, %v5246
      %v5248 = vpop.f32.mrf.mxu0
      %5249 = vmatprep.mubr.bf16.mxu0 0
      %5250 = vmatmul.mubr.bf16.gmra.mxu0 %v5150
      %v5251 = vpop.f32.mrf.mxu0
      %v5252 = vadd.f32 %v5123, %v5251
      %v5253 = vpop.f32.mrf.mxu0
      %v5254 = vpop.f32.mrf.mxu0
      %v5255 = vadd.f32 %v5123, %v5254
      %v5256 = vpop.f32.mrf.mxu0
      %5257 = vmatprep.mubr.bf16.mxu0 0
      %5258 = vmatmul.mubr.bf16.gmra.mxu0 %v5153
      %v5259 = vpop.f32.mrf.mxu0
      %v5260 = vadd.f32 %v5123, %v5259
      %v5261 = vpop.f32.mrf.mxu0
      %v5262 = vpop.f32.mrf.mxu0
      %v5263 = vadd.f32 %v5123, %v5262
      %v5264 = vpop.f32.mrf.mxu0
      %5265 = vmatprep.mubr.bf16.mxu0 0
      %5266 = vmatmul.mubr.bf16.gmra.mxu0 %v5156
      %v5267 = vpop.f32.mrf.mxu0
      %v5268 = vadd.f32 %v5123, %v5267
      %v5269 = vpop.f32.mrf.mxu0
      %v5270 = vpop.f32.mrf.mxu0
      %v5271 = vadd.f32 %v5123, %v5270
      %v5272 = vpop.f32.mrf.mxu0
      %5273 = vmatprep.mubr.bf16.mxu0 0
      %5274 = vmatmul.mubr.bf16.gmra.mxu0 %v5159
      %v5275 = vpop.f32.mrf.mxu0
      %v5276 = vadd.f32 %v5123, %v5275
      %v5277 = vpop.f32.mrf.mxu0
      %v5278 = vpop.f32.mrf.mxu0
      %v5279 = vadd.f32 %v5123, %v5278
      %v5280 = vpop.f32.mrf.mxu0
      %5281 = vmatprep.mubr.bf16.mxu0 0
      %5282 = vmatmul.mubr.bf16.gmra.mxu0 %v5162
      %v5283 = vpop.f32.mrf.mxu0
      %v5284 = vadd.f32 %v5123, %v5283
      %v5285 = vpop.f32.mrf.mxu0
      %v5286 = vpop.f32.mrf.mxu0
      %v5287 = vadd.f32 %v5123, %v5286
      %v5288 = vpop.f32.mrf.mxu0
      %5289 = vmatprep.mubr.bf16.mxu0 0
      %5290 = vmatmul.mubr.bf16.gmra.mxu0 %v5165
      %v5291 = vpop.f32.mrf.mxu0
      %v5292 = vadd.f32 %v5123, %v5291
      %v5293 = vpop.f32.mrf.mxu0
      %v5294 = vpop.f32.mrf.mxu0
      %v5295 = vadd.f32 %v5123, %v5294
      %v5296 = vpop.f32.mrf.mxu0
      %5297 = vmatprep.mubr.bf16.mxu0 0
      %5298 = vmatmul.mubr.bf16.gmra.mxu0 %v5168
      %v5299 = vpop.f32.mrf.mxu0
      %v5300 = vadd.f32 %v5123, %v5299
      %v5301 = vpop.f32.mrf.mxu0
      %v5302 = vpop.f32.mrf.mxu0
      %v5303 = vadd.f32 %v5123, %v5302
      %v5304 = vpop.f32.mrf.mxu0
      %5305 = vmatprep.mubr.bf16.mxu0 0
      %5306 = vmatmul.mubr.bf16.gmra.mxu0 %v5171
      %v5307 = vpop.f32.mrf.mxu0
      %v5308 = vadd.f32 %v5123, %v5307
      %v5309 = vpop.f32.mrf.mxu0
      %v5310 = vpop.f32.mrf.mxu0
      %v5311 = vadd.f32 %v5123, %v5310
      %v5312 = vpop.f32.mrf.mxu0
      %5313 = vmatprep.mubr.bf16.mxu0 0
      %5314 = vmatmul.mubr.bf16.gmra.mxu0 %v5174
      %v5315 = vpop.f32.mrf.mxu0
      %v5316 = vadd.f32 %v5123, %v5315
      %v5317 = vpop.f32.mrf.mxu0
      %v5318 = vpop.f32.mrf.mxu0
      %v5319 = vadd.f32 %v5123, %v5318
      %v5320 = vpop.f32.mrf.mxu0
      %5321 = vmatprep.mubr.bf16.mxu0 0
      %5322 = vmatmul.mubr.bf16.gmra.mxu0 %v5177
      %v5323 = vpop.f32.mrf.mxu0
      %v5324 = vadd.f32 %v5123, %v5323
      %v5325 = vpop.f32.mrf.mxu0
      %v5326 = vpop.f32.mrf.mxu0
      %v5327 = vadd.f32 %v5123, %v5326
      %v5328 = vpop.f32.mrf.mxu0
      %5329 = vmatprep.mubr.bf16.mxu0 0
      %5330 = vmatmul.mubr.bf16.gmra.mxu0 %v5180
      %v5331 = vpop.f32.mrf.mxu0
      %v5332 = vadd.f32 %v5123, %v5331
      %v5333 = vpop.f32.mrf.mxu0
      %v5334 = vpop.f32.mrf.mxu0
      %v5335 = vadd.f32 %v5123, %v5334
      %v5336 = vpop.f32.mrf.mxu0
      %5337 = vmatprep.mubr.bf16.mxu0 0
      %5338 = vmatmul.mubr.bf16.gmra.mxu0 %v5183
      %v5339 = vpop.f32.mrf.mxu0
      %v5340 = vadd.f32 %v5123, %v5339
      %v5341 = vpop.f32.mrf.mxu0
      %v5342 = vpop.f32.mrf.mxu0
      %v5343 = vadd.f32 %v5123, %v5342
      %v5344 = vpop.f32.mrf.mxu0
      %5345 = vdwg.mxu0
      %v5346 = vmul.f32 %v5220, %v5220
      %v5347 = vmul.f32 %v5223, %v5223
      %v5348 = vmul.f32 %v5228, %v5228
      %v5349 = vmul.f32 %v5231, %v5231
      %v5350 = vmul.f32 %v5236, %v5236
      %v5351 = vmul.f32 %v5239, %v5239
      %v5352 = vmul.f32 %v5244, %v5244
      %v5353 = vmul.f32 %v5247, %v5247
      %v5354 = vmul.f32 %v5252, %v5252
      %v5355 = vmul.f32 %v5255, %v5255
      %v5356 = vmul.f32 %v5260, %v5260
      %v5357 = vmul.f32 %v5263, %v5263
      %v5358 = vmul.f32 %v5268, %v5268
      %v5359 = vmul.f32 %v5271, %v5271
      %v5360 = vmul.f32 %v5276, %v5276
      %v5361 = vmul.f32 %v5279, %v5279
      %v5362 = vmul.f32 %v5284, %v5284
      %v5363 = vmul.f32 %v5287, %v5287
      %v5364 = vmul.f32 %v5292, %v5292
      %v5365 = vmul.f32 %v5295, %v5295
      %v5366 = vmul.f32 %v5300, %v5300
      %v5367 = vmul.f32 %v5303, %v5303
      %v5368 = vmul.f32 %v5308, %v5308
      %v5369 = vmul.f32 %v5311, %v5311
      %v5370 = vmul.f32 %v5316, %v5316
      %v5371 = vmul.f32 %v5319, %v5319
      %v5372 = vmul.f32 %v5324, %v5324
      %v5373 = vmul.f32 %v5327, %v5327
      %v5374 = vmul.f32 %v5332, %v5332
      %v5375 = vmul.f32 %v5335, %v5335
      %v5376 = vmul.f32 %v5340, %v5340
      %v5377 = vmul.f32 %v5343, %v5343
      %v5378 = vmul.f32 %v5220, %v5346
      %v5379 = vmul.f32 %v5223, %v5347
      %v5380 = vmul.f32 %v5228, %v5348
      %v5381 = vmul.f32 %v5231, %v5349
      %v5382 = vmul.f32 %v5236, %v5350
      %v5383 = vmul.f32 %v5239, %v5351
      %v5384 = vmul.f32 %v5244, %v5352
      %v5385 = vmul.f32 %v5247, %v5353
      %v5386 = vmul.f32 %v5252, %v5354
      %v5387 = vmul.f32 %v5255, %v5355
      %v5388 = vmul.f32 %v5260, %v5356
      %v5389 = vmul.f32 %v5263, %v5357
      %v5390 = vmul.f32 %v5268, %v5358
      %v5391 = vmul.f32 %v5271, %v5359
      %v5392 = vmul.f32 %v5276, %v5360
      %v5393 = vmul.f32 %v5279, %v5361
      %v5394 = vmul.f32 %v5284, %v5362
      %v5395 = vmul.f32 %v5287, %v5363
      %v5396 = vmul.f32 %v5292, %v5364
      %v5397 = vmul.f32 %v5295, %v5365
      %v5398 = vmul.f32 %v5300, %v5366
      %v5399 = vmul.f32 %v5303, %v5367
      %v5400 = vmul.f32 %v5308, %v5368
      %v5401 = vmul.f32 %v5311, %v5369
      %v5402 = vmul.f32 %v5316, %v5370
      %v5403 = vmul.f32 %v5319, %v5371
      %v5404 = vmul.f32 %v5324, %v5372
      %v5405 = vmul.f32 %v5327, %v5373
      %v5406 = vmul.f32 %v5332, %v5374
      %v5407 = vmul.f32 %v5335, %v5375
      %v5408 = vmul.f32 %v5340, %v5376
      %v5409 = vmul.f32 %v5343, %v5377
      %v5410 = vmul.f32 %v5378, 0.044715
      %v5411 = vmul.f32 %v5379, 0.044715
      %v5412 = vmul.f32 %v5380, 0.044715
      %v5413 = vmul.f32 %v5381, 0.044715
      %v5414 = vmul.f32 %v5382, 0.044715
      %v5415 = vmul.f32 %v5383, 0.044715
      %v5416 = vmul.f32 %v5384, 0.044715
      %v5417 = vmul.f32 %v5385, 0.044715
      %v5418 = vmul.f32 %v5386, 0.044715
      %v5419 = vmul.f32 %v5387, 0.044715
      %v5420 = vmul.f32 %v5388, 0.044715
      %v5421 = vmul.f32 %v5389, 0.044715
      %v5422 = vmul.f32 %v5390, 0.044715
      %v5423 = vmul.f32 %v5391, 0.044715
      %v5424 = vmul.f32 %v5392, 0.044715
      %v5425 = vmul.f32 %v5393, 0.044715
      %v5426 = vmul.f32 %v5394, 0.044715
      %v5427 = vmul.f32 %v5395, 0.044715
      %v5428 = vmul.f32 %v5396, 0.044715
      %v5429 = vmul.f32 %v5397, 0.044715
      %v5430 = vmul.f32 %v5398, 0.044715
      %v5431 = vmul.f32 %v5399, 0.044715
      %v5432 = vmul.f32 %v5400, 0.044715
      %v5433 = vmul.f32 %v5401, 0.044715
      %v5434 = vmul.f32 %v5402, 0.044715
      %v5435 = vmul.f32 %v5403, 0.044715
      %v5436 = vmul.f32 %v5404, 0.044715
      %v5437 = vmul.f32 %v5405, 0.044715
      %v5438 = vmul.f32 %v5406, 0.044715
      %v5439 = vmul.f32 %v5407, 0.044715
      %v5440 = vmul.f32 %v5408, 0.044715
      %v5441 = vmul.f32 %v5409, 0.044715
      %v5442 = vadd.f32 %v5220, %v5410
      %v5443 = vadd.f32 %v5223, %v5411
      %v5444 = vadd.f32 %v5228, %v5412
      %v5445 = vadd.f32 %v5231, %v5413
      %v5446 = vadd.f32 %v5236, %v5414
      %v5447 = vadd.f32 %v5239, %v5415
      %v5448 = vadd.f32 %v5244, %v5416
      %v5449 = vadd.f32 %v5247, %v5417
      %v5450 = vadd.f32 %v5252, %v5418
      %v5451 = vadd.f32 %v5255, %v5419
      %v5452 = vadd.f32 %v5260, %v5420
      %v5453 = vadd.f32 %v5263, %v5421
      %v5454 = vadd.f32 %v5268, %v5422
      %v5455 = vadd.f32 %v5271, %v5423
      %v5456 = vadd.f32 %v5276, %v5424
      %v5457 = vadd.f32 %v5279, %v5425
      %v5458 = vadd.f32 %v5284, %v5426
      %v5459 = vadd.f32 %v5287, %v5427
      %v5460 = vadd.f32 %v5292, %v5428
      %v5461 = vadd.f32 %v5295, %v5429
      %v5462 = vadd.f32 %v5300, %v5430
      %v5463 = vadd.f32 %v5303, %v5431
      %v5464 = vadd.f32 %v5308, %v5432
      %v5465 = vadd.f32 %v5311, %v5433
      %v5466 = vadd.f32 %v5316, %v5434
      %v5467 = vadd.f32 %v5319, %v5435
      %v5468 = vadd.f32 %v5324, %v5436
      %v5469 = vadd.f32 %v5327, %v5437
      %v5470 = vadd.f32 %v5332, %v5438
      %v5471 = vadd.f32 %v5335, %v5439
      %v5472 = vadd.f32 %v5340, %v5440
      %v5473 = vadd.f32 %v5343, %v5441
      %v5474 = vmul.f32 %v5442, 0.7978846
      %v5475 = vmul.f32 %v5443, 0.7978846
      %v5476 = vmul.f32 %v5444, 0.7978846
      %v5477 = vmul.f32 %v5445, 0.7978846
      %v5478 = vmul.f32 %v5446, 0.7978846
      %v5479 = vmul.f32 %v5447, 0.7978846
      %v5480 = vmul.f32 %v5448, 0.7978846
      %v5481 = vmul.f32 %v5449, 0.7978846
      %v5482 = vmul.f32 %v5450, 0.7978846
      %v5483 = vmul.f32 %v5451, 0.7978846
      %v5484 = vmul.f32 %v5452, 0.7978846
      %v5485 = vmul.f32 %v5453, 0.7978846
      %v5486 = vmul.f32 %v5454, 0.7978846
      %v5487 = vmul.f32 %v5455, 0.7978846
      %v5488 = vmul.f32 %v5456, 0.7978846
      %v5489 = vmul.f32 %v5457, 0.7978846
      %v5490 = vmul.f32 %v5458, 0.7978846
      %v5491 = vmul.f32 %v5459, 0.7978846
      %v5492 = vmul.f32 %v5460, 0.7978846
      %v5493 = vmul.f32 %v5461, 0.7978846
      %v5494 = vmul.f32 %v5462, 0.7978846
      %v5495 = vmul.f32 %v5463, 0.7978846
      %v5496 = vmul.f32 %v5464, 0.7978846
      %v5497 = vmul.f32 %v5465, 0.7978846
      %v5498 = vmul.f32 %v5466, 0.7978846
      %v5499 = vmul.f32 %v5467, 0.7978846
      %v5500 = vmul.f32 %v5468, 0.7978846
      %v5501 = vmul.f32 %v5469, 0.7978846
      %v5502 = vmul.f32 %v5470, 0.7978846
      %v5503 = vmul.f32 %v5471, 0.7978846
      %v5504 = vmul.f32 %v5472, 0.7978846
      %v5505 = vmul.f32 %v5473, 0.7978846
      %v5506 = vtanh.pop %v5474
      %v5507 = vtanh.pop %v5475
      %v5508 = vtanh.pop %v5476
      %v5509 = vtanh.pop %v5477
      %v5510 = vtanh.pop %v5478
      %v5511 = vtanh.pop %v5479
      %v5512 = vtanh.pop %v5480
      %v5513 = vtanh.pop %v5481
      %v5514 = vtanh.pop %v5482
      %v5515 = vtanh.pop %v5483
      %v5516 = vtanh.pop %v5484
      %v5517 = vtanh.pop %v5485
      %v5518 = vtanh.pop %v5486
      %v5519 = vtanh.pop %v5487
      %v5520 = vtanh.pop %v5488
      %v5521 = vtanh.pop %v5489
      %v5522 = vtanh.pop %v5490
      %v5523 = vtanh.pop %v5491
      %v5524 = vtanh.pop %v5492
      %v5525 = vtanh.pop %v5493
      %v5526 = vtanh.pop %v5494
      %v5527 = vtanh.pop %v5495
      %v5528 = vtanh.pop %v5496
      %v5529 = vtanh.pop %v5497
      %v5530 = vtanh.pop %v5498
      %v5531 = vtanh.pop %v5499
      %v5532 = vtanh.pop %v5500
      %v5533 = vtanh.pop %v5501
      %v5534 = vtanh.pop %v5502
      %v5535 = vtanh.pop %v5503
      %v5536 = vtanh.pop %v5504
      %v5537 = vtanh.pop %v5505
      %v5538 = vadd.f32 %v5506, 1.0
      %v5539 = vadd.f32 %v5507, 1.0
      %v5540 = vadd.f32 %v5508, 1.0
      %v5541 = vadd.f32 %v5509, 1.0
      %v5542 = vadd.f32 %v5510, 1.0
      %v5543 = vadd.f32 %v5511, 1.0
      %v5544 = vadd.f32 %v5512, 1.0
      %v5545 = vadd.f32 %v5513, 1.0
      %v5546 = vadd.f32 %v5514, 1.0
      %v5547 = vadd.f32 %v5515, 1.0
      %v5548 = vadd.f32 %v5516, 1.0
      %v5549 = vadd.f32 %v5517, 1.0
      %v5550 = vadd.f32 %v5518, 1.0
      %v5551 = vadd.f32 %v5519, 1.0
      %v5552 = vadd.f32 %v5520, 1.0
      %v5553 = vadd.f32 %v5521, 1.0
      %v5554 = vadd.f32 %v5522, 1.0
      %v5555 = vadd.f32 %v5523, 1.0
      %v5556 = vadd.f32 %v5524, 1.0
      %v5557 = vadd.f32 %v5525, 1.0
      %v5558 = vadd.f32 %v5526, 1.0
      %v5559 = vadd.f32 %v5527, 1.0
      %v5560 = vadd.f32 %v5528, 1.0
      %v5561 = vadd.f32 %v5529, 1.0
      %v5562 = vadd.f32 %v5530, 1.0
      %v5563 = vadd.f32 %v5531, 1.0
      %v5564 = vadd.f32 %v5532, 1.0
      %v5565 = vadd.f32 %v5533, 1.0
      %v5566 = vadd.f32 %v5534, 1.0
      %v5567 = vadd.f32 %v5535, 1.0
      %v5568 = vadd.f32 %v5536, 1.0
      %v5569 = vadd.f32 %v5537, 1.0
      %v5570 = vmul.f32 %v5538, 0.5
      %v5571 = vmul.f32 %v5539, 0.5
      %v5572 = vmul.f32 %v5540, 0.5
      %v5573 = vmul.f32 %v5541, 0.5
      %v5574 = vmul.f32 %v5542, 0.5
      %v5575 = vmul.f32 %v5543, 0.5
      %v5576 = vmul.f32 %v5544, 0.5
      %v5577 = vmul.f32 %v5545, 0.5
      %v5578 = vmul.f32 %v5546, 0.5
      %v5579 = vmul.f32 %v5547, 0.5
      %v5580 = vmul.f32 %v5548, 0.5
      %v5581 = vmul.f32 %v5549, 0.5
      %v5582 = vmul.f32 %v5550, 0.5
      %v5583 = vmul.f32 %v5551, 0.5
      %v5584 = vmul.f32 %v5552, 0.5
      %v5585 = vmul.f32 %v5553, 0.5
      %v5586 = vmul.f32 %v5554, 0.5
      %v5587 = vmul.f32 %v5555, 0.5
      %v5588 = vmul.f32 %v5556, 0.5
      %v5589 = vmul.f32 %v5557, 0.5
      %v5590 = vmul.f32 %v5558, 0.5
      %v5591 = vmul.f32 %v5559, 0.5
      %v5592 = vmul.f32 %v5560, 0.5
      %v5593 = vmul.f32 %v5561, 0.5
      %v5594 = vmul.f32 %v5562, 0.5
      %v5595 = vmul.f32 %v5563, 0.5
      %v5596 = vmul.f32 %v5564, 0.5
      %v5597 = vmul.f32 %v5565, 0.5
      %v5598 = vmul.f32 %v5566, 0.5
      %v5599 = vmul.f32 %v5567, 0.5
      %v5600 = vmul.f32 %v5568, 0.5
      %v5601 = vmul.f32 %v5569, 0.5
      %v5602 = vmul.f32 %v5220, %v5570
      %v5603 = vmul.f32 %v5223, %v5571
      %v5604 = vmul.f32 %v5228, %v5572
      %v5605 = vmul.f32 %v5231, %v5573
      %v5606 = vmul.f32 %v5236, %v5574
      %v5607 = vmul.f32 %v5239, %v5575
      %v5608 = vmul.f32 %v5244, %v5576
      %v5609 = vmul.f32 %v5247, %v5577
      %v5610 = vmul.f32 %v5252, %v5578
      %v5611 = vmul.f32 %v5255, %v5579
      %v5612 = vmul.f32 %v5260, %v5580
      %v5613 = vmul.f32 %v5263, %v5581
      %v5614 = vmul.f32 %v5268, %v5582
      %v5615 = vmul.f32 %v5271, %v5583
      %v5616 = vmul.f32 %v5276, %v5584
      %v5617 = vmul.f32 %v5279, %v5585
      %v5618 = vmul.f32 %v5284, %v5586
      %v5619 = vmul.f32 %v5287, %v5587
      %v5620 = vmul.f32 %v5292, %v5588
      %v5621 = vmul.f32 %v5295, %v5589
      %v5622 = vmul.f32 %v5300, %v5590
      %v5623 = vmul.f32 %v5303, %v5591
      %v5624 = vmul.f32 %v5308, %v5592
      %v5625 = vmul.f32 %v5311, %v5593
      %v5626 = vmul.f32 %v5316, %v5594
      %v5627 = vmul.f32 %v5319, %v5595
      %v5628 = vmul.f32 %v5324, %v5596
      %v5629 = vmul.f32 %v5327, %v5597
      %v5630 = vmul.f32 %v5332, %v5598
      %v5631 = vmul.f32 %v5335, %v5599
      %v5632 = vmul.f32 %v5340, %v5600
      %v5633 = vmul.f32 %v5343, %v5601
      %v5634 = vpack.c.bf16 %v5603, %v5602
      %v5635 = vpack.c.bf16 %v5605, %v5604
      %v5636 = vpack.c.bf16 %v5607, %v5606
      %v5637 = vpack.c.bf16 %v5609, %v5608
      %v5638 = vpack.c.bf16 %v5611, %v5610
      %v5639 = vpack.c.bf16 %v5613, %v5612
      %v5640 = vpack.c.bf16 %v5615, %v5614
      %v5641 = vpack.c.bf16 %v5617, %v5616
      %v5642 = vpack.c.bf16 %v5619, %v5618
      %v5643 = vpack.c.bf16 %v5621, %v5620
      %v5644 = vpack.c.bf16 %v5623, %v5622
      %v5645 = vpack.c.bf16 %v5625, %v5624
      %v5646 = vpack.c.bf16 %v5627, %v5626
      %v5647 = vpack.c.bf16 %v5629, %v5628
      %v5648 = vpack.c.bf16 %v5631, %v5630
      %v5649 = vpack.c.bf16 %v5633, %v5632
      %v5650 = vld [vmem:[%s16] sm:$0xf]
      %v5651 = vld [vmem:[%s16 + $0x4] sm:$0xf]
      %v5652 = vld [vmem:[%s16 + $0x8] sm:$0xf]
      %v5653 = vld [vmem:[%s16 + $0xc] sm:$0xf]
      %v5654 = vld [vmem:[%s16 + $0x10] sm:$0xf]
      %v5655 = vld [vmem:[%s16 + $0x14] sm:$0xf]
      %v5656 = vld [vmem:[%s16 + $0x18] sm:$0xf]
      %v5657 = vld [vmem:[%s16 + $0x1c] sm:$0xf]
      %v5658 = vld [vmem:[%s16 + $0x20] sm:$0xf]
      %v5659 = vld [vmem:[%s16 + $0x24] sm:$0xf]
      %v5660 = vld [vmem:[%s16 + $0x28] sm:$0xf]
      %v5661 = vld [vmem:[%s16 + $0x2c] sm:$0xf]
      %v5662 = vld [vmem:[%s16 + $0x30] sm:$0xf]
      %v5663 = vld [vmem:[%s16 + $0x34] sm:$0xf]
      %v5664 = vld [vmem:[%s16 + $0x38] sm:$0xf]
      %v5665 = vld [vmem:[%s16 + $0x3c] sm:$0xf]
      %v5666 = vld [vmem:[%s17] sm:$0x1]
      %v5668 = vlaneseq
      %v5669 = vshrl.u32 %v5668, 7
      %v5670 = vsub.s32 0, %v5669
      %v5671 = vrot.slane %v5666, %v5670
      %v5689 = vunpack.c.l.b16 %v5650
      %v5690 = vunpack.c.l.b16 %v5651
      %v5691 = vunpack.c.l.b16 %v5652
      %v5692 = vunpack.c.l.b16 %v5653
      %v5693 = vunpack.c.l.b16 %v5654
      %v5694 = vunpack.c.l.b16 %v5655
      %v5695 = vunpack.c.l.b16 %v5656
      %v5696 = vunpack.c.l.b16 %v5657
      %v5697 = vunpack.c.l.b16 %v5658
      %v5698 = vunpack.c.l.b16 %v5659
      %v5699 = vunpack.c.l.b16 %v5660
      %v5700 = vunpack.c.l.b16 %v5661
      %v5701 = vunpack.c.l.b16 %v5662
      %v5702 = vunpack.c.l.b16 %v5663
      %v5703 = vunpack.c.l.b16 %v5664
      %v5704 = vunpack.c.l.b16 %v5665
      %v5705 = vpack.c.b16 %v5690, %v5689
      %v5706 = vpack.c.b16 %v5692, %v5691
      %v5707 = vpack.c.b16 %v5694, %v5693
      %v5708 = vpack.c.b16 %v5696, %v5695
      %v5709 = vpack.c.b16 %v5698, %v5697
      %v5710 = vpack.c.b16 %v5700, %v5699
      %v5711 = vpack.c.b16 %v5702, %v5701
      %v5712 = vpack.c.b16 %v5704, %v5703
      %5721 = vmatprep.subr.bf16.mxu0 0
      %5722 = vmatpush1.bf16.msra.mxu0 %v5712
      %5723 = vmatprep.subr.bf16.mxu0 0
      %5724 = vmatpush1.bf16.msra.mxu0 %v5711
      %5725 = vmatprep.subr.bf16.mxu0 0
      %5726 = vmatpush1.bf16.msra.mxu0 %v5710
      %5727 = vmatprep.subr.bf16.mxu0 0
      %5728 = vmatpush1.bf16.msra.mxu0 %v5709
      %5729 = vmatprep.subr.bf16.mxu0 0
      %5730 = vmatpush1.bf16.msra.mxu0 %v5708
      %5731 = vmatprep.subr.bf16.mxu0 0
      %5732 = vmatpush1.bf16.msra.mxu0 %v5707
      %5733 = vmatprep.subr.bf16.mxu0 0
      %5734 = vmatpush1.bf16.msra.mxu0 %v5706
      %5735 = vmatprep.subr.bf16.mxu0 0
      %5736 = vmatpush1.bf16.msra.mxu0 %v5705
      %5737 = vmatprep.subr.bf16.mxu0 0
      %5738 = vmatpush2.bf16.msra.mxu0 0
      %5739 = vmatprep.subr.bf16.mxu0 0
      %5740 = vmatpush2.bf16.msra.mxu0 0
      %5741 = vmatprep.subr.bf16.mxu0 0
      %5742 = vmatpush2.bf16.msra.mxu0 0
      %5743 = vmatprep.subr.bf16.mxu0 0
      %5744 = vmatpush2.bf16.msra.mxu0 0
      %5745 = vmatprep.subr.bf16.mxu0 0
      %5746 = vmatpush2.bf16.msra.mxu0 0
      %5747 = vmatprep.subr.bf16.mxu0 0
      %5748 = vmatpush2.bf16.msra.mxu0 0
      %5749 = vmatprep.subr.bf16.mxu0 0
      %5750 = vmatpush2.bf16.msra.mxu0 0
      %5751 = vmatprep.subr.bf16.mxu0 0
      %5752 = vmatpush2.bf16.msra.mxu0 0
      %5753 = vmatprep.mubr.bf16.mxu0 0
      %5754 = vmatmul.mubr.bf16.gmra.mxu0 %v5634
      %v5755 = vpop.f32.mrf.mxu0
      %v5756 = vadd.f32 %v5671, %v5755
      %v5757 = vpop.f32.mrf.mxu0
      %v5758 = vpop.f32.mrf.mxu0
      %v5759 = vadd.f32 %v5671, %v5758
      %v5760 = vpop.f32.mrf.mxu0
      %5761 = vmatprep.mubr.bf16.mxu0 0
      %5762 = vmatmul.mubr.bf16.gmra.mxu0 %v5635
      %v5763 = vpop.f32.mrf.mxu0
      %v5764 = vadd.f32 %v5671, %v5763
      %v5765 = vpop.f32.mrf.mxu0
      %v5766 = vpop.f32.mrf.mxu0
      %v5767 = vadd.f32 %v5671, %v5766
      %v5768 = vpop.f32.mrf.mxu0
      %5769 = vmatprep.mubr.bf16.mxu0 0
      %5770 = vmatmul.mubr.bf16.gmra.mxu0 %v5636
      %v5771 = vpop.f32.mrf.mxu0
      %v5772 = vadd.f32 %v5671, %v5771
      %v5773 = vpop.f32.mrf.mxu0
      %v5774 = vpop.f32.mrf.mxu0
      %v5775 = vadd.f32 %v5671, %v5774
      %v5776 = vpop.f32.mrf.mxu0
      %5777 = vmatprep.mubr.bf16.mxu0 0
      %5778 = vmatmul.mubr.bf16.gmra.mxu0 %v5637
      %v5779 = vpop.f32.mrf.mxu0
      %v5780 = vadd.f32 %v5671, %v5779
      %v5781 = vpop.f32.mrf.mxu0
      %v5782 = vpop.f32.mrf.mxu0
      %v5783 = vadd.f32 %v5671, %v5782
      %v5784 = vpop.f32.mrf.mxu0
      %5785 = vmatprep.mubr.bf16.mxu0 0
      %5786 = vmatmul.mubr.bf16.gmra.mxu0 %v5638
      %v5787 = vpop.f32.mrf.mxu0
      %v5788 = vadd.f32 %v5671, %v5787
      %v5789 = vpop.f32.mrf.mxu0
      %v5790 = vpop.f32.mrf.mxu0
      %v5791 = vadd.f32 %v5671, %v5790
      %v5792 = vpop.f32.mrf.mxu0
      %5793 = vmatprep.mubr.bf16.mxu0 0
      %5794 = vmatmul.mubr.bf16.gmra.mxu0 %v5639
      %v5795 = vpop.f32.mrf.mxu0
      %v5796 = vadd.f32 %v5671, %v5795
      %v5797 = vpop.f32.mrf.mxu0
      %v5798 = vpop.f32.mrf.mxu0
      %v5799 = vadd.f32 %v5671, %v5798
      %v5800 = vpop.f32.mrf.mxu0
      %5801 = vmatprep.mubr.bf16.mxu0 0
      %5802 = vmatmul.mubr.bf16.gmra.mxu0 %v5640
      %v5803 = vpop.f32.mrf.mxu0
      %v5804 = vadd.f32 %v5671, %v5803
      %v5805 = vpop.f32.mrf.mxu0
      %v5806 = vpop.f32.mrf.mxu0
      %v5807 = vadd.f32 %v5671, %v5806
      %v5808 = vpop.f32.mrf.mxu0
      %5809 = vmatprep.mubr.bf16.mxu0 0
      %5810 = vmatmul.mubr.bf16.gmra.mxu0 %v5641
      %v5811 = vpop.f32.mrf.mxu0
      %v5812 = vadd.f32 %v5671, %v5811
      %v5813 = vpop.f32.mrf.mxu0
      %v5814 = vpop.f32.mrf.mxu0
      %v5815 = vadd.f32 %v5671, %v5814
      %v5816 = vpop.f32.mrf.mxu0
      %5817 = vmatprep.mubr.bf16.mxu0 0
      %5818 = vmatmul.mubr.bf16.gmra.mxu0 %v5642
      %v5819 = vpop.f32.mrf.mxu0
      %v5820 = vadd.f32 %v5671, %v5819
      %v5821 = vpop.f32.mrf.mxu0
      %v5822 = vpop.f32.mrf.mxu0
      %v5823 = vadd.f32 %v5671, %v5822
      %v5824 = vpop.f32.mrf.mxu0
      %5825 = vmatprep.mubr.bf16.mxu0 0
      %5826 = vmatmul.mubr.bf16.gmra.mxu0 %v5643
      %v5827 = vpop.f32.mrf.mxu0
      %v5828 = vadd.f32 %v5671, %v5827
      %v5829 = vpop.f32.mrf.mxu0
      %v5830 = vpop.f32.mrf.mxu0
      %v5831 = vadd.f32 %v5671, %v5830
      %v5832 = vpop.f32.mrf.mxu0
      %5833 = vmatprep.mubr.bf16.mxu0 0
      %5834 = vmatmul.mubr.bf16.gmra.mxu0 %v5644
      %v5835 = vpop.f32.mrf.mxu0
      %v5836 = vadd.f32 %v5671, %v5835
      %v5837 = vpop.f32.mrf.mxu0
      %v5838 = vpop.f32.mrf.mxu0
      %v5839 = vadd.f32 %v5671, %v5838
      %v5840 = vpop.f32.mrf.mxu0
      %5841 = vmatprep.mubr.bf16.mxu0 0
      %5842 = vmatmul.mubr.bf16.gmra.mxu0 %v5645
      %v5843 = vpop.f32.mrf.mxu0
      %v5844 = vadd.f32 %v5671, %v5843
      %v5845 = vpop.f32.mrf.mxu0
      %v5846 = vpop.f32.mrf.mxu0
      %v5847 = vadd.f32 %v5671, %v5846
      %v5848 = vpop.f32.mrf.mxu0
      %5849 = vmatprep.mubr.bf16.mxu0 0
      %5850 = vmatmul.mubr.bf16.gmra.mxu0 %v5646
      %v5851 = vpop.f32.mrf.mxu0
      %v5852 = vadd.f32 %v5671, %v5851
      %v5853 = vpop.f32.mrf.mxu0
      %v5854 = vpop.f32.mrf.mxu0
      %v5855 = vadd.f32 %v5671, %v5854
      %v5856 = vpop.f32.mrf.mxu0
      %5857 = vmatprep.mubr.bf16.mxu0 0
      %5858 = vmatmul.mubr.bf16.gmra.mxu0 %v5647
      %v5859 = vpop.f32.mrf.mxu0
      %v5860 = vadd.f32 %v5671, %v5859
      %v5861 = vpop.f32.mrf.mxu0
      %v5862 = vpop.f32.mrf.mxu0
      %v5863 = vadd.f32 %v5671, %v5862
      %v5864 = vpop.f32.mrf.mxu0
      %5865 = vmatprep.mubr.bf16.mxu0 0
      %5866 = vmatmul.mubr.bf16.gmra.mxu0 %v5648
      %v5867 = vpop.f32.mrf.mxu0
      %v5868 = vadd.f32 %v5671, %v5867
      %v5869 = vpop.f32.mrf.mxu0
      %v5870 = vpop.f32.mrf.mxu0
      %v5871 = vadd.f32 %v5671, %v5870
      %v5872 = vpop.f32.mrf.mxu0
      %5873 = vmatprep.mubr.bf16.mxu0 0
      %5874 = vmatmul.mubr.bf16.gmra.mxu0 %v5649
      %v5875 = vpop.f32.mrf.mxu0
      %v5876 = vadd.f32 %v5671, %v5875
      %v5877 = vpop.f32.mrf.mxu0
      %v5878 = vpop.f32.mrf.mxu0
      %v5879 = vadd.f32 %v5671, %v5878
      %v5880 = vpop.f32.mrf.mxu0
      %5881 = vdwg.mxu0
      %v5882 = vadd.f32 %v4572, %v5756
      %v5883 = vadd.f32 %v4573, %v5759
      %v5884 = vadd.f32 %v4574, %v5764
      %v5885 = vadd.f32 %v4575, %v5767
      %v5886 = vadd.f32 %v4576, %v5772
      %v5887 = vadd.f32 %v4577, %v5775
      %v5888 = vadd.f32 %v4578, %v5780
      %v5889 = vadd.f32 %v4579, %v5783
      %v5890 = vadd.f32 %v4580, %v5788
      %v5891 = vadd.f32 %v4581, %v5791
      %v5892 = vadd.f32 %v4582, %v5796
      %v5893 = vadd.f32 %v4583, %v5799
      %v5894 = vadd.f32 %v4584, %v5804
      %v5895 = vadd.f32 %v4585, %v5807
      %v5896 = vadd.f32 %v4586, %v5812
      %v5897 = vadd.f32 %v4587, %v5815
      %v5898 = vadd.f32 %v4588, %v5820
      %v5899 = vadd.f32 %v4589, %v5823
      %v5900 = vadd.f32 %v4590, %v5828
      %v5901 = vadd.f32 %v4591, %v5831
      %v5902 = vadd.f32 %v4592, %v5836
      %v5903 = vadd.f32 %v4593, %v5839
      %v5904 = vadd.f32 %v4594, %v5844
      %v5905 = vadd.f32 %v4595, %v5847
      %v5906 = vadd.f32 %v4596, %v5852
      %v5907 = vadd.f32 %v4597, %v5855
      %v5908 = vadd.f32 %v4598, %v5860
      %v5909 = vadd.f32 %v4599, %v5863
      %v5910 = vadd.f32 %v4600, %v5868
      %v5911 = vadd.f32 %v4601, %v5871
      %v5912 = vadd.f32 %v4602, %v5876
      %v5913 = vadd.f32 %v4603, %v5879
      %5914 = vst.msk [vmem:[%s575] sm:$0xff] %vm609, %v5882
      %5915 = vst.msk [vmem:[%s575 + $0x8] sm:$0xff] %vm609, %v5883
      %5916 = vst.msk [vmem:[%s575 + $0x10] sm:$0xff] %vm609, %v5884
      %5917 = vst.msk [vmem:[%s575 + $0x18] sm:$0xff] %vm609, %v5885
      %5918 = vst.msk [vmem:[%s575 + $0x20] sm:$0xff] %vm609, %v5886
      %5919 = vst.msk [vmem:[%s575 + $0x28] sm:$0xff] %vm609, %v5887
      %5920 = vst.msk [vmem:[%s575 + $0x30] sm:$0xff] %vm609, %v5888
      %5921 = vst.msk [vmem:[%s575 + $0x38] sm:$0xff] %vm609, %v5889
      %5922 = vst.msk [vmem:[%s575 + $0x40] sm:$0xff] %vm609, %v5890
      %5923 = vst.msk [vmem:[%s575 + $0x48] sm:$0xff] %vm609, %v5891
      %5924 = vst.msk [vmem:[%s575 + $0x50] sm:$0xff] %vm609, %v5892
      %5925 = vst.msk [vmem:[%s575 + $0x58] sm:$0xff] %vm609, %v5893
      %5926 = vst.msk [vmem:[%s575 + $0x60] sm:$0xff] %vm609, %v5894
      %5927 = vst.msk [vmem:[%s575 + $0x68] sm:$0xff] %vm609, %v5895
      %5928 = vst.msk [vmem:[%s575 + $0x70] sm:$0xff] %vm609, %v5896
      %5929 = vst.msk [vmem:[%s575 + $0x78] sm:$0xff] %vm609, %v5897
      %5930 = vst.msk [vmem:[%s575 + $0x80] sm:$0xff] %vm609, %v5898
      %5931 = vst.msk [vmem:[%s575 + $0x88] sm:$0xff] %vm609, %v5899
      %5932 = vst.msk [vmem:[%s575 + $0x90] sm:$0xff] %vm609, %v5900
      %5933 = vst.msk [vmem:[%s575 + $0x98] sm:$0xff] %vm609, %v5901
      %5934 = vst.msk [vmem:[%s575 + $0xa0] sm:$0xff] %vm609, %v5902
      %5935 = vst.msk [vmem:[%s575 + $0xa8] sm:$0xff] %vm609, %v5903
      %5936 = vst.msk [vmem:[%s575 + $0xb0] sm:$0xff] %vm609, %v5904
      %5937 = vst.msk [vmem:[%s575 + $0xb8] sm:$0xff] %vm609, %v5905
      %5938 = vst.msk [vmem:[%s575 + $0xc0] sm:$0xff] %vm609, %v5906
      %5939 = vst.msk [vmem:[%s575 + $0xc8] sm:$0xff] %vm609, %v5907
      %5940 = vst.msk [vmem:[%s575 + $0xd0] sm:$0xff] %vm609, %v5908
      %5941 = vst.msk [vmem:[%s575 + $0xd8] sm:$0xff] %vm609, %v5909
      %5942 = vst.msk [vmem:[%s575 + $0xe0] sm:$0xff] %vm609, %v5910
      %5943 = vst.msk [vmem:[%s575 + $0xe8] sm:$0xff] %vm609, %v5911
      %5944 = vst.msk [vmem:[%s575 + $0xf0] sm:$0xff] %vm609, %v5912
      %5945 = vst.msk [vmem:[%s575 + $0xf8] sm:$0xff] %vm609, %v5913
      %p5946 = scmp.lt.s32.totalorder %s29, 1
      %s5947 = scalar_select %p5946, %s29, 1
      %s5948 = smul.addr %s5947, 32
      %s5949 = smul.addr %s5948, 8
      %s5950 = scalar_lea.vmem %s18, %s5949
      // Predicated region
      $region93: #{tpu_custom_call.1} parent=91 // pred_check
        %p5951 = pneg %p430
      $region94: #{tpu_custom_call.1} parent=91 // pred_check_branch
        %5953 = sbr.rel (%p5951) target = $region96
      $region95: #{tpu_custom_call.1} parent=91 // pred_region
        _
      $region96: #{tpu_custom_call.1} parent=91 // pred_fallthru
        _
    $region92: #{tpu_custom_call.1} parent=5 // pred_fallthru
      _
    %p5954 = scmp.le.s32.totalorder 2, %s24
    // Predicated region
    $region97: #{tpu_custom_call.1} parent=5 // pred_check
      %p5955 = pneg %p5954
    $region98: #{tpu_custom_call.1} parent=5 // pred_check_branch
      %5957 = sbr.rel (%p5955) target = $region100
    $region99: #{tpu_custom_call.1} parent=5 // pred_region
      %s5958 = ssub.s32 %s24, 2
      // Predicated region
      $region101: #{tpu_custom_call.1} parent=99 // pred_check
        %p5959 = pneg %p436
      $region102: #{tpu_custom_call.1} parent=99 // pred_check_branch
        %5961 = sbr.rel (%p5959) target = $region104
      $region103: #{tpu_custom_call.1} parent=99 // pred_region
        %p5962 = scmp.lt.s32.totalorder %s30, 1
        %s5963 = scalar_select %p5962, %s30, 1
        %s5964 = smul.addr %s5963, 32
        %s5965 = smul.addr %s5964, 8
        %s5966 = scalar_lea.vmem %s18, %s5965
      $region104: #{tpu_custom_call.1} parent=99 // pred_fallthru
        _
    $region100: #{tpu_custom_call.1} parent=5 // pred_fallthru
      _
  $region6: #{tpu_custom_call.1} parent=0 // loop_footer
    %s28 = sadd.s32 1, %s24
  $region7: #{tpu_custom_call.1} parent=0 // loop_footer_branch
    %23 = sbr.rel target = $region3
  $region8: #{tpu_custom_call.1} parent=0 // loop_exit
    _

</llo_original>
